<compile_context>
chip_gen: v5e
topology: v5e:2x2
jax: 0.10.0
libtpu: 0.0.40
codegen_flags: <defaults>
</compile_context>

<pallas_src>
import functools

import jax
import jax.numpy as jnp
from jax.experimental import pallas as pl
from jax.experimental.pallas import tpu as pltpu


# ----------------------------------------------------------------------------
# Helpers
# ----------------------------------------------------------------------------
def _row_tile(m, target):
    """Largest divisor of m that is <= target and a multiple of 8 (else m)."""
    if m <= target:
        return m
    t = (min(target, m) // 8) * 8
    while t >= 8 and m % t:
        t -= 8
    return t if (t >= 8 and m % t == 0) else m


def _split_gru_hidden(gp):
    """Split packed PyTorch nn.GRU hidden weights/biases into r/z/n slabs."""
    h = gp["wh"].shape[0]
    wh, bh = gp["wh"], gp["bh"]
    return (wh[:, :h], wh[:, h:2 * h], wh[:, 2 * h:],
            bh[:, :h], bh[:, h:2 * h], bh[:, 2 * h:])


# ----------------------------------------------------------------------------
# Pallas kernels
# ----------------------------------------------------------------------------
def _gru_kernel(x_ref, wi_ref, whr_ref, whz_ref, whn_ref,
                bi_ref, bhr_ref, bhz_ref, bhn_ref,
                o_ref, gir_scr, giz_scr, gin_scr):
    """GRU over time for a tile of B*N rows (PyTorch nn.GRU semantics, h0=0).

    The input gate projection for ALL timesteps is computed with a single
    [T*M, D] @ [D, 3H] matmul before the recurrence; the per-step body only
    does the three small hidden-state matmuls + gate math.
    """
    T, M, D = x_ref.shape
    H = whr_ref.shape[0]

    # ---- hoisted, time-parallel input-gate projection ----
    gi = (jnp.dot(x_ref[...].reshape(T * M, D), wi_ref[...],
                  preferred_element_type=jnp.float32)
          + bi_ref[...]).reshape(T, M, 3 * H)
    gir_scr[...] = gi[..., :H]          # lane-aligned r/z/n slabs for the loop
    giz_scr[...] = gi[..., H:2 * H]
    gin_scr[...] = gi[..., 2 * H:]

    whr = whr_ref[...]
    whz = whz_ref[...]
    whn = whn_ref[...]
    bhr = bhr_ref[...]
    bhz = bhz_ref[...]
    bhn = bhn_ref[...]

    # ---- serial recurrence (statically unrolled; tiny body after the hoist) ----
    h = jnp.zeros((M, H), jnp.float32)
    for t in range(T):
        gr = jnp.dot(h, whr, preferred_element_type=jnp.float32) + bhr
        gz = jnp.dot(h, whz, preferred_element_type=jnp.float32) + bhz
        gn = jnp.dot(h, whn, preferred_element_type=jnp.float32) + bhn
        r = jax.nn.sigmoid(gir_scr[t] + gr)
        z = jax.nn.sigmoid(giz_scr[t] + gz)
        n = jnp.tanh(gin_scr[t] + r * gn)
        h = (1.0 - z) * n + z * h
        o_ref[t] = h


def gru_seq_pallas(x_tmd, gp, row_tile=256):
    """x: [T, M, D] (t-major, rows = B*N, PyTorch row order b*N+n) -> [T, M, H]."""
    T, M, D = x_tmd.shape
    H = gp["wh"].shape[0]
    whr, whz, whn, bhr, bhz, bhn = _split_gru_hidden(gp)
    tm = _row_tile(M, row_tile)

    def rep(shape):
        n = len(shape)
        return pl.BlockSpec(shape, lambda i: (0,) * n)

    return pl.pallas_call(
        _gru_kernel,
        out_shape=jax.ShapeDtypeStruct((T, M, H), jnp.float32),
        grid=(M // tm,),
        in_specs=[pl.BlockSpec((T, tm, D), lambda i: (0, i, 0)),
                  rep((D, 3 * H)),
                  rep((H, H)), rep((H, H)), rep((H, H)),
                  rep((1, 3 * H)),
                  rep((1, H)), rep((1, H)), rep((1, H))],
        out_specs=pl.BlockSpec((T, tm, H), lambda i: (0, i, 0)),
        scratch_shapes=[pltpu.VMEM((T, tm, H), jnp.float32)] * 3,
        compiler_params=pltpu.CompilerParams(dimension_semantics=("parallel",)),
    )(x_tmd, gp["wi"], whr, whz, whn, gp["bi"], bhr, bhz, bhn)


def _ddg_kernel(g_ref, v_ref, emb_ref, wp_ref, bias_ref,
                dw1_ref, dw2_ref, db_ref,
                wi_ref, whr_ref, whz_ref, whn_ref,
                bi_ref, bhr_ref, bhz_ref, bhn_ref,
                o_ref, gir_scr, giz_scr, gin_scr, *, num_nodes):
    """Dynamic dependency + fused 1x1 diff conv + gru2 (whole batch at once).

    Pre-pass (time/batch parallel, all T*B rows):
        s2 = relu(V V^T), xg = (I + s2) @ H,
        Z = xg @ WPflat ([R, E*R]) -> per-node projection via emb-weighted sum,
        g2 = H @ W1 + diff @ W2 + b (1x1 conv), gi2 = g2 @ Wi + bi.
    Serial part: only the gru2 hidden-state matmuls; outputs the last state.
    """
    T, BN, R = g_ref.shape
    N = num_nodes
    B = BN // N
    K = T * B
    E = emb_ref.shape[1]

    g = g_ref[...]                        # [T, BN, R]
    v = v_ref[...]                        # [T, BN, E]
    emb = emb_ref[...]                    # [N, E]

    # ---- time/batch-parallel pre-pass ----
    g_k = g.reshape(K, N, R)              # rows (t*B + b, n)
    v_k = v.reshape(K, N, E)
    s2 = jnp.maximum(jnp.einsum("kne,kme->knm", v_k, v_k,
                                preferred_element_type=jnp.float32), 0.0)
    xg = g_k + jnp.einsum("knm,kmr->knr", s2, g_k,
                          preferred_element_type=jnp.float32)
    # per-node projection collapsed into one [K*N, R] @ [R, E*R] matmul
    z = jnp.dot(xg.reshape(K * N, R), wp_ref[...],
                preferred_element_type=jnp.float32).reshape(K, N, E * R)
    diff = emb[None, :, 0:1] * z[:, :, :R]
    for d in range(1, E):                 # E static iters, outside the time loop
        diff = diff + emb[None, :, d:d + 1] * z[:, :, d * R:(d + 1) * R]
    diff = diff + bias_ref[...][None]
    # fused 1x1 "diff" conv (2R -> R)
    # TODO(synk): nn.Dropout(p=0.1) on the conv output treated as eval-mode identity.
    g2 = (jnp.dot(g.reshape(K * N, R), dw1_ref[...],
                  preferred_element_type=jnp.float32)
          + jnp.dot(diff.reshape(K * N, R), dw2_ref[...],
                    preferred_element_type=jnp.float32)
          + db_ref[...])
    # hoisted gru2 input-gate projection for all timesteps
    gi = (jnp.dot(g2, wi_ref[...], preferred_element_type=jnp.float32)
          + bi_ref[...]).reshape(T, BN, 3 * R)
    gir_scr[...] = gi[..., :R]
    giz_scr[...] = gi[..., R:2 * R]
    gin_scr[...] = gi[..., 2 * R:]

    whr = whr_ref[...]
    whz = whz_ref[...]
    whn = whn_ref[...]
    bhr = bhr_ref[...]
    bhz = bhz_ref[...]
    bhn = bhn_ref[...]

    # ---- serial gru2 recurrence; only the final state is consumed downstream ----
    h = jnp.zeros((BN, R), jnp.float32)
    for t in range(T):
        gr = jnp.dot(h, whr, preferred_element_type=jnp.float32) + bhr
        gz = jnp.dot(h, whz, preferred_element_type=jnp.float32) + bhz
        gn = jnp.dot(h, whn, preferred_element_type=jnp.float32) + bhn
        r = jax.nn.sigmoid(gir_scr[t] + gr)
        zt = jax.nn.sigmoid(giz_scr[t] + gz)
        n = jnp.tanh(gin_scr[t] + r * gn)
        h = (1.0 - zt) * n + zt * h
    o_ref[...] = h


def ddg_pallas(g_t, v_t, node_static, wpflat, bias, dw1, dw2, db, g2p, num_nodes):
    """g_t/v_t: [T, B*N, {R,E}] (t-major) -> final gru2 state [B*N, R]."""
    T, BN, R = g_t.shape
    E = node_static.shape[1]
    whr, whz, whn, bhr, bhz, bhn = _split_gru_hidden(g2p)

    def rep(shape):
        n = len(shape)
        return pl.BlockSpec(shape, lambda i: (0,) * n)

    kernel = functools.partial(_ddg_kernel, num_nodes=num_nodes)
    # NOTE: single invocation -- whole batch fits VMEM at these sizes; at
    # production scale tile B (and/or T) via the grid instead.
    return pl.pallas_call(
        kernel,
        out_shape=jax.ShapeDtypeStruct((BN, R), jnp.float32),
        grid=(1,),
        in_specs=[rep((T, BN, R)), rep((T, BN, E)),
                  rep((num_nodes, E)), rep((R, E * R)), rep((num_nodes, R)),
                  rep((R, R)), rep((R, R)), rep((1, R)),
                  rep((R, 3 * R)), rep((R, R)), rep((R, R)), rep((R, R)),
                  rep((1, 3 * R)), rep((1, R)), rep((1, R)), rep((1, R))],
        out_specs=rep((BN, R)),
        scratch_shapes=[pltpu.VMEM((T, BN, R), jnp.float32)] * 3,
        compiler_params=pltpu.CompilerParams(dimension_semantics=("arbitrary",)),
    )(g_t, v_t, node_static, wpflat, bias, dw1, dw2, db,
      g2p["wi"], whr, whz, whn, g2p["bi"], bhr, bhz, bhn)


# ----------------------------------------------------------------------------
# Plain-JAX glue (tiny MLPs, embeddings, heads, reshapes)
# ----------------------------------------------------------------------------
def mlp3(x, p):
    h = jax.nn.sigmoid(x @ p["W1"] + p["b1"])
    h = jax.nn.sigmoid(h @ p["W2"] + p["b2"])
    return h @ p["W3"] + p["b3"]


def hsdgnn_block(source_x, node_emb_t, node_static, p):
    """source_x: [B,T,N,D_in]; node_emb_t: [T,B,N,E] -> last-step state [B,N,R]."""
    B, T, N, _ = source_x.shape
    E = node_static.shape[1]
    R = p["gru1"]["wh"].shape[0]

    # feature-level dynamic graph (degenerate dims -> plain JAX)
    node_embed = mlp3(source_x[..., None], p["x_embedding"])            # [B,T,N,D,E]
    s_node2 = jnp.maximum(
        jnp.einsum("btnde,btnfe->btndf", node_embed, node_embed), 0.0)  # [B,T,N,D,D]
    x2 = jnp.einsum("btnji,btni->btnj", s_node2, source_x)
    inp = source_x + x2                                                 # supports_node1 = I

    g1_in = mlp3(inp, p["fc1"])                                         # [B,T,N,E]
    x_t = jnp.transpose(g1_in, (1, 0, 2, 3)).reshape(T, B * N, E)       # t-major rows b*N+n
    out1_t = gru_seq_pallas(x_t, p["gru1"])                             # [T,B*N,R]

    # node-level dynamic dependency inputs
    filt = mlp3(out1_t, p["fc2"])                                       # [T,B*N,E]
    nodevec = jnp.tanh(node_emb_t.reshape(T, B * N, E) * filt)          # [T,B*N,E]
    bias = node_static @ p["bias_pool"]                                 # [N,R]
    wpflat = jnp.transpose(p["weights_pool"], (1, 0, 2)).reshape(R, E * R)

    h_last = ddg_pallas(out1_t, nodevec, node_static, wpflat, bias,
                        p["diff_W1"], p["diff_W2"], p["diff_b"], p["gru2"],
                        num_nodes=N)                                    # [B*N,R]
    return h_last.reshape(B, N, R)


def hsdgnn_forward(params, source, steps_per_day):
    B, T, N, _ = source.shape
    R = params["enc1"]["gru1"]["wh"].shape[0]

    source1 = source[..., :-2]                                          # [B,T,N,D_in]
    tid_idx = (source[..., -2] * steps_per_day).astype(jnp.int32)
    diw_idx = source[..., -1].astype(jnp.int32)

    node_embedding = params["node_embeddings"] * params["T_i_D_emb"][tid_idx]
    node_embedding = node_embedding * params["D_i_W_emb"][diw_idx]      # [B,T,N,E]
    node_emb_t = jnp.transpose(node_embedding, (1, 0, 2, 3))            # [T,B,N,E]
    node_static = params["node_embeddings"]

    def heads(o_last, W_main, b_main, W_aux=None, b_aux=None):
        # end conv: Conv2d(1, C, kernel=(1, R)) on [B,1,N,R] == linear over R.
        # Sub-microsecond matmuls -> plain jnp (pallas launches were overhead).
        flat = o_last.reshape(B * N, R)
        main = (flat @ W_main + b_main).reshape(B, N, -1)
        main = main.transpose(0, 2, 1)[..., None]                       # [B,C,N,1]
        if W_aux is None:
            return main, None
        aux = (flat @ W_aux + b_aux).reshape(B, N, -1)
        aux = aux.transpose(0, 2, 1)[..., None]                         # [B,lag,N,1]
        return main, aux

    # --- stage 1 ---  (dropout1 -> eval-mode identity)
    h1 = hsdgnn_block(source1, node_emb_t, node_static, params["enc1"])
    output1, source1_b = heads(h1, params["end_conv1_W"], params["end_conv1_bias"],
                               params["end_conv1b_W"], params["end_conv1b_bias"])
    source2 = source1 - source1_b           # broadcast over D_in; assumes lag == T

    # --- stage 2 ---
    h2 = hsdgnn_block(source2, node_emb_t, node_static, params["enc2"])
    output2, source2_b = heads(h2, params["end_conv2_W"], params["end_conv2_bias"],
                               params["end_conv2b_W"], params["end_conv2b_bias"])
    source3 = source2 - source2_b

    # --- stage 3 ---
    h3 = hsdgnn_block(source3, node_emb_t, node_static, params["enc3"])
    output3, _ = heads(h3, params["end_conv3_W"], params["end_conv3_bias"])

    return output1 + output2 + output3                                  # [B, horizon*out_dim, N, 1]


# ----------------------------------------------------------------------------
# Deterministic parameter init
# ----------------------------------------------------------------------------
def _nrm(key, shape, scale=0.1):
    return scale * jax.random.normal(key, shape, jnp.float32)


def init_mlp(key, d_in, d_emb):
    k = jax.random.split(key, 6)
    return dict(W1=_nrm(k[0], (d_in, 16)), b1=_nrm(k[1], (16,)),
                W2=_nrm(k[2], (16, 2)), b2=_nrm(k[3], (2,)),
                W3=_nrm(k[4], (2, d_emb)), b3=_nrm(k[5], (d_emb,)))


def init_gru(key, d_in, h):
    # Packed PyTorch nn.GRU layout: wi = weight_ih_l0.T (gate order r|z|n along
    # the 3H axis), wh = weight_hh_l0.T, bi = bias_ih_l0, bh = bias_hh_l0.
    k = jax.random.split(key, 4)
    return dict(wi=_nrm(k[0], (d_in, 3 * h)), wh=_nrm(k[1], (h, 3 * h)),
                bi=_nrm(k[2], (1, 3 * h)), bh=_nrm(k[3], (1, 3 * h)))


def init_block(key, num_nodes, d_in, r, e):
    k = jax.random.split(key, 10)
    return dict(
        x_embedding=init_mlp(k[0], 1, e),
        fc1=init_mlp(k[1], d_in, e),
        fc2=init_mlp(k[2], r, e),
        gru1=init_gru(k[3], e, r),
        gru2=init_gru(k[4], r, r),
        weights_pool=_nrm(k[5], (e, r, r)),
        bias_pool=_nrm(k[6], (e, r)),
        # diff conv split: diff_W1 = conv_w[:, :r, 0, 0].T, diff_W2 = conv_w[:, r:, 0, 0].T
        diff_W1=_nrm(k[7], (r, r)),
        diff_W2=_nrm(k[8], (r, r)),
        diff_b=_nrm(k[9], (1, r)))


def init_params(key, num_nodes, d_in, r, e, lag, horizon, out_dim, spd):
    k = jax.random.split(key, 16)
    C = horizon * out_dim
    return dict(
        node_embeddings=_nrm(k[0], (num_nodes, e), scale=0.5),
        T_i_D_emb=_nrm(k[1], (spd, e), scale=0.5),
        D_i_W_emb=_nrm(k[2], (7, e), scale=0.5),
        enc1=init_block(k[3], num_nodes, d_in, r, e),
        enc2=init_block(k[4], num_nodes, d_in, r, e),
        enc3=init_block(k[5], num_nodes, d_in, r, e),
        end_conv1_W=_nrm(k[6], (r, C)), end_conv1_bias=_nrm(k[7], (C,)),
        end_conv1b_W=_nrm(k[8], (r, lag)), end_conv1b_bias=_nrm(k[9], (lag,)),
        end_conv2_W=_nrm(k[10], (r, C)), end_conv2_bias=_nrm(k[11], (C,)),
        end_conv2b_W=_nrm(k[12], (r, lag)), end_conv2b_bias=_nrm(k[13], (lag,)),
        end_conv3_W=_nrm(k[14], (r, C)), end_conv3_bias=_nrm(k[15], (C,)))


# ----------------------------------------------------------------------------
if __name__ == "__main__":
    # small, module-consistent shapes
    B, LAG, N, D_IN = 2, 8, 8, 2
    EMBED, RNN = 8, 16
    HORIZON, OUT_DIM, STEPS_PER_DAY = 3, 1, 12

    key = jax.random.PRNGKey(0)
    kd, kt, kw, kp = jax.random.split(key, 4)

    data = jax.random.normal(kd, (B, LAG, N, D_IN), jnp.float32)
    t_i_d = jax.random.uniform(kt, (B, LAG, N, 1), jnp.float32, 0.0, 0.999)
    d_i_w = jax.random.randint(kw, (B, LAG, N, 1), 0, 7).astype(jnp.float32)
    source = jnp.concatenate([data, t_i_d, d_i_w], axis=-1)   # [B, T, N, D_in+2]

    params = init_params(kp, N, D_IN, RNN, EMBED, LAG, HORIZON, OUT_DIM,
                         STEPS_PER_DAY)

    fwd = jax.jit(functools.partial(hsdgnn_forward, steps_per_day=STEPS_PER_DAY))
    out = fwd(params, source)
    out = jax.block_until_ready(out)

    assert out.shape == (B, HORIZON * OUT_DIM, N, 1)
    assert bool(jnp.all(jnp.isfinite(out)))
    print("KERNEL_OK")
</pallas_src>

<mosaic_0001>
module attributes {stable_mosaic.version = 11 : i64} {
  func.func @_gru_kernel(%arg0: i32, %arg1: memref<8x16x8xf32, #tpu.memory_space<vmem>>, %arg2: memref<8x48xf32, #tpu.memory_space<vmem>>, %arg3: memref<16x16xf32, #tpu.memory_space<vmem>>, %arg4: memref<16x16xf32, #tpu.memory_space<vmem>>, %arg5: memref<16x16xf32, #tpu.memory_space<vmem>>, %arg6: memref<1x48xf32, #tpu.memory_space<vmem>>, %arg7: memref<1x16xf32, #tpu.memory_space<vmem>>, %arg8: memref<1x16xf32, #tpu.memory_space<vmem>>, %arg9: memref<1x16xf32, #tpu.memory_space<vmem>>, %arg10: memref<8x16x16xf32, #tpu.memory_space<vmem>>, %arg11: memref<8x16x16xf32, #tpu.memory_space<vmem>>, %arg12: memref<8x16x16xf32, #tpu.memory_space<vmem>>, %arg13: memref<8x16x16xf32, #tpu.memory_space<vmem>>) attributes {dimension_semantics = [#tpu.dimension_semantics<parallel>], iteration_bounds = array<i64: 1>, scalar_prefetch = 0 : i64, scratch_operands = 3 : i64, tpu.core_type = #tpu.core_type<tc>, window_params = [{transform_indices = @transform_0, window_bounds = array<i64: 8, 16, 8>}, {pipeline_mode = #tpu.pipeline_mode<synchronous>, transform_indices = @transform_1, window_bounds = array<i64: 8, 48>}, {pipeline_mode = #tpu.pipeline_mode<synchronous>, transform_indices = @transform_2, window_bounds = array<i64: 16, 16>}, {pipeline_mode = #tpu.pipeline_mode<synchronous>, transform_indices = @transform_3, window_bounds = array<i64: 16, 16>}, {pipeline_mode = #tpu.pipeline_mode<synchronous>, transform_indices = @transform_4, window_bounds = array<i64: 16, 16>}, {pipeline_mode = #tpu.pipeline_mode<synchronous>, transform_indices = @transform_5, window_bounds = array<i64: 1, 48>}, {pipeline_mode = #tpu.pipeline_mode<synchronous>, transform_indices = @transform_6, window_bounds = array<i64: 1, 16>}, {pipeline_mode = #tpu.pipeline_mode<synchronous>, transform_indices = @transform_7, window_bounds = array<i64: 1, 16>}, {pipeline_mode = #tpu.pipeline_mode<synchronous>, transform_indices = @transform_8, window_bounds = array<i64: 1, 16>}, {transform_indices = @transform_9, window_bounds = array<i64: 8, 16, 16>}]} {
    %c0 = arith.constant 0 : index
    %c0_0 = arith.constant 0 : index
    %c0_1 = arith.constant 0 : index
    %0 = vector.load %arg1[%c0, %c0_0, %c0_1] : memref<8x16x8xf32, #tpu.memory_space<vmem>>, vector<8x16x8xf32>
    %1 = vector.shape_cast %0 : vector<8x16x8xf32> to vector<128x8xf32>
    %c0_2 = arith.constant 0 : index
    %c0_3 = arith.constant 0 : index
    %2 = vector.load %arg2[%c0_2, %c0_3] : memref<8x48xf32, #tpu.memory_space<vmem>>, vector<8x48xf32>
    %cst = arith.constant dense<0.000000e+00> : vector<128x48xf32>
    %3 = tpu.matmul %1, %2, %cst {dimension_numbers = #tpu.dot_dimension_numbers<[1], [0], [0], [1], [0, 0, 1, 1], [], []>} : vector<128x8xf32>, vector<8x48xf32>, vector<128x48xf32> -> vector<128x48xf32>
    %c0_4 = arith.constant 0 : index
    %c0_5 = arith.constant 0 : index
    %4 = vector.load %arg6[%c0_4, %c0_5] : memref<1x48xf32, #tpu.memory_space<vmem>>, vector<1x48xf32>
    %5 = vector.broadcast %4 : vector<1x48xf32> to vector<128x48xf32>
    %6 = arith.addf %3, %5 : vector<128x48xf32>
    %7 = vector.shape_cast %6 : vector<128x48xf32> to vector<8x16x48xf32>
    %8 = vector.extract_strided_slice %7 {offsets = [0, 0, 0], sizes = [8, 16, 16], strides = [1, 1, 1]} : vector<8x16x48xf32> to vector<8x16x16xf32>
    %c0_6 = arith.constant 0 : index
    %c0_7 = arith.constant 0 : index
    %c0_8 = arith.constant 0 : index
    %9 = vector.load %arg11[%c0_6, %c0_7, %c0_8] : memref<8x16x16xf32, #tpu.memory_space<vmem>>, vector<8x16x16xf32>
    tpu.vector_store %arg11[%c0_6, %c0_7, %c0_8], %8 {strides = array<i32>} : memref<8x16x16xf32, #tpu.memory_space<vmem>>, vector<8x16x16xf32>,
    %10 = vector.extract_strided_slice %7 {offsets = [0, 0, 16], sizes = [8, 16, 16], strides = [1, 1, 1]} : vector<8x16x48xf32> to vector<8x16x16xf32>
    %c0_9 = arith.constant 0 : index
    %c0_10 = arith.constant 0 : index
    %c0_11 = arith.constant 0 : index
    %11 = vector.load %arg12[%c0_9, %c0_10, %c0_11] : memref<8x16x16xf32, #tpu.memory_space<vmem>>, vector<8x16x16xf32>
    tpu.vector_store %arg12[%c0_9, %c0_10, %c0_11], %10 {strides = array<i32>} : memref<8x16x16xf32, #tpu.memory_space<vmem>>, vector<8x16x16xf32>,
    %12 = vector.extract_strided_slice %7 {offsets = [0, 0, 32], sizes = [8, 16, 16], strides = [1, 1, 1]} : vector<8x16x48xf32> to vector<8x16x16xf32>
    %c0_12 = arith.constant 0 : index
    %c0_13 = arith.constant 0 : index
    %c0_14 = arith.constant 0 : index
    %13 = vector.load %arg13[%c0_12, %c0_13, %c0_14] : memref<8x16x16xf32, #tpu.memory_space<vmem>>, vector<8x16x16xf32>
    tpu.vector_store %arg13[%c0_12, %c0_13, %c0_14], %12 {strides = array<i32>} : memref<8x16x16xf32, #tpu.memory_space<vmem>>, vector<8x16x16xf32>,
    %c0_15 = arith.constant 0 : index
    %c0_16 = arith.constant 0 : index
    %14 = vector.load %arg3[%c0_15, %c0_16] : memref<16x16xf32, #tpu.memory_space<vmem>>, vector<16x16xf32>
    %c0_17 = arith.constant 0 : index
    %c0_18 = arith.constant 0 : index
    %15 = vector.load %arg4[%c0_17, %c0_18] : memref<16x16xf32, #tpu.memory_space<vmem>>, vector<16x16xf32>
    %c0_19 = arith.constant 0 : index
    %c0_20 = arith.constant 0 : index
    %16 = vector.load %arg5[%c0_19, %c0_20] : memref<16x16xf32, #tpu.memory_space<vmem>>, vector<16x16xf32>
    %c0_21 = arith.constant 0 : index
    %c0_22 = arith.constant 0 : index
    %17 = vector.load %arg7[%c0_21, %c0_22] : memref<1x16xf32, #tpu.memory_space<vmem>>, vector<1x16xf32>
    %c0_23 = arith.constant 0 : index
    %c0_24 = arith.constant 0 : index
    %18 = vector.load %arg8[%c0_23, %c0_24] : memref<1x16xf32, #tpu.memory_space<vmem>>, vector<1x16xf32>
    %c0_25 = arith.constant 0 : index
    %c0_26 = arith.constant 0 : index
    %19 = vector.load %arg9[%c0_25, %c0_26] : memref<1x16xf32, #tpu.memory_space<vmem>>, vector<1x16xf32>
    %cst_27 = arith.constant 0.000000e+00 : f32
    %20 = vector.broadcast %cst_27 : f32 to vector<16x16xf32>
    %cst_28 = arith.constant dense<0.000000e+00> : vector<16x16xf32>
    %21 = tpu.matmul %20, %14, %cst_28 {dimension_numbers = #tpu.dot_dimension_numbers<[1], [0], [0], [1], [0, 0, 1, 1], [], []>} : vector<16x16xf32>, vector<16x16xf32>, vector<16x16xf32> -> vector<16x16xf32>
    %22 = vector.broadcast %17 : vector<1x16xf32> to vector<16x16xf32>
    %23 = arith.addf %21, %22 : vector<16x16xf32>
    %cst_29 = arith.constant dense<0.000000e+00> : vector<16x16xf32>
    %24 = tpu.matmul %20, %15, %cst_29 {dimension_numbers = #tpu.dot_dimension_numbers<[1], [0], [0], [1], [0, 0, 1, 1], [], []>} : vector<16x16xf32>, vector<16x16xf32>, vector<16x16xf32> -> vector<16x16xf32>
    %25 = vector.broadcast %18 : vector<1x16xf32> to vector<16x16xf32>
    %26 = arith.addf %24, %25 : vector<16x16xf32>
    %cst_30 = arith.constant dense<0.000000e+00> : vector<16x16xf32>
    %27 = tpu.matmul %20, %16, %cst_30 {dimension_numbers = #tpu.dot_dimension_numbers<[1], [0], [0], [1], [0, 0, 1, 1], [], []>} : vector<16x16xf32>, vector<16x16xf32>, vector<16x16xf32> -> vector<16x16xf32>
    %28 = vector.broadcast %19 : vector<1x16xf32> to vector<16x16xf32>
    %29 = arith.addf %27, %28 : vector<16x16xf32>
    %c0_31 = arith.constant 0 : index
    %c0_32 = arith.constant 0 : index
    %c0_33 = arith.constant 0 : index
    %30 = vector.load %arg11[%c0_31, %c0_32, %c0_33] : memref<8x16x16xf32, #tpu.memory_space<vmem>>, vector<1x16x16xf32>
    %31 = vector.shape_cast %30 : vector<1x16x16xf32> to vector<16x16xf32>
    %32 = arith.addf %31, %23 : vector<16x16xf32>
    %33 = arith.negf %32 : vector<16x16xf32>
    %34 = math.exp %33 : vector<16x16xf32>
    %cst_34 = arith.constant 1.000000e+00 : f32
    %35 = vector.broadcast %cst_34 : f32 to vector<16x16xf32>
    %36 = arith.addf %35, %34 : vector<16x16xf32>
    %37 = arith.divf %35, %36 : vector<16x16xf32>
    %c0_35 = arith.constant 0 : index
    %c0_36 = arith.constant 0 : index
    %c0_37 = arith.constant 0 : index
    %38 = vector.load %arg12[%c0_35, %c0_36, %c0_37] : memref<8x16x16xf32, #tpu.memory_space<vmem>>, vector<1x16x16xf32>
    %39 = vector.shape_cast %38 : vector<1x16x16xf32> to vector<16x16xf32>
    %40 = arith.addf %39, %26 : vector<16x16xf32>
    %41 = arith.negf %40 : vector<16x16xf32>
    %42 = math.exp %41 : vector<16x16xf32>
    %cst_38 = arith.constant 1.000000e+00 : f32
    %43 = vector.broadcast %cst_38 : f32 to vector<16x16xf32>
    %44 = arith.addf %43, %42 : vector<16x16xf32>
    %45 = arith.divf %43, %44 : vector<16x16xf32>
    %c0_39 = arith.constant 0 : index
    %c0_40 = arith.constant 0 : index
    %c0_41 = arith.constant 0 : index
    %46 = vector.load %arg13[%c0_39, %c0_40, %c0_41] : memref<8x16x16xf32, #tpu.memory_space<vmem>>, vector<1x16x16xf32>
    %47 = vector.shape_cast %46 : vector<1x16x16xf32> to vector<16x16xf32>
    %48 = arith.mulf %37, %29 : vector<16x16xf32>
    %49 = arith.addf %47, %48 : vector<16x16xf32>
    %50 = math.tanh %49 : vector<16x16xf32>
    %cst_42 = arith.constant 1.000000e+00 : f32
    %51 = vector.broadcast %cst_42 : f32 to vector<16x16xf32>
    %52 = arith.subf %51, %45 : vector<16x16xf32>
    %53 = arith.mulf %52, %50 : vector<16x16xf32>
    %54 = arith.mulf %45, %20 : vector<16x16xf32>
    %55 = arith.addf %53, %54 : vector<16x16xf32>
    %c0_43 = arith.constant 0 : index
    %c0_44 = arith.constant 0 : index
    %c0_45 = arith.constant 0 : index
    %56 = vector.load %arg10[%c0_43, %c0_44, %c0_45] : memref<8x16x16xf32, #tpu.memory_space<vmem>>, vector<1x16x16xf32>
    %57 = vector.shape_cast %56 : vector<1x16x16xf32> to vector<16x16xf32>
    %58 = vector.shape_cast %55 : vector<16x16xf32> to vector<1x16x16xf32>
    tpu.vector_store %arg10[%c0_43, %c0_44, %c0_45], %58 {strides = array<i32>} : memref<8x16x16xf32, #tpu.memory_space<vmem>>, vector<1x16x16xf32>,
    %cst_46 = arith.constant dense<0.000000e+00> : vector<16x16xf32>
    %59 = tpu.matmul %55, %14, %cst_46 {dimension_numbers = #tpu.dot_dimension_numbers<[1], [0], [0], [1], [0, 0, 1, 1], [], []>} : vector<16x16xf32>, vector<16x16xf32>, vector<16x16xf32> -> vector<16x16xf32>
    %60 = vector.broadcast %17 : vector<1x16xf32> to vector<16x16xf32>
    %61 = arith.addf %59, %60 : vector<16x16xf32>
    %cst_47 = arith.constant dense<0.000000e+00> : vector<16x16xf32>
    %62 = tpu.matmul %55, %15, %cst_47 {dimension_numbers = #tpu.dot_dimension_numbers<[1], [0], [0], [1], [0, 0, 1, 1], [], []>} : vector<16x16xf32>, vector<16x16xf32>, vector<16x16xf32> -> vector<16x16xf32>
    %63 = vector.broadcast %18 : vector<1x16xf32> to vector<16x16xf32>
    %64 = arith.addf %62, %63 : vector<16x16xf32>
    %cst_48 = arith.constant dense<0.000000e+00> : vector<16x16xf32>
    %65 = tpu.matmul %55, %16, %cst_48 {dimension_numbers = #tpu.dot_dimension_numbers<[1], [0], [0], [1], [0, 0, 1, 1], [], []>} : vector<16x16xf32>, vector<16x16xf32>, vector<16x16xf32> -> vector<16x16xf32>
    %66 = vector.broadcast %19 : vector<1x16xf32> to vector<16x16xf32>
    %67 = arith.addf %65, %66 : vector<16x16xf32>
    %c1 = arith.constant 1 : index
    %c0_49 = arith.constant 0 : index
    %c0_50 = arith.constant 0 : index
    %68 = vector.load %arg11[%c1, %c0_49, %c0_50] : memref<8x16x16xf32, #tpu.memory_space<vmem>>, vector<1x16x16xf32>
    %69 = vector.shape_cast %68 : vector<1x16x16xf32> to vector<16x16xf32>
    %70 = arith.addf %69, %61 : vector<16x16xf32>
    %71 = arith.negf %70 : vector<16x16xf32>
    %72 = math.exp %71 : vector<16x16xf32>
    %cst_51 = arith.constant 1.000000e+00 : f32
    %73 = vector.broadcast %cst_51 : f32 to vector<16x16xf32>
    %74 = arith.addf %73, %72 : vector<16x16xf32>
    %75 = arith.divf %73, %74 : vector<16x16xf32>
    %c1_52 = arith.constant 1 : index
    %c0_53 = arith.constant 0 : index
    %c0_54 = arith.constant 0 : index
    %76 = vector.load %arg12[%c1_52, %c0_53, %c0_54] : memref<8x16x16xf32, #tpu.memory_space<vmem>>, vector<1x16x16xf32>
    %77 = vector.shape_cast %76 : vector<1x16x16xf32> to vector<16x16xf32>
    %78 = arith.addf %77, %64 : vector<16x16xf32>
    %79 = arith.negf %78 : vector<16x16xf32>
    %80 = math.exp %79 : vector<16x16xf32>
    %cst_55 = arith.constant 1.000000e+00 : f32
    %81 = vector.broadcast %cst_55 : f32 to vector<16x16xf32>
    %82 = arith.addf %81, %80 : vector<16x16xf32>
    %83 = arith.divf %81, %82 : vector<16x16xf32>
    %c1_56 = arith.constant 1 : index
    %c0_57 = arith.constant 0 : index
    %c0_58 = arith.constant 0 : index
    %84 = vector.load %arg13[%c1_56, %c0_57, %c0_58] : memref<8x16x16xf32, #tpu.memory_space<vmem>>, vector<1x16x16xf32>
    %85 = vector.shape_cast %84 : vector<1x16x16xf32> to vector<16x16xf32>
    %86 = arith.mulf %75, %67 : vector<16x16xf32>
    %87 = arith.addf %85, %86 : vector<16x16xf32>
    %88 = math.tanh %87 : vector<16x16xf32>
    %cst_59 = arith.constant 1.000000e+00 : f32
    %89 = vector.broadcast %cst_59 : f32 to vector<16x16xf32>
    %90 = arith.subf %89, %83 : vector<16x16xf32>
    %91 = arith.mulf %90, %88 : vector<16x16xf32>
    %92 = arith.mulf %83, %55 : vector<16x16xf32>
    %93 = arith.addf %91, %92 : vector<16x16xf32>
    %c1_60 = arith.constant 1 : index
    %c0_61 = arith.constant 0 : index
    %c0_62 = arith.constant 0 : index
    %94 = vector.load %arg10[%c1_60, %c0_61, %c0_62] : memref<8x16x16xf32, #tpu.memory_space<vmem>>, vector<1x16x16xf32>
    %95 = vector.shape_cast %94 : vector<1x16x16xf32> to vector<16x16xf32>
    %96 = vector.shape_cast %93 : vector<16x16xf32> to vector<1x16x16xf32>
    tpu.vector_store %arg10[%c1_60, %c0_61, %c0_62], %96 {strides = array<i32>} : memref<8x16x16xf32, #tpu.memory_space<vmem>>, vector<1x16x16xf32>,
    %cst_63 = arith.constant dense<0.000000e+00> : vector<16x16xf32>
    %97 = tpu.matmul %93, %14, %cst_63 {dimension_numbers = #tpu.dot_dimension_numbers<[1], [0], [0], [1], [0, 0, 1, 1], [], []>} : vector<16x16xf32>, vector<16x16xf32>, vector<16x16xf32> -> vector<16x16xf32>
    %98 = vector.broadcast %17 : vector<1x16xf32> to vector<16x16xf32>
    %99 = arith.addf %97, %98 : vector<16x16xf32>
    %cst_64 = arith.constant dense<0.000000e+00> : vector<16x16xf32>
    %100 = tpu.matmul %93, %15, %cst_64 {dimension_numbers = #tpu.dot_dimension_numbers<[1], [0], [0], [1], [0, 0, 1, 1], [], []>} : vector<16x16xf32>, vector<16x16xf32>, vector<16x16xf32> -> vector<16x16xf32>
    %101 = vector.broadcast %18 : vector<1x16xf32> to vector<16x16xf32>
    %102 = arith.addf %100, %101 : vector<16x16xf32>
    %cst_65 = arith.constant dense<0.000000e+00> : vector<16x16xf32>
    %103 = tpu.matmul %93, %16, %cst_65 {dimension_numbers = #tpu.dot_dimension_numbers<[1], [0], [0], [1], [0, 0, 1, 1], [], []>} : vector<16x16xf32>, vector<16x16xf32>, vector<16x16xf32> -> vector<16x16xf32>
    %104 = vector.broadcast %19 : vector<1x16xf32> to vector<16x16xf32>
    %105 = arith.addf %103, %104 : vector<16x16xf32>
    %c2 = arith.constant 2 : index
    %c0_66 = arith.constant 0 : index
    %c0_67 = arith.constant 0 : index
    %106 = vector.load %arg11[%c2, %c0_66, %c0_67] : memref<8x16x16xf32, #tpu.memory_space<vmem>>, vector<1x16x16xf32>
    %107 = vector.shape_cast %106 : vector<1x16x16xf32> to vector<16x16xf32>
    %108 = arith.addf %107, %99 : vector<16x16xf32>
    %109 = arith.negf %108 : vector<16x16xf32>
    %110 = math.exp %109 : vector<16x16xf32>
    %cst_68 = arith.constant 1.000000e+00 : f32
    %111 = vector.broadcast %cst_68 : f32 to vector<16x16xf32>
    %112 = arith.addf %111, %110 : vector<16x16xf32>
    %113 = arith.divf %111, %112 : vector<16x16xf32>
    %c2_69 = arith.constant 2 : index
    %c0_70 = arith.constant 0 : index
    %c0_71 = arith.constant 0 : index
    %114 = vector.load %arg12[%c2_69, %c0_70, %c0_71] : memref<8x16x16xf32, #tpu.memory_space<vmem>>, vector<1x16x16xf32>
    %115 = vector.shape_cast %114 : vector<1x16x16xf32> to vector<16x16xf32>
    %116 = arith.addf %115, %102 : vector<16x16xf32>
    %117 = arith.negf %116 : vector<16x16xf32>
    %118 = math.exp %117 : vector<16x16xf32>
    %cst_72 = arith.constant 1.000000e+00 : f32
    %119 = vector.broadcast %cst_72 : f32 to vector<16x16xf32>
    %120 = arith.addf %119, %118 : vector<16x16xf32>
    %121 = arith.divf %119, %120 : vector<16x16xf32>
    %c2_73 = arith.constant 2 : index
    %c0_74 = arith.constant 0 : index
    %c0_75 = arith.constant 0 : index
    %122 = vector.load %arg13[%c2_73, %c0_74, %c0_75] : memref<8x16x16xf32, #tpu.memory_space<vmem>>, vector<1x16x16xf32>
    %123 = vector.shape_cast %122 : vector<1x16x16xf32> to vector<16x16xf32>
    %124 = arith.mulf %113, %105 : vector<16x16xf32>
    %125 = arith.addf %123, %124 : vector<16x16xf32>
    %126 = math.tanh %125 : vector<16x16xf32>
    %cst_76 = arith.constant 1.000000e+00 : f32
    %127 = vector.broadcast %cst_76 : f32 to vector<16x16xf32>
    %128 = arith.subf %127, %121 : vector<16x16xf32>
    %129 = arith.mulf %128, %126 : vector<16x16xf32>
    %130 = arith.mulf %121, %93 : vector<16x16xf32>
    %131 = arith.addf %129, %130 : vector<16x16xf32>
    %c2_77 = arith.constant 2 : index
    %c0_78 = arith.constant 0 : index
    %c0_79 = arith.constant 0 : index
    %132 = vector.load %arg10[%c2_77, %c0_78, %c0_79] : memref<8x16x16xf32, #tpu.memory_space<vmem>>, vector<1x16x16xf32>
    %133 = vector.shape_cast %132 : vector<1x16x16xf32> to vector<16x16xf32>
    %134 = vector.shape_cast %131 : vector<16x16xf32> to vector<1x16x16xf32>
    tpu.vector_store %arg10[%c2_77, %c0_78, %c0_79], %134 {strides = array<i32>} : memref<8x16x16xf32, #tpu.memory_space<vmem>>, vector<1x16x16xf32>,
    %cst_80 = arith.constant dense<0.000000e+00> : vector<16x16xf32>
    %135 = tpu.matmul %131, %14, %cst_80 {dimension_numbers = #tpu.dot_dimension_numbers<[1], [0], [0], [1], [0, 0, 1, 1], [], []>} : vector<16x16xf32>, vector<16x16xf32>, vector<16x16xf32> -> vector<16x16xf32>
    %136 = vector.broadcast %17 : vector<1x16xf32> to vector<16x16xf32>
    %137 = arith.addf %135, %136 : vector<16x16xf32>
    %cst_81 = arith.constant dense<0.000000e+00> : vector<16x16xf32>
    %138 = tpu.matmul %131, %15, %cst_81 {dimension_numbers = #tpu.dot_dimension_numbers<[1], [0], [0], [1], [0, 0, 1, 1], [], []>} : vector<16x16xf32>, vector<16x16xf32>, vector<16x16xf32> -> vector<16x16xf32>
    %139 = vector.broadcast %18 : vector<1x16xf32> to vector<16x16xf32>
    %140 = arith.addf %138, %139 : vector<16x16xf32>
    %cst_82 = arith.constant dense<0.000000e+00> : vector<16x16xf32>
    %141 = tpu.matmul %131, %16, %cst_82 {dimension_numbers = #tpu.dot_dimension_numbers<[1], [0], [0], [1], [0, 0, 1, 1], [], []>} : vector<16x16xf32>, vector<16x16xf32>, vector<16x16xf32> -> vector<16x16xf32>
    %142 = vector.broadcast %19 : vector<1x16xf32> to vector<16x16xf32>
    %143 = arith.addf %141, %142 : vector<16x16xf32>
    %c3 = arith.constant 3 : index
    %c0_83 = arith.constant 0 : index
    %c0_84 = arith.constant 0 : index
    %144 = vector.load %arg11[%c3, %c0_83, %c0_84] : memref<8x16x16xf32, #tpu.memory_space<vmem>>, vector<1x16x16xf32>
    %145 = vector.shape_cast %144 : vector<1x16x16xf32> to vector<16x16xf32>
    %146 = arith.addf %145, %137 : vector<16x16xf32>
    %147 = arith.negf %146 : vector<16x16xf32>
    %148 = math.exp %147 : vector<16x16xf32>
    %cst_85 = arith.constant 1.000000e+00 : f32
    %149 = vector.broadcast %cst_85 : f32 to vector<16x16xf32>
    %150 = arith.addf %149, %148 : vector<16x16xf32>
    %151 = arith.divf %149, %150 : vector<16x16xf32>
    %c3_86 = arith.constant 3 : index
    %c0_87 = arith.constant 0 : index
    %c0_88 = arith.constant 0 : index
    %152 = vector.load %arg12[%c3_86, %c0_87, %c0_88] : memref<8x16x16xf32, #tpu.memory_space<vmem>>, vector<1x16x16xf32>
    %153 = vector.shape_cast %152 : vector<1x16x16xf32> to vector<16x16xf32>
    %154 = arith.addf %153, %140 : vector<16x16xf32>
    %155 = arith.negf %154 : vector<16x16xf32>
    %156 = math.exp %155 : vector<16x16xf32>
    %cst_89 = arith.constant 1.000000e+00 : f32
    %157 = vector.broadcast %cst_89 : f32 to vector<16x16xf32>
    %158 = arith.addf %157, %156 : vector<16x16xf32>
    %159 = arith.divf %157, %158 : vector<16x16xf32>
    %c3_90 = arith.constant 3 : index
    %c0_91 = arith.constant 0 : index
    %c0_92 = arith.constant 0 : index
    %160 = vector.load %arg13[%c3_90, %c0_91, %c0_92] : memref<8x16x16xf32, #tpu.memory_space<vmem>>, vector<1x16x16xf32>
    %161 = vector.shape_cast %160 : vector<1x16x16xf32> to vector<16x16xf32>
    %162 = arith.mulf %151, %143 : vector<16x16xf32>
    %163 = arith.addf %161, %162 : vector<16x16xf32>
    %164 = math.tanh %163 : vector<16x16xf32>
    %cst_93 = arith.constant 1.000000e+00 : f32
    %165 = vector.broadcast %cst_93 : f32 to vector<16x16xf32>
    %166 = arith.subf %165, %159 : vector<16x16xf32>
    %167 = arith.mulf %166, %164 : vector<16x16xf32>
    %168 = arith.mulf %159, %131 : vector<16x16xf32>
    %169 = arith.addf %167, %168 : vector<16x16xf32>
    %c3_94 = arith.constant 3 : index
    %c0_95 = arith.constant 0 : index
    %c0_96 = arith.constant 0 : index
    %170 = vector.load %arg10[%c3_94, %c0_95, %c0_96] : memref<8x16x16xf32, #tpu.memory_space<vmem>>, vector<1x16x16xf32>
    %171 = vector.shape_cast %170 : vector<1x16x16xf32> to vector<16x16xf32>
    %172 = vector.shape_cast %169 : vector<16x16xf32> to vector<1x16x16xf32>
    tpu.vector_store %arg10[%c3_94, %c0_95, %c0_96], %172 {strides = array<i32>} : memref<8x16x16xf32, #tpu.memory_space<vmem>>, vector<1x16x16xf32>,
    %cst_97 = arith.constant dense<0.000000e+00> : vector<16x16xf32>
    %173 = tpu.matmul %169, %14, %cst_97 {dimension_numbers = #tpu.dot_dimension_numbers<[1], [0], [0], [1], [0, 0, 1, 1], [], []>} : vector<16x16xf32>, vector<16x16xf32>, vector<16x16xf32> -> vector<16x16xf32>
    %174 = vector.broadcast %17 : vector<1x16xf32> to vector<16x16xf32>
    %175 = arith.addf %173, %174 : vector<16x16xf32>
    %cst_98 = arith.constant dense<0.000000e+00> : vector<16x16xf32>
    %176 = tpu.matmul %169, %15, %cst_98 {dimension_numbers = #tpu.dot_dimension_numbers<[1], [0], [0], [1], [0, 0, 1, 1], [], []>} : vector<16x16xf32>, vector<16x16xf32>, vector<16x16xf32> -> vector<16x16xf32>
    %177 = vector.broadcast %18 : vector<1x16xf32> to vector<16x16xf32>
    %178 = arith.addf %176, %177 : vector<16x16xf32>
    %cst_99 = arith.constant dense<0.000000e+00> : vector<16x16xf32>
    %179 = tpu.matmul %169, %16, %cst_99 {dimension_numbers = #tpu.dot_dimension_numbers<[1], [0], [0], [1], [0, 0, 1, 1], [], []>} : vector<16x16xf32>, vector<16x16xf32>, vector<16x16xf32> -> vector<16x16xf32>
    %180 = vector.broadcast %19 : vector<1x16xf32> to vector<16x16xf32>
    %181 = arith.addf %179, %180 : vector<16x16xf32>
    %c4 = arith.constant 4 : index
    %c0_100 = arith.constant 0 : index
    %c0_101 = arith.constant 0 : index
    %182 = vector.load %arg11[%c4, %c0_100, %c0_101] : memref<8x16x16xf32, #tpu.memory_space<vmem>>, vector<1x16x16xf32>
    %183 = vector.shape_cast %182 : vector<1x16x16xf32> to vector<16x16xf32>
    %184 = arith.addf %183, %175 : vector<16x16xf32>
    %185 = arith.negf %184 : vector<16x16xf32>
    %186 = math.exp %185 : vector<16x16xf32>
    %cst_102 = arith.constant 1.000000e+00 : f32
    %187 = vector.broadcast %cst_102 : f32 to vector<16x16xf32>
    %188 = arith.addf %187, %186 : vector<16x16xf32>
    %189 = arith.divf %187, %188 : vector<16x16xf32>
    %c4_103 = arith.constant 4 : index
    %c0_104 = arith.constant 0 : index
    %c0_105 = arith.constant 0 : index
    %190 = vector.load %arg12[%c4_103, %c0_104, %c0_105] : memref<8x16x16xf32, #tpu.memory_space<vmem>>, vector<1x16x16xf32>
    %191 = vector.shape_cast %190 : vector<1x16x16xf32> to vector<16x16xf32>
    %192 = arith.addf %191, %178 : vector<16x16xf32>
    %193 = arith.negf %192 : vector<16x16xf32>
    %194 = math.exp %193 : vector<16x16xf32>
    %cst_106 = arith.constant 1.000000e+00 : f32
    %195 = vector.broadcast %cst_106 : f32 to vector<16x16xf32>
    %196 = arith.addf %195, %194 : vector<16x16xf32>
    %197 = arith.divf %195, %196 : vector<16x16xf32>
    %c4_107 = arith.constant 4 : index
    %c0_108 = arith.constant 0 : index
    %c0_109 = arith.constant 0 : index
    %198 = vector.load %arg13[%c4_107, %c0_108, %c0_109] : memref<8x16x16xf32, #tpu.memory_space<vmem>>, vector<1x16x16xf32>
    %199 = vector.shape_cast %198 : vector<1x16x16xf32> to vector<16x16xf32>
    %200 = arith.mulf %189, %181 : vector<16x16xf32>
    %201 = arith.addf %199, %200 : vector<16x16xf32>
    %202 = math.tanh %201 : vector<16x16xf32>
    %cst_110 = arith.constant 1.000000e+00 : f32
    %203 = vector.broadcast %cst_110 : f32 to vector<16x16xf32>
    %204 = arith.subf %203, %197 : vector<16x16xf32>
    %205 = arith.mulf %204, %202 : vector<16x16xf32>
    %206 = arith.mulf %197, %169 : vector<16x16xf32>
    %207 = arith.addf %205, %206 : vector<16x16xf32>
    %c4_111 = arith.constant 4 : index
    %c0_112 = arith.constant 0 : index
    %c0_113 = arith.constant 0 : index
    %208 = vector.load %arg10[%c4_111, %c0_112, %c0_113] : memref<8x16x16xf32, #tpu.memory_space<vmem>>, vector<1x16x16xf32>
    %209 = vector.shape_cast %208 : vector<1x16x16xf32> to vector<16x16xf32>
    %210 = vector.shape_cast %207 : vector<16x16xf32> to vector<1x16x16xf32>
    tpu.vector_store %arg10[%c4_111, %c0_112, %c0_113], %210 {strides = array<i32>} : memref<8x16x16xf32, #tpu.memory_space<vmem>>, vector<1x16x16xf32>,
    %cst_114 = arith.constant dense<0.000000e+00> : vector<16x16xf32>
    %211 = tpu.matmul %207, %14, %cst_114 {dimension_numbers = #tpu.dot_dimension_numbers<[1], [0], [0], [1], [0, 0, 1, 1], [], []>} : vector<16x16xf32>, vector<16x16xf32>, vector<16x16xf32> -> vector<16x16xf32>
    %212 = vector.broadcast %17 : vector<1x16xf32> to vector<16x16xf32>
    %213 = arith.addf %211, %212 : vector<16x16xf32>
    %cst_115 = arith.constant dense<0.000000e+00> : vector<16x16xf32>
    %214 = tpu.matmul %207, %15, %cst_115 {dimension_numbers = #tpu.dot_dimension_numbers<[1], [0], [0], [1], [0, 0, 1, 1], [], []>} : vector<16x16xf32>, vector<16x16xf32>, vector<16x16xf32> -> vector<16x16xf32>
    %215 = vector.broadcast %18 : vector<1x16xf32> to vector<16x16xf32>
    %216 = arith.addf %214, %215 : vector<16x16xf32>
    %cst_116 = arith.constant dense<0.000000e+00> : vector<16x16xf32>
    %217 = tpu.matmul %207, %16, %cst_116 {dimension_numbers = #tpu.dot_dimension_numbers<[1], [0], [0], [1], [0, 0, 1, 1], [], []>} : vector<16x16xf32>, vector<16x16xf32>, vector<16x16xf32> -> vector<16x16xf32>
    %218 = vector.broadcast %19 : vector<1x16xf32> to vector<16x16xf32>
    %219 = arith.addf %217, %218 : vector<16x16xf32>
    %c5 = arith.constant 5 : index
    %c0_117 = arith.constant 0 : index
    %c0_118 = arith.constant 0 : index
    %220 = vector.load %arg11[%c5, %c0_117, %c0_118] : memref<8x16x16xf32, #tpu.memory_space<vmem>>, vector<1x16x16xf32>
    %221 = vector.shape_cast %220 : vector<1x16x16xf32> to vector<16x16xf32>
    %222 = arith.addf %221, %213 : vector<16x16xf32>
    %223 = arith.negf %222 : vector<16x16xf32>
    %224 = math.exp %223 : vector<16x16xf32>
    %cst_119 = arith.constant 1.000000e+00 : f32
    %225 = vector.broadcast %cst_119 : f32 to vector<16x16xf32>
    %226 = arith.addf %225, %224 : vector<16x16xf32>
    %227 = arith.divf %225, %226 : vector<16x16xf32>
    %c5_120 = arith.constant 5 : index
    %c0_121 = arith.constant 0 : index
    %c0_122 = arith.constant 0 : index
    %228 = vector.load %arg12[%c5_120, %c0_121, %c0_122] : memref<8x16x16xf32, #tpu.memory_space<vmem>>, vector<1x16x16xf32>
    %229 = vector.shape_cast %228 : vector<1x16x16xf32> to vector<16x16xf32>
    %230 = arith.addf %229, %216 : vector<16x16xf32>
    %231 = arith.negf %230 : vector<16x16xf32>
    %232 = math.exp %231 : vector<16x16xf32>
    %cst_123 = arith.constant 1.000000e+00 : f32
    %233 = vector.broadcast %cst_123 : f32 to vector<16x16xf32>
    %234 = arith.addf %233, %232 : vector<16x16xf32>
    %235 = arith.divf %233, %234 : vector<16x16xf32>
    %c5_124 = arith.constant 5 : index
    %c0_125 = arith.constant 0 : index
    %c0_126 = arith.constant 0 : index
    %236 = vector.load %arg13[%c5_124, %c0_125, %c0_126] : memref<8x16x16xf32, #tpu.memory_space<vmem>>, vector<1x16x16xf32>
    %237 = vector.shape_cast %236 : vector<1x16x16xf32> to vector<16x16xf32>
    %238 = arith.mulf %227, %219 : vector<16x16xf32>
    %239 = arith.addf %237, %238 : vector<16x16xf32>
    %240 = math.tanh %239 : vector<16x16xf32>
    %cst_127 = arith.constant 1.000000e+00 : f32
    %241 = vector.broadcast %cst_127 : f32 to vector<16x16xf32>
    %242 = arith.subf %241, %235 : vector<16x16xf32>
    %243 = arith.mulf %242, %240 : vector<16x16xf32>
    %244 = arith.mulf %235, %207 : vector<16x16xf32>
    %245 = arith.addf %243, %244 : vector<16x16xf32>
    %c5_128 = arith.constant 5 : index
    %c0_129 = arith.constant 0 : index
    %c0_130 = arith.constant 0 : index
    %246 = vector.load %arg10[%c5_128, %c0_129, %c0_130] : memref<8x16x16xf32, #tpu.memory_space<vmem>>, vector<1x16x16xf32>
    %247 = vector.shape_cast %246 : vector<1x16x16xf32> to vector<16x16xf32>
    %248 = vector.shape_cast %245 : vector<16x16xf32> to vector<1x16x16xf32>
    tpu.vector_store %arg10[%c5_128, %c0_129, %c0_130], %248 {strides = array<i32>} : memref<8x16x16xf32, #tpu.memory_space<vmem>>, vector<1x16x16xf32>,
    %cst_131 = arith.constant dense<0.000000e+00> : vector<16x16xf32>
    %249 = tpu.matmul %245, %14, %cst_131 {dimension_numbers = #tpu.dot_dimension_numbers<[1], [0], [0], [1], [0, 0, 1, 1], [], []>} : vector<16x16xf32>, vector<16x16xf32>, vector<16x16xf32> -> vector<16x16xf32>
    %250 = vector.broadcast %17 : vector<1x16xf32> to vector<16x16xf32>
    %251 = arith.addf %249, %250 : vector<16x16xf32>
    %cst_132 = arith.constant dense<0.000000e+00> : vector<16x16xf32>
    %252 = tpu.matmul %245, %15, %cst_132 {dimension_numbers = #tpu.dot_dimension_numbers<[1], [0], [0], [1], [0, 0, 1, 1], [], []>} : vector<16x16xf32>, vector<16x16xf32>, vector<16x16xf32> -> vector<16x16xf32>
    %253 = vector.broadcast %18 : vector<1x16xf32> to vector<16x16xf32>
    %254 = arith.addf %252, %253 : vector<16x16xf32>
    %cst_133 = arith.constant dense<0.000000e+00> : vector<16x16xf32>
    %255 = tpu.matmul %245, %16, %cst_133 {dimension_numbers = #tpu.dot_dimension_numbers<[1], [0], [0], [1], [0, 0, 1, 1], [], []>} : vector<16x16xf32>, vector<16x16xf32>, vector<16x16xf32> -> vector<16x16xf32>
    %256 = vector.broadcast %19 : vector<1x16xf32> to vector<16x16xf32>
    %257 = arith.addf %255, %256 : vector<16x16xf32>
    %c6 = arith.constant 6 : index
    %c0_134 = arith.constant 0 : index
    %c0_135 = arith.constant 0 : index
    %258 = vector.load %arg11[%c6, %c0_134, %c0_135] : memref<8x16x16xf32, #tpu.memory_space<vmem>>, vector<1x16x16xf32>
    %259 = vector.shape_cast %258 : vector<1x16x16xf32> to vector<16x16xf32>
    %260 = arith.addf %259, %251 : vector<16x16xf32>
    %261 = arith.negf %260 : vector<16x16xf32>
    %262 = math.exp %261 : vector<16x16xf32>
    %cst_136 = arith.constant 1.000000e+00 : f32
    %263 = vector.broadcast %cst_136 : f32 to vector<16x16xf32>
    %264 = arith.addf %263, %262 : vector<16x16xf32>
    %265 = arith.divf %263, %264 : vector<16x16xf32>
    %c6_137 = arith.constant 6 : index
    %c0_138 = arith.constant 0 : index
    %c0_139 = arith.constant 0 : index
    %266 = vector.load %arg12[%c6_137, %c0_138, %c0_139] : memref<8x16x16xf32, #tpu.memory_space<vmem>>, vector<1x16x16xf32>
    %267 = vector.shape_cast %266 : vector<1x16x16xf32> to vector<16x16xf32>
    %268 = arith.addf %267, %254 : vector<16x16xf32>
    %269 = arith.negf %268 : vector<16x16xf32>
    %270 = math.exp %269 : vector<16x16xf32>
    %cst_140 = arith.constant 1.000000e+00 : f32
    %271 = vector.broadcast %cst_140 : f32 to vector<16x16xf32>
    %272 = arith.addf %271, %270 : vector<16x16xf32>
    %273 = arith.divf %271, %272 : vector<16x16xf32>
    %c6_141 = arith.constant 6 : index
    %c0_142 = arith.constant 0 : index
    %c0_143 = arith.constant 0 : index
    %274 = vector.load %arg13[%c6_141, %c0_142, %c0_143] : memref<8x16x16xf32, #tpu.memory_space<vmem>>, vector<1x16x16xf32>
    %275 = vector.shape_cast %274 : vector<1x16x16xf32> to vector<16x16xf32>
    %276 = arith.mulf %265, %257 : vector<16x16xf32>
    %277 = arith.addf %275, %276 : vector<16x16xf32>
    %278 = math.tanh %277 : vector<16x16xf32>
    %cst_144 = arith.constant 1.000000e+00 : f32
    %279 = vector.broadcast %cst_144 : f32 to vector<16x16xf32>
    %280 = arith.subf %279, %273 : vector<16x16xf32>
    %281 = arith.mulf %280, %278 : vector<16x16xf32>
    %282 = arith.mulf %273, %245 : vector<16x16xf32>
    %283 = arith.addf %281, %282 : vector<16x16xf32>
    %c6_145 = arith.constant 6 : index
    %c0_146 = arith.constant 0 : index
    %c0_147 = arith.constant 0 : index
    %284 = vector.load %arg10[%c6_145, %c0_146, %c0_147] : memref<8x16x16xf32, #tpu.memory_space<vmem>>, vector<1x16x16xf32>
    %285 = vector.shape_cast %284 : vector<1x16x16xf32> to vector<16x16xf32>
    %286 = vector.shape_cast %283 : vector<16x16xf32> to vector<1x16x16xf32>
    tpu.vector_store %arg10[%c6_145, %c0_146, %c0_147], %286 {strides = array<i32>} : memref<8x16x16xf32, #tpu.memory_space<vmem>>, vector<1x16x16xf32>,
    %cst_148 = arith.constant dense<0.000000e+00> : vector<16x16xf32>
    %287 = tpu.matmul %283, %14, %cst_148 {dimension_numbers = #tpu.dot_dimension_numbers<[1], [0], [0], [1], [0, 0, 1, 1], [], []>} : vector<16x16xf32>, vector<16x16xf32>, vector<16x16xf32> -> vector<16x16xf32>
    %288 = vector.broadcast %17 : vector<1x16xf32> to vector<16x16xf32>
    %289 = arith.addf %287, %288 : vector<16x16xf32>
    %cst_149 = arith.constant dense<0.000000e+00> : vector<16x16xf32>
    %290 = tpu.matmul %283, %15, %cst_149 {dimension_numbers = #tpu.dot_dimension_numbers<[1], [0], [0], [1], [0, 0, 1, 1], [], []>} : vector<16x16xf32>, vector<16x16xf32>, vector<16x16xf32> -> vector<16x16xf32>
    %291 = vector.broadcast %18 : vector<1x16xf32> to vector<16x16xf32>
    %292 = arith.addf %290, %291 : vector<16x16xf32>
    %cst_150 = arith.constant dense<0.000000e+00> : vector<16x16xf32>
    %293 = tpu.matmul %283, %16, %cst_150 {dimension_numbers = #tpu.dot_dimension_numbers<[1], [0], [0], [1], [0, 0, 1, 1], [], []>} : vector<16x16xf32>, vector<16x16xf32>, vector<16x16xf32> -> vector<16x16xf32>
    %294 = vector.broadcast %19 : vector<1x16xf32> to vector<16x16xf32>
    %295 = arith.addf %293, %294 : vector<16x16xf32>
    %c7 = arith.constant 7 : index
    %c0_151 = arith.constant 0 : index
    %c0_152 = arith.constant 0 : index
    %296 = vector.load %arg11[%c7, %c0_151, %c0_152] : memref<8x16x16xf32, #tpu.memory_space<vmem>>, vector<1x16x16xf32>
    %297 = vector.shape_cast %296 : vector<1x16x16xf32> to vector<16x16xf32>
    %298 = arith.addf %297, %289 : vector<16x16xf32>
    %299 = arith.negf %298 : vector<16x16xf32>
    %300 = math.exp %299 : vector<16x16xf32>
    %cst_153 = arith.constant 1.000000e+00 : f32
    %301 = vector.broadcast %cst_153 : f32 to vector<16x16xf32>
    %302 = arith.addf %301, %300 : vector<16x16xf32>
    %303 = arith.divf %301, %302 : vector<16x16xf32>
    %c7_154 = arith.constant 7 : index
    %c0_155 = arith.constant 0 : index
    %c0_156 = arith.constant 0 : index
    %304 = vector.load %arg12[%c7_154, %c0_155, %c0_156] : memref<8x16x16xf32, #tpu.memory_space<vmem>>, vector<1x16x16xf32>
    %305 = vector.shape_cast %304 : vector<1x16x16xf32> to vector<16x16xf32>
    %306 = arith.addf %305, %292 : vector<16x16xf32>
    %307 = arith.negf %306 : vector<16x16xf32>
    %308 = math.exp %307 : vector<16x16xf32>
    %cst_157 = arith.constant 1.000000e+00 : f32
    %309 = vector.broadcast %cst_157 : f32 to vector<16x16xf32>
    %310 = arith.addf %309, %308 : vector<16x16xf32>
    %311 = arith.divf %309, %310 : vector<16x16xf32>
    %c7_158 = arith.constant 7 : index
    %c0_159 = arith.constant 0 : index
    %c0_160 = arith.constant 0 : index
    %312 = vector.load %arg13[%c7_158, %c0_159, %c0_160] : memref<8x16x16xf32, #tpu.memory_space<vmem>>, vector<1x16x16xf32>
    %313 = vector.shape_cast %312 : vector<1x16x16xf32> to vector<16x16xf32>
    %314 = arith.mulf %303, %295 : vector<16x16xf32>
    %315 = arith.addf %313, %314 : vector<16x16xf32>
    %316 = math.tanh %315 : vector<16x16xf32>
    %cst_161 = arith.constant 1.000000e+00 : f32
    %317 = vector.broadcast %cst_161 : f32 to vector<16x16xf32>
    %318 = arith.subf %317, %311 : vector<16x16xf32>
    %319 = arith.mulf %318, %316 : vector<16x16xf32>
    %320 = arith.mulf %311, %283 : vector<16x16xf32>
    %321 = arith.addf %319, %320 : vector<16x16xf32>
    %c7_162 = arith.constant 7 : index
    %c0_163 = arith.constant 0 : index
    %c0_164 = arith.constant 0 : index
    %322 = vector.load %arg10[%c7_162, %c0_163, %c0_164] : memref<8x16x16xf32, #tpu.memory_space<vmem>>, vector<1x16x16xf32>
    %323 = vector.shape_cast %322 : vector<1x16x16xf32> to vector<16x16xf32>
    %324 = vector.shape_cast %321 : vector<16x16xf32> to vector<1x16x16xf32>
    tpu.vector_store %arg10[%c7_162, %c0_163, %c0_164], %324 {strides = array<i32>} : memref<8x16x16xf32, #tpu.memory_space<vmem>>, vector<1x16x16xf32>,
    return
  }
  func.func @transform_0(%arg0: i32) -> (i32, i32, i32) {
    %c0_i32 = arith.constant 0 : i32
    %c0_i32_0 = arith.constant 0 : i32
    %c0_i32_1 = arith.constant 0 : i32
    return %c0_i32, %arg0, %c0_i32_0 : i32, i32, i32
  }
  func.func @transform_1(%arg0: i32) -> (i32, i32) {
    %c0_i32 = arith.constant 0 : i32
    %c0_i32_0 = arith.constant 0 : i32
    %c0_i32_1 = arith.constant 0 : i32
    return %c0_i32, %c0_i32_0 : i32, i32
  }
  func.func @transform_2(%arg0: i32) -> (i32, i32) {
    %c0_i32 = arith.constant 0 : i32
    %c0_i32_0 = arith.constant 0 : i32
    %c0_i32_1 = arith.constant 0 : i32
    return %c0_i32, %c0_i32_0 : i32, i32
  }
  func.func @transform_3(%arg0: i32) -> (i32, i32) {
    %c0_i32 = arith.constant 0 : i32
    %c0_i32_0 = arith.constant 0 : i32
    %c0_i32_1 = arith.constant 0 : i32
    return %c0_i32, %c0_i32_0 : i32, i32
  }
  func.func @transform_4(%arg0: i32) -> (i32, i32) {
    %c0_i32 = arith.constant 0 : i32
    %c0_i32_0 = arith.constant 0 : i32
    %c0_i32_1 = arith.constant 0 : i32
    return %c0_i32, %c0_i32_0 : i32, i32
  }
  func.func @transform_5(%arg0: i32) -> (i32, i32) {
    %c0_i32 = arith.constant 0 : i32
    %c0_i32_0 = arith.constant 0 : i32
    %c0_i32_1 = arith.constant 0 : i32
    return %c0_i32, %c0_i32_0 : i32, i32
  }
  func.func @transform_6(%arg0: i32) -> (i32, i32) {
    %c0_i32 = arith.constant 0 : i32
    %c0_i32_0 = arith.constant 0 : i32
    %c0_i32_1 = arith.constant 0 : i32
    return %c0_i32, %c0_i32_0 : i32, i32
  }
  func.func @transform_7(%arg0: i32) -> (i32, i32) {
    %c0_i32 = arith.constant 0 : i32
    %c0_i32_0 = arith.constant 0 : i32
    %c0_i32_1 = arith.constant 0 : i32
    return %c0_i32, %c0_i32_0 : i32, i32
  }
  func.func @transform_8(%arg0: i32) -> (i32, i32) {
    %c0_i32 = arith.constant 0 : i32
    %c0_i32_0 = arith.constant 0 : i32
    %c0_i32_1 = arith.constant 0 : i32
    return %c0_i32, %c0_i32_0 : i32, i32
  }
  func.func @transform_9(%arg0: i32) -> (i32, i32, i32) {
    %c0_i32 = arith.constant 0 : i32
    %c0_i32_0 = arith.constant 0 : i32
    %c0_i32_1 = arith.constant 0 : i32
    return %c0_i32, %arg0, %c0_i32_0 : i32, i32, i32
  }
}

module attributes {stable_mosaic.version = 11 : i64} {
  func.func @_ddg_kernel(%arg0: i32, %arg1: memref<8x16x16xf32, #tpu.memory_space<vmem>>, %arg2: memref<8x16x8xf32, #tpu.memory_space<vmem>>, %arg3: memref<8x8xf32, #tpu.memory_space<vmem>>, %arg4: memref<16x128xf32, #tpu.memory_space<vmem>>, %arg5: memref<8x16xf32, #tpu.memory_space<vmem>>, %arg6: memref<16x16xf32, #tpu.memory_space<vmem>>, %arg7: memref<16x16xf32, #tpu.memory_space<vmem>>, %arg8: memref<1x16xf32, #tpu.memory_space<vmem>>, %arg9: memref<16x48xf32, #tpu.memory_space<vmem>>, %arg10: memref<16x16xf32, #tpu.memory_space<vmem>>, %arg11: memref<16x16xf32, #tpu.memory_space<vmem>>, %arg12: memref<16x16xf32, #tpu.memory_space<vmem>>, %arg13: memref<1x48xf32, #tpu.memory_space<vmem>>, %arg14: memref<1x16xf32, #tpu.memory_space<vmem>>, %arg15: memref<1x16xf32, #tpu.memory_space<vmem>>, %arg16: memref<1x16xf32, #tpu.memory_space<vmem>>, %arg17: memref<16x16xf32, #tpu.memory_space<vmem>>, %arg18: memref<8x16x16xf32, #tpu.memory_space<vmem>>, %arg19: memref<8x16x16xf32, #tpu.memory_space<vmem>>, %arg20: memref<8x16x16xf32, #tpu.memory_space<vmem>>) attributes {dimension_semantics = [#tpu.dimension_semantics<arbitrary>], iteration_bounds = array<i64: 1>, scalar_prefetch = 0 : i64, scratch_operands = 3 : i64, tpu.core_type = #tpu.core_type<tc>, window_params = [{pipeline_mode = #tpu.pipeline_mode<synchronous>, transform_indices = @transform_0, window_bounds = array<i64: 8, 16, 16>}, {pipeline_mode = #tpu.pipeline_mode<synchronous>, transform_indices = @transform_1, window_bounds = array<i64: 8, 16, 8>}, {pipeline_mode = #tpu.pipeline_mode<synchronous>, transform_indices = @transform_2, window_bounds = array<i64: 8, 8>}, {pipeline_mode = #tpu.pipeline_mode<synchronous>, transform_indices = @transform_3, window_bounds = array<i64: 16, 128>}, {pipeline_mode = #tpu.pipeline_mode<synchronous>, transform_indices = @transform_4, window_bounds = array<i64: 8, 16>}, {pipeline_mode = #tpu.pipeline_mode<synchronous>, transform_indices = @transform_5, window_bounds = array<i64: 16, 16>}, {pipeline_mode = #tpu.pipeline_mode<synchronous>, transform_indices = @transform_6, window_bounds = array<i64: 16, 16>}, {pipeline_mode = #tpu.pipeline_mode<synchronous>, transform_indices = @transform_7, window_bounds = array<i64: 1, 16>}, {pipeline_mode = #tpu.pipeline_mode<synchronous>, transform_indices = @transform_8, window_bounds = array<i64: 16, 48>}, {pipeline_mode = #tpu.pipeline_mode<synchronous>, transform_indices = @transform_9, window_bounds = array<i64: 16, 16>}, {pipeline_mode = #tpu.pipeline_mode<synchronous>, transform_indices = @transform_10, window_bounds = array<i64: 16, 16>}, {pipeline_mode = #tpu.pipeline_mode<synchronous>, transform_indices = @transform_11, window_bounds = array<i64: 16, 16>}, {pipeline_mode = #tpu.pipeline_mode<synchronous>, transform_indices = @transform_12, window_bounds = array<i64: 1, 48>}, {pipeline_mode = #tpu.pipeline_mode<synchronous>, transform_indices = @transform_13, window_bounds = array<i64: 1, 16>}, {pipeline_mode = #tpu.pipeline_mode<synchronous>, transform_indices = @transform_14, window_bounds = array<i64: 1, 16>}, {pipeline_mode = #tpu.pipeline_mode<synchronous>, transform_indices = @transform_15, window_bounds = array<i64: 1, 16>}, {pipeline_mode = #tpu.pipeline_mode<synchronous>, transform_indices = @transform_16, window_bounds = array<i64: 16, 16>}]} {
    %c0 = arith.constant 0 : index
    %c0_0 = arith.constant 0 : index
    %c0_1 = arith.constant 0 : index
    %0 = vector.load %arg1[%c0, %c0_0, %c0_1] : memref<8x16x16xf32, #tpu.memory_space<vmem>>, vector<8x16x16xf32>
    %c0_2 = arith.constant 0 : index
    %c0_3 = arith.constant 0 : index
    %c0_4 = arith.constant 0 : index
    %1 = vector.load %arg2[%c0_2, %c0_3, %c0_4] : memref<8x16x8xf32, #tpu.memory_space<vmem>>, vector<8x16x8xf32>
    %c0_5 = arith.constant 0 : index
    %c0_6 = arith.constant 0 : index
    %2 = vector.load %arg3[%c0_5, %c0_6] : memref<8x8xf32, #tpu.memory_space<vmem>>, vector<8x8xf32>
    %3 = vector.shape_cast %0 : vector<8x16x16xf32> to vector<16x8x16xf32>
    %4 = vector.shape_cast %1 : vector<8x16x8xf32> to vector<16x8x8xf32>
    "tpu.trace_start"() <{level = 10 : i32, message = "kne,kme->knm"}> : () -> ()
    %cst = arith.constant dense<0.000000e+00> : vector<16x8x8xf32>
    %5 = tpu.matmul %4, %4, %cst {dimension_numbers = #tpu.dot_dimension_numbers<[2], [2], [1], [1], [0, 0, 0, 1, 1, 1], [0], [0]>} : vector<16x8x8xf32>, vector<16x8x8xf32>, vector<16x8x8xf32> -> vector<16x8x8xf32>
    "tpu.trace_stop"() : () -> ()
    %cst_7 = arith.constant 0.000000e+00 : f32
    %6 = vector.broadcast %cst_7 : f32 to vector<16x8x8xf32>
    %7 = arith.maximumf %5, %6 : vector<16x8x8xf32>
    "tpu.trace_start"() <{level = 10 : i32, message = "knm,kmr->knr"}> : () -> ()
    %cst_8 = arith.constant dense<0.000000e+00> : vector<16x8x16xf32>
    %8 = tpu.matmul %7, %3, %cst_8 {dimension_numbers = #tpu.dot_dimension_numbers<[2], [1], [1], [2], [0, 0, 0, 1, 1, 2], [0], [0]>} : vector<16x8x8xf32>, vector<16x8x16xf32>, vector<16x8x16xf32> -> vector<16x8x16xf32>
    "tpu.trace_stop"() : () -> ()
    %9 = arith.addf %3, %8 : vector<16x8x16xf32>
    %10 = vector.shape_cast %9 : vector<16x8x16xf32> to vector<128x16xf32>
    %c0_9 = arith.constant 0 : index
    %c0_10 = arith.constant 0 : index
    %11 = vector.load %arg4[%c0_9, %c0_10] : memref<16x128xf32, #tpu.memory_space<vmem>>, vector<16x128xf32>
    %cst_11 = arith.constant dense<0.000000e+00> : vector<128x128xf32>
    %12 = tpu.matmul %10, %11, %cst_11 {dimension_numbers = #tpu.dot_dimension_numbers<[1], [0], [0], [1], [0, 0, 1, 1], [], []>} : vector<128x16xf32>, vector<16x128xf32>, vector<128x128xf32> -> vector<128x128xf32>
    %13 = vector.shape_cast %12 : vector<128x128xf32> to vector<16x8x128xf32>
    %14 = vector.extract_strided_slice %2 {offsets = [0, 0], sizes = [8, 1], strides = [1, 1]} : vector<8x8xf32> to vector<8x1xf32>
    %15 = vector.shape_cast %14 : vector<8x1xf32> to vector<1x8x1xf32>
    %16 = vector.extract_strided_slice %13 {offsets = [0, 0, 0], sizes = [16, 8, 16], strides = [1, 1, 1]} : vector<16x8x128xf32> to vector<16x8x16xf32>
    %17 = vector.broadcast %15 : vector<1x8x1xf32> to vector<16x8x16xf32>
    %18 = arith.mulf %17, %16 : vector<16x8x16xf32>
    %19 = vector.extract_strided_slice %2 {offsets = [0, 1], sizes = [8, 1], strides = [1, 1]} : vector<8x8xf32> to vector<8x1xf32>
    %20 = vector.shape_cast %19 : vector<8x1xf32> to vector<1x8x1xf32>
    %21 = vector.extract_strided_slice %13 {offsets = [0, 0, 16], sizes = [16, 8, 16], strides = [1, 1, 1]} : vector<16x8x128xf32> to vector<16x8x16xf32>
    %22 = vector.broadcast %20 : vector<1x8x1xf32> to vector<16x8x16xf32>
    %23 = arith.mulf %22, %21 : vector<16x8x16xf32>
    %24 = arith.addf %18, %23 : vector<16x8x16xf32>
    %25 = vector.extract_strided_slice %2 {offsets = [0, 2], sizes = [8, 1], strides = [1, 1]} : vector<8x8xf32> to vector<8x1xf32>
    %26 = vector.shape_cast %25 : vector<8x1xf32> to vector<1x8x1xf32>
    %27 = vector.extract_strided_slice %13 {offsets = [0, 0, 32], sizes = [16, 8, 16], strides = [1, 1, 1]} : vector<16x8x128xf32> to vector<16x8x16xf32>
    %28 = vector.broadcast %26 : vector<1x8x1xf32> to vector<16x8x16xf32>
    %29 = arith.mulf %28, %27 : vector<16x8x16xf32>
    %30 = arith.addf %24, %29 : vector<16x8x16xf32>
    %31 = vector.extract_strided_slice %2 {offsets = [0, 3], sizes = [8, 1], strides = [1, 1]} : vector<8x8xf32> to vector<8x1xf32>
    %32 = vector.shape_cast %31 : vector<8x1xf32> to vector<1x8x1xf32>
    %33 = vector.extract_strided_slice %13 {offsets = [0, 0, 48], sizes = [16, 8, 16], strides = [1, 1, 1]} : vector<16x8x128xf32> to vector<16x8x16xf32>
    %34 = vector.broadcast %32 : vector<1x8x1xf32> to vector<16x8x16xf32>
    %35 = arith.mulf %34, %33 : vector<16x8x16xf32>
    %36 = arith.addf %30, %35 : vector<16x8x16xf32>
    %37 = vector.extract_strided_slice %2 {offsets = [0, 4], sizes = [8, 1], strides = [1, 1]} : vector<8x8xf32> to vector<8x1xf32>
    %38 = vector.shape_cast %37 : vector<8x1xf32> to vector<1x8x1xf32>
    %39 = vector.extract_strided_slice %13 {offsets = [0, 0, 64], sizes = [16, 8, 16], strides = [1, 1, 1]} : vector<16x8x128xf32> to vector<16x8x16xf32>
    %40 = vector.broadcast %38 : vector<1x8x1xf32> to vector<16x8x16xf32>
    %41 = arith.mulf %40, %39 : vector<16x8x16xf32>
    %42 = arith.addf %36, %41 : vector<16x8x16xf32>
    %43 = vector.extract_strided_slice %2 {offsets = [0, 5], sizes = [8, 1], strides = [1, 1]} : vector<8x8xf32> to vector<8x1xf32>
    %44 = vector.shape_cast %43 : vector<8x1xf32> to vector<1x8x1xf32>
    %45 = vector.extract_strided_slice %13 {offsets = [0, 0, 80], sizes = [16, 8, 16], strides = [1, 1, 1]} : vector<16x8x128xf32> to vector<16x8x16xf32>
    %46 = vector.broadcast %44 : vector<1x8x1xf32> to vector<16x8x16xf32>
    %47 = arith.mulf %46, %45 : vector<16x8x16xf32>
    %48 = arith.addf %42, %47 : vector<16x8x16xf32>
    %49 = vector.extract_strided_slice %2 {offsets = [0, 6], sizes = [8, 1], strides = [1, 1]} : vector<8x8xf32> to vector<8x1xf32>
    %50 = vector.shape_cast %49 : vector<8x1xf32> to vector<1x8x1xf32>
    %51 = vector.extract_strided_slice %13 {offsets = [0, 0, 96], sizes = [16, 8, 16], strides = [1, 1, 1]} : vector<16x8x128xf32> to vector<16x8x16xf32>
    %52 = vector.broadcast %50 : vector<1x8x1xf32> to vector<16x8x16xf32>
    %53 = arith.mulf %52, %51 : vector<16x8x16xf32>
    %54 = arith.addf %48, %53 : vector<16x8x16xf32>
    %55 = vector.extract_strided_slice %2 {offsets = [0, 7], sizes = [8, 1], strides = [1, 1]} : vector<8x8xf32> to vector<8x1xf32>
    %56 = vector.shape_cast %55 : vector<8x1xf32> to vector<1x8x1xf32>
    %57 = vector.extract_strided_slice %13 {offsets = [0, 0, 112], sizes = [16, 8, 16], strides = [1, 1, 1]} : vector<16x8x128xf32> to vector<16x8x16xf32>
    %58 = vector.broadcast %56 : vector<1x8x1xf32> to vector<16x8x16xf32>
    %59 = arith.mulf %58, %57 : vector<16x8x16xf32>
    %60 = arith.addf %54, %59 : vector<16x8x16xf32>
    %c0_12 = arith.constant 0 : index
    %c0_13 = arith.constant 0 : index
    %61 = vector.load %arg5[%c0_12, %c0_13] : memref<8x16xf32, #tpu.memory_space<vmem>>, vector<8x16xf32>
    %62 = vector.shape_cast %61 : vector<8x16xf32> to vector<1x8x16xf32>
    %63 = vector.broadcast %62 : vector<1x8x16xf32> to vector<16x8x16xf32>
    %64 = arith.addf %60, %63 : vector<16x8x16xf32>
    %65 = vector.shape_cast %0 : vector<8x16x16xf32> to vector<128x16xf32>
    %c0_14 = arith.constant 0 : index
    %c0_15 = arith.constant 0 : index
    %66 = vector.load %arg6[%c0_14, %c0_15] : memref<16x16xf32, #tpu.memory_space<vmem>>, vector<16x16xf32>
    %cst_16 = arith.constant dense<0.000000e+00> : vector<128x16xf32>
    %67 = tpu.matmul %65, %66, %cst_16 {dimension_numbers = #tpu.dot_dimension_numbers<[1], [0], [0], [1], [0, 0, 1, 1], [], []>} : vector<128x16xf32>, vector<16x16xf32>, vector<128x16xf32> -> vector<128x16xf32>
    %68 = vector.shape_cast %64 : vector<16x8x16xf32> to vector<128x16xf32>
    %c0_17 = arith.constant 0 : index
    %c0_18 = arith.constant 0 : index
    %69 = vector.load %arg7[%c0_17, %c0_18] : memref<16x16xf32, #tpu.memory_space<vmem>>, vector<16x16xf32>
    %cst_19 = arith.constant dense<0.000000e+00> : vector<128x16xf32>
    %70 = tpu.matmul %68, %69, %cst_19 {dimension_numbers = #tpu.dot_dimension_numbers<[1], [0], [0], [1], [0, 0, 1, 1], [], []>} : vector<128x16xf32>, vector<16x16xf32>, vector<128x16xf32> -> vector<128x16xf32>
    %71 = arith.addf %67, %70 : vector<128x16xf32>
    %c0_20 = arith.constant 0 : index
    %c0_21 = arith.constant 0 : index
    %72 = vector.load %arg8[%c0_20, %c0_21] : memref<1x16xf32, #tpu.memory_space<vmem>>, vector<1x16xf32>
    %73 = vector.broadcast %72 : vector<1x16xf32> to vector<128x16xf32>
    %74 = arith.addf %71, %73 : vector<128x16xf32>
    %c0_22 = arith.constant 0 : index
    %c0_23 = arith.constant 0 : index
    %75 = vector.load %arg9[%c0_22, %c0_23] : memref<16x48xf32, #tpu.memory_space<vmem>>, vector<16x48xf32>
    %cst_24 = arith.constant dense<0.000000e+00> : vector<128x48xf32>
    %76 = tpu.matmul %74, %75, %cst_24 {dimension_numbers = #tpu.dot_dimension_numbers<[1], [0], [0], [1], [0, 0, 1, 1], [], []>} : vector<128x16xf32>, vector<16x48xf32>, vector<128x48xf32> -> vector<128x48xf32>
    %c0_25 = arith.constant 0 : index
    %c0_26 = arith.constant 0 : index
    %77 = vector.load %arg13[%c0_25, %c0_26] : memref<1x48xf32, #tpu.memory_space<vmem>>, vector<1x48xf32>
    %78 = vector.broadcast %77 : vector<1x48xf32> to vector<128x48xf32>
    %79 = arith.addf %76, %78 : vector<128x48xf32>
    %80 = vector.shape_cast %79 : vector<128x48xf32> to vector<8x16x48xf32>
    %81 = vector.extract_strided_slice %80 {offsets = [0, 0, 0], sizes = [8, 16, 16], strides = [1, 1, 1]} : vector<8x16x48xf32> to vector<8x16x16xf32>
    %c0_27 = arith.constant 0 : index
    %c0_28 = arith.constant 0 : index
    %c0_29 = arith.constant 0 : index
    %82 = vector.load %arg18[%c0_27, %c0_28, %c0_29] : memref<8x16x16xf32, #tpu.memory_space<vmem>>, vector<8x16x16xf32>
    tpu.vector_store %arg18[%c0_27, %c0_28, %c0_29], %81 {strides = array<i32>} : memref<8x16x16xf32, #tpu.memory_space<vmem>>, vector<8x16x16xf32>,
    %83 = vector.extract_strided_slice %80 {offsets = [0, 0, 16], sizes = [8, 16, 16], strides = [1, 1, 1]} : vector<8x16x48xf32> to vector<8x16x16xf32>
    %c0_30 = arith.constant 0 : index
    %c0_31 = arith.constant 0 : index
    %c0_32 = arith.constant 0 : index
    %84 = vector.load %arg19[%c0_30, %c0_31, %c0_32] : memref<8x16x16xf32, #tpu.memory_space<vmem>>, vector<8x16x16xf32>
    tpu.vector_store %arg19[%c0_30, %c0_31, %c0_32], %83 {strides = array<i32>} : memref<8x16x16xf32, #tpu.memory_space<vmem>>, vector<8x16x16xf32>,
    %85 = vector.extract_strided_slice %80 {offsets = [0, 0, 32], sizes = [8, 16, 16], strides = [1, 1, 1]} : vector<8x16x48xf32> to vector<8x16x16xf32>
    %c0_33 = arith.constant 0 : index
    %c0_34 = arith.constant 0 : index
    %c0_35 = arith.constant 0 : index
    %86 = vector.load %arg20[%c0_33, %c0_34, %c0_35] : memref<8x16x16xf32, #tpu.memory_space<vmem>>, vector<8x16x16xf32>
    tpu.vector_store %arg20[%c0_33, %c0_34, %c0_35], %85 {strides = array<i32>} : memref<8x16x16xf32, #tpu.memory_space<vmem>>, vector<8x16x16xf32>,
    %c0_36 = arith.constant 0 : index
    %c0_37 = arith.constant 0 : index
    %87 = vector.load %arg10[%c0_36, %c0_37] : memref<16x16xf32, #tpu.memory_space<vmem>>, vector<16x16xf32>
    %c0_38 = arith.constant 0 : index
    %c0_39 = arith.constant 0 : index
    %88 = vector.load %arg11[%c0_38, %c0_39] : memref<16x16xf32, #tpu.memory_space<vmem>>, vector<16x16xf32>
    %c0_40 = arith.constant 0 : index
    %c0_41 = arith.constant 0 : index
    %89 = vector.load %arg12[%c0_40, %c0_41] : memref<16x16xf32, #tpu.memory_space<vmem>>, vector<16x16xf32>
    %c0_42 = arith.constant 0 : index
    %c0_43 = arith.constant 0 : index
    %90 = vector.load %arg14[%c0_42, %c0_43] : memref<1x16xf32, #tpu.memory_space<vmem>>, vector<1x16xf32>
    %c0_44 = arith.constant 0 : index
    %c0_45 = arith.constant 0 : index
    %91 = vector.load %arg15[%c0_44, %c0_45] : memref<1x16xf32, #tpu.memory_space<vmem>>, vector<1x16xf32>
    %c0_46 = arith.constant 0 : index
    %c0_47 = arith.constant 0 : index
    %92 = vector.load %arg16[%c0_46, %c0_47] : memref<1x16xf32, #tpu.memory_space<vmem>>, vector<1x16xf32>
    %cst_48 = arith.constant 0.000000e+00 : f32
    %93 = vector.broadcast %cst_48 : f32 to vector<16x16xf32>
    %cst_49 = arith.constant dense<0.000000e+00> : vector<16x16xf32>
    %94 = tpu.matmul %93, %87, %cst_49 {dimension_numbers = #tpu.dot_dimension_numbers<[1], [0], [0], [1], [0, 0, 1, 1], [], []>} : vector<16x16xf32>, vector<16x16xf32>, vector<16x16xf32> -> vector<16x16xf32>
    %95 = vector.broadcast %90 : vector<1x16xf32> to vector<16x16xf32>
    %96 = arith.addf %94, %95 : vector<16x16xf32>
    %cst_50 = arith.constant dense<0.000000e+00> : vector<16x16xf32>
    %97 = tpu.matmul %93, %88, %cst_50 {dimension_numbers = #tpu.dot_dimension_numbers<[1], [0], [0], [1], [0, 0, 1, 1], [], []>} : vector<16x16xf32>, vector<16x16xf32>, vector<16x16xf32> -> vector<16x16xf32>
    %98 = vector.broadcast %91 : vector<1x16xf32> to vector<16x16xf32>
    %99 = arith.addf %97, %98 : vector<16x16xf32>
    %cst_51 = arith.constant dense<0.000000e+00> : vector<16x16xf32>
    %100 = tpu.matmul %93, %89, %cst_51 {dimension_numbers = #tpu.dot_dimension_numbers<[1], [0], [0], [1], [0, 0, 1, 1], [], []>} : vector<16x16xf32>, vector<16x16xf32>, vector<16x16xf32> -> vector<16x16xf32>
    %101 = vector.broadcast %92 : vector<1x16xf32> to vector<16x16xf32>
    %102 = arith.addf %100, %101 : vector<16x16xf32>
    %c0_52 = arith.constant 0 : index
    %c0_53 = arith.constant 0 : index
    %c0_54 = arith.constant 0 : index
    %103 = vector.load %arg18[%c0_52, %c0_53, %c0_54] : memref<8x16x16xf32, #tpu.memory_space<vmem>>, vector<1x16x16xf32>
    %104 = vector.shape_cast %103 : vector<1x16x16xf32> to vector<16x16xf32>
    %105 = arith.addf %104, %96 : vector<16x16xf32>
    %106 = arith.negf %105 : vector<16x16xf32>
    %107 = math.exp %106 : vector<16x16xf32>
    %cst_55 = arith.constant 1.000000e+00 : f32
    %108 = vector.broadcast %cst_55 : f32 to vector<16x16xf32>
    %109 = arith.addf %108, %107 : vector<16x16xf32>
    %110 = arith.divf %108, %109 : vector<16x16xf32>
    %c0_56 = arith.constant 0 : index
    %c0_57 = arith.constant 0 : index
    %c0_58 = arith.constant 0 : index
    %111 = vector.load %arg19[%c0_56, %c0_57, %c0_58] : memref<8x16x16xf32, #tpu.memory_space<vmem>>, vector<1x16x16xf32>
    %112 = vector.shape_cast %111 : vector<1x16x16xf32> to vector<16x16xf32>
    %113 = arith.addf %112, %99 : vector<16x16xf32>
    %114 = arith.negf %113 : vector<16x16xf32>
    %115 = math.exp %114 : vector<16x16xf32>
    %cst_59 = arith.constant 1.000000e+00 : f32
    %116 = vector.broadcast %cst_59 : f32 to vector<16x16xf32>
    %117 = arith.addf %116, %115 : vector<16x16xf32>
    %118 = arith.divf %116, %117 : vector<16x16xf32>
    %c0_60 = arith.constant 0 : index
    %c0_61 = arith.constant 0 : index
    %c0_62 = arith.constant 0 : index
    %119 = vector.load %arg20[%c0_60, %c0_61, %c0_62] : memref<8x16x16xf32, #tpu.memory_space<vmem>>, vector<1x16x16xf32>
    %120 = vector.shape_cast %119 : vector<1x16x16xf32> to vector<16x16xf32>
    %121 = arith.mulf %110, %102 : vector<16x16xf32>
    %122 = arith.addf %120, %121 : vector<16x16xf32>
    %123 = math.tanh %122 : vector<16x16xf32>
    %cst_63 = arith.constant 1.000000e+00 : f32
    %124 = vector.broadcast %cst_63 : f32 to vector<16x16xf32>
    %125 = arith.subf %124, %118 : vector<16x16xf32>
    %126 = arith.mulf %125, %123 : vector<16x16xf32>
    %127 = arith.mulf %118, %93 : vector<16x16xf32>
    %128 = arith.addf %126, %127 : vector<16x16xf32>
    %cst_64 = arith.constant dense<0.000000e+00> : vector<16x16xf32>
    %129 = tpu.matmul %128, %87, %cst_64 {dimension_numbers = #tpu.dot_dimension_numbers<[1], [0], [0], [1], [0, 0, 1, 1], [], []>} : vector<16x16xf32>, vector<16x16xf32>, vector<16x16xf32> -> vector<16x16xf32>
    %130 = vector.broadcast %90 : vector<1x16xf32> to vector<16x16xf32>
    %131 = arith.addf %129, %130 : vector<16x16xf32>
    %cst_65 = arith.constant dense<0.000000e+00> : vector<16x16xf32>
    %132 = tpu.matmul %128, %88, %cst_65 {dimension_numbers = #tpu.dot_dimension_numbers<[1], [0], [0], [1], [0, 0, 1, 1], [], []>} : vector<16x16xf32>, vector<16x16xf32>, vector<16x16xf32> -> vector<16x16xf32>
    %133 = vector.broadcast %91 : vector<1x16xf32> to vector<16x16xf32>
    %134 = arith.addf %132, %133 : vector<16x16xf32>
    %cst_66 = arith.constant dense<0.000000e+00> : vector<16x16xf32>
    %135 = tpu.matmul %128, %89, %cst_66 {dimension_numbers = #tpu.dot_dimension_numbers<[1], [0], [0], [1], [0, 0, 1, 1], [], []>} : vector<16x16xf32>, vector<16x16xf32>, vector<16x16xf32> -> vector<16x16xf32>
    %136 = vector.broadcast %92 : vector<1x16xf32> to vector<16x16xf32>
    %137 = arith.addf %135, %136 : vector<16x16xf32>
    %c1 = arith.constant 1 : index
    %c0_67 = arith.constant 0 : index
    %c0_68 = arith.constant 0 : index
    %138 = vector.load %arg18[%c1, %c0_67, %c0_68] : memref<8x16x16xf32, #tpu.memory_space<vmem>>, vector<1x16x16xf32>
    %139 = vector.shape_cast %138 : vector<1x16x16xf32> to vector<16x16xf32>
    %140 = arith.addf %139, %131 : vector<16x16xf32>
    %141 = arith.negf %140 : vector<16x16xf32>
    %142 = math.exp %141 : vector<16x16xf32>
    %cst_69 = arith.constant 1.000000e+00 : f32
    %143 = vector.broadcast %cst_69 : f32 to vector<16x16xf32>
    %144 = arith.addf %143, %142 : vector<16x16xf32>
    %145 = arith.divf %143, %144 : vector<16x16xf32>
    %c1_70 = arith.constant 1 : index
    %c0_71 = arith.constant 0 : index
    %c0_72 = arith.constant 0 : index
    %146 = vector.load %arg19[%c1_70, %c0_71, %c0_72] : memref<8x16x16xf32, #tpu.memory_space<vmem>>, vector<1x16x16xf32>
    %147 = vector.shape_cast %146 : vector<1x16x16xf32> to vector<16x16xf32>
    %148 = arith.addf %147, %134 : vector<16x16xf32>
    %149 = arith.negf %148 : vector<16x16xf32>
    %150 = math.exp %149 : vector<16x16xf32>
    %cst_73 = arith.constant 1.000000e+00 : f32
    %151 = vector.broadcast %cst_73 : f32 to vector<16x16xf32>
    %152 = arith.addf %151, %150 : vector<16x16xf32>
    %153 = arith.divf %151, %152 : vector<16x16xf32>
    %c1_74 = arith.constant 1 : index
    %c0_75 = arith.constant 0 : index
    %c0_76 = arith.constant 0 : index
    %154 = vector.load %arg20[%c1_74, %c0_75, %c0_76] : memref<8x16x16xf32, #tpu.memory_space<vmem>>, vector<1x16x16xf32>
    %155 = vector.shape_cast %154 : vector<1x16x16xf32> to vector<16x16xf32>
    %156 = arith.mulf %145, %137 : vector<16x16xf32>
    %157 = arith.addf %155, %156 : vector<16x16xf32>
    %158 = math.tanh %157 : vector<16x16xf32>
    %cst_77 = arith.constant 1.000000e+00 : f32
    %159 = vector.broadcast %cst_77 : f32 to vector<16x16xf32>
    %160 = arith.subf %159, %153 : vector<16x16xf32>
    %161 = arith.mulf %160, %158 : vector<16x16xf32>
    %162 = arith.mulf %153, %128 : vector<16x16xf32>
    %163 = arith.addf %161, %162 : vector<16x16xf32>
    %cst_78 = arith.constant dense<0.000000e+00> : vector<16x16xf32>
    %164 = tpu.matmul %163, %87, %cst_78 {dimension_numbers = #tpu.dot_dimension_numbers<[1], [0], [0], [1], [0, 0, 1, 1], [], []>} : vector<16x16xf32>, vector<16x16xf32>, vector<16x16xf32> -> vector<16x16xf32>
    %165 = vector.broadcast %90 : vector<1x16xf32> to vector<16x16xf32>
    %166 = arith.addf %164, %165 : vector<16x16xf32>
    %cst_79 = arith.constant dense<0.000000e+00> : vector<16x16xf32>
    %167 = tpu.matmul %163, %88, %cst_79 {dimension_numbers = #tpu.dot_dimension_numbers<[1], [0], [0], [1], [0, 0, 1, 1], [], []>} : vector<16x16xf32>, vector<16x16xf32>, vector<16x16xf32> -> vector<16x16xf32>
    %168 = vector.broadcast %91 : vector<1x16xf32> to vector<16x16xf32>
    %169 = arith.addf %167, %168 : vector<16x16xf32>
    %cst_80 = arith.constant dense<0.000000e+00> : vector<16x16xf32>
    %170 = tpu.matmul %163, %89, %cst_80 {dimension_numbers = #tpu.dot_dimension_numbers<[1], [0], [0], [1], [0, 0, 1, 1], [], []>} : vector<16x16xf32>, vector<16x16xf32>, vector<16x16xf32> -> vector<16x16xf32>
    %171 = vector.broadcast %92 : vector<1x16xf32> to vector<16x16xf32>
    %172 = arith.addf %170, %171 : vector<16x16xf32>
    %c2 = arith.constant 2 : index
    %c0_81 = arith.constant 0 : index
    %c0_82 = arith.constant 0 : index
    %173 = vector.load %arg18[%c2, %c0_81, %c0_82] : memref<8x16x16xf32, #tpu.memory_space<vmem>>, vector<1x16x16xf32>
    %174 = vector.shape_cast %173 : vector<1x16x16xf32> to vector<16x16xf32>
    %175 = arith.addf %174, %166 : vector<16x16xf32>
    %176 = arith.negf %175 : vector<16x16xf32>
    %177 = math.exp %176 : vector<16x16xf32>
    %cst_83 = arith.constant 1.000000e+00 : f32
    %178 = vector.broadcast %cst_83 : f32 to vector<16x16xf32>
    %179 = arith.addf %178, %177 : vector<16x16xf32>
    %180 = arith.divf %178, %179 : vector<16x16xf32>
    %c2_84 = arith.constant 2 : index
    %c0_85 = arith.constant 0 : index
    %c0_86 = arith.constant 0 : index
    %181 = vector.load %arg19[%c2_84, %c0_85, %c0_86] : memref<8x16x16xf32, #tpu.memory_space<vmem>>, vector<1x16x16xf32>
    %182 = vector.shape_cast %181 : vector<1x16x16xf32> to vector<16x16xf32>
    %183 = arith.addf %182, %169 : vector<16x16xf32>
    %184 = arith.negf %183 : vector<16x16xf32>
    %185 = math.exp %184 : vector<16x16xf32>
    %cst_87 = arith.constant 1.000000e+00 : f32
    %186 = vector.broadcast %cst_87 : f32 to vector<16x16xf32>
    %187 = arith.addf %186, %185 : vector<16x16xf32>
    %188 = arith.divf %186, %187 : vector<16x16xf32>
    %c2_88 = arith.constant 2 : index
    %c0_89 = arith.constant 0 : index
    %c0_90 = arith.constant 0 : index
    %189 = vector.load %arg20[%c2_88, %c0_89, %c0_90] : memref<8x16x16xf32, #tpu.memory_space<vmem>>, vector<1x16x16xf32>
    %190 = vector.shape_cast %189 : vector<1x16x16xf32> to vector<16x16xf32>
    %191 = arith.mulf %180, %172 : vector<16x16xf32>
    %192 = arith.addf %190, %191 : vector<16x16xf32>
    %193 = math.tanh %192 : vector<16x16xf32>
    %cst_91 = arith.constant 1.000000e+00 : f32
    %194 = vector.broadcast %cst_91 : f32 to vector<16x16xf32>
    %195 = arith.subf %194, %188 : vector<16x16xf32>
    %196 = arith.mulf %195, %193 : vector<16x16xf32>
    %197 = arith.mulf %188, %163 : vector<16x16xf32>
    %198 = arith.addf %196, %197 : vector<16x16xf32>
    %cst_92 = arith.constant dense<0.000000e+00> : vector<16x16xf32>
    %199 = tpu.matmul %198, %87, %cst_92 {dimension_numbers = #tpu.dot_dimension_numbers<[1], [0], [0], [1], [0, 0, 1, 1], [], []>} : vector<16x16xf32>, vector<16x16xf32>, vector<16x16xf32> -> vector<16x16xf32>
    %200 = vector.broadcast %90 : vector<1x16xf32> to vector<16x16xf32>
    %201 = arith.addf %199, %200 : vector<16x16xf32>
    %cst_93 = arith.constant dense<0.000000e+00> : vector<16x16xf32>
    %202 = tpu.matmul %198, %88, %cst_93 {dimension_numbers = #tpu.dot_dimension_numbers<[1], [0], [0], [1], [0, 0, 1, 1], [], []>} : vector<16x16xf32>, vector<16x16xf32>, vector<16x16xf32> -> vector<16x16xf32>
    %203 = vector.broadcast %91 : vector<1x16xf32> to vector<16x16xf32>
    %204 = arith.addf %202, %203 : vector<16x16xf32>
    %cst_94 = arith.constant dense<0.000000e+00> : vector<16x16xf32>
    %205 = tpu.matmul %198, %89, %cst_94 {dimension_numbers = #tpu.dot_dimension_numbers<[1], [0], [0], [1], [0, 0, 1, 1], [], []>} : vector<16x16xf32>, vector<16x16xf32>, vector<16x16xf32> -> vector<16x16xf32>
    %206 = vector.broadcast %92 : vector<1x16xf32> to vector<16x16xf32>
    %207 = arith.addf %205, %206 : vector<16x16xf32>
    %c3 = arith.constant 3 : index
    %c0_95 = arith.constant 0 : index
    %c0_96 = arith.constant 0 : index
    %208 = vector.load %arg18[%c3, %c0_95, %c0_96] : memref<8x16x16xf32, #tpu.memory_space<vmem>>, vector<1x16x16xf32>
    %209 = vector.shape_cast %208 : vector<1x16x16xf32> to vector<16x16xf32>
    %210 = arith.addf %209, %201 : vector<16x16xf32>
    %211 = arith.negf %210 : vector<16x16xf32>
    %212 = math.exp %211 : vector<16x16xf32>
    %cst_97 = arith.constant 1.000000e+00 : f32
    %213 = vector.broadcast %cst_97 : f32 to vector<16x16xf32>
    %214 = arith.addf %213, %212 : vector<16x16xf32>
    %215 = arith.divf %213, %214 : vector<16x16xf32>
    %c3_98 = arith.constant 3 : index
    %c0_99 = arith.constant 0 : index
    %c0_100 = arith.constant 0 : index
    %216 = vector.load %arg19[%c3_98, %c0_99, %c0_100] : memref<8x16x16xf32, #tpu.memory_space<vmem>>, vector<1x16x16xf32>
    %217 = vector.shape_cast %216 : vector<1x16x16xf32> to vector<16x16xf32>
    %218 = arith.addf %217, %204 : vector<16x16xf32>
    %219 = arith.negf %218 : vector<16x16xf32>
    %220 = math.exp %219 : vector<16x16xf32>
    %cst_101 = arith.constant 1.000000e+00 : f32
    %221 = vector.broadcast %cst_101 : f32 to vector<16x16xf32>
    %222 = arith.addf %221, %220 : vector<16x16xf32>
    %223 = arith.divf %221, %222 : vector<16x16xf32>
    %c3_102 = arith.constant 3 : index
    %c0_103 = arith.constant 0 : index
    %c0_104 = arith.constant 0 : index
    %224 = vector.load %arg20[%c3_102, %c0_103, %c0_104] : memref<8x16x16xf32, #tpu.memory_space<vmem>>, vector<1x16x16xf32>
    %225 = vector.shape_cast %224 : vector<1x16x16xf32> to vector<16x16xf32>
    %226 = arith.mulf %215, %207 : vector<16x16xf32>
    %227 = arith.addf %225, %226 : vector<16x16xf32>
    %228 = math.tanh %227 : vector<16x16xf32>
    %cst_105 = arith.constant 1.000000e+00 : f32
    %229 = vector.broadcast %cst_105 : f32 to vector<16x16xf32>
    %230 = arith.subf %229, %223 : vector<16x16xf32>
    %231 = arith.mulf %230, %228 : vector<16x16xf32>
    %232 = arith.mulf %223, %198 : vector<16x16xf32>
    %233 = arith.addf %231, %232 : vector<16x16xf32>
    %cst_106 = arith.constant dense<0.000000e+00> : vector<16x16xf32>
    %234 = tpu.matmul %233, %87, %cst_106 {dimension_numbers = #tpu.dot_dimension_numbers<[1], [0], [0], [1], [0, 0, 1, 1], [], []>} : vector<16x16xf32>, vector<16x16xf32>, vector<16x16xf32> -> vector<16x16xf32>
    %235 = vector.broadcast %90 : vector<1x16xf32> to vector<16x16xf32>
    %236 = arith.addf %234, %235 : vector<16x16xf32>
    %cst_107 = arith.constant dense<0.000000e+00> : vector<16x16xf32>
    %237 = tpu.matmul %233, %88, %cst_107 {dimension_numbers = #tpu.dot_dimension_numbers<[1], [0], [0], [1], [0, 0, 1, 1], [], []>} : vector<16x16xf32>, vector<16x16xf32>, vector<16x16xf32> -> vector<16x16xf32>
    %238 = vector.broadcast %91 : vector<1x16xf32> to vector<16x16xf32>
    %239 = arith.addf %237, %238 : vector<16x16xf32>
    %cst_108 = arith.constant dense<0.000000e+00> : vector<16x16xf32>
    %240 = tpu.matmul %233, %89, %cst_108 {dimension_numbers = #tpu.dot_dimension_numbers<[1], [0], [0], [1], [0, 0, 1, 1], [], []>} : vector<16x16xf32>, vector<16x16xf32>, vector<16x16xf32> -> vector<16x16xf32>
    %241 = vector.broadcast %92 : vector<1x16xf32> to vector<16x16xf32>
    %242 = arith.addf %240, %241 : vector<16x16xf32>
    %c4 = arith.constant 4 : index
    %c0_109 = arith.constant 0 : index
    %c0_110 = arith.constant 0 : index
    %243 = vector.load %arg18[%c4, %c0_109, %c0_110] : memref<8x16x16xf32, #tpu.memory_space<vmem>>, vector<1x16x16xf32>
    %244 = vector.shape_cast %243 : vector<1x16x16xf32> to vector<16x16xf32>
    %245 = arith.addf %244, %236 : vector<16x16xf32>
    %246 = arith.negf %245 : vector<16x16xf32>
    %247 = math.exp %246 : vector<16x16xf32>
    %cst_111 = arith.constant 1.000000e+00 : f32
    %248 = vector.broadcast %cst_111 : f32 to vector<16x16xf32>
    %249 = arith.addf %248, %247 : vector<16x16xf32>
    %250 = arith.divf %248, %249 : vector<16x16xf32>
    %c4_112 = arith.constant 4 : index
    %c0_113 = arith.constant 0 : index
    %c0_114 = arith.constant 0 : index
    %251 = vector.load %arg19[%c4_112, %c0_113, %c0_114] : memref<8x16x16xf32, #tpu.memory_space<vmem>>, vector<1x16x16xf32>
    %252 = vector.shape_cast %251 : vector<1x16x16xf32> to vector<16x16xf32>
    %253 = arith.addf %252, %239 : vector<16x16xf32>
    %254 = arith.negf %253 : vector<16x16xf32>
    %255 = math.exp %254 : vector<16x16xf32>
    %cst_115 = arith.constant 1.000000e+00 : f32
    %256 = vector.broadcast %cst_115 : f32 to vector<16x16xf32>
    %257 = arith.addf %256, %255 : vector<16x16xf32>
    %258 = arith.divf %256, %257 : vector<16x16xf32>
    %c4_116 = arith.constant 4 : index
    %c0_117 = arith.constant 0 : index
    %c0_118 = arith.constant 0 : index
    %259 = vector.load %arg20[%c4_116, %c0_117, %c0_118] : memref<8x16x16xf32, #tpu.memory_space<vmem>>, vector<1x16x16xf32>
    %260 = vector.shape_cast %259 : vector<1x16x16xf32> to vector<16x16xf32>
    %261 = arith.mulf %250, %242 : vector<16x16xf32>
    %262 = arith.addf %260, %261 : vector<16x16xf32>
    %263 = math.tanh %262 : vector<16x16xf32>
    %cst_119 = arith.constant 1.000000e+00 : f32
    %264 = vector.broadcast %cst_119 : f32 to vector<16x16xf32>
    %265 = arith.subf %264, %258 : vector<16x16xf32>
    %266 = arith.mulf %265, %263 : vector<16x16xf32>
    %267 = arith.mulf %258, %233 : vector<16x16xf32>
    %268 = arith.addf %266, %267 : vector<16x16xf32>
    %cst_120 = arith.constant dense<0.000000e+00> : vector<16x16xf32>
    %269 = tpu.matmul %268, %87, %cst_120 {dimension_numbers = #tpu.dot_dimension_numbers<[1], [0], [0], [1], [0, 0, 1, 1], [], []>} : vector<16x16xf32>, vector<16x16xf32>, vector<16x16xf32> -> vector<16x16xf32>
    %270 = vector.broadcast %90 : vector<1x16xf32> to vector<16x16xf32>
    %271 = arith.addf %269, %270 : vector<16x16xf32>
    %cst_121 = arith.constant dense<0.000000e+00> : vector<16x16xf32>
    %272 = tpu.matmul %268, %88, %cst_121 {dimension_numbers = #tpu.dot_dimension_numbers<[1], [0], [0], [1], [0, 0, 1, 1], [], []>} : vector<16x16xf32>, vector<16x16xf32>, vector<16x16xf32> -> vector<16x16xf32>
    %273 = vector.broadcast %91 : vector<1x16xf32> to vector<16x16xf32>
    %274 = arith.addf %272, %273 : vector<16x16xf32>
    %cst_122 = arith.constant dense<0.000000e+00> : vector<16x16xf32>
    %275 = tpu.matmul %268, %89, %cst_122 {dimension_numbers = #tpu.dot_dimension_numbers<[1], [0], [0], [1], [0, 0, 1, 1], [], []>} : vector<16x16xf32>, vector<16x16xf32>, vector<16x16xf32> -> vector<16x16xf32>
    %276 = vector.broadcast %92 : vector<1x16xf32> to vector<16x16xf32>
    %277 = arith.addf %275, %276 : vector<16x16xf32>
    %c5 = arith.constant 5 : index
    %c0_123 = arith.constant 0 : index
    %c0_124 = arith.constant 0 : index
    %278 = vector.load %arg18[%c5, %c0_123, %c0_124] : memref<8x16x16xf32, #tpu.memory_space<vmem>>, vector<1x16x16xf32>
    %279 = vector.shape_cast %278 : vector<1x16x16xf32> to vector<16x16xf32>
    %280 = arith.addf %279, %271 : vector<16x16xf32>
    %281 = arith.negf %280 : vector<16x16xf32>
    %282 = math.exp %281 : vector<16x16xf32>
    %cst_125 = arith.constant 1.000000e+00 : f32
    %283 = vector.broadcast %cst_125 : f32 to vector<16x16xf32>
    %284 = arith.addf %283, %282 : vector<16x16xf32>
    %285 = arith.divf %283, %284 : vector<16x16xf32>
    %c5_126 = arith.constant 5 : index
    %c0_127 = arith.constant 0 : index
    %c0_128 = arith.constant 0 : index
    %286 = vector.load %arg19[%c5_126, %c0_127, %c0_128] : memref<8x16x16xf32, #tpu.memory_space<vmem>>, vector<1x16x16xf32>
    %287 = vector.shape_cast %286 : vector<1x16x16xf32> to vector<16x16xf32>
    %288 = arith.addf %287, %274 : vector<16x16xf32>
    %289 = arith.negf %288 : vector<16x16xf32>
    %290 = math.exp %289 : vector<16x16xf32>
    %cst_129 = arith.constant 1.000000e+00 : f32
    %291 = vector.broadcast %cst_129 : f32 to vector<16x16xf32>
    %292 = arith.addf %291, %290 : vector<16x16xf32>
    %293 = arith.divf %291, %292 : vector<16x16xf32>
    %c5_130 = arith.constant 5 : index
    %c0_131 = arith.constant 0 : index
    %c0_132 = arith.constant 0 : index
    %294 = vector.load %arg20[%c5_130, %c0_131, %c0_132] : memref<8x16x16xf32, #tpu.memory_space<vmem>>, vector<1x16x16xf32>
    %295 = vector.shape_cast %294 : vector<1x16x16xf32> to vector<16x16xf32>
    %296 = arith.mulf %285, %277 : vector<16x16xf32>
    %297 = arith.addf %295, %296 : vector<16x16xf32>
    %298 = math.tanh %297 : vector<16x16xf32>
    %cst_133 = arith.constant 1.000000e+00 : f32
    %299 = vector.broadcast %cst_133 : f32 to vector<16x16xf32>
    %300 = arith.subf %299, %293 : vector<16x16xf32>
    %301 = arith.mulf %300, %298 : vector<16x16xf32>
    %302 = arith.mulf %293, %268 : vector<16x16xf32>
    %303 = arith.addf %301, %302 : vector<16x16xf32>
    %cst_134 = arith.constant dense<0.000000e+00> : vector<16x16xf32>
    %304 = tpu.matmul %303, %87, %cst_134 {dimension_numbers = #tpu.dot_dimension_numbers<[1], [0], [0], [1], [0, 0, 1, 1], [], []>} : vector<16x16xf32>, vector<16x16xf32>, vector<16x16xf32> -> vector<16x16xf32>
    %305 = vector.broadcast %90 : vector<1x16xf32> to vector<16x16xf32>
    %306 = arith.addf %304, %305 : vector<16x16xf32>
    %cst_135 = arith.constant dense<0.000000e+00> : vector<16x16xf32>
    %307 = tpu.matmul %303, %88, %cst_135 {dimension_numbers = #tpu.dot_dimension_numbers<[1], [0], [0], [1], [0, 0, 1, 1], [], []>} : vector<16x16xf32>, vector<16x16xf32>, vector<16x16xf32> -> vector<16x16xf32>
    %308 = vector.broadcast %91 : vector<1x16xf32> to vector<16x16xf32>
    %309 = arith.addf %307, %308 : vector<16x16xf32>
    %cst_136 = arith.constant dense<0.000000e+00> : vector<16x16xf32>
    %310 = tpu.matmul %303, %89, %cst_136 {dimension_numbers = #tpu.dot_dimension_numbers<[1], [0], [0], [1], [0, 0, 1, 1], [], []>} : vector<16x16xf32>, vector<16x16xf32>, vector<16x16xf32> -> vector<16x16xf32>
    %311 = vector.broadcast %92 : vector<1x16xf32> to vector<16x16xf32>
    %312 = arith.addf %310, %311 : vector<16x16xf32>
    %c6 = arith.constant 6 : index
    %c0_137 = arith.constant 0 : index
    %c0_138 = arith.constant 0 : index
    %313 = vector.load %arg18[%c6, %c0_137, %c0_138] : memref<8x16x16xf32, #tpu.memory_space<vmem>>, vector<1x16x16xf32>
    %314 = vector.shape_cast %313 : vector<1x16x16xf32> to vector<16x16xf32>
    %315 = arith.addf %314, %306 : vector<16x16xf32>
    %316 = arith.negf %315 : vector<16x16xf32>
    %317 = math.exp %316 : vector<16x16xf32>
    %cst_139 = arith.constant 1.000000e+00 : f32
    %318 = vector.broadcast %cst_139 : f32 to vector<16x16xf32>
    %319 = arith.addf %318, %317 : vector<16x16xf32>
    %320 = arith.divf %318, %319 : vector<16x16xf32>
    %c6_140 = arith.constant 6 : index
    %c0_141 = arith.constant 0 : index
    %c0_142 = arith.constant 0 : index
    %321 = vector.load %arg19[%c6_140, %c0_141, %c0_142] : memref<8x16x16xf32, #tpu.memory_space<vmem>>, vector<1x16x16xf32>
    %322 = vector.shape_cast %321 : vector<1x16x16xf32> to vector<16x16xf32>
    %323 = arith.addf %322, %309 : vector<16x16xf32>
    %324 = arith.negf %323 : vector<16x16xf32>
    %325 = math.exp %324 : vector<16x16xf32>
    %cst_143 = arith.constant 1.000000e+00 : f32
    %326 = vector.broadcast %cst_143 : f32 to vector<16x16xf32>
    %327 = arith.addf %326, %325 : vector<16x16xf32>
    %328 = arith.divf %326, %327 : vector<16x16xf32>
    %c6_144 = arith.constant 6 : index
    %c0_145 = arith.constant 0 : index
    %c0_146 = arith.constant 0 : index
    %329 = vector.load %arg20[%c6_144, %c0_145, %c0_146] : memref<8x16x16xf32, #tpu.memory_space<vmem>>, vector<1x16x16xf32>
    %330 = vector.shape_cast %329 : vector<1x16x16xf32> to vector<16x16xf32>
    %331 = arith.mulf %320, %312 : vector<16x16xf32>
    %332 = arith.addf %330, %331 : vector<16x16xf32>
    %333 = math.tanh %332 : vector<16x16xf32>
    %cst_147 = arith.constant 1.000000e+00 : f32
    %334 = vector.broadcast %cst_147 : f32 to vector<16x16xf32>
    %335 = arith.subf %334, %328 : vector<16x16xf32>
    %336 = arith.mulf %335, %333 : vector<16x16xf32>
    %337 = arith.mulf %328, %303 : vector<16x16xf32>
    %338 = arith.addf %336, %337 : vector<16x16xf32>
    %cst_148 = arith.constant dense<0.000000e+00> : vector<16x16xf32>
    %339 = tpu.matmul %338, %87, %cst_148 {dimension_numbers = #tpu.dot_dimension_numbers<[1], [0], [0], [1], [0, 0, 1, 1], [], []>} : vector<16x16xf32>, vector<16x16xf32>, vector<16x16xf32> -> vector<16x16xf32>
    %340 = vector.broadcast %90 : vector<1x16xf32> to vector<16x16xf32>
    %341 = arith.addf %339, %340 : vector<16x16xf32>
    %cst_149 = arith.constant dense<0.000000e+00> : vector<16x16xf32>
    %342 = tpu.matmul %338, %88, %cst_149 {dimension_numbers = #tpu.dot_dimension_numbers<[1], [0], [0], [1], [0, 0, 1, 1], [], []>} : vector<16x16xf32>, vector<16x16xf32>, vector<16x16xf32> -> vector<16x16xf32>
    %343 = vector.broadcast %91 : vector<1x16xf32> to vector<16x16xf32>
    %344 = arith.addf %342, %343 : vector<16x16xf32>
    %cst_150 = arith.constant dense<0.000000e+00> : vector<16x16xf32>
    %345 = tpu.matmul %338, %89, %cst_150 {dimension_numbers = #tpu.dot_dimension_numbers<[1], [0], [0], [1], [0, 0, 1, 1], [], []>} : vector<16x16xf32>, vector<16x16xf32>, vector<16x16xf32> -> vector<16x16xf32>
    %346 = vector.broadcast %92 : vector<1x16xf32> to vector<16x16xf32>
    %347 = arith.addf %345, %346 : vector<16x16xf32>
    %c7 = arith.constant 7 : index
    %c0_151 = arith.constant 0 : index
    %c0_152 = arith.constant 0 : index
    %348 = vector.load %arg18[%c7, %c0_151, %c0_152] : memref<8x16x16xf32, #tpu.memory_space<vmem>>, vector<1x16x16xf32>
    %349 = vector.shape_cast %348 : vector<1x16x16xf32> to vector<16x16xf32>
    %350 = arith.addf %349, %341 : vector<16x16xf32>
    %351 = arith.negf %350 : vector<16x16xf32>
    %352 = math.exp %351 : vector<16x16xf32>
    %cst_153 = arith.constant 1.000000e+00 : f32
    %353 = vector.broadcast %cst_153 : f32 to vector<16x16xf32>
    %354 = arith.addf %353, %352 : vector<16x16xf32>
    %355 = arith.divf %353, %354 : vector<16x16xf32>
    %c7_154 = arith.constant 7 : index
    %c0_155 = arith.constant 0 : index
    %c0_156 = arith.constant 0 : index
    %356 = vector.load %arg19[%c7_154, %c0_155, %c0_156] : memref<8x16x16xf32, #tpu.memory_space<vmem>>, vector<1x16x16xf32>
    %357 = vector.shape_cast %356 : vector<1x16x16xf32> to vector<16x16xf32>
    %358 = arith.addf %357, %344 : vector<16x16xf32>
    %359 = arith.negf %358 : vector<16x16xf32>
    %360 = math.exp %359 : vector<16x16xf32>
    %cst_157 = arith.constant 1.000000e+00 : f32
    %361 = vector.broadcast %cst_157 : f32 to vector<16x16xf32>
    %362 = arith.addf %361, %360 : vector<16x16xf32>
    %363 = arith.divf %361, %362 : vector<16x16xf32>
    %c7_158 = arith.constant 7 : index
    %c0_159 = arith.constant 0 : index
    %c0_160 = arith.constant 0 : index
    %364 = vector.load %arg20[%c7_158, %c0_159, %c0_160] : memref<8x16x16xf32, #tpu.memory_space<vmem>>, vector<1x16x16xf32>
    %365 = vector.shape_cast %364 : vector<1x16x16xf32> to vector<16x16xf32>
    %366 = arith.mulf %355, %347 : vector<16x16xf32>
    %367 = arith.addf %365, %366 : vector<16x16xf32>
    %368 = math.tanh %367 : vector<16x16xf32>
    %cst_161 = arith.constant 1.000000e+00 : f32
    %369 = vector.broadcast %cst_161 : f32 to vector<16x16xf32>
    %370 = arith.subf %369, %363 : vector<16x16xf32>
    %371 = arith.mulf %370, %368 : vector<16x16xf32>
    %372 = arith.mulf %363, %338 : vector<16x16xf32>
    %373 = arith.addf %371, %372 : vector<16x16xf32>
    %c0_162 = arith.constant 0 : index
    %c0_163 = arith.constant 0 : index
    %374 = vector.load %arg17[%c0_162, %c0_163] : memref<16x16xf32, #tpu.memory_space<vmem>>, vector<16x16xf32>
    tpu.vector_store %arg17[%c0_162, %c0_163], %373 {strides = array<i32>} : memref<16x16xf32, #tpu.memory_space<vmem>>, vector<16x16xf32>,
    return
  }
  func.func @transform_0(%arg0: i32) -> (i32, i32, i32) {
    %c0_i32 = arith.constant 0 : i32
    %c0_i32_0 = arith.constant 0 : i32
    %c0_i32_1 = arith.constant 0 : i32
    %c0_i32_2 = arith.constant 0 : i32
    return %c0_i32, %c0_i32_0, %c0_i32_1 : i32, i32, i32
  }
  func.func @transform_1(%arg0: i32) -> (i32, i32, i32) {
    %c0_i32 = arith.constant 0 : i32
    %c0_i32_0 = arith.constant 0 : i32
    %c0_i32_1 = arith.constant 0 : i32
    %c0_i32_2 = arith.constant 0 : i32
    return %c0_i32, %c0_i32_0, %c0_i32_1 : i32, i32, i32
  }
  func.func @transform_2(%arg0: i32) -> (i32, i32) {
    %c0_i32 = arith.constant 0 : i32
    %c0_i32_0 = arith.constant 0 : i32
    %c0_i32_1 = arith.constant 0 : i32
    return %c0_i32, %c0_i32_0 : i32, i32
  }
  func.func @transform_3(%arg0: i32) -> (i32, i32) {
    %c0_i32 = arith.constant 0 : i32
    %c0_i32_0 = arith.constant 0 : i32
    %c0_i32_1 = arith.constant 0 : i32
    return %c0_i32, %c0_i32_0 : i32, i32
  }
  func.func @transform_4(%arg0: i32) -> (i32, i32) {
    %c0_i32 = arith.constant 0 : i32
    %c0_i32_0 = arith.constant 0 : i32
    %c0_i32_1 = arith.constant 0 : i32
    return %c0_i32, %c0_i32_0 : i32, i32
  }
  func.func @transform_5(%arg0: i32) -> (i32, i32) {
    %c0_i32 = arith.constant 0 : i32
    %c0_i32_0 = arith.constant 0 : i32
    %c0_i32_1 = arith.constant 0 : i32
    return %c0_i32, %c0_i32_0 : i32, i32
  }
  func.func @transform_6(%arg0: i32) -> (i32, i32) {
    %c0_i32 = arith.constant 0 : i32
    %c0_i32_0 = arith.constant 0 : i32
    %c0_i32_1 = arith.constant 0 : i32
    return %c0_i32, %c0_i32_0 : i32, i32
  }
  func.func @transform_7(%arg0: i32) -> (i32, i32) {
    %c0_i32 = arith.constant 0 : i32
    %c0_i32_0 = arith.constant 0 : i32
    %c0_i32_1 = arith.constant 0 : i32
    return %c0_i32, %c0_i32_0 : i32, i32
  }
  func.func @transform_8(%arg0: i32) -> (i32, i32) {
    %c0_i32 = arith.constant 0 : i32
    %c0_i32_0 = arith.constant 0 : i32
    %c0_i32_1 = arith.constant 0 : i32
    return %c0_i32, %c0_i32_0 : i32, i32
  }
  func.func @transform_9(%arg0: i32) -> (i32, i32) {
    %c0_i32 = arith.constant 0 : i32
    %c0_i32_0 = arith.constant 0 : i32
    %c0_i32_1 = arith.constant 0 : i32
    return %c0_i32, %c0_i32_0 : i32, i32
  }
  func.func @transform_10(%arg0: i32) -> (i32, i32) {
    %c0_i32 = arith.constant 0 : i32
    %c0_i32_0 = arith.constant 0 : i32
    %c0_i32_1 = arith.constant 0 : i32
    return %c0_i32, %c0_i32_0 : i32, i32
  }
  func.func @transform_11(%arg0: i32) -> (i32, i32) {
    %c0_i32 = arith.constant 0 : i32
    %c0_i32_0 = arith.constant 0 : i32
    %c0_i32_1 = arith.constant 0 : i32
    return %c0_i32, %c0_i32_0 : i32, i32
  }
  func.func @transform_12(%arg0: i32) -> (i32, i32) {
    %c0_i32 = arith.constant 0 : i32
    %c0_i32_0 = arith.constant 0 : i32
    %c0_i32_1 = arith.constant 0 : i32
    return %c0_i32, %c0_i32_0 : i32, i32
  }
  func.func @transform_13(%arg0: i32) -> (i32, i32) {
    %c0_i32 = arith.constant 0 : i32
    %c0_i32_0 = arith.constant 0 : i32
    %c0_i32_1 = arith.constant 0 : i32
    return %c0_i32, %c0_i32_0 : i32, i32
  }
  func.func @transform_14(%arg0: i32) -> (i32, i32) {
    %c0_i32 = arith.constant 0 : i32
    %c0_i32_0 = arith.constant 0 : i32
    %c0_i32_1 = arith.constant 0 : i32
    return %c0_i32, %c0_i32_0 : i32, i32
  }
  func.func @transform_15(%arg0: i32) -> (i32, i32) {
    %c0_i32 = arith.constant 0 : i32
    %c0_i32_0 = arith.constant 0 : i32
    %c0_i32_1 = arith.constant 0 : i32
    return %c0_i32, %c0_i32_0 : i32, i32
  }
  func.func @transform_16(%arg0: i32) -> (i32, i32) {
    %c0_i32 = arith.constant 0 : i32
    %c0_i32_0 = arith.constant 0 : i32
    %c0_i32_1 = arith.constant 0 : i32
    return %c0_i32, %c0_i32_0 : i32, i32
  }
}

</mosaic_0001>

<llo_original>
// kernel: hsdgnn_forward.6
$region0: #{hsdgnn_forward.6}
  #allocation0 [shape = 'u32[]', space=smem, size = 0x4, offset = 0x4, fixed_abs, tag = 'smem constant byte address 0x4 - core index']
  #allocation1 [shape = 'u32[72,128]{1,0:T(1,128)}', space=vmem, size = 0x9000, scoped, tag = 'internal scratch']
  #allocation2 [shape = 'f32[8,16,16]{2,1,0:T(8,128)}', space=vmem, size = 0x10000, scoped, tag = 'scratch operand']
  #allocation3 [shape = 'f32[8,16,16]{2,1,0:T(8,128)}', space=vmem, size = 0x10000, scoped, tag = 'scratch operand']
  #allocation4 [shape = 'f32[8,16,16]{2,1,0:T(8,128)}', space=vmem, size = 0x10000, scoped, tag = 'scratch operand']
  %s0 = inlined_call_operand.vmem [shape: f32[8,16,8], index: 0, kind: input, shape index: {}]
  %s1 = inlined_call_operand.vmem [shape: f32[8,48], index: 1, kind: input, shape index: {}]
  %s2 = inlined_call_operand.vmem [shape: f32[16,16], index: 2, kind: input, shape index: {}]
  %s3 = inlined_call_operand.vmem [shape: f32[16,16], index: 3, kind: input, shape index: {}]
  %s4 = inlined_call_operand.vmem [shape: f32[16,16], index: 4, kind: input, shape index: {}]
  %s5 = inlined_call_operand.vmem [shape: f32[1,48], index: 5, kind: input, shape index: {}]
  %s6 = inlined_call_operand.vmem [shape: f32[1,16], index: 6, kind: input, shape index: {}]
  %s7 = inlined_call_operand.vmem [shape: f32[1,16], index: 7, kind: input, shape index: {}]
  %s8 = inlined_call_operand.vmem [shape: f32[1,16], index: 8, kind: input, shape index: {}]
  %s9 = inlined_call_operand.vmem [shape: f32[8,16,16], index: 9, kind: output, shape index: {}]
  %s10 = sld [smem:[#allocation0]]
  $region46: #{hsdgnn_forward.6} parent=0
    _
  %s12 = ssub.s32 1, %s10
  %s13 = scalar_select 0, %s12, %s10
  // Predicated region
  $region2: #{hsdgnn_forward.6} parent=0 // pred_check
    _
  $region3: #{hsdgnn_forward.6} parent=0 // pred_check_branch
    %15 = sbr.rel (0) target = $region5
  $region4: #{hsdgnn_forward.6} parent=0 // pred_region
    _
  $region5: #{hsdgnn_forward.6} parent=0 // pred_fallthru
    _
  // Predicated region
  $region6: #{hsdgnn_forward.6} parent=0 // pred_check
    _
  $region7: #{hsdgnn_forward.6} parent=0 // pred_check_branch
    %17 = sbr.rel (0) target = $region9
  $region8: #{hsdgnn_forward.6} parent=0 // pred_region
    _
  $region9: #{hsdgnn_forward.6} parent=0 // pred_fallthru
    _
  // Predicated region
  $region10: #{hsdgnn_forward.6} parent=0 // pred_check
    _
  $region11: #{hsdgnn_forward.6} parent=0 // pred_check_branch
    %19 = sbr.rel (0) target = $region13
  $region12: #{hsdgnn_forward.6} parent=0 // pred_region
    _
  $region13: #{hsdgnn_forward.6} parent=0 // pred_fallthru
    _
  // Predicated region
  $region14: #{hsdgnn_forward.6} parent=0 // pred_check
    _
  $region15: #{hsdgnn_forward.6} parent=0 // pred_check_branch
    %21 = sbr.rel (0) target = $region17
  $region16: #{hsdgnn_forward.6} parent=0 // pred_region
    _
  $region17: #{hsdgnn_forward.6} parent=0 // pred_fallthru
    _
  // Predicated region
  $region18: #{hsdgnn_forward.6} parent=0 // pred_check
    _
  $region19: #{hsdgnn_forward.6} parent=0 // pred_check_branch
    %23 = sbr.rel (0) target = $region21
  $region20: #{hsdgnn_forward.6} parent=0 // pred_region
    _
  $region21: #{hsdgnn_forward.6} parent=0 // pred_fallthru
    _
  // Predicated region
  $region22: #{hsdgnn_forward.6} parent=0 // pred_check
    _
  $region23: #{hsdgnn_forward.6} parent=0 // pred_check_branch
    %25 = sbr.rel (0) target = $region25
  $region24: #{hsdgnn_forward.6} parent=0 // pred_region
    _
  $region25: #{hsdgnn_forward.6} parent=0 // pred_fallthru
    _
  // Predicated region
  $region26: #{hsdgnn_forward.6} parent=0 // pred_check
    _
  $region27: #{hsdgnn_forward.6} parent=0 // pred_check_branch
    %27 = sbr.rel (0) target = $region29
  $region28: #{hsdgnn_forward.6} parent=0 // pred_region
    _
  $region29: #{hsdgnn_forward.6} parent=0 // pred_fallthru
    _
  // Predicated region
  $region30: #{hsdgnn_forward.6} parent=0 // pred_check
    _
  $region31: #{hsdgnn_forward.6} parent=0 // pred_check_branch
    %29 = sbr.rel (0) target = $region33
  $region32: #{hsdgnn_forward.6} parent=0 // pred_region
    _
  $region33: #{hsdgnn_forward.6} parent=0 // pred_fallthru
    _
  // Predicated region
  $region34: #{hsdgnn_forward.6} parent=0 // pred_check
    _
  $region35: #{hsdgnn_forward.6} parent=0 // pred_check_branch
    %31 = sbr.rel (0) target = $region37
  $region36: #{hsdgnn_forward.6} parent=0 // pred_region
    _
  $region37: #{hsdgnn_forward.6} parent=0 // pred_fallthru
    _
  %v32 = vld [vmem:[%s0] sm:$0xff]
  %v33 = vld [vmem:[%s0 + $0x8] sm:$0xff]
  %v34 = vld [vmem:[%s0 + $0x10] sm:$0xff]
  %v35 = vld [vmem:[%s0 + $0x18] sm:$0xff]
  %v36 = vld [vmem:[%s0 + $0x20] sm:$0xff]
  %v37 = vld [vmem:[%s0 + $0x28] sm:$0xff]
  %v38 = vld [vmem:[%s0 + $0x30] sm:$0xff]
  %v39 = vld [vmem:[%s0 + $0x38] sm:$0xff]
  %v40 = vld [vmem:[%s0 + $0x40] sm:$0xff]
  %v41 = vld [vmem:[%s0 + $0x48] sm:$0xff]
  %v42 = vld [vmem:[%s0 + $0x50] sm:$0xff]
  %v43 = vld [vmem:[%s0 + $0x58] sm:$0xff]
  %v44 = vld [vmem:[%s0 + $0x60] sm:$0xff]
  %v45 = vld [vmem:[%s0 + $0x68] sm:$0xff]
  %v46 = vld [vmem:[%s0 + $0x70] sm:$0xff]
  %v47 = vld [vmem:[%s0 + $0x78] sm:$0xff]
  %v48 = vld [vmem:[%s1] sm:$0xff]
  %v49 = vld [vmem:[%s5] sm:$0x1]
  %v51 = vperm.slane %v49, 0
  %vm53 = vcmask 64512
  %v55 = vsel %vm53, %v32, 0
  %v58 = vsel %vm53, %v33, 0
  %v61 = vsel %vm53, %v34, 0
  %v64 = vsel %vm53, %v35, 0
  %v67 = vsel %vm53, %v36, 0
  %v70 = vsel %vm53, %v37, 0
  %v73 = vsel %vm53, %v38, 0
  %v76 = vsel %vm53, %v39, 0
  %v79 = vsel %vm53, %v40, 0
  %v82 = vsel %vm53, %v41, 0
  %v85 = vsel %vm53, %v42, 0
  %v88 = vsel %vm53, %v43, 0
  %v91 = vsel %vm53, %v44, 0
  %v94 = vsel %vm53, %v45, 0
  %v97 = vsel %vm53, %v46, 0
  %v100 = vsel %vm53, %v47, 0
  %102 = vmatpush.msra.mxu0 0.0
  %103 = vmatpush.msra.mxu0 0.0
  %104 = vmatpush.msra.mxu0 0.0
  %105 = vmatpush.msra.mxu0 0.0
  %106 = vmatpush.msra.mxu0 0.0
  %107 = vmatpush.msra.mxu0 0.0
  %108 = vmatpush.msra.mxu0 0.0
  %109 = vmatpush.msra.mxu0 0.0
  %110 = vmatpush.msra.mxu0 0.0
  %111 = vmatpush.msra.mxu0 0.0
  %112 = vmatpush.msra.mxu0 0.0
  %113 = vmatpush.msra.mxu0 0.0
  %114 = vmatpush.msra.mxu0 0.0
  %115 = vmatpush.msra.mxu0 0.0
  %116 = vmatpush.msra.mxu0 0.0
  %117 = vmatpush.msra.mxu0 %v48
  %118 = vmatmul.f32.gmra.mxu0 %v55
  %v119 = vpop.f32.mrf.mxu0
  %v120 = vadd.f32 %v51, %v119
  %121 = vmatmul.f32.gmra.mxu0 %v58
  %v122 = vpop.f32.mrf.mxu0
  %v123 = vadd.f32 %v51, %v122
  %124 = vmatmul.f32.gmra.mxu0 %v61
  %v125 = vpop.f32.mrf.mxu0
  %v126 = vadd.f32 %v51, %v125
  %127 = vmatmul.f32.gmra.mxu0 %v64
  %v128 = vpop.f32.mrf.mxu0
  %v129 = vadd.f32 %v51, %v128
  %130 = vmatmul.f32.gmra.mxu0 %v67
  %v131 = vpop.f32.mrf.mxu0
  %v132 = vadd.f32 %v51, %v131
  %133 = vmatmul.f32.gmra.mxu0 %v70
  %v134 = vpop.f32.mrf.mxu0
  %v135 = vadd.f32 %v51, %v134
  %136 = vmatmul.f32.gmra.mxu0 %v73
  %v137 = vpop.f32.mrf.mxu0
  %v138 = vadd.f32 %v51, %v137
  %139 = vmatmul.f32.gmra.mxu0 %v76
  %v140 = vpop.f32.mrf.mxu0
  %v141 = vadd.f32 %v51, %v140
  %142 = vmatmul.f32.gmra.mxu0 %v79
  %v143 = vpop.f32.mrf.mxu0
  %v144 = vadd.f32 %v51, %v143
  %145 = vmatmul.f32.gmra.mxu0 %v82
  %v146 = vpop.f32.mrf.mxu0
  %v147 = vadd.f32 %v51, %v146
  %148 = vmatmul.f32.gmra.mxu0 %v85
  %v149 = vpop.f32.mrf.mxu0
  %v150 = vadd.f32 %v51, %v149
  %151 = vmatmul.f32.gmra.mxu0 %v88
  %v152 = vpop.f32.mrf.mxu0
  %v153 = vadd.f32 %v51, %v152
  %154 = vmatmul.f32.gmra.mxu0 %v91
  %v155 = vpop.f32.mrf.mxu0
  %v156 = vadd.f32 %v51, %v155
  %157 = vmatmul.f32.gmra.mxu0 %v94
  %v158 = vpop.f32.mrf.mxu0
  %v159 = vadd.f32 %v51, %v158
  %160 = vmatmul.f32.gmra.mxu0 %v97
  %v161 = vpop.f32.mrf.mxu0
  %v162 = vadd.f32 %v51, %v161
  %163 = vmatmul.f32.gmra.mxu0 %v100
  %v164 = vpop.f32.mrf.mxu0
  %v165 = vadd.f32 %v51, %v164
  %166 = vdwg.mxu0
  %vm167 = vcmask 130048
  %168 = vst.msk [vmem:[#allocation2] sm:$0xff] %vm167, %v120
  %169 = vst.msk [vmem:[#allocation2 + $0x8] sm:$0xff] %vm167, %v123
  %170 = vst.msk [vmem:[#allocation2 + $0x10] sm:$0xff] %vm167, %v126
  %171 = vst.msk [vmem:[#allocation2 + $0x18] sm:$0xff] %vm167, %v129
  %172 = vst.msk [vmem:[#allocation2 + $0x20] sm:$0xff] %vm167, %v132
  %173 = vst.msk [vmem:[#allocation2 + $0x28] sm:$0xff] %vm167, %v135
  %174 = vst.msk [vmem:[#allocation2 + $0x30] sm:$0xff] %vm167, %v138
  %175 = vst.msk [vmem:[#allocation2 + $0x38] sm:$0xff] %vm167, %v141
  %176 = vst.msk [vmem:[#allocation2 + $0x40] sm:$0xff] %vm167, %v144
  %177 = vst.msk [vmem:[#allocation2 + $0x48] sm:$0xff] %vm167, %v147
  %178 = vst.msk [vmem:[#allocation2 + $0x50] sm:$0xff] %vm167, %v150
  %179 = vst.msk [vmem:[#allocation2 + $0x58] sm:$0xff] %vm167, %v153
  %180 = vst.msk [vmem:[#allocation2 + $0x60] sm:$0xff] %vm167, %v156
  %181 = vst.msk [vmem:[#allocation2 + $0x68] sm:$0xff] %vm167, %v159
  %182 = vst.msk [vmem:[#allocation2 + $0x70] sm:$0xff] %vm167, %v162
  %183 = vst.msk [vmem:[#allocation2 + $0x78] sm:$0xff] %vm167, %v165
  %200 = vrot.lane.b32.xlu0 %v120, 112
  %v201 = vpop.permute.xlu0 %200
  %202 = vrot.lane.b32.xlu0 %v123, 112
  %v203 = vpop.permute.xlu0 %202
  %204 = vrot.lane.b32.xlu0 %v126, 112
  %v205 = vpop.permute.xlu0 %204
  %206 = vrot.lane.b32.xlu0 %v129, 112
  %v207 = vpop.permute.xlu0 %206
  %208 = vrot.lane.b32.xlu0 %v132, 112
  %v209 = vpop.permute.xlu0 %208
  %210 = vrot.lane.b32.xlu0 %v135, 112
  %v211 = vpop.permute.xlu0 %210
  %212 = vrot.lane.b32.xlu0 %v138, 112
  %v213 = vpop.permute.xlu0 %212
  %214 = vrot.lane.b32.xlu0 %v141, 112
  %v215 = vpop.permute.xlu0 %214
  %216 = vrot.lane.b32.xlu0 %v144, 112
  %v217 = vpop.permute.xlu0 %216
  %218 = vrot.lane.b32.xlu0 %v147, 112
  %v219 = vpop.permute.xlu0 %218
  %220 = vrot.lane.b32.xlu0 %v150, 112
  %v221 = vpop.permute.xlu0 %220
  %222 = vrot.lane.b32.xlu0 %v153, 112
  %v223 = vpop.permute.xlu0 %222
  %224 = vrot.lane.b32.xlu0 %v156, 112
  %v225 = vpop.permute.xlu0 %224
  %226 = vrot.lane.b32.xlu0 %v159, 112
  %v227 = vpop.permute.xlu0 %226
  %228 = vrot.lane.b32.xlu0 %v162, 112
  %v229 = vpop.permute.xlu0 %228
  %230 = vrot.lane.b32.xlu0 %v165, 112
  %v231 = vpop.permute.xlu0 %230
  %248 = vst.msk [vmem:[#allocation3] sm:$0xff] %vm167, %v201
  %249 = vst.msk [vmem:[#allocation3 + $0x8] sm:$0xff] %vm167, %v203
  %250 = vst.msk [vmem:[#allocation3 + $0x10] sm:$0xff] %vm167, %v205
  %251 = vst.msk [vmem:[#allocation3 + $0x18] sm:$0xff] %vm167, %v207
  %252 = vst.msk [vmem:[#allocation3 + $0x20] sm:$0xff] %vm167, %v209
  %253 = vst.msk [vmem:[#allocation3 + $0x28] sm:$0xff] %vm167, %v211
  %254 = vst.msk [vmem:[#allocation3 + $0x30] sm:$0xff] %vm167, %v213
  %255 = vst.msk [vmem:[#allocation3 + $0x38] sm:$0xff] %vm167, %v215
  %256 = vst.msk [vmem:[#allocation3 + $0x40] sm:$0xff] %vm167, %v217
  %257 = vst.msk [vmem:[#allocation3 + $0x48] sm:$0xff] %vm167, %v219
  %258 = vst.msk [vmem:[#allocation3 + $0x50] sm:$0xff] %vm167, %v221
  %259 = vst.msk [vmem:[#allocation3 + $0x58] sm:$0xff] %vm167, %v223
  %260 = vst.msk [vmem:[#allocation3 + $0x60] sm:$0xff] %vm167, %v225
  %261 = vst.msk [vmem:[#allocation3 + $0x68] sm:$0xff] %vm167, %v227
  %262 = vst.msk [vmem:[#allocation3 + $0x70] sm:$0xff] %vm167, %v229
  %263 = vst.msk [vmem:[#allocation3 + $0x78] sm:$0xff] %vm167, %v231
  %264 = vrot.lane.b32.xlu0 %v120, 96
  %v265 = vpop.permute.xlu0 %264
  %266 = vrot.lane.b32.xlu0 %v123, 96
  %v267 = vpop.permute.xlu0 %266
  %268 = vrot.lane.b32.xlu0 %v126, 96
  %v269 = vpop.permute.xlu0 %268
  %270 = vrot.lane.b32.xlu0 %v129, 96
  %v271 = vpop.permute.xlu0 %270
  %272 = vrot.lane.b32.xlu0 %v132, 96
  %v273 = vpop.permute.xlu0 %272
  %274 = vrot.lane.b32.xlu0 %v135, 96
  %v275 = vpop.permute.xlu0 %274
  %276 = vrot.lane.b32.xlu0 %v138, 96
  %v277 = vpop.permute.xlu0 %276
  %278 = vrot.lane.b32.xlu0 %v141, 96
  %v279 = vpop.permute.xlu0 %278
  %280 = vrot.lane.b32.xlu0 %v144, 96
  %v281 = vpop.permute.xlu0 %280
  %282 = vrot.lane.b32.xlu0 %v147, 96
  %v283 = vpop.permute.xlu0 %282
  %284 = vrot.lane.b32.xlu0 %v150, 96
  %v285 = vpop.permute.xlu0 %284
  %286 = vrot.lane.b32.xlu0 %v153, 96
  %v287 = vpop.permute.xlu0 %286
  %288 = vrot.lane.b32.xlu0 %v156, 96
  %v289 = vpop.permute.xlu0 %288
  %290 = vrot.lane.b32.xlu0 %v159, 96
  %v291 = vpop.permute.xlu0 %290
  %292 = vrot.lane.b32.xlu0 %v162, 96
  %v293 = vpop.permute.xlu0 %292
  %294 = vrot.lane.b32.xlu0 %v165, 96
  %v295 = vpop.permute.xlu0 %294
  %312 = vst.msk [vmem:[#allocation4] sm:$0xff] %vm167, %v265
  %313 = vst.msk [vmem:[#allocation4 + $0x8] sm:$0xff] %vm167, %v267
  %314 = vst.msk [vmem:[#allocation4 + $0x10] sm:$0xff] %vm167, %v269
  %315 = vst.msk [vmem:[#allocation4 + $0x18] sm:$0xff] %vm167, %v271
  %316 = vst.msk [vmem:[#allocation4 + $0x20] sm:$0xff] %vm167, %v273
  %317 = vst.msk [vmem:[#allocation4 + $0x28] sm:$0xff] %vm167, %v275
  %318 = vst.msk [vmem:[#allocation4 + $0x30] sm:$0xff] %vm167, %v277
  %319 = vst.msk [vmem:[#allocation4 + $0x38] sm:$0xff] %vm167, %v279
  %320 = vst.msk [vmem:[#allocation4 + $0x40] sm:$0xff] %vm167, %v281
  %321 = vst.msk [vmem:[#allocation4 + $0x48] sm:$0xff] %vm167, %v283
  %322 = vst.msk [vmem:[#allocation4 + $0x50] sm:$0xff] %vm167, %v285
  %323 = vst.msk [vmem:[#allocation4 + $0x58] sm:$0xff] %vm167, %v287
  %324 = vst.msk [vmem:[#allocation4 + $0x60] sm:$0xff] %vm167, %v289
  %325 = vst.msk [vmem:[#allocation4 + $0x68] sm:$0xff] %vm167, %v291
  %326 = vst.msk [vmem:[#allocation4 + $0x70] sm:$0xff] %vm167, %v293
  %327 = vst.msk [vmem:[#allocation4 + $0x78] sm:$0xff] %vm167, %v295
  %v328 = vld [vmem:[%s2] sm:$0xff]
  %v329 = vld [vmem:[%s2 + $0x8] sm:$0xff]
  %v330 = vld [vmem:[%s3] sm:$0xff]
  %v331 = vld [vmem:[%s3 + $0x8] sm:$0xff]
  %v332 = vld [vmem:[%s4] sm:$0xff]
  %v333 = vld [vmem:[%s4 + $0x8] sm:$0xff]
  %v334 = vld [vmem:[%s6] sm:$0x1]
  %v335 = vld [vmem:[%s7] sm:$0x1]
  %v336 = vld [vmem:[%s8] sm:$0x1]
  %v338 = vperm.slane %v334, 0
  %v341 = vsel %vm167, 0.0, 0
  %343 = vmatpush.msra.mxu0 0.0
  %344 = vmatpush.msra.mxu0 0.0
  %345 = vmatpush.msra.mxu0 0.0
  %346 = vmatpush.msra.mxu0 0.0
  %347 = vmatpush.msra.mxu0 0.0
  %348 = vmatpush.msra.mxu0 0.0
  %349 = vmatpush.msra.mxu0 0.0
  %350 = vmatpush.msra.mxu0 0.0
  %351 = vmatpush.msra.mxu0 0.0
  %352 = vmatpush.msra.mxu0 0.0
  %353 = vmatpush.msra.mxu0 0.0
  %354 = vmatpush.msra.mxu0 0.0
  %355 = vmatpush.msra.mxu0 0.0
  %356 = vmatpush.msra.mxu0 0.0
  %357 = vmatpush.msra.mxu0 %v329
  %358 = vmatpush.msra.mxu0 %v328
  %359 = vmatmul.f32.gmra.mxu0 %v341
  %v360 = vpop.f32.mrf.mxu0
  %v361 = vadd.f32 %v338, %v360
  %362 = vmatmul.f32.gmra.mxu0 %v341
  %v363 = vpop.f32.mrf.mxu0
  %v364 = vadd.f32 %v338, %v363
  %365 = vdwg.mxu0
  %v367 = vperm.slane %v335, 0
  %369 = vmatpush.msra.mxu0 0.0
  %370 = vmatpush.msra.mxu0 0.0
  %371 = vmatpush.msra.mxu0 0.0
  %372 = vmatpush.msra.mxu0 0.0
  %373 = vmatpush.msra.mxu0 0.0
  %374 = vmatpush.msra.mxu0 0.0
  %375 = vmatpush.msra.mxu0 0.0
  %376 = vmatpush.msra.mxu0 0.0
  %377 = vmatpush.msra.mxu0 0.0
  %378 = vmatpush.msra.mxu0 0.0
  %379 = vmatpush.msra.mxu0 0.0
  %380 = vmatpush.msra.mxu0 0.0
  %381 = vmatpush.msra.mxu0 0.0
  %382 = vmatpush.msra.mxu0 0.0
  %383 = vmatpush.msra.mxu0 %v331
  %384 = vmatpush.msra.mxu0 %v330
  %385 = vmatmul.f32.gmra.mxu0 %v341
  %v386 = vpop.f32.mrf.mxu0
  %v387 = vadd.f32 %v367, %v386
  %388 = vmatmul.f32.gmra.mxu0 %v341
  %v389 = vpop.f32.mrf.mxu0
  %v390 = vadd.f32 %v367, %v389
  %391 = vdwg.mxu0
  %v393 = vperm.slane %v336, 0
  %395 = vmatpush.msra.mxu0 0.0
  %396 = vmatpush.msra.mxu0 0.0
  %397 = vmatpush.msra.mxu0 0.0
  %398 = vmatpush.msra.mxu0 0.0
  %399 = vmatpush.msra.mxu0 0.0
  %400 = vmatpush.msra.mxu0 0.0
  %401 = vmatpush.msra.mxu0 0.0
  %402 = vmatpush.msra.mxu0 0.0
  %403 = vmatpush.msra.mxu0 0.0
  %404 = vmatpush.msra.mxu0 0.0
  %405 = vmatpush.msra.mxu0 0.0
  %406 = vmatpush.msra.mxu0 0.0
  %407 = vmatpush.msra.mxu0 0.0
  %408 = vmatpush.msra.mxu0 0.0
  %409 = vmatpush.msra.mxu0 %v333
  %410 = vmatpush.msra.mxu0 %v332
  %411 = vmatmul.f32.gmra.mxu0 %v341
  %v412 = vpop.f32.mrf.mxu0
  %v413 = vadd.f32 %v393, %v412
  %414 = vmatmul.f32.gmra.mxu0 %v341
  %v415 = vpop.f32.mrf.mxu0
  %v416 = vadd.f32 %v393, %v415
  %417 = vdwg.mxu0
  %v418 = vld [vmem:[#allocation2] sm:$0xff]
  %v419 = vld [vmem:[#allocation2 + $0x8] sm:$0xff]
  %v420 = vadd.f32 %v418, %v361
  %v421 = vadd.f32 %v419, %v364
  %v422 = vxor.u32 %v420, 2147483648
  %v423 = vxor.u32 %v421, 2147483648
  %v424 = vmul.f32 %v422, 1.442695
  %v425 = vpow.pop %v424
  %v426 = vmul.f32 %v423, 1.442695
  %v427 = vpow.pop %v426
  %v428 = vadd.f32 %v425, 1.0
  %v429 = vadd.f32 %v427, 1.0
  %v430 = vrcp.pop %v428
  %v431 = vmul.f32 %v428, %v430
  %v432 = vsub.f32 1.0, %v431
  %v433 = vmul.f32 %v430, %v432
  %v434 = vadd.f32 %v430, %v433
  %vm435 = vweird.f32 %v428
  %vm436 = vweird.f32 %v430
  %vm437 = vmor %vm435, %vm436
  %v438 = vsel %vm437, %v430, %v434
  %v439 = vand.u32 2147483647, %v428
  %vm440 = vcmp.eq.f32.partialorder %v439, 8.507059e+37
  %v441 = vand.u32 %v428, 2147483648
  %v442 = vor.u32 1.1754944e-38, %v441
  %v443 = vsel %vm440, %v442, %v438
  %v444 = vmul.f32 1.0, %v443
  %v445 = vrcp.pop %v429
  %v446 = vmul.f32 %v429, %v445
  %v447 = vsub.f32 1.0, %v446
  %v448 = vmul.f32 %v445, %v447
  %v449 = vadd.f32 %v445, %v448
  %vm450 = vweird.f32 %v429
  %vm451 = vweird.f32 %v445
  %vm452 = vmor %vm450, %vm451
  %v453 = vsel %vm452, %v445, %v449
  %v454 = vand.u32 2147483647, %v429
  %vm455 = vcmp.eq.f32.partialorder %v454, 8.507059e+37
  %v456 = vand.u32 %v429, 2147483648
  %v457 = vor.u32 1.1754944e-38, %v456
  %v458 = vsel %vm455, %v457, %v453
  %v459 = vmul.f32 1.0, %v458
  %v460 = vld [vmem:[#allocation3] sm:$0xff]
  %v461 = vld [vmem:[#allocation3 + $0x8] sm:$0xff]
  %v462 = vadd.f32 %v460, %v387
  %v463 = vadd.f32 %v461, %v390
  %v464 = vxor.u32 %v462, 2147483648
  %v465 = vxor.u32 %v463, 2147483648
  %v466 = vmul.f32 %v464, 1.442695
  %v467 = vpow.pop %v466
  %v468 = vmul.f32 %v465, 1.442695
  %v469 = vpow.pop %v468
  %v470 = vadd.f32 %v467, 1.0
  %v471 = vadd.f32 %v469, 1.0
  %v472 = vrcp.pop %v470
  %v473 = vmul.f32 %v470, %v472
  %v474 = vsub.f32 1.0, %v473
  %v475 = vmul.f32 %v472, %v474
  %v476 = vadd.f32 %v472, %v475
  %vm477 = vweird.f32 %v470
  %vm478 = vweird.f32 %v472
  %vm479 = vmor %vm477, %vm478
  %v480 = vsel %vm479, %v472, %v476
  %v481 = vand.u32 2147483647, %v470
  %vm482 = vcmp.eq.f32.partialorder %v481, 8.507059e+37
  %v483 = vand.u32 %v470, 2147483648
  %v484 = vor.u32 1.1754944e-38, %v483
  %v485 = vsel %vm482, %v484, %v480
  %v486 = vmul.f32 1.0, %v485
  %v487 = vrcp.pop %v471
  %v488 = vmul.f32 %v471, %v487
  %v489 = vsub.f32 1.0, %v488
  %v490 = vmul.f32 %v487, %v489
  %v491 = vadd.f32 %v487, %v490
  %vm492 = vweird.f32 %v471
  %vm493 = vweird.f32 %v487
  %vm494 = vmor %vm492, %vm493
  %v495 = vsel %vm494, %v487, %v491
  %v496 = vand.u32 2147483647, %v471
  %vm497 = vcmp.eq.f32.partialorder %v496, 8.507059e+37
  %v498 = vand.u32 %v471, 2147483648
  %v499 = vor.u32 1.1754944e-38, %v498
  %v500 = vsel %vm497, %v499, %v495
  %v501 = vmul.f32 1.0, %v500
  %v502 = vld [vmem:[#allocation4] sm:$0xff]
  %v503 = vld [vmem:[#allocation4 + $0x8] sm:$0xff]
  %v504 = vmul.f32 %v444, %v413
  %v505 = vmul.f32 %v459, %v416
  %v506 = vadd.f32 %v502, %v504
  %v507 = vadd.f32 %v503, %v505
  %v508 = vtanh.pop %v506
  %v509 = vtanh.pop %v507
  %v510 = vsub.f32 1.0, %v486
  %v511 = vsub.f32 1.0, %v501
  %v512 = vmul.f32 %v510, %v508
  %v513 = vmul.f32 %v511, %v509
  %v514 = vmul.f32 %v486, 0.0
  %v515 = vmul.f32 %v501, 0.0
  %v516 = vadd.f32 %v512, %v514
  %v517 = vadd.f32 %v513, %v515
  %518 = vst.msk [vmem:[%s9] sm:$0xff] %vm167, %v516
  %519 = vst.msk [vmem:[%s9 + $0x8] sm:$0xff] %vm167, %v517
  %v521 = vsel %vm167, %v516, 0
  %v524 = vsel %vm167, %v517, 0
  %526 = vmatpush.msra.mxu0 0.0
  %527 = vmatpush.msra.mxu0 0.0
  %528 = vmatpush.msra.mxu0 0.0
  %529 = vmatpush.msra.mxu0 0.0
  %530 = vmatpush.msra.mxu0 0.0
  %531 = vmatpush.msra.mxu0 0.0
  %532 = vmatpush.msra.mxu0 0.0
  %533 = vmatpush.msra.mxu0 0.0
  %534 = vmatpush.msra.mxu0 0.0
  %535 = vmatpush.msra.mxu0 0.0
  %536 = vmatpush.msra.mxu0 0.0
  %537 = vmatpush.msra.mxu0 0.0
  %538 = vmatpush.msra.mxu0 0.0
  %539 = vmatpush.msra.mxu0 0.0
  %540 = vmatpush.msra.mxu0 %v329
  %541 = vmatpush.msra.mxu0 %v328
  %542 = vmatmul.f32.gmra.mxu0 %v521
  %v543 = vpop.f32.mrf.mxu0
  %v544 = vadd.f32 %v338, %v543
  %545 = vmatmul.f32.gmra.mxu0 %v524
  %v546 = vpop.f32.mrf.mxu0
  %v547 = vadd.f32 %v338, %v546
  %548 = vdwg.mxu0
  %549 = vmatpush.msra.mxu0 0.0
  %550 = vmatpush.msra.mxu0 0.0
  %551 = vmatpush.msra.mxu0 0.0
  %552 = vmatpush.msra.mxu0 0.0
  %553 = vmatpush.msra.mxu0 0.0
  %554 = vmatpush.msra.mxu0 0.0
  %555 = vmatpush.msra.mxu0 0.0
  %556 = vmatpush.msra.mxu0 0.0
  %557 = vmatpush.msra.mxu0 0.0
  %558 = vmatpush.msra.mxu0 0.0
  %559 = vmatpush.msra.mxu0 0.0
  %560 = vmatpush.msra.mxu0 0.0
  %561 = vmatpush.msra.mxu0 0.0
  %562 = vmatpush.msra.mxu0 0.0
  %563 = vmatpush.msra.mxu0 %v331
  %564 = vmatpush.msra.mxu0 %v330
  %565 = vmatmul.f32.gmra.mxu0 %v521
  %v566 = vpop.f32.mrf.mxu0
  %v567 = vadd.f32 %v367, %v566
  %568 = vmatmul.f32.gmra.mxu0 %v524
  %v569 = vpop.f32.mrf.mxu0
  %v570 = vadd.f32 %v367, %v569
  %571 = vdwg.mxu0
  %572 = vmatpush.msra.mxu0 0.0
  %573 = vmatpush.msra.mxu0 0.0
  %574 = vmatpush.msra.mxu0 0.0
  %575 = vmatpush.msra.mxu0 0.0
  %576 = vmatpush.msra.mxu0 0.0
  %577 = vmatpush.msra.mxu0 0.0
  %578 = vmatpush.msra.mxu0 0.0
  %579 = vmatpush.msra.mxu0 0.0
  %580 = vmatpush.msra.mxu0 0.0
  %581 = vmatpush.msra.mxu0 0.0
  %582 = vmatpush.msra.mxu0 0.0
  %583 = vmatpush.msra.mxu0 0.0
  %584 = vmatpush.msra.mxu0 0.0
  %585 = vmatpush.msra.mxu0 0.0
  %586 = vmatpush.msra.mxu0 %v333
  %587 = vmatpush.msra.mxu0 %v332
  %588 = vmatmul.f32.gmra.mxu0 %v521
  %v589 = vpop.f32.mrf.mxu0
  %v590 = vadd.f32 %v393, %v589
  %591 = vmatmul.f32.gmra.mxu0 %v524
  %v592 = vpop.f32.mrf.mxu0
  %v593 = vadd.f32 %v393, %v592
  %594 = vdwg.mxu0
  %s595 = scalar_lea.vmem [#allocation2], 16
  %v596 = vld [vmem:[%s595] sm:$0xff]
  %v597 = vld [vmem:[%s595 + $0x8] sm:$0xff]
  %v598 = vadd.f32 %v596, %v544
  %v599 = vadd.f32 %v597, %v547
  %v600 = vxor.u32 %v598, 2147483648
  %v601 = vxor.u32 %v599, 2147483648
  %v602 = vmul.f32 %v600, 1.442695
  %v603 = vpow.pop %v602
  %v604 = vmul.f32 %v601, 1.442695
  %v605 = vpow.pop %v604
  %v606 = vadd.f32 %v603, 1.0
  %v607 = vadd.f32 %v605, 1.0
  %v608 = vrcp.pop %v606
  %v609 = vmul.f32 %v606, %v608
  %v610 = vsub.f32 1.0, %v609
  %v611 = vmul.f32 %v608, %v610
  %v612 = vadd.f32 %v608, %v611
  %vm613 = vweird.f32 %v606
  %vm614 = vweird.f32 %v608
  %vm615 = vmor %vm613, %vm614
  %v616 = vsel %vm615, %v608, %v612
  %v617 = vand.u32 2147483647, %v606
  %vm618 = vcmp.eq.f32.partialorder %v617, 8.507059e+37
  %v619 = vand.u32 %v606, 2147483648
  %v620 = vor.u32 1.1754944e-38, %v619
  %v621 = vsel %vm618, %v620, %v616
  %v622 = vmul.f32 1.0, %v621
  %v623 = vrcp.pop %v607
  %v624 = vmul.f32 %v607, %v623
  %v625 = vsub.f32 1.0, %v624
  %v626 = vmul.f32 %v623, %v625
  %v627 = vadd.f32 %v623, %v626
  %vm628 = vweird.f32 %v607
  %vm629 = vweird.f32 %v623
  %vm630 = vmor %vm628, %vm629
  %v631 = vsel %vm630, %v623, %v627
  %v632 = vand.u32 2147483647, %v607
  %vm633 = vcmp.eq.f32.partialorder %v632, 8.507059e+37
  %v634 = vand.u32 %v607, 2147483648
  %v635 = vor.u32 1.1754944e-38, %v634
  %v636 = vsel %vm633, %v635, %v631
  %v637 = vmul.f32 1.0, %v636
  %s638 = scalar_lea.vmem [#allocation3], 16
  %v639 = vld [vmem:[%s638] sm:$0xff]
  %v640 = vld [vmem:[%s638 + $0x8] sm:$0xff]
  %v641 = vadd.f32 %v639, %v567
  %v642 = vadd.f32 %v640, %v570
  %v643 = vxor.u32 %v641, 2147483648
  %v644 = vxor.u32 %v642, 2147483648
  %v645 = vmul.f32 %v643, 1.442695
  %v646 = vpow.pop %v645
  %v647 = vmul.f32 %v644, 1.442695
  %v648 = vpow.pop %v647
  %v649 = vadd.f32 %v646, 1.0
  %v650 = vadd.f32 %v648, 1.0
  %v651 = vrcp.pop %v649
  %v652 = vmul.f32 %v649, %v651
  %v653 = vsub.f32 1.0, %v652
  %v654 = vmul.f32 %v651, %v653
  %v655 = vadd.f32 %v651, %v654
  %vm656 = vweird.f32 %v649
  %vm657 = vweird.f32 %v651
  %vm658 = vmor %vm656, %vm657
  %v659 = vsel %vm658, %v651, %v655
  %v660 = vand.u32 2147483647, %v649
  %vm661 = vcmp.eq.f32.partialorder %v660, 8.507059e+37
  %v662 = vand.u32 %v649, 2147483648
  %v663 = vor.u32 1.1754944e-38, %v662
  %v664 = vsel %vm661, %v663, %v659
  %v665 = vmul.f32 1.0, %v664
  %v666 = vrcp.pop %v650
  %v667 = vmul.f32 %v650, %v666
  %v668 = vsub.f32 1.0, %v667
  %v669 = vmul.f32 %v666, %v668
  %v670 = vadd.f32 %v666, %v669
  %vm671 = vweird.f32 %v650
  %vm672 = vweird.f32 %v666
  %vm673 = vmor %vm671, %vm672
  %v674 = vsel %vm673, %v666, %v670
  %v675 = vand.u32 2147483647, %v650
  %vm676 = vcmp.eq.f32.partialorder %v675, 8.507059e+37
  %v677 = vand.u32 %v650, 2147483648
  %v678 = vor.u32 1.1754944e-38, %v677
  %v679 = vsel %vm676, %v678, %v674
  %v680 = vmul.f32 1.0, %v679
  %s681 = scalar_lea.vmem [#allocation4], 16
  %v682 = vld [vmem:[%s681] sm:$0xff]
  %v683 = vld [vmem:[%s681 + $0x8] sm:$0xff]
  %v684 = vmul.f32 %v622, %v590
  %v685 = vmul.f32 %v637, %v593
  %v686 = vadd.f32 %v682, %v684
  %v687 = vadd.f32 %v683, %v685
  %v688 = vtanh.pop %v686
  %v689 = vtanh.pop %v687
  %v690 = vsub.f32 1.0, %v665
  %v691 = vsub.f32 1.0, %v680
  %v692 = vmul.f32 %v690, %v688
  %v693 = vmul.f32 %v691, %v689
  %v694 = vmul.f32 %v665, %v516
  %v695 = vmul.f32 %v680, %v517
  %v696 = vadd.f32 %v692, %v694
  %v697 = vadd.f32 %v693, %v695
  %s698 = scalar_lea.vmem %s9, 16
  %699 = vst.msk [vmem:[%s698] sm:$0xff] %vm167, %v696
  %700 = vst.msk [vmem:[%s698 + $0x8] sm:$0xff] %vm167, %v697
  %v702 = vsel %vm167, %v696, 0
  %v705 = vsel %vm167, %v697, 0
  %707 = vmatpush.msra.mxu0 0.0
  %708 = vmatpush.msra.mxu0 0.0
  %709 = vmatpush.msra.mxu0 0.0
  %710 = vmatpush.msra.mxu0 0.0
  %711 = vmatpush.msra.mxu0 0.0
  %712 = vmatpush.msra.mxu0 0.0
  %713 = vmatpush.msra.mxu0 0.0
  %714 = vmatpush.msra.mxu0 0.0
  %715 = vmatpush.msra.mxu0 0.0
  %716 = vmatpush.msra.mxu0 0.0
  %717 = vmatpush.msra.mxu0 0.0
  %718 = vmatpush.msra.mxu0 0.0
  %719 = vmatpush.msra.mxu0 0.0
  %720 = vmatpush.msra.mxu0 0.0
  %721 = vmatpush.msra.mxu0 %v329
  %722 = vmatpush.msra.mxu0 %v328
  %723 = vmatmul.f32.gmra.mxu0 %v702
  %v724 = vpop.f32.mrf.mxu0
  %v725 = vadd.f32 %v338, %v724
  %726 = vmatmul.f32.gmra.mxu0 %v705
  %v727 = vpop.f32.mrf.mxu0
  %v728 = vadd.f32 %v338, %v727
  %729 = vdwg.mxu0
  %730 = vmatpush.msra.mxu0 0.0
  %731 = vmatpush.msra.mxu0 0.0
  %732 = vmatpush.msra.mxu0 0.0
  %733 = vmatpush.msra.mxu0 0.0
  %734 = vmatpush.msra.mxu0 0.0
  %735 = vmatpush.msra.mxu0 0.0
  %736 = vmatpush.msra.mxu0 0.0
  %737 = vmatpush.msra.mxu0 0.0
  %738 = vmatpush.msra.mxu0 0.0
  %739 = vmatpush.msra.mxu0 0.0
  %740 = vmatpush.msra.mxu0 0.0
  %741 = vmatpush.msra.mxu0 0.0
  %742 = vmatpush.msra.mxu0 0.0
  %743 = vmatpush.msra.mxu0 0.0
  %744 = vmatpush.msra.mxu0 %v331
  %745 = vmatpush.msra.mxu0 %v330
  %746 = vmatmul.f32.gmra.mxu0 %v702
  %v747 = vpop.f32.mrf.mxu0
  %v748 = vadd.f32 %v367, %v747
  %749 = vmatmul.f32.gmra.mxu0 %v705
  %v750 = vpop.f32.mrf.mxu0
  %v751 = vadd.f32 %v367, %v750
  %752 = vdwg.mxu0
  %753 = vmatpush.msra.mxu0 0.0
  %754 = vmatpush.msra.mxu0 0.0
  %755 = vmatpush.msra.mxu0 0.0
  %756 = vmatpush.msra.mxu0 0.0
  %757 = vmatpush.msra.mxu0 0.0
  %758 = vmatpush.msra.mxu0 0.0
  %759 = vmatpush.msra.mxu0 0.0
  %760 = vmatpush.msra.mxu0 0.0
  %761 = vmatpush.msra.mxu0 0.0
  %762 = vmatpush.msra.mxu0 0.0
  %763 = vmatpush.msra.mxu0 0.0
  %764 = vmatpush.msra.mxu0 0.0
  %765 = vmatpush.msra.mxu0 0.0
  %766 = vmatpush.msra.mxu0 0.0
  %767 = vmatpush.msra.mxu0 %v333
  %768 = vmatpush.msra.mxu0 %v332
  %769 = vmatmul.f32.gmra.mxu0 %v702
  %v770 = vpop.f32.mrf.mxu0
  %v771 = vadd.f32 %v393, %v770
  %772 = vmatmul.f32.gmra.mxu0 %v705
  %v773 = vpop.f32.mrf.mxu0
  %v774 = vadd.f32 %v393, %v773
  %775 = vdwg.mxu0
  %s776 = scalar_lea.vmem [#allocation2], 32
  %v777 = vld [vmem:[%s776] sm:$0xff]
  %v778 = vld [vmem:[%s776 + $0x8] sm:$0xff]
  %v779 = vadd.f32 %v777, %v725
  %v780 = vadd.f32 %v778, %v728
  %v781 = vxor.u32 %v779, 2147483648
  %v782 = vxor.u32 %v780, 2147483648
  %v783 = vmul.f32 %v781, 1.442695
  %v784 = vpow.pop %v783
  %v785 = vmul.f32 %v782, 1.442695
  %v786 = vpow.pop %v785
  %v787 = vadd.f32 %v784, 1.0
  %v788 = vadd.f32 %v786, 1.0
  %v789 = vrcp.pop %v787
  %v790 = vmul.f32 %v787, %v789
  %v791 = vsub.f32 1.0, %v790
  %v792 = vmul.f32 %v789, %v791
  %v793 = vadd.f32 %v789, %v792
  %vm794 = vweird.f32 %v787
  %vm795 = vweird.f32 %v789
  %vm796 = vmor %vm794, %vm795
  %v797 = vsel %vm796, %v789, %v793
  %v798 = vand.u32 2147483647, %v787
  %vm799 = vcmp.eq.f32.partialorder %v798, 8.507059e+37
  %v800 = vand.u32 %v787, 2147483648
  %v801 = vor.u32 1.1754944e-38, %v800
  %v802 = vsel %vm799, %v801, %v797
  %v803 = vmul.f32 1.0, %v802
  %v804 = vrcp.pop %v788
  %v805 = vmul.f32 %v788, %v804
  %v806 = vsub.f32 1.0, %v805
  %v807 = vmul.f32 %v804, %v806
  %v808 = vadd.f32 %v804, %v807
  %vm809 = vweird.f32 %v788
  %vm810 = vweird.f32 %v804
  %vm811 = vmor %vm809, %vm810
  %v812 = vsel %vm811, %v804, %v808
  %v813 = vand.u32 2147483647, %v788
  %vm814 = vcmp.eq.f32.partialorder %v813, 8.507059e+37
  %v815 = vand.u32 %v788, 2147483648
  %v816 = vor.u32 1.1754944e-38, %v815
  %v817 = vsel %vm814, %v816, %v812
  %v818 = vmul.f32 1.0, %v817
  %s819 = scalar_lea.vmem [#allocation3], 32
  %v820 = vld [vmem:[%s819] sm:$0xff]
  %v821 = vld [vmem:[%s819 + $0x8] sm:$0xff]
  %v822 = vadd.f32 %v820, %v748
  %v823 = vadd.f32 %v821, %v751
  %v824 = vxor.u32 %v822, 2147483648
  %v825 = vxor.u32 %v823, 2147483648
  %v826 = vmul.f32 %v824, 1.442695
  %v827 = vpow.pop %v826
  %v828 = vmul.f32 %v825, 1.442695
  %v829 = vpow.pop %v828
  %v830 = vadd.f32 %v827, 1.0
  %v831 = vadd.f32 %v829, 1.0
  %v832 = vrcp.pop %v830
  %v833 = vmul.f32 %v830, %v832
  %v834 = vsub.f32 1.0, %v833
  %v835 = vmul.f32 %v832, %v834
  %v836 = vadd.f32 %v832, %v835
  %vm837 = vweird.f32 %v830
  %vm838 = vweird.f32 %v832
  %vm839 = vmor %vm837, %vm838
  %v840 = vsel %vm839, %v832, %v836
  %v841 = vand.u32 2147483647, %v830
  %vm842 = vcmp.eq.f32.partialorder %v841, 8.507059e+37
  %v843 = vand.u32 %v830, 2147483648
  %v844 = vor.u32 1.1754944e-38, %v843
  %v845 = vsel %vm842, %v844, %v840
  %v846 = vmul.f32 1.0, %v845
  %v847 = vrcp.pop %v831
  %v848 = vmul.f32 %v831, %v847
  %v849 = vsub.f32 1.0, %v848
  %v850 = vmul.f32 %v847, %v849
  %v851 = vadd.f32 %v847, %v850
  %vm852 = vweird.f32 %v831
  %vm853 = vweird.f32 %v847
  %vm854 = vmor %vm852, %vm853
  %v855 = vsel %vm854, %v847, %v851
  %v856 = vand.u32 2147483647, %v831
  %vm857 = vcmp.eq.f32.partialorder %v856, 8.507059e+37
  %v858 = vand.u32 %v831, 2147483648
  %v859 = vor.u32 1.1754944e-38, %v858
  %v860 = vsel %vm857, %v859, %v855
  %v861 = vmul.f32 1.0, %v860
  %s862 = scalar_lea.vmem [#allocation4], 32
  %v863 = vld [vmem:[%s862] sm:$0xff]
  %v864 = vld [vmem:[%s862 + $0x8] sm:$0xff]
  %v865 = vmul.f32 %v803, %v771
  %v866 = vmul.f32 %v818, %v774
  %v867 = vadd.f32 %v863, %v865
  %v868 = vadd.f32 %v864, %v866
  %v869 = vtanh.pop %v867
  %v870 = vtanh.pop %v868
  %v871 = vsub.f32 1.0, %v846
  %v872 = vsub.f32 1.0, %v861
  %v873 = vmul.f32 %v871, %v869
  %v874 = vmul.f32 %v872, %v870
  %v875 = vmul.f32 %v846, %v696
  %v876 = vmul.f32 %v861, %v697
  %v877 = vadd.f32 %v873, %v875
  %v878 = vadd.f32 %v874, %v876
  %s879 = scalar_lea.vmem %s9, 32
  %880 = vst.msk [vmem:[%s879] sm:$0xff] %vm167, %v877
  %881 = vst.msk [vmem:[%s879 + $0x8] sm:$0xff] %vm167, %v878
  %v883 = vsel %vm167, %v877, 0
  %v886 = vsel %vm167, %v878, 0
  %888 = vmatpush.msra.mxu0 0.0
  %889 = vmatpush.msra.mxu0 0.0
  %890 = vmatpush.msra.mxu0 0.0
  %891 = vmatpush.msra.mxu0 0.0
  %892 = vmatpush.msra.mxu0 0.0
  %893 = vmatpush.msra.mxu0 0.0
  %894 = vmatpush.msra.mxu0 0.0
  %895 = vmatpush.msra.mxu0 0.0
  %896 = vmatpush.msra.mxu0 0.0
  %897 = vmatpush.msra.mxu0 0.0
  %898 = vmatpush.msra.mxu0 0.0
  %899 = vmatpush.msra.mxu0 0.0
  %900 = vmatpush.msra.mxu0 0.0
  %901 = vmatpush.msra.mxu0 0.0
  %902 = vmatpush.msra.mxu0 %v329
  %903 = vmatpush.msra.mxu0 %v328
  %904 = vmatmul.f32.gmra.mxu0 %v883
  %v905 = vpop.f32.mrf.mxu0
  %v906 = vadd.f32 %v338, %v905
  %907 = vmatmul.f32.gmra.mxu0 %v886
  %v908 = vpop.f32.mrf.mxu0
  %v909 = vadd.f32 %v338, %v908
  %910 = vdwg.mxu0
  %911 = vmatpush.msra.mxu0 0.0
  %912 = vmatpush.msra.mxu0 0.0
  %913 = vmatpush.msra.mxu0 0.0
  %914 = vmatpush.msra.mxu0 0.0
  %915 = vmatpush.msra.mxu0 0.0
  %916 = vmatpush.msra.mxu0 0.0
  %917 = vmatpush.msra.mxu0 0.0
  %918 = vmatpush.msra.mxu0 0.0
  %919 = vmatpush.msra.mxu0 0.0
  %920 = vmatpush.msra.mxu0 0.0
  %921 = vmatpush.msra.mxu0 0.0
  %922 = vmatpush.msra.mxu0 0.0
  %923 = vmatpush.msra.mxu0 0.0
  %924 = vmatpush.msra.mxu0 0.0
  %925 = vmatpush.msra.mxu0 %v331
  %926 = vmatpush.msra.mxu0 %v330
  %927 = vmatmul.f32.gmra.mxu0 %v883
  %v928 = vpop.f32.mrf.mxu0
  %v929 = vadd.f32 %v367, %v928
  %930 = vmatmul.f32.gmra.mxu0 %v886
  %v931 = vpop.f32.mrf.mxu0
  %v932 = vadd.f32 %v367, %v931
  %933 = vdwg.mxu0
  %934 = vmatpush.msra.mxu0 0.0
  %935 = vmatpush.msra.mxu0 0.0
  %936 = vmatpush.msra.mxu0 0.0
  %937 = vmatpush.msra.mxu0 0.0
  %938 = vmatpush.msra.mxu0 0.0
  %939 = vmatpush.msra.mxu0 0.0
  %940 = vmatpush.msra.mxu0 0.0
  %941 = vmatpush.msra.mxu0 0.0
  %942 = vmatpush.msra.mxu0 0.0
  %943 = vmatpush.msra.mxu0 0.0
  %944 = vmatpush.msra.mxu0 0.0
  %945 = vmatpush.msra.mxu0 0.0
  %946 = vmatpush.msra.mxu0 0.0
  %947 = vmatpush.msra.mxu0 0.0
  %948 = vmatpush.msra.mxu0 %v333
  %949 = vmatpush.msra.mxu0 %v332
  %950 = vmatmul.f32.gmra.mxu0 %v883
  %v951 = vpop.f32.mrf.mxu0
  %v952 = vadd.f32 %v393, %v951
  %953 = vmatmul.f32.gmra.mxu0 %v886
  %v954 = vpop.f32.mrf.mxu0
  %v955 = vadd.f32 %v393, %v954
  %956 = vdwg.mxu0
  %s957 = scalar_lea.vmem [#allocation2], 48
  %v958 = vld [vmem:[%s957] sm:$0xff]
  %v959 = vld [vmem:[%s957 + $0x8] sm:$0xff]
  %v960 = vadd.f32 %v958, %v906
  %v961 = vadd.f32 %v959, %v909
  %v962 = vxor.u32 %v960, 2147483648
  %v963 = vxor.u32 %v961, 2147483648
  %v964 = vmul.f32 %v962, 1.442695
  %v965 = vpow.pop %v964
  %v966 = vmul.f32 %v963, 1.442695
  %v967 = vpow.pop %v966
  %v968 = vadd.f32 %v965, 1.0
  %v969 = vadd.f32 %v967, 1.0
  %v970 = vrcp.pop %v968
  %v971 = vmul.f32 %v968, %v970
  %v972 = vsub.f32 1.0, %v971
  %v973 = vmul.f32 %v970, %v972
  %v974 = vadd.f32 %v970, %v973
  %vm975 = vweird.f32 %v968
  %vm976 = vweird.f32 %v970
  %vm977 = vmor %vm975, %vm976
  %v978 = vsel %vm977, %v970, %v974
  %v979 = vand.u32 2147483647, %v968
  %vm980 = vcmp.eq.f32.partialorder %v979, 8.507059e+37
  %v981 = vand.u32 %v968, 2147483648
  %v982 = vor.u32 1.1754944e-38, %v981
  %v983 = vsel %vm980, %v982, %v978
  %v984 = vmul.f32 1.0, %v983
  %v985 = vrcp.pop %v969
  %v986 = vmul.f32 %v969, %v985
  %v987 = vsub.f32 1.0, %v986
  %v988 = vmul.f32 %v985, %v987
  %v989 = vadd.f32 %v985, %v988
  %vm990 = vweird.f32 %v969
  %vm991 = vweird.f32 %v985
  %vm992 = vmor %vm990, %vm991
  %v993 = vsel %vm992, %v985, %v989
  %v994 = vand.u32 2147483647, %v969
  %vm995 = vcmp.eq.f32.partialorder %v994, 8.507059e+37
  %v996 = vand.u32 %v969, 2147483648
  %v997 = vor.u32 1.1754944e-38, %v996
  %v998 = vsel %vm995, %v997, %v993
  %v999 = vmul.f32 1.0, %v998
  %s1000 = scalar_lea.vmem [#allocation3], 48
  %v1001 = vld [vmem:[%s1000] sm:$0xff]
  %v1002 = vld [vmem:[%s1000 + $0x8] sm:$0xff]
  %v1003 = vadd.f32 %v1001, %v929
  %v1004 = vadd.f32 %v1002, %v932
  %v1005 = vxor.u32 %v1003, 2147483648
  %v1006 = vxor.u32 %v1004, 2147483648
  %v1007 = vmul.f32 %v1005, 1.442695
  %v1008 = vpow.pop %v1007
  %v1009 = vmul.f32 %v1006, 1.442695
  %v1010 = vpow.pop %v1009
  %v1011 = vadd.f32 %v1008, 1.0
  %v1012 = vadd.f32 %v1010, 1.0
  %v1013 = vrcp.pop %v1011
  %v1014 = vmul.f32 %v1011, %v1013
  %v1015 = vsub.f32 1.0, %v1014
  %v1016 = vmul.f32 %v1013, %v1015
  %v1017 = vadd.f32 %v1013, %v1016
  %vm1018 = vweird.f32 %v1011
  %vm1019 = vweird.f32 %v1013
  %vm1020 = vmor %vm1018, %vm1019
  %v1021 = vsel %vm1020, %v1013, %v1017
  %v1022 = vand.u32 2147483647, %v1011
  %vm1023 = vcmp.eq.f32.partialorder %v1022, 8.507059e+37
  %v1024 = vand.u32 %v1011, 2147483648
  %v1025 = vor.u32 1.1754944e-38, %v1024
  %v1026 = vsel %vm1023, %v1025, %v1021
  %v1027 = vmul.f32 1.0, %v1026
  %v1028 = vrcp.pop %v1012
  %v1029 = vmul.f32 %v1012, %v1028
  %v1030 = vsub.f32 1.0, %v1029
  %v1031 = vmul.f32 %v1028, %v1030
  %v1032 = vadd.f32 %v1028, %v1031
  %vm1033 = vweird.f32 %v1012
  %vm1034 = vweird.f32 %v1028
  %vm1035 = vmor %vm1033, %vm1034
  %v1036 = vsel %vm1035, %v1028, %v1032
  %v1037 = vand.u32 2147483647, %v1012
  %vm1038 = vcmp.eq.f32.partialorder %v1037, 8.507059e+37
  %v1039 = vand.u32 %v1012, 2147483648
  %v1040 = vor.u32 1.1754944e-38, %v1039
  %v1041 = vsel %vm1038, %v1040, %v1036
  %v1042 = vmul.f32 1.0, %v1041
  %s1043 = scalar_lea.vmem [#allocation4], 48
  %v1044 = vld [vmem:[%s1043] sm:$0xff]
  %v1045 = vld [vmem:[%s1043 + $0x8] sm:$0xff]
  %v1046 = vmul.f32 %v984, %v952
  %v1047 = vmul.f32 %v999, %v955
  %v1048 = vadd.f32 %v1044, %v1046
  %v1049 = vadd.f32 %v1045, %v1047
  %v1050 = vtanh.pop %v1048
  %v1051 = vtanh.pop %v1049
  %v1052 = vsub.f32 1.0, %v1027
  %v1053 = vsub.f32 1.0, %v1042
  %v1054 = vmul.f32 %v1052, %v1050
  %v1055 = vmul.f32 %v1053, %v1051
  %v1056 = vmul.f32 %v1027, %v877
  %v1057 = vmul.f32 %v1042, %v878
  %v1058 = vadd.f32 %v1054, %v1056
  %v1059 = vadd.f32 %v1055, %v1057
  %s1060 = scalar_lea.vmem %s9, 48
  %1061 = vst.msk [vmem:[%s1060] sm:$0xff] %vm167, %v1058
  %1062 = vst.msk [vmem:[%s1060 + $0x8] sm:$0xff] %vm167, %v1059
  %v1064 = vsel %vm167, %v1058, 0
  %v1067 = vsel %vm167, %v1059, 0
  %1069 = vmatpush.msra.mxu0 0.0
  %1070 = vmatpush.msra.mxu0 0.0
  %1071 = vmatpush.msra.mxu0 0.0
  %1072 = vmatpush.msra.mxu0 0.0
  %1073 = vmatpush.msra.mxu0 0.0
  %1074 = vmatpush.msra.mxu0 0.0
  %1075 = vmatpush.msra.mxu0 0.0
  %1076 = vmatpush.msra.mxu0 0.0
  %1077 = vmatpush.msra.mxu0 0.0
  %1078 = vmatpush.msra.mxu0 0.0
  %1079 = vmatpush.msra.mxu0 0.0
  %1080 = vmatpush.msra.mxu0 0.0
  %1081 = vmatpush.msra.mxu0 0.0
  %1082 = vmatpush.msra.mxu0 0.0
  %1083 = vmatpush.msra.mxu0 %v329
  %1084 = vmatpush.msra.mxu0 %v328
  %1085 = vmatmul.f32.gmra.mxu0 %v1064
  %v1086 = vpop.f32.mrf.mxu0
  %v1087 = vadd.f32 %v338, %v1086
  %1088 = vmatmul.f32.gmra.mxu0 %v1067
  %v1089 = vpop.f32.mrf.mxu0
  %v1090 = vadd.f32 %v338, %v1089
  %1091 = vdwg.mxu0
  %1092 = vmatpush.msra.mxu0 0.0
  %1093 = vmatpush.msra.mxu0 0.0
  %1094 = vmatpush.msra.mxu0 0.0
  %1095 = vmatpush.msra.mxu0 0.0
  %1096 = vmatpush.msra.mxu0 0.0
  %1097 = vmatpush.msra.mxu0 0.0
  %1098 = vmatpush.msra.mxu0 0.0
  %1099 = vmatpush.msra.mxu0 0.0
  %1100 = vmatpush.msra.mxu0 0.0
  %1101 = vmatpush.msra.mxu0 0.0
  %1102 = vmatpush.msra.mxu0 0.0
  %1103 = vmatpush.msra.mxu0 0.0
  %1104 = vmatpush.msra.mxu0 0.0
  %1105 = vmatpush.msra.mxu0 0.0
  %1106 = vmatpush.msra.mxu0 %v331
  %1107 = vmatpush.msra.mxu0 %v330
  %1108 = vmatmul.f32.gmra.mxu0 %v1064
  %v1109 = vpop.f32.mrf.mxu0
  %v1110 = vadd.f32 %v367, %v1109
  %1111 = vmatmul.f32.gmra.mxu0 %v1067
  %v1112 = vpop.f32.mrf.mxu0
  %v1113 = vadd.f32 %v367, %v1112
  %1114 = vdwg.mxu0
  %1115 = vmatpush.msra.mxu0 0.0
  %1116 = vmatpush.msra.mxu0 0.0
  %1117 = vmatpush.msra.mxu0 0.0
  %1118 = vmatpush.msra.mxu0 0.0
  %1119 = vmatpush.msra.mxu0 0.0
  %1120 = vmatpush.msra.mxu0 0.0
  %1121 = vmatpush.msra.mxu0 0.0
  %1122 = vmatpush.msra.mxu0 0.0
  %1123 = vmatpush.msra.mxu0 0.0
  %1124 = vmatpush.msra.mxu0 0.0
  %1125 = vmatpush.msra.mxu0 0.0
  %1126 = vmatpush.msra.mxu0 0.0
  %1127 = vmatpush.msra.mxu0 0.0
  %1128 = vmatpush.msra.mxu0 0.0
  %1129 = vmatpush.msra.mxu0 %v333
  %1130 = vmatpush.msra.mxu0 %v332
  %1131 = vmatmul.f32.gmra.mxu0 %v1064
  %v1132 = vpop.f32.mrf.mxu0
  %v1133 = vadd.f32 %v393, %v1132
  %1134 = vmatmul.f32.gmra.mxu0 %v1067
  %v1135 = vpop.f32.mrf.mxu0
  %v1136 = vadd.f32 %v393, %v1135
  %1137 = vdwg.mxu0
  %s1138 = scalar_lea.vmem [#allocation2], 64
  %v1139 = vld [vmem:[%s1138] sm:$0xff]
  %v1140 = vld [vmem:[%s1138 + $0x8] sm:$0xff]
  %v1141 = vadd.f32 %v1139, %v1087
  %v1142 = vadd.f32 %v1140, %v1090
  %v1143 = vxor.u32 %v1141, 2147483648
  %v1144 = vxor.u32 %v1142, 2147483648
  %v1145 = vmul.f32 %v1143, 1.442695
  %v1146 = vpow.pop %v1145
  %v1147 = vmul.f32 %v1144, 1.442695
  %v1148 = vpow.pop %v1147
  %v1149 = vadd.f32 %v1146, 1.0
  %v1150 = vadd.f32 %v1148, 1.0
  %v1151 = vrcp.pop %v1149
  %v1152 = vmul.f32 %v1149, %v1151
  %v1153 = vsub.f32 1.0, %v1152
  %v1154 = vmul.f32 %v1151, %v1153
  %v1155 = vadd.f32 %v1151, %v1154
  %vm1156 = vweird.f32 %v1149
  %vm1157 = vweird.f32 %v1151
  %vm1158 = vmor %vm1156, %vm1157
  %v1159 = vsel %vm1158, %v1151, %v1155
  %v1160 = vand.u32 2147483647, %v1149
  %vm1161 = vcmp.eq.f32.partialorder %v1160, 8.507059e+37
  %v1162 = vand.u32 %v1149, 2147483648
  %v1163 = vor.u32 1.1754944e-38, %v1162
  %v1164 = vsel %vm1161, %v1163, %v1159
  %v1165 = vmul.f32 1.0, %v1164
  %v1166 = vrcp.pop %v1150
  %v1167 = vmul.f32 %v1150, %v1166
  %v1168 = vsub.f32 1.0, %v1167
  %v1169 = vmul.f32 %v1166, %v1168
  %v1170 = vadd.f32 %v1166, %v1169
  %vm1171 = vweird.f32 %v1150
  %vm1172 = vweird.f32 %v1166
  %vm1173 = vmor %vm1171, %vm1172
  %v1174 = vsel %vm1173, %v1166, %v1170
  %v1175 = vand.u32 2147483647, %v1150
  %vm1176 = vcmp.eq.f32.partialorder %v1175, 8.507059e+37
  %v1177 = vand.u32 %v1150, 2147483648
  %v1178 = vor.u32 1.1754944e-38, %v1177
  %v1179 = vsel %vm1176, %v1178, %v1174
  %v1180 = vmul.f32 1.0, %v1179
  %s1181 = scalar_lea.vmem [#allocation3], 64
  %v1182 = vld [vmem:[%s1181] sm:$0xff]
  %v1183 = vld [vmem:[%s1181 + $0x8] sm:$0xff]
  %v1184 = vadd.f32 %v1182, %v1110
  %v1185 = vadd.f32 %v1183, %v1113
  %v1186 = vxor.u32 %v1184, 2147483648
  %v1187 = vxor.u32 %v1185, 2147483648
  %v1188 = vmul.f32 %v1186, 1.442695
  %v1189 = vpow.pop %v1188
  %v1190 = vmul.f32 %v1187, 1.442695
  %v1191 = vpow.pop %v1190
  %v1192 = vadd.f32 %v1189, 1.0
  %v1193 = vadd.f32 %v1191, 1.0
  %v1194 = vrcp.pop %v1192
  %v1195 = vmul.f32 %v1192, %v1194
  %v1196 = vsub.f32 1.0, %v1195
  %v1197 = vmul.f32 %v1194, %v1196
  %v1198 = vadd.f32 %v1194, %v1197
  %vm1199 = vweird.f32 %v1192
  %vm1200 = vweird.f32 %v1194
  %vm1201 = vmor %vm1199, %vm1200
  %v1202 = vsel %vm1201, %v1194, %v1198
  %v1203 = vand.u32 2147483647, %v1192
  %vm1204 = vcmp.eq.f32.partialorder %v1203, 8.507059e+37
  %v1205 = vand.u32 %v1192, 2147483648
  %v1206 = vor.u32 1.1754944e-38, %v1205
  %v1207 = vsel %vm1204, %v1206, %v1202
  %v1208 = vmul.f32 1.0, %v1207
  %v1209 = vrcp.pop %v1193
  %v1210 = vmul.f32 %v1193, %v1209
  %v1211 = vsub.f32 1.0, %v1210
  %v1212 = vmul.f32 %v1209, %v1211
  %v1213 = vadd.f32 %v1209, %v1212
  %vm1214 = vweird.f32 %v1193
  %vm1215 = vweird.f32 %v1209
  %vm1216 = vmor %vm1214, %vm1215
  %v1217 = vsel %vm1216, %v1209, %v1213
  %v1218 = vand.u32 2147483647, %v1193
  %vm1219 = vcmp.eq.f32.partialorder %v1218, 8.507059e+37
  %v1220 = vand.u32 %v1193, 2147483648
  %v1221 = vor.u32 1.1754944e-38, %v1220
  %v1222 = vsel %vm1219, %v1221, %v1217
  %v1223 = vmul.f32 1.0, %v1222
  %s1224 = scalar_lea.vmem [#allocation4], 64
  %v1225 = vld [vmem:[%s1224] sm:$0xff]
  %v1226 = vld [vmem:[%s1224 + $0x8] sm:$0xff]
  %v1227 = vmul.f32 %v1165, %v1133
  %v1228 = vmul.f32 %v1180, %v1136
  %v1229 = vadd.f32 %v1225, %v1227
  %v1230 = vadd.f32 %v1226, %v1228
  %v1231 = vtanh.pop %v1229
  %v1232 = vtanh.pop %v1230
  %v1233 = vsub.f32 1.0, %v1208
  %v1234 = vsub.f32 1.0, %v1223
  %v1235 = vmul.f32 %v1233, %v1231
  %v1236 = vmul.f32 %v1234, %v1232
  %v1237 = vmul.f32 %v1208, %v1058
  %v1238 = vmul.f32 %v1223, %v1059
  %v1239 = vadd.f32 %v1235, %v1237
  %v1240 = vadd.f32 %v1236, %v1238
  %s1241 = scalar_lea.vmem %s9, 64
  %1242 = vst.msk [vmem:[%s1241] sm:$0xff] %vm167, %v1239
  %1243 = vst.msk [vmem:[%s1241 + $0x8] sm:$0xff] %vm167, %v1240
  %v1245 = vsel %vm167, %v1239, 0
  %v1248 = vsel %vm167, %v1240, 0
  %1250 = vmatpush.msra.mxu0 0.0
  %1251 = vmatpush.msra.mxu0 0.0
  %1252 = vmatpush.msra.mxu0 0.0
  %1253 = vmatpush.msra.mxu0 0.0
  %1254 = vmatpush.msra.mxu0 0.0
  %1255 = vmatpush.msra.mxu0 0.0
  %1256 = vmatpush.msra.mxu0 0.0
  %1257 = vmatpush.msra.mxu0 0.0
  %1258 = vmatpush.msra.mxu0 0.0
  %1259 = vmatpush.msra.mxu0 0.0
  %1260 = vmatpush.msra.mxu0 0.0
  %1261 = vmatpush.msra.mxu0 0.0
  %1262 = vmatpush.msra.mxu0 0.0
  %1263 = vmatpush.msra.mxu0 0.0
  %1264 = vmatpush.msra.mxu0 %v329
  %1265 = vmatpush.msra.mxu0 %v328
  %1266 = vmatmul.f32.gmra.mxu0 %v1245
  %v1267 = vpop.f32.mrf.mxu0
  %v1268 = vadd.f32 %v338, %v1267
  %1269 = vmatmul.f32.gmra.mxu0 %v1248
  %v1270 = vpop.f32.mrf.mxu0
  %v1271 = vadd.f32 %v338, %v1270
  %1272 = vdwg.mxu0
  %1273 = vmatpush.msra.mxu0 0.0
  %1274 = vmatpush.msra.mxu0 0.0
  %1275 = vmatpush.msra.mxu0 0.0
  %1276 = vmatpush.msra.mxu0 0.0
  %1277 = vmatpush.msra.mxu0 0.0
  %1278 = vmatpush.msra.mxu0 0.0
  %1279 = vmatpush.msra.mxu0 0.0
  %1280 = vmatpush.msra.mxu0 0.0
  %1281 = vmatpush.msra.mxu0 0.0
  %1282 = vmatpush.msra.mxu0 0.0
  %1283 = vmatpush.msra.mxu0 0.0
  %1284 = vmatpush.msra.mxu0 0.0
  %1285 = vmatpush.msra.mxu0 0.0
  %1286 = vmatpush.msra.mxu0 0.0
  %1287 = vmatpush.msra.mxu0 %v331
  %1288 = vmatpush.msra.mxu0 %v330
  %1289 = vmatmul.f32.gmra.mxu0 %v1245
  %v1290 = vpop.f32.mrf.mxu0
  %v1291 = vadd.f32 %v367, %v1290
  %1292 = vmatmul.f32.gmra.mxu0 %v1248
  %v1293 = vpop.f32.mrf.mxu0
  %v1294 = vadd.f32 %v367, %v1293
  %1295 = vdwg.mxu0
  %1296 = vmatpush.msra.mxu0 0.0
  %1297 = vmatpush.msra.mxu0 0.0
  %1298 = vmatpush.msra.mxu0 0.0
  %1299 = vmatpush.msra.mxu0 0.0
  %1300 = vmatpush.msra.mxu0 0.0
  %1301 = vmatpush.msra.mxu0 0.0
  %1302 = vmatpush.msra.mxu0 0.0
  %1303 = vmatpush.msra.mxu0 0.0
  %1304 = vmatpush.msra.mxu0 0.0
  %1305 = vmatpush.msra.mxu0 0.0
  %1306 = vmatpush.msra.mxu0 0.0
  %1307 = vmatpush.msra.mxu0 0.0
  %1308 = vmatpush.msra.mxu0 0.0
  %1309 = vmatpush.msra.mxu0 0.0
  %1310 = vmatpush.msra.mxu0 %v333
  %1311 = vmatpush.msra.mxu0 %v332
  %1312 = vmatmul.f32.gmra.mxu0 %v1245
  %v1313 = vpop.f32.mrf.mxu0
  %v1314 = vadd.f32 %v393, %v1313
  %1315 = vmatmul.f32.gmra.mxu0 %v1248
  %v1316 = vpop.f32.mrf.mxu0
  %v1317 = vadd.f32 %v393, %v1316
  %1318 = vdwg.mxu0
  %s1319 = scalar_lea.vmem [#allocation2], 80
  %v1320 = vld [vmem:[%s1319] sm:$0xff]
  %v1321 = vld [vmem:[%s1319 + $0x8] sm:$0xff]
  %v1322 = vadd.f32 %v1320, %v1268
  %v1323 = vadd.f32 %v1321, %v1271
  %v1324 = vxor.u32 %v1322, 2147483648
  %v1325 = vxor.u32 %v1323, 2147483648
  %v1326 = vmul.f32 %v1324, 1.442695
  %v1327 = vpow.pop %v1326
  %v1328 = vmul.f32 %v1325, 1.442695
  %v1329 = vpow.pop %v1328
  %v1330 = vadd.f32 %v1327, 1.0
  %v1331 = vadd.f32 %v1329, 1.0
  %v1332 = vrcp.pop %v1330
  %v1333 = vmul.f32 %v1330, %v1332
  %v1334 = vsub.f32 1.0, %v1333
  %v1335 = vmul.f32 %v1332, %v1334
  %v1336 = vadd.f32 %v1332, %v1335
  %vm1337 = vweird.f32 %v1330
  %vm1338 = vweird.f32 %v1332
  %vm1339 = vmor %vm1337, %vm1338
  %v1340 = vsel %vm1339, %v1332, %v1336
  %v1341 = vand.u32 2147483647, %v1330
  %vm1342 = vcmp.eq.f32.partialorder %v1341, 8.507059e+37
  %v1343 = vand.u32 %v1330, 2147483648
  %v1344 = vor.u32 1.1754944e-38, %v1343
  %v1345 = vsel %vm1342, %v1344, %v1340
  %v1346 = vmul.f32 1.0, %v1345
  %v1347 = vrcp.pop %v1331
  %v1348 = vmul.f32 %v1331, %v1347
  %v1349 = vsub.f32 1.0, %v1348
  %v1350 = vmul.f32 %v1347, %v1349
  %v1351 = vadd.f32 %v1347, %v1350
  %vm1352 = vweird.f32 %v1331
  %vm1353 = vweird.f32 %v1347
  %vm1354 = vmor %vm1352, %vm1353
  %v1355 = vsel %vm1354, %v1347, %v1351
  %v1356 = vand.u32 2147483647, %v1331
  %vm1357 = vcmp.eq.f32.partialorder %v1356, 8.507059e+37
  %v1358 = vand.u32 %v1331, 2147483648
  %v1359 = vor.u32 1.1754944e-38, %v1358
  %v1360 = vsel %vm1357, %v1359, %v1355
  %v1361 = vmul.f32 1.0, %v1360
  %s1362 = scalar_lea.vmem [#allocation3], 80
  %v1363 = vld [vmem:[%s1362] sm:$0xff]
  %v1364 = vld [vmem:[%s1362 + $0x8] sm:$0xff]
  %v1365 = vadd.f32 %v1363, %v1291
  %v1366 = vadd.f32 %v1364, %v1294
  %v1367 = vxor.u32 %v1365, 2147483648
  %v1368 = vxor.u32 %v1366, 2147483648
  %v1369 = vmul.f32 %v1367, 1.442695
  %v1370 = vpow.pop %v1369
  %v1371 = vmul.f32 %v1368, 1.442695
  %v1372 = vpow.pop %v1371
  %v1373 = vadd.f32 %v1370, 1.0
  %v1374 = vadd.f32 %v1372, 1.0
  %v1375 = vrcp.pop %v1373
  %v1376 = vmul.f32 %v1373, %v1375
  %v1377 = vsub.f32 1.0, %v1376
  %v1378 = vmul.f32 %v1375, %v1377
  %v1379 = vadd.f32 %v1375, %v1378
  %vm1380 = vweird.f32 %v1373
  %vm1381 = vweird.f32 %v1375
  %vm1382 = vmor %vm1380, %vm1381
  %v1383 = vsel %vm1382, %v1375, %v1379
  %v1384 = vand.u32 2147483647, %v1373
  %vm1385 = vcmp.eq.f32.partialorder %v1384, 8.507059e+37
  %v1386 = vand.u32 %v1373, 2147483648
  %v1387 = vor.u32 1.1754944e-38, %v1386
  %v1388 = vsel %vm1385, %v1387, %v1383
  %v1389 = vmul.f32 1.0, %v1388
  %v1390 = vrcp.pop %v1374
  %v1391 = vmul.f32 %v1374, %v1390
  %v1392 = vsub.f32 1.0, %v1391
  %v1393 = vmul.f32 %v1390, %v1392
  %v1394 = vadd.f32 %v1390, %v1393
  %vm1395 = vweird.f32 %v1374
  %vm1396 = vweird.f32 %v1390
  %vm1397 = vmor %vm1395, %vm1396
  %v1398 = vsel %vm1397, %v1390, %v1394
  %v1399 = vand.u32 2147483647, %v1374
  %vm1400 = vcmp.eq.f32.partialorder %v1399, 8.507059e+37
  %v1401 = vand.u32 %v1374, 2147483648
  %v1402 = vor.u32 1.1754944e-38, %v1401
  %v1403 = vsel %vm1400, %v1402, %v1398
  %v1404 = vmul.f32 1.0, %v1403
  %s1405 = scalar_lea.vmem [#allocation4], 80
  %v1406 = vld [vmem:[%s1405] sm:$0xff]
  %v1407 = vld [vmem:[%s1405 + $0x8] sm:$0xff]
  %v1408 = vmul.f32 %v1346, %v1314
  %v1409 = vmul.f32 %v1361, %v1317
  %v1410 = vadd.f32 %v1406, %v1408
  %v1411 = vadd.f32 %v1407, %v1409
  %v1412 = vtanh.pop %v1410
  %v1413 = vtanh.pop %v1411
  %v1414 = vsub.f32 1.0, %v1389
  %v1415 = vsub.f32 1.0, %v1404
  %v1416 = vmul.f32 %v1414, %v1412
  %v1417 = vmul.f32 %v1415, %v1413
  %v1418 = vmul.f32 %v1389, %v1239
  %v1419 = vmul.f32 %v1404, %v1240
  %v1420 = vadd.f32 %v1416, %v1418
  %v1421 = vadd.f32 %v1417, %v1419
  %s1422 = scalar_lea.vmem %s9, 80
  %1423 = vst.msk [vmem:[%s1422] sm:$0xff] %vm167, %v1420
  %1424 = vst.msk [vmem:[%s1422 + $0x8] sm:$0xff] %vm167, %v1421
  %v1426 = vsel %vm167, %v1420, 0
  %v1429 = vsel %vm167, %v1421, 0
  %1431 = vmatpush.msra.mxu0 0.0
  %1432 = vmatpush.msra.mxu0 0.0
  %1433 = vmatpush.msra.mxu0 0.0
  %1434 = vmatpush.msra.mxu0 0.0
  %1435 = vmatpush.msra.mxu0 0.0
  %1436 = vmatpush.msra.mxu0 0.0
  %1437 = vmatpush.msra.mxu0 0.0
  %1438 = vmatpush.msra.mxu0 0.0
  %1439 = vmatpush.msra.mxu0 0.0
  %1440 = vmatpush.msra.mxu0 0.0
  %1441 = vmatpush.msra.mxu0 0.0
  %1442 = vmatpush.msra.mxu0 0.0
  %1443 = vmatpush.msra.mxu0 0.0
  %1444 = vmatpush.msra.mxu0 0.0
  %1445 = vmatpush.msra.mxu0 %v329
  %1446 = vmatpush.msra.mxu0 %v328
  %1447 = vmatmul.f32.gmra.mxu0 %v1426
  %v1448 = vpop.f32.mrf.mxu0
  %v1449 = vadd.f32 %v338, %v1448
  %1450 = vmatmul.f32.gmra.mxu0 %v1429
  %v1451 = vpop.f32.mrf.mxu0
  %v1452 = vadd.f32 %v338, %v1451
  %1453 = vdwg.mxu0
  %1454 = vmatpush.msra.mxu0 0.0
  %1455 = vmatpush.msra.mxu0 0.0
  %1456 = vmatpush.msra.mxu0 0.0
  %1457 = vmatpush.msra.mxu0 0.0
  %1458 = vmatpush.msra.mxu0 0.0
  %1459 = vmatpush.msra.mxu0 0.0
  %1460 = vmatpush.msra.mxu0 0.0
  %1461 = vmatpush.msra.mxu0 0.0
  %1462 = vmatpush.msra.mxu0 0.0
  %1463 = vmatpush.msra.mxu0 0.0
  %1464 = vmatpush.msra.mxu0 0.0
  %1465 = vmatpush.msra.mxu0 0.0
  %1466 = vmatpush.msra.mxu0 0.0
  %1467 = vmatpush.msra.mxu0 0.0
  %1468 = vmatpush.msra.mxu0 %v331
  %1469 = vmatpush.msra.mxu0 %v330
  %1470 = vmatmul.f32.gmra.mxu0 %v1426
  %v1471 = vpop.f32.mrf.mxu0
  %v1472 = vadd.f32 %v367, %v1471
  %1473 = vmatmul.f32.gmra.mxu0 %v1429
  %v1474 = vpop.f32.mrf.mxu0
  %v1475 = vadd.f32 %v367, %v1474
  %1476 = vdwg.mxu0
  %1477 = vmatpush.msra.mxu0 0.0
  %1478 = vmatpush.msra.mxu0 0.0
  %1479 = vmatpush.msra.mxu0 0.0
  %1480 = vmatpush.msra.mxu0 0.0
  %1481 = vmatpush.msra.mxu0 0.0
  %1482 = vmatpush.msra.mxu0 0.0
  %1483 = vmatpush.msra.mxu0 0.0
  %1484 = vmatpush.msra.mxu0 0.0
  %1485 = vmatpush.msra.mxu0 0.0
  %1486 = vmatpush.msra.mxu0 0.0
  %1487 = vmatpush.msra.mxu0 0.0
  %1488 = vmatpush.msra.mxu0 0.0
  %1489 = vmatpush.msra.mxu0 0.0
  %1490 = vmatpush.msra.mxu0 0.0
  %1491 = vmatpush.msra.mxu0 %v333
  %1492 = vmatpush.msra.mxu0 %v332
  %1493 = vmatmul.f32.gmra.mxu0 %v1426
  %v1494 = vpop.f32.mrf.mxu0
  %v1495 = vadd.f32 %v393, %v1494
  %1496 = vmatmul.f32.gmra.mxu0 %v1429
  %v1497 = vpop.f32.mrf.mxu0
  %v1498 = vadd.f32 %v393, %v1497
  %1499 = vdwg.mxu0
  %s1500 = scalar_lea.vmem [#allocation2], 96
  %v1501 = vld [vmem:[%s1500] sm:$0xff]
  %v1502 = vld [vmem:[%s1500 + $0x8] sm:$0xff]
  %v1503 = vadd.f32 %v1501, %v1449
  %v1504 = vadd.f32 %v1502, %v1452
  %v1505 = vxor.u32 %v1503, 2147483648
  %v1506 = vxor.u32 %v1504, 2147483648
  %v1507 = vmul.f32 %v1505, 1.442695
  %v1508 = vpow.pop %v1507
  %v1509 = vmul.f32 %v1506, 1.442695
  %v1510 = vpow.pop %v1509
  %v1511 = vadd.f32 %v1508, 1.0
  %v1512 = vadd.f32 %v1510, 1.0
  %v1513 = vrcp.pop %v1511
  %v1514 = vmul.f32 %v1511, %v1513
  %v1515 = vsub.f32 1.0, %v1514
  %v1516 = vmul.f32 %v1513, %v1515
  %v1517 = vadd.f32 %v1513, %v1516
  %vm1518 = vweird.f32 %v1511
  %vm1519 = vweird.f32 %v1513
  %vm1520 = vmor %vm1518, %vm1519
  %v1521 = vsel %vm1520, %v1513, %v1517
  %v1522 = vand.u32 2147483647, %v1511
  %vm1523 = vcmp.eq.f32.partialorder %v1522, 8.507059e+37
  %v1524 = vand.u32 %v1511, 2147483648
  %v1525 = vor.u32 1.1754944e-38, %v1524
  %v1526 = vsel %vm1523, %v1525, %v1521
  %v1527 = vmul.f32 1.0, %v1526
  %v1528 = vrcp.pop %v1512
  %v1529 = vmul.f32 %v1512, %v1528
  %v1530 = vsub.f32 1.0, %v1529
  %v1531 = vmul.f32 %v1528, %v1530
  %v1532 = vadd.f32 %v1528, %v1531
  %vm1533 = vweird.f32 %v1512
  %vm1534 = vweird.f32 %v1528
  %vm1535 = vmor %vm1533, %vm1534
  %v1536 = vsel %vm1535, %v1528, %v1532
  %v1537 = vand.u32 2147483647, %v1512
  %vm1538 = vcmp.eq.f32.partialorder %v1537, 8.507059e+37
  %v1539 = vand.u32 %v1512, 2147483648
  %v1540 = vor.u32 1.1754944e-38, %v1539
  %v1541 = vsel %vm1538, %v1540, %v1536
  %v1542 = vmul.f32 1.0, %v1541
  %s1543 = scalar_lea.vmem [#allocation3], 96
  %v1544 = vld [vmem:[%s1543] sm:$0xff]
  %v1545 = vld [vmem:[%s1543 + $0x8] sm:$0xff]
  %v1546 = vadd.f32 %v1544, %v1472
  %v1547 = vadd.f32 %v1545, %v1475
  %v1548 = vxor.u32 %v1546, 2147483648
  %v1549 = vxor.u32 %v1547, 2147483648
  %v1550 = vmul.f32 %v1548, 1.442695
  %v1551 = vpow.pop %v1550
  %v1552 = vmul.f32 %v1549, 1.442695
  %v1553 = vpow.pop %v1552
  %v1554 = vadd.f32 %v1551, 1.0
  %v1555 = vadd.f32 %v1553, 1.0
  %v1556 = vrcp.pop %v1554
  %v1557 = vmul.f32 %v1554, %v1556
  %v1558 = vsub.f32 1.0, %v1557
  %v1559 = vmul.f32 %v1556, %v1558
  %v1560 = vadd.f32 %v1556, %v1559
  %vm1561 = vweird.f32 %v1554
  %vm1562 = vweird.f32 %v1556
  %vm1563 = vmor %vm1561, %vm1562
  %v1564 = vsel %vm1563, %v1556, %v1560
  %v1565 = vand.u32 2147483647, %v1554
  %vm1566 = vcmp.eq.f32.partialorder %v1565, 8.507059e+37
  %v1567 = vand.u32 %v1554, 2147483648
  %v1568 = vor.u32 1.1754944e-38, %v1567
  %v1569 = vsel %vm1566, %v1568, %v1564
  %v1570 = vmul.f32 1.0, %v1569
  %v1571 = vrcp.pop %v1555
  %v1572 = vmul.f32 %v1555, %v1571
  %v1573 = vsub.f32 1.0, %v1572
  %v1574 = vmul.f32 %v1571, %v1573
  %v1575 = vadd.f32 %v1571, %v1574
  %vm1576 = vweird.f32 %v1555
  %vm1577 = vweird.f32 %v1571
  %vm1578 = vmor %vm1576, %vm1577
  %v1579 = vsel %vm1578, %v1571, %v1575
  %v1580 = vand.u32 2147483647, %v1555
  %vm1581 = vcmp.eq.f32.partialorder %v1580, 8.507059e+37
  %v1582 = vand.u32 %v1555, 2147483648
  %v1583 = vor.u32 1.1754944e-38, %v1582
  %v1584 = vsel %vm1581, %v1583, %v1579
  %v1585 = vmul.f32 1.0, %v1584
  %s1586 = scalar_lea.vmem [#allocation4], 96
  %v1587 = vld [vmem:[%s1586] sm:$0xff]
  %v1588 = vld [vmem:[%s1586 + $0x8] sm:$0xff]
  %v1589 = vmul.f32 %v1527, %v1495
  %v1590 = vmul.f32 %v1542, %v1498
  %v1591 = vadd.f32 %v1587, %v1589
  %v1592 = vadd.f32 %v1588, %v1590
  %v1593 = vtanh.pop %v1591
  %v1594 = vtanh.pop %v1592
  %v1595 = vsub.f32 1.0, %v1570
  %v1596 = vsub.f32 1.0, %v1585
  %v1597 = vmul.f32 %v1595, %v1593
  %v1598 = vmul.f32 %v1596, %v1594
  %v1599 = vmul.f32 %v1570, %v1420
  %v1600 = vmul.f32 %v1585, %v1421
  %v1601 = vadd.f32 %v1597, %v1599
  %v1602 = vadd.f32 %v1598, %v1600
  %s1603 = scalar_lea.vmem %s9, 96
  %1604 = vst.msk [vmem:[%s1603] sm:$0xff] %vm167, %v1601
  %1605 = vst.msk [vmem:[%s1603 + $0x8] sm:$0xff] %vm167, %v1602
  %v1607 = vsel %vm167, %v1601, 0
  %v1610 = vsel %vm167, %v1602, 0
  %1612 = vmatpush.msra.mxu0 0.0
  %1613 = vmatpush.msra.mxu0 0.0
  %1614 = vmatpush.msra.mxu0 0.0
  %1615 = vmatpush.msra.mxu0 0.0
  %1616 = vmatpush.msra.mxu0 0.0
  %1617 = vmatpush.msra.mxu0 0.0
  %1618 = vmatpush.msra.mxu0 0.0
  %1619 = vmatpush.msra.mxu0 0.0
  %1620 = vmatpush.msra.mxu0 0.0
  %1621 = vmatpush.msra.mxu0 0.0
  %1622 = vmatpush.msra.mxu0 0.0
  %1623 = vmatpush.msra.mxu0 0.0
  %1624 = vmatpush.msra.mxu0 0.0
  %1625 = vmatpush.msra.mxu0 0.0
  %1626 = vmatpush.msra.mxu0 %v329
  %1627 = vmatpush.msra.mxu0 %v328
  %1628 = vmatmul.f32.gmra.mxu0 %v1607
  %v1629 = vpop.f32.mrf.mxu0
  %v1630 = vadd.f32 %v338, %v1629
  %1631 = vmatmul.f32.gmra.mxu0 %v1610
  %v1632 = vpop.f32.mrf.mxu0
  %v1633 = vadd.f32 %v338, %v1632
  %1634 = vdwg.mxu0
  %1635 = vmatpush.msra.mxu0 0.0
  %1636 = vmatpush.msra.mxu0 0.0
  %1637 = vmatpush.msra.mxu0 0.0
  %1638 = vmatpush.msra.mxu0 0.0
  %1639 = vmatpush.msra.mxu0 0.0
  %1640 = vmatpush.msra.mxu0 0.0
  %1641 = vmatpush.msra.mxu0 0.0
  %1642 = vmatpush.msra.mxu0 0.0
  %1643 = vmatpush.msra.mxu0 0.0
  %1644 = vmatpush.msra.mxu0 0.0
  %1645 = vmatpush.msra.mxu0 0.0
  %1646 = vmatpush.msra.mxu0 0.0
  %1647 = vmatpush.msra.mxu0 0.0
  %1648 = vmatpush.msra.mxu0 0.0
  %1649 = vmatpush.msra.mxu0 %v331
  %1650 = vmatpush.msra.mxu0 %v330
  %1651 = vmatmul.f32.gmra.mxu0 %v1607
  %v1652 = vpop.f32.mrf.mxu0
  %v1653 = vadd.f32 %v367, %v1652
  %1654 = vmatmul.f32.gmra.mxu0 %v1610
  %v1655 = vpop.f32.mrf.mxu0
  %v1656 = vadd.f32 %v367, %v1655
  %1657 = vdwg.mxu0
  %1658 = vmatpush.msra.mxu0 0.0
  %1659 = vmatpush.msra.mxu0 0.0
  %1660 = vmatpush.msra.mxu0 0.0
  %1661 = vmatpush.msra.mxu0 0.0
  %1662 = vmatpush.msra.mxu0 0.0
  %1663 = vmatpush.msra.mxu0 0.0
  %1664 = vmatpush.msra.mxu0 0.0
  %1665 = vmatpush.msra.mxu0 0.0
  %1666 = vmatpush.msra.mxu0 0.0
  %1667 = vmatpush.msra.mxu0 0.0
  %1668 = vmatpush.msra.mxu0 0.0
  %1669 = vmatpush.msra.mxu0 0.0
  %1670 = vmatpush.msra.mxu0 0.0
  %1671 = vmatpush.msra.mxu0 0.0
  %1672 = vmatpush.msra.mxu0 %v333
  %1673 = vmatpush.msra.mxu0 %v332
  %1674 = vmatmul.f32.gmra.mxu0 %v1607
  %v1675 = vpop.f32.mrf.mxu0
  %v1676 = vadd.f32 %v393, %v1675
  %1677 = vmatmul.f32.gmra.mxu0 %v1610
  %v1678 = vpop.f32.mrf.mxu0
  %v1679 = vadd.f32 %v393, %v1678
  %1680 = vdwg.mxu0
  %s1681 = scalar_lea.vmem [#allocation2], 112
  %v1682 = vld [vmem:[%s1681] sm:$0xff]
  %v1683 = vld [vmem:[%s1681 + $0x8] sm:$0xff]
  %v1684 = vadd.f32 %v1682, %v1630
  %v1685 = vadd.f32 %v1683, %v1633
  %v1686 = vxor.u32 %v1684, 2147483648
  %v1687 = vxor.u32 %v1685, 2147483648
  %v1688 = vmul.f32 %v1686, 1.442695
  %v1689 = vpow.pop %v1688
  %v1690 = vmul.f32 %v1687, 1.442695
  %v1691 = vpow.pop %v1690
  %v1692 = vadd.f32 %v1689, 1.0
  %v1693 = vadd.f32 %v1691, 1.0
  %v1694 = vrcp.pop %v1692
  %v1695 = vmul.f32 %v1692, %v1694
  %v1696 = vsub.f32 1.0, %v1695
  %v1697 = vmul.f32 %v1694, %v1696
  %v1698 = vadd.f32 %v1694, %v1697
  %vm1699 = vweird.f32 %v1692
  %vm1700 = vweird.f32 %v1694
  %vm1701 = vmor %vm1699, %vm1700
  %v1702 = vsel %vm1701, %v1694, %v1698
  %v1703 = vand.u32 2147483647, %v1692
  %vm1704 = vcmp.eq.f32.partialorder %v1703, 8.507059e+37
  %v1705 = vand.u32 %v1692, 2147483648
  %v1706 = vor.u32 1.1754944e-38, %v1705
  %v1707 = vsel %vm1704, %v1706, %v1702
  %v1708 = vmul.f32 1.0, %v1707
  %v1709 = vrcp.pop %v1693
  %v1710 = vmul.f32 %v1693, %v1709
  %v1711 = vsub.f32 1.0, %v1710
  %v1712 = vmul.f32 %v1709, %v1711
  %v1713 = vadd.f32 %v1709, %v1712
  %vm1714 = vweird.f32 %v1693
  %vm1715 = vweird.f32 %v1709
  %vm1716 = vmor %vm1714, %vm1715
  %v1717 = vsel %vm1716, %v1709, %v1713
  %v1718 = vand.u32 2147483647, %v1693
  %vm1719 = vcmp.eq.f32.partialorder %v1718, 8.507059e+37
  %v1720 = vand.u32 %v1693, 2147483648
  %v1721 = vor.u32 1.1754944e-38, %v1720
  %v1722 = vsel %vm1719, %v1721, %v1717
  %v1723 = vmul.f32 1.0, %v1722
  %s1724 = scalar_lea.vmem [#allocation3], 112
  %v1725 = vld [vmem:[%s1724] sm:$0xff]
  %v1726 = vld [vmem:[%s1724 + $0x8] sm:$0xff]
  %v1727 = vadd.f32 %v1725, %v1653
  %v1728 = vadd.f32 %v1726, %v1656
  %v1729 = vxor.u32 %v1727, 2147483648
  %v1730 = vxor.u32 %v1728, 2147483648
  %v1731 = vmul.f32 %v1729, 1.442695
  %v1732 = vpow.pop %v1731
  %v1733 = vmul.f32 %v1730, 1.442695
  %v1734 = vpow.pop %v1733
  %v1735 = vadd.f32 %v1732, 1.0
  %v1736 = vadd.f32 %v1734, 1.0
  %v1737 = vrcp.pop %v1735
  %v1738 = vmul.f32 %v1735, %v1737
  %v1739 = vsub.f32 1.0, %v1738
  %v1740 = vmul.f32 %v1737, %v1739
  %v1741 = vadd.f32 %v1737, %v1740
  %vm1742 = vweird.f32 %v1735
  %vm1743 = vweird.f32 %v1737
  %vm1744 = vmor %vm1742, %vm1743
  %v1745 = vsel %vm1744, %v1737, %v1741
  %v1746 = vand.u32 2147483647, %v1735
  %vm1747 = vcmp.eq.f32.partialorder %v1746, 8.507059e+37
  %v1748 = vand.u32 %v1735, 2147483648
  %v1749 = vor.u32 1.1754944e-38, %v1748
  %v1750 = vsel %vm1747, %v1749, %v1745
  %v1751 = vmul.f32 1.0, %v1750
  %v1752 = vrcp.pop %v1736
  %v1753 = vmul.f32 %v1736, %v1752
  %v1754 = vsub.f32 1.0, %v1753
  %v1755 = vmul.f32 %v1752, %v1754
  %v1756 = vadd.f32 %v1752, %v1755
  %vm1757 = vweird.f32 %v1736
  %vm1758 = vweird.f32 %v1752
  %vm1759 = vmor %vm1757, %vm1758
  %v1760 = vsel %vm1759, %v1752, %v1756
  %v1761 = vand.u32 2147483647, %v1736
  %vm1762 = vcmp.eq.f32.partialorder %v1761, 8.507059e+37
  %v1763 = vand.u32 %v1736, 2147483648
  %v1764 = vor.u32 1.1754944e-38, %v1763
  %v1765 = vsel %vm1762, %v1764, %v1760
  %v1766 = vmul.f32 1.0, %v1765
  %s1767 = scalar_lea.vmem [#allocation4], 112
  %v1768 = vld [vmem:[%s1767] sm:$0xff]
  %v1769 = vld [vmem:[%s1767 + $0x8] sm:$0xff]
  %v1770 = vmul.f32 %v1708, %v1676
  %v1771 = vmul.f32 %v1723, %v1679
  %v1772 = vadd.f32 %v1768, %v1770
  %v1773 = vadd.f32 %v1769, %v1771
  %v1774 = vtanh.pop %v1772
  %v1775 = vtanh.pop %v1773
  %v1776 = vsub.f32 1.0, %v1751
  %v1777 = vsub.f32 1.0, %v1766
  %v1778 = vmul.f32 %v1776, %v1774
  %v1779 = vmul.f32 %v1777, %v1775
  %v1780 = vmul.f32 %v1751, %v1601
  %v1781 = vmul.f32 %v1766, %v1602
  %v1782 = vadd.f32 %v1778, %v1780
  %v1783 = vadd.f32 %v1779, %v1781
  %s1784 = scalar_lea.vmem %s9, 112
  %1785 = vst.msk [vmem:[%s1784] sm:$0xff] %vm167, %v1782
  %1786 = vst.msk [vmem:[%s1784 + $0x8] sm:$0xff] %vm167, %v1783
  // Predicated region
  $region38: #{hsdgnn_forward.6} parent=0 // pred_check
    _
  $region39: #{hsdgnn_forward.6} parent=0 // pred_check_branch
    %1788 = sbr.rel (0) target = $region41
  $region40: #{hsdgnn_forward.6} parent=0 // pred_region
    _
  $region41: #{hsdgnn_forward.6} parent=0 // pred_fallthru
    _
  // Predicated region
  $region42: #{hsdgnn_forward.6} parent=0 // pred_check
    _
  $region43: #{hsdgnn_forward.6} parent=0 // pred_check_branch
    %1790 = sbr.rel (0) target = $region45
  $region44: #{hsdgnn_forward.6} parent=0 // pred_region
    _
  $region45: #{hsdgnn_forward.6} parent=0 // pred_fallthru
    _

// kernel: hsdgnn_forward.7
$region0: #{hsdgnn_forward.7}
  #allocation0 [shape = 'u32[]', space=smem, size = 0x4, offset = 0x4, fixed_abs, tag = 'smem constant byte address 0x4 - core index']
  #allocation1 [shape = 'u32[72,128]{1,0:T(1,128)}', space=vmem, size = 0x9000, scoped, tag = 'internal scratch']
  #allocation2 [shape = 'f32[8,16,16]{2,1,0:T(8,128)}', space=vmem, size = 0x10000, scoped, tag = 'scratch operand']
  #allocation3 [shape = 'f32[8,16,16]{2,1,0:T(8,128)}', space=vmem, size = 0x10000, scoped, tag = 'scratch operand']
  #allocation4 [shape = 'f32[8,16,16]{2,1,0:T(8,128)}', space=vmem, size = 0x10000, scoped, tag = 'scratch operand']
  %s0 = inlined_call_operand.vmem [shape: f32[8,16,16], index: 0, kind: input, shape index: {}]
  %s1 = inlined_call_operand.vmem [shape: f32[8,16,8], index: 1, kind: input, shape index: {}]
  %s2 = inlined_call_operand.vmem [shape: f32[8,8], index: 2, kind: input, shape index: {}]
  %s3 = inlined_call_operand.vmem [shape: f32[16,128], index: 3, kind: input, shape index: {}]
  %s4 = inlined_call_operand.vmem [shape: f32[8,16], index: 4, kind: input, shape index: {}]
  %s5 = inlined_call_operand.vmem [shape: f32[16,16], index: 5, kind: input, shape index: {}]
  %s6 = inlined_call_operand.vmem [shape: f32[16,16], index: 6, kind: input, shape index: {}]
  %s7 = inlined_call_operand.vmem [shape: f32[1,16], index: 7, kind: input, shape index: {}]
  %s8 = inlined_call_operand.vmem [shape: f32[16,48], index: 8, kind: input, shape index: {}]
  %s9 = inlined_call_operand.vmem [shape: f32[16,16], index: 9, kind: input, shape index: {}]
  %s10 = inlined_call_operand.vmem [shape: f32[16,16], index: 10, kind: input, shape index: {}]
  %s11 = inlined_call_operand.vmem [shape: f32[16,16], index: 11, kind: input, shape index: {}]
  %s12 = inlined_call_operand.vmem [shape: f32[1,48], index: 12, kind: input, shape index: {}]
  %s13 = inlined_call_operand.vmem [shape: f32[1,16], index: 13, kind: input, shape index: {}]
  %s14 = inlined_call_operand.vmem [shape: f32[1,16], index: 14, kind: input, shape index: {}]
  %s15 = inlined_call_operand.vmem [shape: f32[1,16], index: 15, kind: input, shape index: {}]
  %s16 = inlined_call_operand.vmem [shape: f32[16,16], index: 16, kind: output, shape index: {}]
  %s17 = sld [smem:[#allocation0]]
  $region74: #{hsdgnn_forward.7} parent=0
    _
  %s19 = ssub.s32 1, %s17
  %s20 = scalar_select 0, %s19, %s17
  // Predicated region
  $region2: #{hsdgnn_forward.7} parent=0 // pred_check
    _
  $region3: #{hsdgnn_forward.7} parent=0 // pred_check_branch
    %22 = sbr.rel (0) target = $region5
  $region4: #{hsdgnn_forward.7} parent=0 // pred_region
    _
  $region5: #{hsdgnn_forward.7} parent=0 // pred_fallthru
    _
  // Predicated region
  $region6: #{hsdgnn_forward.7} parent=0 // pred_check
    _
  $region7: #{hsdgnn_forward.7} parent=0 // pred_check_branch
    %24 = sbr.rel (0) target = $region9
  $region8: #{hsdgnn_forward.7} parent=0 // pred_region
    _
  $region9: #{hsdgnn_forward.7} parent=0 // pred_fallthru
    _
  // Predicated region
  $region10: #{hsdgnn_forward.7} parent=0 // pred_check
    _
  $region11: #{hsdgnn_forward.7} parent=0 // pred_check_branch
    %26 = sbr.rel (0) target = $region13
  $region12: #{hsdgnn_forward.7} parent=0 // pred_region
    _
  $region13: #{hsdgnn_forward.7} parent=0 // pred_fallthru
    _
  // Predicated region
  $region14: #{hsdgnn_forward.7} parent=0 // pred_check
    _
  $region15: #{hsdgnn_forward.7} parent=0 // pred_check_branch
    %28 = sbr.rel (0) target = $region17
  $region16: #{hsdgnn_forward.7} parent=0 // pred_region
    _
  $region17: #{hsdgnn_forward.7} parent=0 // pred_fallthru
    _
  // Predicated region
  $region18: #{hsdgnn_forward.7} parent=0 // pred_check
    _
  $region19: #{hsdgnn_forward.7} parent=0 // pred_check_branch
    %30 = sbr.rel (0) target = $region21
  $region20: #{hsdgnn_forward.7} parent=0 // pred_region
    _
  $region21: #{hsdgnn_forward.7} parent=0 // pred_fallthru
    _
  // Predicated region
  $region22: #{hsdgnn_forward.7} parent=0 // pred_check
    _
  $region23: #{hsdgnn_forward.7} parent=0 // pred_check_branch
    %32 = sbr.rel (0) target = $region25
  $region24: #{hsdgnn_forward.7} parent=0 // pred_region
    _
  $region25: #{hsdgnn_forward.7} parent=0 // pred_fallthru
    _
  // Predicated region
  $region26: #{hsdgnn_forward.7} parent=0 // pred_check
    _
  $region27: #{hsdgnn_forward.7} parent=0 // pred_check_branch
    %34 = sbr.rel (0) target = $region29
  $region28: #{hsdgnn_forward.7} parent=0 // pred_region
    _
  $region29: #{hsdgnn_forward.7} parent=0 // pred_fallthru
    _
  // Predicated region
  $region30: #{hsdgnn_forward.7} parent=0 // pred_check
    _
  $region31: #{hsdgnn_forward.7} parent=0 // pred_check_branch
    %36 = sbr.rel (0) target = $region33
  $region32: #{hsdgnn_forward.7} parent=0 // pred_region
    _
  $region33: #{hsdgnn_forward.7} parent=0 // pred_fallthru
    _
  // Predicated region
  $region34: #{hsdgnn_forward.7} parent=0 // pred_check
    _
  $region35: #{hsdgnn_forward.7} parent=0 // pred_check_branch
    %38 = sbr.rel (0) target = $region37
  $region36: #{hsdgnn_forward.7} parent=0 // pred_region
    _
  $region37: #{hsdgnn_forward.7} parent=0 // pred_fallthru
    _
  // Predicated region
  $region38: #{hsdgnn_forward.7} parent=0 // pred_check
    _
  $region39: #{hsdgnn_forward.7} parent=0 // pred_check_branch
    %40 = sbr.rel (0) target = $region41
  $region40: #{hsdgnn_forward.7} parent=0 // pred_region
    _
  $region41: #{hsdgnn_forward.7} parent=0 // pred_fallthru
    _
  // Predicated region
  $region42: #{hsdgnn_forward.7} parent=0 // pred_check
    _
  $region43: #{hsdgnn_forward.7} parent=0 // pred_check_branch
    %42 = sbr.rel (0) target = $region45
  $region44: #{hsdgnn_forward.7} parent=0 // pred_region
    _
  $region45: #{hsdgnn_forward.7} parent=0 // pred_fallthru
    _
  // Predicated region
  $region46: #{hsdgnn_forward.7} parent=0 // pred_check
    _
  $region47: #{hsdgnn_forward.7} parent=0 // pred_check_branch
    %44 = sbr.rel (0) target = $region49
  $region48: #{hsdgnn_forward.7} parent=0 // pred_region
    _
  $region49: #{hsdgnn_forward.7} parent=0 // pred_fallthru
    _
  // Predicated region
  $region50: #{hsdgnn_forward.7} parent=0 // pred_check
    _
  $region51: #{hsdgnn_forward.7} parent=0 // pred_check_branch
    %46 = sbr.rel (0) target = $region53
  $region52: #{hsdgnn_forward.7} parent=0 // pred_region
    _
  $region53: #{hsdgnn_forward.7} parent=0 // pred_fallthru
    _
  // Predicated region
  $region54: #{hsdgnn_forward.7} parent=0 // pred_check
    _
  $region55: #{hsdgnn_forward.7} parent=0 // pred_check_branch
    %48 = sbr.rel (0) target = $region57
  $region56: #{hsdgnn_forward.7} parent=0 // pred_region
    _
  $region57: #{hsdgnn_forward.7} parent=0 // pred_fallthru
    _
  // Predicated region
  $region58: #{hsdgnn_forward.7} parent=0 // pred_check
    _
  $region59: #{hsdgnn_forward.7} parent=0 // pred_check_branch
    %50 = sbr.rel (0) target = $region61
  $region60: #{hsdgnn_forward.7} parent=0 // pred_region
    _
  $region61: #{hsdgnn_forward.7} parent=0 // pred_fallthru
    _
  // Predicated region
  $region62: #{hsdgnn_forward.7} parent=0 // pred_check
    _
  $region63: #{hsdgnn_forward.7} parent=0 // pred_check_branch
    %52 = sbr.rel (0) target = $region65
  $region64: #{hsdgnn_forward.7} parent=0 // pred_region
    _
  $region65: #{hsdgnn_forward.7} parent=0 // pred_fallthru
    _
  %v53 = vld [vmem:[%s0] sm:$0xff]
  %v54 = vld [vmem:[%s0 + $0x8] sm:$0xff]
  %v55 = vld [vmem:[%s0 + $0x10] sm:$0xff]
  %v56 = vld [vmem:[%s0 + $0x18] sm:$0xff]
  %v57 = vld [vmem:[%s0 + $0x20] sm:$0xff]
  %v58 = vld [vmem:[%s0 + $0x28] sm:$0xff]
  %v59 = vld [vmem:[%s0 + $0x30] sm:$0xff]
  %v60 = vld [vmem:[%s0 + $0x38] sm:$0xff]
  %v61 = vld [vmem:[%s0 + $0x40] sm:$0xff]
  %v62 = vld [vmem:[%s0 + $0x48] sm:$0xff]
  %v63 = vld [vmem:[%s0 + $0x50] sm:$0xff]
  %v64 = vld [vmem:[%s0 + $0x58] sm:$0xff]
  %v65 = vld [vmem:[%s0 + $0x60] sm:$0xff]
  %v66 = vld [vmem:[%s0 + $0x68] sm:$0xff]
  %v67 = vld [vmem:[%s0 + $0x70] sm:$0xff]
  %v68 = vld [vmem:[%s0 + $0x78] sm:$0xff]
  %v69 = vld [vmem:[%s1] sm:$0xff]
  %v70 = vld [vmem:[%s1 + $0x8] sm:$0xff]
  %v71 = vld [vmem:[%s1 + $0x10] sm:$0xff]
  %v72 = vld [vmem:[%s1 + $0x18] sm:$0xff]
  %v73 = vld [vmem:[%s1 + $0x20] sm:$0xff]
  %v74 = vld [vmem:[%s1 + $0x28] sm:$0xff]
  %v75 = vld [vmem:[%s1 + $0x30] sm:$0xff]
  %v76 = vld [vmem:[%s1 + $0x38] sm:$0xff]
  %v77 = vld [vmem:[%s1 + $0x40] sm:$0xff]
  %v78 = vld [vmem:[%s1 + $0x48] sm:$0xff]
  %v79 = vld [vmem:[%s1 + $0x50] sm:$0xff]
  %v80 = vld [vmem:[%s1 + $0x58] sm:$0xff]
  %v81 = vld [vmem:[%s1 + $0x60] sm:$0xff]
  %v82 = vld [vmem:[%s1 + $0x68] sm:$0xff]
  %v83 = vld [vmem:[%s1 + $0x70] sm:$0xff]
  %v84 = vld [vmem:[%s1 + $0x78] sm:$0xff]
  %v85 = vld [vmem:[%s2] sm:$0xff]
  %vm86 = vcmask 64512
  %v88 = vsel %vm86, %v69, 0
  %90 = vmatpush.xpose.msra.mxu0 0.0
  %91 = vmatpush.xpose.msra.mxu0 0.0
  %92 = vmatpush.xpose.msra.mxu0 0.0
  %93 = vmatpush.xpose.msra.mxu0 0.0
  %94 = vmatpush.xpose.msra.mxu0 0.0
  %95 = vmatpush.xpose.msra.mxu0 0.0
  %96 = vmatpush.xpose.msra.mxu0 0.0
  %97 = vmatpush.xpose.msra.mxu0 0.0
  %98 = vmatpush.xpose.msra.mxu0 0.0
  %99 = vmatpush.xpose.msra.mxu0 0.0
  %100 = vmatpush.xpose.msra.mxu0 0.0
  %101 = vmatpush.xpose.msra.mxu0 0.0
  %102 = vmatpush.xpose.msra.mxu0 0.0
  %103 = vmatpush.xpose.msra.mxu0 0.0
  %104 = vmatpush.xpose.msra.mxu0 0.0
  %105 = vmatpush.xpose.msra.mxu0 %v88
  %106 = vmatmul.f32.gmra.mxu0 %v88
  %v107 = vpop.f32.mrf.mxu0
  %v108 = vadd.f32 0.0, %v107
  %109 = vdwg.mxu0
  %v111 = vsel %vm86, %v70, 0
  %113 = vmatpush.xpose.msra.mxu0 0.0
  %114 = vmatpush.xpose.msra.mxu0 0.0
  %115 = vmatpush.xpose.msra.mxu0 0.0
  %116 = vmatpush.xpose.msra.mxu0 0.0
  %117 = vmatpush.xpose.msra.mxu0 0.0
  %118 = vmatpush.xpose.msra.mxu0 0.0
  %119 = vmatpush.xpose.msra.mxu0 0.0
  %120 = vmatpush.xpose.msra.mxu0 0.0
  %121 = vmatpush.xpose.msra.mxu0 0.0
  %122 = vmatpush.xpose.msra.mxu0 0.0
  %123 = vmatpush.xpose.msra.mxu0 0.0
  %124 = vmatpush.xpose.msra.mxu0 0.0
  %125 = vmatpush.xpose.msra.mxu0 0.0
  %126 = vmatpush.xpose.msra.mxu0 0.0
  %127 = vmatpush.xpose.msra.mxu0 0.0
  %128 = vmatpush.xpose.msra.mxu0 %v111
  %129 = vmatmul.f32.gmra.mxu0 %v111
  %v130 = vpop.f32.mrf.mxu0
  %v131 = vadd.f32 0.0, %v130
  %132 = vdwg.mxu0
  %v134 = vsel %vm86, %v71, 0
  %136 = vmatpush.xpose.msra.mxu0 0.0
  %137 = vmatpush.xpose.msra.mxu0 0.0
  %138 = vmatpush.xpose.msra.mxu0 0.0
  %139 = vmatpush.xpose.msra.mxu0 0.0
  %140 = vmatpush.xpose.msra.mxu0 0.0
  %141 = vmatpush.xpose.msra.mxu0 0.0
  %142 = vmatpush.xpose.msra.mxu0 0.0
  %143 = vmatpush.xpose.msra.mxu0 0.0
  %144 = vmatpush.xpose.msra.mxu0 0.0
  %145 = vmatpush.xpose.msra.mxu0 0.0
  %146 = vmatpush.xpose.msra.mxu0 0.0
  %147 = vmatpush.xpose.msra.mxu0 0.0
  %148 = vmatpush.xpose.msra.mxu0 0.0
  %149 = vmatpush.xpose.msra.mxu0 0.0
  %150 = vmatpush.xpose.msra.mxu0 0.0
  %151 = vmatpush.xpose.msra.mxu0 %v134
  %152 = vmatmul.f32.gmra.mxu0 %v134
  %v153 = vpop.f32.mrf.mxu0
  %v154 = vadd.f32 0.0, %v153
  %155 = vdwg.mxu0
  %v157 = vsel %vm86, %v72, 0
  %159 = vmatpush.xpose.msra.mxu0 0.0
  %160 = vmatpush.xpose.msra.mxu0 0.0
  %161 = vmatpush.xpose.msra.mxu0 0.0
  %162 = vmatpush.xpose.msra.mxu0 0.0
  %163 = vmatpush.xpose.msra.mxu0 0.0
  %164 = vmatpush.xpose.msra.mxu0 0.0
  %165 = vmatpush.xpose.msra.mxu0 0.0
  %166 = vmatpush.xpose.msra.mxu0 0.0
  %167 = vmatpush.xpose.msra.mxu0 0.0
  %168 = vmatpush.xpose.msra.mxu0 0.0
  %169 = vmatpush.xpose.msra.mxu0 0.0
  %170 = vmatpush.xpose.msra.mxu0 0.0
  %171 = vmatpush.xpose.msra.mxu0 0.0
  %172 = vmatpush.xpose.msra.mxu0 0.0
  %173 = vmatpush.xpose.msra.mxu0 0.0
  %174 = vmatpush.xpose.msra.mxu0 %v157
  %175 = vmatmul.f32.gmra.mxu0 %v157
  %v176 = vpop.f32.mrf.mxu0
  %v177 = vadd.f32 0.0, %v176
  %178 = vdwg.mxu0
  %v180 = vsel %vm86, %v73, 0
  %182 = vmatpush.xpose.msra.mxu0 0.0
  %183 = vmatpush.xpose.msra.mxu0 0.0
  %184 = vmatpush.xpose.msra.mxu0 0.0
  %185 = vmatpush.xpose.msra.mxu0 0.0
  %186 = vmatpush.xpose.msra.mxu0 0.0
  %187 = vmatpush.xpose.msra.mxu0 0.0
  %188 = vmatpush.xpose.msra.mxu0 0.0
  %189 = vmatpush.xpose.msra.mxu0 0.0
  %190 = vmatpush.xpose.msra.mxu0 0.0
  %191 = vmatpush.xpose.msra.mxu0 0.0
  %192 = vmatpush.xpose.msra.mxu0 0.0
  %193 = vmatpush.xpose.msra.mxu0 0.0
  %194 = vmatpush.xpose.msra.mxu0 0.0
  %195 = vmatpush.xpose.msra.mxu0 0.0
  %196 = vmatpush.xpose.msra.mxu0 0.0
  %197 = vmatpush.xpose.msra.mxu0 %v180
  %198 = vmatmul.f32.gmra.mxu0 %v180
  %v199 = vpop.f32.mrf.mxu0
  %v200 = vadd.f32 0.0, %v199
  %201 = vdwg.mxu0
  %v203 = vsel %vm86, %v74, 0
  %205 = vmatpush.xpose.msra.mxu0 0.0
  %206 = vmatpush.xpose.msra.mxu0 0.0
  %207 = vmatpush.xpose.msra.mxu0 0.0
  %208 = vmatpush.xpose.msra.mxu0 0.0
  %209 = vmatpush.xpose.msra.mxu0 0.0
  %210 = vmatpush.xpose.msra.mxu0 0.0
  %211 = vmatpush.xpose.msra.mxu0 0.0
  %212 = vmatpush.xpose.msra.mxu0 0.0
  %213 = vmatpush.xpose.msra.mxu0 0.0
  %214 = vmatpush.xpose.msra.mxu0 0.0
  %215 = vmatpush.xpose.msra.mxu0 0.0
  %216 = vmatpush.xpose.msra.mxu0 0.0
  %217 = vmatpush.xpose.msra.mxu0 0.0
  %218 = vmatpush.xpose.msra.mxu0 0.0
  %219 = vmatpush.xpose.msra.mxu0 0.0
  %220 = vmatpush.xpose.msra.mxu0 %v203
  %221 = vmatmul.f32.gmra.mxu0 %v203
  %v222 = vpop.f32.mrf.mxu0
  %v223 = vadd.f32 0.0, %v222
  %224 = vdwg.mxu0
  %v226 = vsel %vm86, %v75, 0
  %228 = vmatpush.xpose.msra.mxu0 0.0
  %229 = vmatpush.xpose.msra.mxu0 0.0
  %230 = vmatpush.xpose.msra.mxu0 0.0
  %231 = vmatpush.xpose.msra.mxu0 0.0
  %232 = vmatpush.xpose.msra.mxu0 0.0
  %233 = vmatpush.xpose.msra.mxu0 0.0
  %234 = vmatpush.xpose.msra.mxu0 0.0
  %235 = vmatpush.xpose.msra.mxu0 0.0
  %236 = vmatpush.xpose.msra.mxu0 0.0
  %237 = vmatpush.xpose.msra.mxu0 0.0
  %238 = vmatpush.xpose.msra.mxu0 0.0
  %239 = vmatpush.xpose.msra.mxu0 0.0
  %240 = vmatpush.xpose.msra.mxu0 0.0
  %241 = vmatpush.xpose.msra.mxu0 0.0
  %242 = vmatpush.xpose.msra.mxu0 0.0
  %243 = vmatpush.xpose.msra.mxu0 %v226
  %244 = vmatmul.f32.gmra.mxu0 %v226
  %v245 = vpop.f32.mrf.mxu0
  %v246 = vadd.f32 0.0, %v245
  %247 = vdwg.mxu0
  %v249 = vsel %vm86, %v76, 0
  %251 = vmatpush.xpose.msra.mxu0 0.0
  %252 = vmatpush.xpose.msra.mxu0 0.0
  %253 = vmatpush.xpose.msra.mxu0 0.0
  %254 = vmatpush.xpose.msra.mxu0 0.0
  %255 = vmatpush.xpose.msra.mxu0 0.0
  %256 = vmatpush.xpose.msra.mxu0 0.0
  %257 = vmatpush.xpose.msra.mxu0 0.0
  %258 = vmatpush.xpose.msra.mxu0 0.0
  %259 = vmatpush.xpose.msra.mxu0 0.0
  %260 = vmatpush.xpose.msra.mxu0 0.0
  %261 = vmatpush.xpose.msra.mxu0 0.0
  %262 = vmatpush.xpose.msra.mxu0 0.0
  %263 = vmatpush.xpose.msra.mxu0 0.0
  %264 = vmatpush.xpose.msra.mxu0 0.0
  %265 = vmatpush.xpose.msra.mxu0 0.0
  %266 = vmatpush.xpose.msra.mxu0 %v249
  %267 = vmatmul.f32.gmra.mxu0 %v249
  %v268 = vpop.f32.mrf.mxu0
  %v269 = vadd.f32 0.0, %v268
  %270 = vdwg.mxu0
  %v272 = vsel %vm86, %v77, 0
  %274 = vmatpush.xpose.msra.mxu0 0.0
  %275 = vmatpush.xpose.msra.mxu0 0.0
  %276 = vmatpush.xpose.msra.mxu0 0.0
  %277 = vmatpush.xpose.msra.mxu0 0.0
  %278 = vmatpush.xpose.msra.mxu0 0.0
  %279 = vmatpush.xpose.msra.mxu0 0.0
  %280 = vmatpush.xpose.msra.mxu0 0.0
  %281 = vmatpush.xpose.msra.mxu0 0.0
  %282 = vmatpush.xpose.msra.mxu0 0.0
  %283 = vmatpush.xpose.msra.mxu0 0.0
  %284 = vmatpush.xpose.msra.mxu0 0.0
  %285 = vmatpush.xpose.msra.mxu0 0.0
  %286 = vmatpush.xpose.msra.mxu0 0.0
  %287 = vmatpush.xpose.msra.mxu0 0.0
  %288 = vmatpush.xpose.msra.mxu0 0.0
  %289 = vmatpush.xpose.msra.mxu0 %v272
  %290 = vmatmul.f32.gmra.mxu0 %v272
  %v291 = vpop.f32.mrf.mxu0
  %v292 = vadd.f32 0.0, %v291
  %293 = vdwg.mxu0
  %v295 = vsel %vm86, %v78, 0
  %297 = vmatpush.xpose.msra.mxu0 0.0
  %298 = vmatpush.xpose.msra.mxu0 0.0
  %299 = vmatpush.xpose.msra.mxu0 0.0
  %300 = vmatpush.xpose.msra.mxu0 0.0
  %301 = vmatpush.xpose.msra.mxu0 0.0
  %302 = vmatpush.xpose.msra.mxu0 0.0
  %303 = vmatpush.xpose.msra.mxu0 0.0
  %304 = vmatpush.xpose.msra.mxu0 0.0
  %305 = vmatpush.xpose.msra.mxu0 0.0
  %306 = vmatpush.xpose.msra.mxu0 0.0
  %307 = vmatpush.xpose.msra.mxu0 0.0
  %308 = vmatpush.xpose.msra.mxu0 0.0
  %309 = vmatpush.xpose.msra.mxu0 0.0
  %310 = vmatpush.xpose.msra.mxu0 0.0
  %311 = vmatpush.xpose.msra.mxu0 0.0
  %312 = vmatpush.xpose.msra.mxu0 %v295
  %313 = vmatmul.f32.gmra.mxu0 %v295
  %v314 = vpop.f32.mrf.mxu0
  %v315 = vadd.f32 0.0, %v314
  %316 = vdwg.mxu0
  %v318 = vsel %vm86, %v79, 0
  %320 = vmatpush.xpose.msra.mxu0 0.0
  %321 = vmatpush.xpose.msra.mxu0 0.0
  %322 = vmatpush.xpose.msra.mxu0 0.0
  %323 = vmatpush.xpose.msra.mxu0 0.0
  %324 = vmatpush.xpose.msra.mxu0 0.0
  %325 = vmatpush.xpose.msra.mxu0 0.0
  %326 = vmatpush.xpose.msra.mxu0 0.0
  %327 = vmatpush.xpose.msra.mxu0 0.0
  %328 = vmatpush.xpose.msra.mxu0 0.0
  %329 = vmatpush.xpose.msra.mxu0 0.0
  %330 = vmatpush.xpose.msra.mxu0 0.0
  %331 = vmatpush.xpose.msra.mxu0 0.0
  %332 = vmatpush.xpose.msra.mxu0 0.0
  %333 = vmatpush.xpose.msra.mxu0 0.0
  %334 = vmatpush.xpose.msra.mxu0 0.0
  %335 = vmatpush.xpose.msra.mxu0 %v318
  %336 = vmatmul.f32.gmra.mxu0 %v318
  %v337 = vpop.f32.mrf.mxu0
  %v338 = vadd.f32 0.0, %v337
  %339 = vdwg.mxu0
  %v341 = vsel %vm86, %v80, 0
  %343 = vmatpush.xpose.msra.mxu0 0.0
  %344 = vmatpush.xpose.msra.mxu0 0.0
  %345 = vmatpush.xpose.msra.mxu0 0.0
  %346 = vmatpush.xpose.msra.mxu0 0.0
  %347 = vmatpush.xpose.msra.mxu0 0.0
  %348 = vmatpush.xpose.msra.mxu0 0.0
  %349 = vmatpush.xpose.msra.mxu0 0.0
  %350 = vmatpush.xpose.msra.mxu0 0.0
  %351 = vmatpush.xpose.msra.mxu0 0.0
  %352 = vmatpush.xpose.msra.mxu0 0.0
  %353 = vmatpush.xpose.msra.mxu0 0.0
  %354 = vmatpush.xpose.msra.mxu0 0.0
  %355 = vmatpush.xpose.msra.mxu0 0.0
  %356 = vmatpush.xpose.msra.mxu0 0.0
  %357 = vmatpush.xpose.msra.mxu0 0.0
  %358 = vmatpush.xpose.msra.mxu0 %v341
  %359 = vmatmul.f32.gmra.mxu0 %v341
  %v360 = vpop.f32.mrf.mxu0
  %v361 = vadd.f32 0.0, %v360
  %362 = vdwg.mxu0
  %v364 = vsel %vm86, %v81, 0
  %366 = vmatpush.xpose.msra.mxu0 0.0
  %367 = vmatpush.xpose.msra.mxu0 0.0
  %368 = vmatpush.xpose.msra.mxu0 0.0
  %369 = vmatpush.xpose.msra.mxu0 0.0
  %370 = vmatpush.xpose.msra.mxu0 0.0
  %371 = vmatpush.xpose.msra.mxu0 0.0
  %372 = vmatpush.xpose.msra.mxu0 0.0
  %373 = vmatpush.xpose.msra.mxu0 0.0
  %374 = vmatpush.xpose.msra.mxu0 0.0
  %375 = vmatpush.xpose.msra.mxu0 0.0
  %376 = vmatpush.xpose.msra.mxu0 0.0
  %377 = vmatpush.xpose.msra.mxu0 0.0
  %378 = vmatpush.xpose.msra.mxu0 0.0
  %379 = vmatpush.xpose.msra.mxu0 0.0
  %380 = vmatpush.xpose.msra.mxu0 0.0
  %381 = vmatpush.xpose.msra.mxu0 %v364
  %382 = vmatmul.f32.gmra.mxu0 %v364
  %v383 = vpop.f32.mrf.mxu0
  %v384 = vadd.f32 0.0, %v383
  %385 = vdwg.mxu0
  %v387 = vsel %vm86, %v82, 0
  %389 = vmatpush.xpose.msra.mxu0 0.0
  %390 = vmatpush.xpose.msra.mxu0 0.0
  %391 = vmatpush.xpose.msra.mxu0 0.0
  %392 = vmatpush.xpose.msra.mxu0 0.0
  %393 = vmatpush.xpose.msra.mxu0 0.0
  %394 = vmatpush.xpose.msra.mxu0 0.0
  %395 = vmatpush.xpose.msra.mxu0 0.0
  %396 = vmatpush.xpose.msra.mxu0 0.0
  %397 = vmatpush.xpose.msra.mxu0 0.0
  %398 = vmatpush.xpose.msra.mxu0 0.0
  %399 = vmatpush.xpose.msra.mxu0 0.0
  %400 = vmatpush.xpose.msra.mxu0 0.0
  %401 = vmatpush.xpose.msra.mxu0 0.0
  %402 = vmatpush.xpose.msra.mxu0 0.0
  %403 = vmatpush.xpose.msra.mxu0 0.0
  %404 = vmatpush.xpose.msra.mxu0 %v387
  %405 = vmatmul.f32.gmra.mxu0 %v387
  %v406 = vpop.f32.mrf.mxu0
  %v407 = vadd.f32 0.0, %v406
  %408 = vdwg.mxu0
  %v410 = vsel %vm86, %v83, 0
  %412 = vmatpush.xpose.msra.mxu0 0.0
  %413 = vmatpush.xpose.msra.mxu0 0.0
  %414 = vmatpush.xpose.msra.mxu0 0.0
  %415 = vmatpush.xpose.msra.mxu0 0.0
  %416 = vmatpush.xpose.msra.mxu0 0.0
  %417 = vmatpush.xpose.msra.mxu0 0.0
  %418 = vmatpush.xpose.msra.mxu0 0.0
  %419 = vmatpush.xpose.msra.mxu0 0.0
  %420 = vmatpush.xpose.msra.mxu0 0.0
  %421 = vmatpush.xpose.msra.mxu0 0.0
  %422 = vmatpush.xpose.msra.mxu0 0.0
  %423 = vmatpush.xpose.msra.mxu0 0.0
  %424 = vmatpush.xpose.msra.mxu0 0.0
  %425 = vmatpush.xpose.msra.mxu0 0.0
  %426 = vmatpush.xpose.msra.mxu0 0.0
  %427 = vmatpush.xpose.msra.mxu0 %v410
  %428 = vmatmul.f32.gmra.mxu0 %v410
  %v429 = vpop.f32.mrf.mxu0
  %v430 = vadd.f32 0.0, %v429
  %431 = vdwg.mxu0
  %v433 = vsel %vm86, %v84, 0
  %435 = vmatpush.xpose.msra.mxu0 0.0
  %436 = vmatpush.xpose.msra.mxu0 0.0
  %437 = vmatpush.xpose.msra.mxu0 0.0
  %438 = vmatpush.xpose.msra.mxu0 0.0
  %439 = vmatpush.xpose.msra.mxu0 0.0
  %440 = vmatpush.xpose.msra.mxu0 0.0
  %441 = vmatpush.xpose.msra.mxu0 0.0
  %442 = vmatpush.xpose.msra.mxu0 0.0
  %443 = vmatpush.xpose.msra.mxu0 0.0
  %444 = vmatpush.xpose.msra.mxu0 0.0
  %445 = vmatpush.xpose.msra.mxu0 0.0
  %446 = vmatpush.xpose.msra.mxu0 0.0
  %447 = vmatpush.xpose.msra.mxu0 0.0
  %448 = vmatpush.xpose.msra.mxu0 0.0
  %449 = vmatpush.xpose.msra.mxu0 0.0
  %450 = vmatpush.xpose.msra.mxu0 %v433
  %451 = vmatmul.f32.gmra.mxu0 %v433
  %v452 = vpop.f32.mrf.mxu0
  %v453 = vadd.f32 0.0, %v452
  %454 = vdwg.mxu0
  %v455 = vmax.f32 %v108, 0.0
  %v456 = vmax.f32 %v131, 0.0
  %v457 = vmax.f32 %v154, 0.0
  %v458 = vmax.f32 %v177, 0.0
  %v459 = vmax.f32 %v200, 0.0
  %v460 = vmax.f32 %v223, 0.0
  %v461 = vmax.f32 %v246, 0.0
  %v462 = vmax.f32 %v269, 0.0
  %v463 = vmax.f32 %v292, 0.0
  %v464 = vmax.f32 %v315, 0.0
  %v465 = vmax.f32 %v338, 0.0
  %v466 = vmax.f32 %v361, 0.0
  %v467 = vmax.f32 %v384, 0.0
  %v468 = vmax.f32 %v407, 0.0
  %v469 = vmax.f32 %v430, 0.0
  %v470 = vmax.f32 %v453, 0.0
  %v472 = vsel %vm86, %v455, 0
  %474 = vmatpush.msra.mxu0 0.0
  %475 = vmatpush.msra.mxu0 0.0
  %476 = vmatpush.msra.mxu0 0.0
  %477 = vmatpush.msra.mxu0 0.0
  %478 = vmatpush.msra.mxu0 0.0
  %479 = vmatpush.msra.mxu0 0.0
  %480 = vmatpush.msra.mxu0 0.0
  %481 = vmatpush.msra.mxu0 0.0
  %482 = vmatpush.msra.mxu0 0.0
  %483 = vmatpush.msra.mxu0 0.0
  %484 = vmatpush.msra.mxu0 0.0
  %485 = vmatpush.msra.mxu0 0.0
  %486 = vmatpush.msra.mxu0 0.0
  %487 = vmatpush.msra.mxu0 0.0
  %488 = vmatpush.msra.mxu0 0.0
  %489 = vmatpush.msra.mxu0 %v53
  %490 = vmatmul.f32.gmra.mxu0 %v472
  %v491 = vpop.f32.mrf.mxu0
  %v492 = vadd.f32 0.0, %v491
  %493 = vdwg.mxu0
  %v495 = vsel %vm86, %v456, 0
  %497 = vmatpush.msra.mxu0 0.0
  %498 = vmatpush.msra.mxu0 0.0
  %499 = vmatpush.msra.mxu0 0.0
  %500 = vmatpush.msra.mxu0 0.0
  %501 = vmatpush.msra.mxu0 0.0
  %502 = vmatpush.msra.mxu0 0.0
  %503 = vmatpush.msra.mxu0 0.0
  %504 = vmatpush.msra.mxu0 0.0
  %505 = vmatpush.msra.mxu0 0.0
  %506 = vmatpush.msra.mxu0 0.0
  %507 = vmatpush.msra.mxu0 0.0
  %508 = vmatpush.msra.mxu0 0.0
  %509 = vmatpush.msra.mxu0 0.0
  %510 = vmatpush.msra.mxu0 0.0
  %511 = vmatpush.msra.mxu0 0.0
  %512 = vmatpush.msra.mxu0 %v54
  %513 = vmatmul.f32.gmra.mxu0 %v495
  %v514 = vpop.f32.mrf.mxu0
  %v515 = vadd.f32 0.0, %v514
  %516 = vdwg.mxu0
  %v518 = vsel %vm86, %v457, 0
  %520 = vmatpush.msra.mxu0 0.0
  %521 = vmatpush.msra.mxu0 0.0
  %522 = vmatpush.msra.mxu0 0.0
  %523 = vmatpush.msra.mxu0 0.0
  %524 = vmatpush.msra.mxu0 0.0
  %525 = vmatpush.msra.mxu0 0.0
  %526 = vmatpush.msra.mxu0 0.0
  %527 = vmatpush.msra.mxu0 0.0
  %528 = vmatpush.msra.mxu0 0.0
  %529 = vmatpush.msra.mxu0 0.0
  %530 = vmatpush.msra.mxu0 0.0
  %531 = vmatpush.msra.mxu0 0.0
  %532 = vmatpush.msra.mxu0 0.0
  %533 = vmatpush.msra.mxu0 0.0
  %534 = vmatpush.msra.mxu0 0.0
  %535 = vmatpush.msra.mxu0 %v55
  %536 = vmatmul.f32.gmra.mxu0 %v518
  %v537 = vpop.f32.mrf.mxu0
  %v538 = vadd.f32 0.0, %v537
  %539 = vdwg.mxu0
  %v541 = vsel %vm86, %v458, 0
  %543 = vmatpush.msra.mxu0 0.0
  %544 = vmatpush.msra.mxu0 0.0
  %545 = vmatpush.msra.mxu0 0.0
  %546 = vmatpush.msra.mxu0 0.0
  %547 = vmatpush.msra.mxu0 0.0
  %548 = vmatpush.msra.mxu0 0.0
  %549 = vmatpush.msra.mxu0 0.0
  %550 = vmatpush.msra.mxu0 0.0
  %551 = vmatpush.msra.mxu0 0.0
  %552 = vmatpush.msra.mxu0 0.0
  %553 = vmatpush.msra.mxu0 0.0
  %554 = vmatpush.msra.mxu0 0.0
  %555 = vmatpush.msra.mxu0 0.0
  %556 = vmatpush.msra.mxu0 0.0
  %557 = vmatpush.msra.mxu0 0.0
  %558 = vmatpush.msra.mxu0 %v56
  %559 = vmatmul.f32.gmra.mxu0 %v541
  %v560 = vpop.f32.mrf.mxu0
  %v561 = vadd.f32 0.0, %v560
  %562 = vdwg.mxu0
  %v564 = vsel %vm86, %v459, 0
  %566 = vmatpush.msra.mxu0 0.0
  %567 = vmatpush.msra.mxu0 0.0
  %568 = vmatpush.msra.mxu0 0.0
  %569 = vmatpush.msra.mxu0 0.0
  %570 = vmatpush.msra.mxu0 0.0
  %571 = vmatpush.msra.mxu0 0.0
  %572 = vmatpush.msra.mxu0 0.0
  %573 = vmatpush.msra.mxu0 0.0
  %574 = vmatpush.msra.mxu0 0.0
  %575 = vmatpush.msra.mxu0 0.0
  %576 = vmatpush.msra.mxu0 0.0
  %577 = vmatpush.msra.mxu0 0.0
  %578 = vmatpush.msra.mxu0 0.0
  %579 = vmatpush.msra.mxu0 0.0
  %580 = vmatpush.msra.mxu0 0.0
  %581 = vmatpush.msra.mxu0 %v57
  %582 = vmatmul.f32.gmra.mxu0 %v564
  %v583 = vpop.f32.mrf.mxu0
  %v584 = vadd.f32 0.0, %v583
  %585 = vdwg.mxu0
  %v587 = vsel %vm86, %v460, 0
  %589 = vmatpush.msra.mxu0 0.0
  %590 = vmatpush.msra.mxu0 0.0
  %591 = vmatpush.msra.mxu0 0.0
  %592 = vmatpush.msra.mxu0 0.0
  %593 = vmatpush.msra.mxu0 0.0
  %594 = vmatpush.msra.mxu0 0.0
  %595 = vmatpush.msra.mxu0 0.0
  %596 = vmatpush.msra.mxu0 0.0
  %597 = vmatpush.msra.mxu0 0.0
  %598 = vmatpush.msra.mxu0 0.0
  %599 = vmatpush.msra.mxu0 0.0
  %600 = vmatpush.msra.mxu0 0.0
  %601 = vmatpush.msra.mxu0 0.0
  %602 = vmatpush.msra.mxu0 0.0
  %603 = vmatpush.msra.mxu0 0.0
  %604 = vmatpush.msra.mxu0 %v58
  %605 = vmatmul.f32.gmra.mxu0 %v587
  %v606 = vpop.f32.mrf.mxu0
  %v607 = vadd.f32 0.0, %v606
  %608 = vdwg.mxu0
  %v610 = vsel %vm86, %v461, 0
  %612 = vmatpush.msra.mxu0 0.0
  %613 = vmatpush.msra.mxu0 0.0
  %614 = vmatpush.msra.mxu0 0.0
  %615 = vmatpush.msra.mxu0 0.0
  %616 = vmatpush.msra.mxu0 0.0
  %617 = vmatpush.msra.mxu0 0.0
  %618 = vmatpush.msra.mxu0 0.0
  %619 = vmatpush.msra.mxu0 0.0
  %620 = vmatpush.msra.mxu0 0.0
  %621 = vmatpush.msra.mxu0 0.0
  %622 = vmatpush.msra.mxu0 0.0
  %623 = vmatpush.msra.mxu0 0.0
  %624 = vmatpush.msra.mxu0 0.0
  %625 = vmatpush.msra.mxu0 0.0
  %626 = vmatpush.msra.mxu0 0.0
  %627 = vmatpush.msra.mxu0 %v59
  %628 = vmatmul.f32.gmra.mxu0 %v610
  %v629 = vpop.f32.mrf.mxu0
  %v630 = vadd.f32 0.0, %v629
  %631 = vdwg.mxu0
  %v633 = vsel %vm86, %v462, 0
  %635 = vmatpush.msra.mxu0 0.0
  %636 = vmatpush.msra.mxu0 0.0
  %637 = vmatpush.msra.mxu0 0.0
  %638 = vmatpush.msra.mxu0 0.0
  %639 = vmatpush.msra.mxu0 0.0
  %640 = vmatpush.msra.mxu0 0.0
  %641 = vmatpush.msra.mxu0 0.0
  %642 = vmatpush.msra.mxu0 0.0
  %643 = vmatpush.msra.mxu0 0.0
  %644 = vmatpush.msra.mxu0 0.0
  %645 = vmatpush.msra.mxu0 0.0
  %646 = vmatpush.msra.mxu0 0.0
  %647 = vmatpush.msra.mxu0 0.0
  %648 = vmatpush.msra.mxu0 0.0
  %649 = vmatpush.msra.mxu0 0.0
  %650 = vmatpush.msra.mxu0 %v60
  %651 = vmatmul.f32.gmra.mxu0 %v633
  %v652 = vpop.f32.mrf.mxu0
  %v653 = vadd.f32 0.0, %v652
  %654 = vdwg.mxu0
  %v656 = vsel %vm86, %v463, 0
  %658 = vmatpush.msra.mxu0 0.0
  %659 = vmatpush.msra.mxu0 0.0
  %660 = vmatpush.msra.mxu0 0.0
  %661 = vmatpush.msra.mxu0 0.0
  %662 = vmatpush.msra.mxu0 0.0
  %663 = vmatpush.msra.mxu0 0.0
  %664 = vmatpush.msra.mxu0 0.0
  %665 = vmatpush.msra.mxu0 0.0
  %666 = vmatpush.msra.mxu0 0.0
  %667 = vmatpush.msra.mxu0 0.0
  %668 = vmatpush.msra.mxu0 0.0
  %669 = vmatpush.msra.mxu0 0.0
  %670 = vmatpush.msra.mxu0 0.0
  %671 = vmatpush.msra.mxu0 0.0
  %672 = vmatpush.msra.mxu0 0.0
  %673 = vmatpush.msra.mxu0 %v61
  %674 = vmatmul.f32.gmra.mxu0 %v656
  %v675 = vpop.f32.mrf.mxu0
  %v676 = vadd.f32 0.0, %v675
  %677 = vdwg.mxu0
  %v679 = vsel %vm86, %v464, 0
  %681 = vmatpush.msra.mxu0 0.0
  %682 = vmatpush.msra.mxu0 0.0
  %683 = vmatpush.msra.mxu0 0.0
  %684 = vmatpush.msra.mxu0 0.0
  %685 = vmatpush.msra.mxu0 0.0
  %686 = vmatpush.msra.mxu0 0.0
  %687 = vmatpush.msra.mxu0 0.0
  %688 = vmatpush.msra.mxu0 0.0
  %689 = vmatpush.msra.mxu0 0.0
  %690 = vmatpush.msra.mxu0 0.0
  %691 = vmatpush.msra.mxu0 0.0
  %692 = vmatpush.msra.mxu0 0.0
  %693 = vmatpush.msra.mxu0 0.0
  %694 = vmatpush.msra.mxu0 0.0
  %695 = vmatpush.msra.mxu0 0.0
  %696 = vmatpush.msra.mxu0 %v62
  %697 = vmatmul.f32.gmra.mxu0 %v679
  %v698 = vpop.f32.mrf.mxu0
  %v699 = vadd.f32 0.0, %v698
  %700 = vdwg.mxu0
  %v702 = vsel %vm86, %v465, 0
  %704 = vmatpush.msra.mxu0 0.0
  %705 = vmatpush.msra.mxu0 0.0
  %706 = vmatpush.msra.mxu0 0.0
  %707 = vmatpush.msra.mxu0 0.0
  %708 = vmatpush.msra.mxu0 0.0
  %709 = vmatpush.msra.mxu0 0.0
  %710 = vmatpush.msra.mxu0 0.0
  %711 = vmatpush.msra.mxu0 0.0
  %712 = vmatpush.msra.mxu0 0.0
  %713 = vmatpush.msra.mxu0 0.0
  %714 = vmatpush.msra.mxu0 0.0
  %715 = vmatpush.msra.mxu0 0.0
  %716 = vmatpush.msra.mxu0 0.0
  %717 = vmatpush.msra.mxu0 0.0
  %718 = vmatpush.msra.mxu0 0.0
  %719 = vmatpush.msra.mxu0 %v63
  %720 = vmatmul.f32.gmra.mxu0 %v702
  %v721 = vpop.f32.mrf.mxu0
  %v722 = vadd.f32 0.0, %v721
  %723 = vdwg.mxu0
  %v725 = vsel %vm86, %v466, 0
  %727 = vmatpush.msra.mxu0 0.0
  %728 = vmatpush.msra.mxu0 0.0
  %729 = vmatpush.msra.mxu0 0.0
  %730 = vmatpush.msra.mxu0 0.0
  %731 = vmatpush.msra.mxu0 0.0
  %732 = vmatpush.msra.mxu0 0.0
  %733 = vmatpush.msra.mxu0 0.0
  %734 = vmatpush.msra.mxu0 0.0
  %735 = vmatpush.msra.mxu0 0.0
  %736 = vmatpush.msra.mxu0 0.0
  %737 = vmatpush.msra.mxu0 0.0
  %738 = vmatpush.msra.mxu0 0.0
  %739 = vmatpush.msra.mxu0 0.0
  %740 = vmatpush.msra.mxu0 0.0
  %741 = vmatpush.msra.mxu0 0.0
  %742 = vmatpush.msra.mxu0 %v64
  %743 = vmatmul.f32.gmra.mxu0 %v725
  %v744 = vpop.f32.mrf.mxu0
  %v745 = vadd.f32 0.0, %v744
  %746 = vdwg.mxu0
  %v748 = vsel %vm86, %v467, 0
  %750 = vmatpush.msra.mxu0 0.0
  %751 = vmatpush.msra.mxu0 0.0
  %752 = vmatpush.msra.mxu0 0.0
  %753 = vmatpush.msra.mxu0 0.0
  %754 = vmatpush.msra.mxu0 0.0
  %755 = vmatpush.msra.mxu0 0.0
  %756 = vmatpush.msra.mxu0 0.0
  %757 = vmatpush.msra.mxu0 0.0
  %758 = vmatpush.msra.mxu0 0.0
  %759 = vmatpush.msra.mxu0 0.0
  %760 = vmatpush.msra.mxu0 0.0
  %761 = vmatpush.msra.mxu0 0.0
  %762 = vmatpush.msra.mxu0 0.0
  %763 = vmatpush.msra.mxu0 0.0
  %764 = vmatpush.msra.mxu0 0.0
  %765 = vmatpush.msra.mxu0 %v65
  %766 = vmatmul.f32.gmra.mxu0 %v748
  %v767 = vpop.f32.mrf.mxu0
  %v768 = vadd.f32 0.0, %v767
  %769 = vdwg.mxu0
  %v771 = vsel %vm86, %v468, 0
  %773 = vmatpush.msra.mxu0 0.0
  %774 = vmatpush.msra.mxu0 0.0
  %775 = vmatpush.msra.mxu0 0.0
  %776 = vmatpush.msra.mxu0 0.0
  %777 = vmatpush.msra.mxu0 0.0
  %778 = vmatpush.msra.mxu0 0.0
  %779 = vmatpush.msra.mxu0 0.0
  %780 = vmatpush.msra.mxu0 0.0
  %781 = vmatpush.msra.mxu0 0.0
  %782 = vmatpush.msra.mxu0 0.0
  %783 = vmatpush.msra.mxu0 0.0
  %784 = vmatpush.msra.mxu0 0.0
  %785 = vmatpush.msra.mxu0 0.0
  %786 = vmatpush.msra.mxu0 0.0
  %787 = vmatpush.msra.mxu0 0.0
  %788 = vmatpush.msra.mxu0 %v66
  %789 = vmatmul.f32.gmra.mxu0 %v771
  %v790 = vpop.f32.mrf.mxu0
  %v791 = vadd.f32 0.0, %v790
  %792 = vdwg.mxu0
  %v794 = vsel %vm86, %v469, 0
  %796 = vmatpush.msra.mxu0 0.0
  %797 = vmatpush.msra.mxu0 0.0
  %798 = vmatpush.msra.mxu0 0.0
  %799 = vmatpush.msra.mxu0 0.0
  %800 = vmatpush.msra.mxu0 0.0
  %801 = vmatpush.msra.mxu0 0.0
  %802 = vmatpush.msra.mxu0 0.0
  %803 = vmatpush.msra.mxu0 0.0
  %804 = vmatpush.msra.mxu0 0.0
  %805 = vmatpush.msra.mxu0 0.0
  %806 = vmatpush.msra.mxu0 0.0
  %807 = vmatpush.msra.mxu0 0.0
  %808 = vmatpush.msra.mxu0 0.0
  %809 = vmatpush.msra.mxu0 0.0
  %810 = vmatpush.msra.mxu0 0.0
  %811 = vmatpush.msra.mxu0 %v67
  %812 = vmatmul.f32.gmra.mxu0 %v794
  %v813 = vpop.f32.mrf.mxu0
  %v814 = vadd.f32 0.0, %v813
  %815 = vdwg.mxu0
  %v817 = vsel %vm86, %v470, 0
  %819 = vmatpush.msra.mxu0 0.0
  %820 = vmatpush.msra.mxu0 0.0
  %821 = vmatpush.msra.mxu0 0.0
  %822 = vmatpush.msra.mxu0 0.0
  %823 = vmatpush.msra.mxu0 0.0
  %824 = vmatpush.msra.mxu0 0.0
  %825 = vmatpush.msra.mxu0 0.0
  %826 = vmatpush.msra.mxu0 0.0
  %827 = vmatpush.msra.mxu0 0.0
  %828 = vmatpush.msra.mxu0 0.0
  %829 = vmatpush.msra.mxu0 0.0
  %830 = vmatpush.msra.mxu0 0.0
  %831 = vmatpush.msra.mxu0 0.0
  %832 = vmatpush.msra.mxu0 0.0
  %833 = vmatpush.msra.mxu0 0.0
  %834 = vmatpush.msra.mxu0 %v68
  %835 = vmatmul.f32.gmra.mxu0 %v817
  %v836 = vpop.f32.mrf.mxu0
  %v837 = vadd.f32 0.0, %v836
  %838 = vdwg.mxu0
  %v839 = vadd.f32 %v53, %v492
  %v840 = vadd.f32 %v54, %v515
  %v841 = vadd.f32 %v55, %v538
  %v842 = vadd.f32 %v56, %v561
  %v843 = vadd.f32 %v57, %v584
  %v844 = vadd.f32 %v58, %v607
  %v845 = vadd.f32 %v59, %v630
  %v846 = vadd.f32 %v60, %v653
  %v847 = vadd.f32 %v61, %v676
  %v848 = vadd.f32 %v62, %v699
  %v849 = vadd.f32 %v63, %v722
  %v850 = vadd.f32 %v64, %v745
  %v851 = vadd.f32 %v65, %v768
  %v852 = vadd.f32 %v66, %v791
  %v853 = vadd.f32 %v67, %v814
  %v854 = vadd.f32 %v68, %v837
  %v855 = vld [vmem:[%s3] sm:$0xff]
  %v856 = vld [vmem:[%s3 + $0x8] sm:$0xff]
  %vm857 = vcmask 130048
  %v859 = vsel %vm857, %v839, 0
  %v862 = vsel %vm857, %v840, 0
  %v865 = vsel %vm857, %v841, 0
  %v868 = vsel %vm857, %v842, 0
  %v871 = vsel %vm857, %v843, 0
  %v874 = vsel %vm857, %v844, 0
  %v877 = vsel %vm857, %v845, 0
  %v880 = vsel %vm857, %v846, 0
  %v883 = vsel %vm857, %v847, 0
  %v886 = vsel %vm857, %v848, 0
  %v889 = vsel %vm857, %v849, 0
  %v892 = vsel %vm857, %v850, 0
  %v895 = vsel %vm857, %v851, 0
  %v898 = vsel %vm857, %v852, 0
  %v901 = vsel %vm857, %v853, 0
  %v904 = vsel %vm857, %v854, 0
  %906 = vmatpush.msra.mxu0 0.0
  %907 = vmatpush.msra.mxu0 0.0
  %908 = vmatpush.msra.mxu0 0.0
  %909 = vmatpush.msra.mxu0 0.0
  %910 = vmatpush.msra.mxu0 0.0
  %911 = vmatpush.msra.mxu0 0.0
  %912 = vmatpush.msra.mxu0 0.0
  %913 = vmatpush.msra.mxu0 0.0
  %914 = vmatpush.msra.mxu0 0.0
  %915 = vmatpush.msra.mxu0 0.0
  %916 = vmatpush.msra.mxu0 0.0
  %917 = vmatpush.msra.mxu0 0.0
  %918 = vmatpush.msra.mxu0 0.0
  %919 = vmatpush.msra.mxu0 0.0
  %920 = vmatpush.msra.mxu0 %v856
  %921 = vmatpush.msra.mxu0 %v855
  %922 = vmatmul.f32.gmra.mxu0 %v859
  %v923 = vpop.f32.mrf.mxu0
  %v924 = vadd.f32 0.0, %v923
  %925 = vmatmul.f32.gmra.mxu0 %v862
  %v926 = vpop.f32.mrf.mxu0
  %v927 = vadd.f32 0.0, %v926
  %928 = vmatmul.f32.gmra.mxu0 %v865
  %v929 = vpop.f32.mrf.mxu0
  %v930 = vadd.f32 0.0, %v929
  %931 = vmatmul.f32.gmra.mxu0 %v868
  %v932 = vpop.f32.mrf.mxu0
  %v933 = vadd.f32 0.0, %v932
  %934 = vmatmul.f32.gmra.mxu0 %v871
  %v935 = vpop.f32.mrf.mxu0
  %v936 = vadd.f32 0.0, %v935
  %937 = vmatmul.f32.gmra.mxu0 %v874
  %v938 = vpop.f32.mrf.mxu0
  %v939 = vadd.f32 0.0, %v938
  %940 = vmatmul.f32.gmra.mxu0 %v877
  %v941 = vpop.f32.mrf.mxu0
  %v942 = vadd.f32 0.0, %v941
  %943 = vmatmul.f32.gmra.mxu0 %v880
  %v944 = vpop.f32.mrf.mxu0
  %v945 = vadd.f32 0.0, %v944
  %946 = vmatmul.f32.gmra.mxu0 %v883
  %v947 = vpop.f32.mrf.mxu0
  %v948 = vadd.f32 0.0, %v947
  %949 = vmatmul.f32.gmra.mxu0 %v886
  %v950 = vpop.f32.mrf.mxu0
  %v951 = vadd.f32 0.0, %v950
  %952 = vmatmul.f32.gmra.mxu0 %v889
  %v953 = vpop.f32.mrf.mxu0
  %v954 = vadd.f32 0.0, %v953
  %955 = vmatmul.f32.gmra.mxu0 %v892
  %v956 = vpop.f32.mrf.mxu0
  %v957 = vadd.f32 0.0, %v956
  %958 = vmatmul.f32.gmra.mxu0 %v895
  %v959 = vpop.f32.mrf.mxu0
  %v960 = vadd.f32 0.0, %v959
  %961 = vmatmul.f32.gmra.mxu0 %v898
  %v962 = vpop.f32.mrf.mxu0
  %v963 = vadd.f32 0.0, %v962
  %964 = vmatmul.f32.gmra.mxu0 %v901
  %v965 = vpop.f32.mrf.mxu0
  %v966 = vadd.f32 0.0, %v965
  %967 = vmatmul.f32.gmra.mxu0 %v904
  %v968 = vpop.f32.mrf.mxu0
  %v969 = vadd.f32 0.0, %v968
  %970 = vdwg.mxu0
  %972 = vset.pattern.permute.xlu0 0
  %973 = vperm.xlu0 %972, %v85
  %v974 = vpop.permute.xlu0 %973
  %v976 = vmul.f32 %v974, %v924
  %v977 = vmul.f32 %v974, %v927
  %v978 = vmul.f32 %v974, %v930
  %v979 = vmul.f32 %v974, %v933
  %v980 = vmul.f32 %v974, %v936
  %v981 = vmul.f32 %v974, %v939
  %v982 = vmul.f32 %v974, %v942
  %v983 = vmul.f32 %v974, %v945
  %v984 = vmul.f32 %v974, %v948
  %v985 = vmul.f32 %v974, %v951
  %v986 = vmul.f32 %v974, %v954
  %v987 = vmul.f32 %v974, %v957
  %v988 = vmul.f32 %v974, %v960
  %v989 = vmul.f32 %v974, %v963
  %v990 = vmul.f32 %v974, %v966
  %v991 = vmul.f32 %v974, %v969
  %992 = vset.pattern.permute.xlu0 1
  %993 = vperm.xlu0 %992, %v85
  %v994 = vpop.permute.xlu0 %993
  %v996 = vmul.f32 %v994, %v924
  %v997 = vmul.f32 %v994, %v927
  %v998 = vmul.f32 %v994, %v930
  %v999 = vmul.f32 %v994, %v933
  %v1000 = vmul.f32 %v994, %v936
  %v1001 = vmul.f32 %v994, %v939
  %v1002 = vmul.f32 %v994, %v942
  %v1003 = vmul.f32 %v994, %v945
  %v1004 = vmul.f32 %v994, %v948
  %v1005 = vmul.f32 %v994, %v951
  %v1006 = vmul.f32 %v994, %v954
  %v1007 = vmul.f32 %v994, %v957
  %v1008 = vmul.f32 %v994, %v960
  %v1009 = vmul.f32 %v994, %v963
  %v1010 = vmul.f32 %v994, %v966
  %v1011 = vmul.f32 %v994, %v969
  %1028 = vrot.lane.b32.xlu0 %v996, 112
  %v1029 = vpop.permute.xlu0 %1028
  %1030 = vrot.lane.b32.xlu0 %v997, 112
  %v1031 = vpop.permute.xlu0 %1030
  %1032 = vrot.lane.b32.xlu0 %v998, 112
  %v1033 = vpop.permute.xlu0 %1032
  %1034 = vrot.lane.b32.xlu0 %v999, 112
  %v1035 = vpop.permute.xlu0 %1034
  %1036 = vrot.lane.b32.xlu0 %v1000, 112
  %v1037 = vpop.permute.xlu0 %1036
  %1038 = vrot.lane.b32.xlu0 %v1001, 112
  %v1039 = vpop.permute.xlu0 %1038
  %1040 = vrot.lane.b32.xlu0 %v1002, 112
  %v1041 = vpop.permute.xlu0 %1040
  %1042 = vrot.lane.b32.xlu0 %v1003, 112
  %v1043 = vpop.permute.xlu0 %1042
  %1044 = vrot.lane.b32.xlu0 %v1004, 112
  %v1045 = vpop.permute.xlu0 %1044
  %1046 = vrot.lane.b32.xlu0 %v1005, 112
  %v1047 = vpop.permute.xlu0 %1046
  %1048 = vrot.lane.b32.xlu0 %v1006, 112
  %v1049 = vpop.permute.xlu0 %1048
  %1050 = vrot.lane.b32.xlu0 %v1007, 112
  %v1051 = vpop.permute.xlu0 %1050
  %1052 = vrot.lane.b32.xlu0 %v1008, 112
  %v1053 = vpop.permute.xlu0 %1052
  %1054 = vrot.lane.b32.xlu0 %v1009, 112
  %v1055 = vpop.permute.xlu0 %1054
  %1056 = vrot.lane.b32.xlu0 %v1010, 112
  %v1057 = vpop.permute.xlu0 %1056
  %1058 = vrot.lane.b32.xlu0 %v1011, 112
  %v1059 = vpop.permute.xlu0 %1058
  %v1076 = vadd.f32 %v976, %v1029
  %v1077 = vadd.f32 %v977, %v1031
  %v1078 = vadd.f32 %v978, %v1033
  %v1079 = vadd.f32 %v979, %v1035
  %v1080 = vadd.f32 %v980, %v1037
  %v1081 = vadd.f32 %v981, %v1039
  %v1082 = vadd.f32 %v982, %v1041
  %v1083 = vadd.f32 %v983, %v1043
  %v1084 = vadd.f32 %v984, %v1045
  %v1085 = vadd.f32 %v985, %v1047
  %v1086 = vadd.f32 %v986, %v1049
  %v1087 = vadd.f32 %v987, %v1051
  %v1088 = vadd.f32 %v988, %v1053
  %v1089 = vadd.f32 %v989, %v1055
  %v1090 = vadd.f32 %v990, %v1057
  %v1091 = vadd.f32 %v991, %v1059
  %1092 = vset.pattern.permute.xlu0 2
  %1093 = vperm.xlu0 %1092, %v85
  %v1094 = vpop.permute.xlu0 %1093
  %v1096 = vmul.f32 %v1094, %v924
  %v1097 = vmul.f32 %v1094, %v927
  %v1098 = vmul.f32 %v1094, %v930
  %v1099 = vmul.f32 %v1094, %v933
  %v1100 = vmul.f32 %v1094, %v936
  %v1101 = vmul.f32 %v1094, %v939
  %v1102 = vmul.f32 %v1094, %v942
  %v1103 = vmul.f32 %v1094, %v945
  %v1104 = vmul.f32 %v1094, %v948
  %v1105 = vmul.f32 %v1094, %v951
  %v1106 = vmul.f32 %v1094, %v954
  %v1107 = vmul.f32 %v1094, %v957
  %v1108 = vmul.f32 %v1094, %v960
  %v1109 = vmul.f32 %v1094, %v963
  %v1110 = vmul.f32 %v1094, %v966
  %v1111 = vmul.f32 %v1094, %v969
  %1128 = vrot.lane.b32.xlu0 %v1096, 96
  %v1129 = vpop.permute.xlu0 %1128
  %1130 = vrot.lane.b32.xlu0 %v1097, 96
  %v1131 = vpop.permute.xlu0 %1130
  %1132 = vrot.lane.b32.xlu0 %v1098, 96
  %v1133 = vpop.permute.xlu0 %1132
  %1134 = vrot.lane.b32.xlu0 %v1099, 96
  %v1135 = vpop.permute.xlu0 %1134
  %1136 = vrot.lane.b32.xlu0 %v1100, 96
  %v1137 = vpop.permute.xlu0 %1136
  %1138 = vrot.lane.b32.xlu0 %v1101, 96
  %v1139 = vpop.permute.xlu0 %1138
  %1140 = vrot.lane.b32.xlu0 %v1102, 96
  %v1141 = vpop.permute.xlu0 %1140
  %1142 = vrot.lane.b32.xlu0 %v1103, 96
  %v1143 = vpop.permute.xlu0 %1142
  %1144 = vrot.lane.b32.xlu0 %v1104, 96
  %v1145 = vpop.permute.xlu0 %1144
  %1146 = vrot.lane.b32.xlu0 %v1105, 96
  %v1147 = vpop.permute.xlu0 %1146
  %1148 = vrot.lane.b32.xlu0 %v1106, 96
  %v1149 = vpop.permute.xlu0 %1148
  %1150 = vrot.lane.b32.xlu0 %v1107, 96
  %v1151 = vpop.permute.xlu0 %1150
  %1152 = vrot.lane.b32.xlu0 %v1108, 96
  %v1153 = vpop.permute.xlu0 %1152
  %1154 = vrot.lane.b32.xlu0 %v1109, 96
  %v1155 = vpop.permute.xlu0 %1154
  %1156 = vrot.lane.b32.xlu0 %v1110, 96
  %v1157 = vpop.permute.xlu0 %1156
  %1158 = vrot.lane.b32.xlu0 %v1111, 96
  %v1159 = vpop.permute.xlu0 %1158
  %v1176 = vadd.f32 %v1076, %v1129
  %v1177 = vadd.f32 %v1077, %v1131
  %v1178 = vadd.f32 %v1078, %v1133
  %v1179 = vadd.f32 %v1079, %v1135
  %v1180 = vadd.f32 %v1080, %v1137
  %v1181 = vadd.f32 %v1081, %v1139
  %v1182 = vadd.f32 %v1082, %v1141
  %v1183 = vadd.f32 %v1083, %v1143
  %v1184 = vadd.f32 %v1084, %v1145
  %v1185 = vadd.f32 %v1085, %v1147
  %v1186 = vadd.f32 %v1086, %v1149
  %v1187 = vadd.f32 %v1087, %v1151
  %v1188 = vadd.f32 %v1088, %v1153
  %v1189 = vadd.f32 %v1089, %v1155
  %v1190 = vadd.f32 %v1090, %v1157
  %v1191 = vadd.f32 %v1091, %v1159
  %1192 = vset.pattern.permute.xlu0 3
  %1193 = vperm.xlu0 %1192, %v85
  %v1194 = vpop.permute.xlu0 %1193
  %v1196 = vmul.f32 %v1194, %v924
  %v1197 = vmul.f32 %v1194, %v927
  %v1198 = vmul.f32 %v1194, %v930
  %v1199 = vmul.f32 %v1194, %v933
  %v1200 = vmul.f32 %v1194, %v936
  %v1201 = vmul.f32 %v1194, %v939
  %v1202 = vmul.f32 %v1194, %v942
  %v1203 = vmul.f32 %v1194, %v945
  %v1204 = vmul.f32 %v1194, %v948
  %v1205 = vmul.f32 %v1194, %v951
  %v1206 = vmul.f32 %v1194, %v954
  %v1207 = vmul.f32 %v1194, %v957
  %v1208 = vmul.f32 %v1194, %v960
  %v1209 = vmul.f32 %v1194, %v963
  %v1210 = vmul.f32 %v1194, %v966
  %v1211 = vmul.f32 %v1194, %v969
  %1228 = vrot.lane.b32.xlu0 %v1196, 80
  %v1229 = vpop.permute.xlu0 %1228
  %1230 = vrot.lane.b32.xlu0 %v1197, 80
  %v1231 = vpop.permute.xlu0 %1230
  %1232 = vrot.lane.b32.xlu0 %v1198, 80
  %v1233 = vpop.permute.xlu0 %1232
  %1234 = vrot.lane.b32.xlu0 %v1199, 80
  %v1235 = vpop.permute.xlu0 %1234
  %1236 = vrot.lane.b32.xlu0 %v1200, 80
  %v1237 = vpop.permute.xlu0 %1236
  %1238 = vrot.lane.b32.xlu0 %v1201, 80
  %v1239 = vpop.permute.xlu0 %1238
  %1240 = vrot.lane.b32.xlu0 %v1202, 80
  %v1241 = vpop.permute.xlu0 %1240
  %1242 = vrot.lane.b32.xlu0 %v1203, 80
  %v1243 = vpop.permute.xlu0 %1242
  %1244 = vrot.lane.b32.xlu0 %v1204, 80
  %v1245 = vpop.permute.xlu0 %1244
  %1246 = vrot.lane.b32.xlu0 %v1205, 80
  %v1247 = vpop.permute.xlu0 %1246
  %1248 = vrot.lane.b32.xlu0 %v1206, 80
  %v1249 = vpop.permute.xlu0 %1248
  %1250 = vrot.lane.b32.xlu0 %v1207, 80
  %v1251 = vpop.permute.xlu0 %1250
  %1252 = vrot.lane.b32.xlu0 %v1208, 80
  %v1253 = vpop.permute.xlu0 %1252
  %1254 = vrot.lane.b32.xlu0 %v1209, 80
  %v1255 = vpop.permute.xlu0 %1254
  %1256 = vrot.lane.b32.xlu0 %v1210, 80
  %v1257 = vpop.permute.xlu0 %1256
  %1258 = vrot.lane.b32.xlu0 %v1211, 80
  %v1259 = vpop.permute.xlu0 %1258
  %v1276 = vadd.f32 %v1176, %v1229
  %v1277 = vadd.f32 %v1177, %v1231
  %v1278 = vadd.f32 %v1178, %v1233
  %v1279 = vadd.f32 %v1179, %v1235
  %v1280 = vadd.f32 %v1180, %v1237
  %v1281 = vadd.f32 %v1181, %v1239
  %v1282 = vadd.f32 %v1182, %v1241
  %v1283 = vadd.f32 %v1183, %v1243
  %v1284 = vadd.f32 %v1184, %v1245
  %v1285 = vadd.f32 %v1185, %v1247
  %v1286 = vadd.f32 %v1186, %v1249
  %v1287 = vadd.f32 %v1187, %v1251
  %v1288 = vadd.f32 %v1188, %v1253
  %v1289 = vadd.f32 %v1189, %v1255
  %v1290 = vadd.f32 %v1190, %v1257
  %v1291 = vadd.f32 %v1191, %v1259
  %1292 = vset.pattern.permute.xlu0 4
  %1293 = vperm.xlu0 %1292, %v85
  %v1294 = vpop.permute.xlu0 %1293
  %v1296 = vmul.f32 %v1294, %v924
  %v1297 = vmul.f32 %v1294, %v927
  %v1298 = vmul.f32 %v1294, %v930
  %v1299 = vmul.f32 %v1294, %v933
  %v1300 = vmul.f32 %v1294, %v936
  %v1301 = vmul.f32 %v1294, %v939
  %v1302 = vmul.f32 %v1294, %v942
  %v1303 = vmul.f32 %v1294, %v945
  %v1304 = vmul.f32 %v1294, %v948
  %v1305 = vmul.f32 %v1294, %v951
  %v1306 = vmul.f32 %v1294, %v954
  %v1307 = vmul.f32 %v1294, %v957
  %v1308 = vmul.f32 %v1294, %v960
  %v1309 = vmul.f32 %v1294, %v963
  %v1310 = vmul.f32 %v1294, %v966
  %v1311 = vmul.f32 %v1294, %v969
  %1328 = vrot.lane.b32.xlu0 %v1296, 64
  %v1329 = vpop.permute.xlu0 %1328
  %1330 = vrot.lane.b32.xlu0 %v1297, 64
  %v1331 = vpop.permute.xlu0 %1330
  %1332 = vrot.lane.b32.xlu0 %v1298, 64
  %v1333 = vpop.permute.xlu0 %1332
  %1334 = vrot.lane.b32.xlu0 %v1299, 64
  %v1335 = vpop.permute.xlu0 %1334
  %1336 = vrot.lane.b32.xlu0 %v1300, 64
  %v1337 = vpop.permute.xlu0 %1336
  %1338 = vrot.lane.b32.xlu0 %v1301, 64
  %v1339 = vpop.permute.xlu0 %1338
  %1340 = vrot.lane.b32.xlu0 %v1302, 64
  %v1341 = vpop.permute.xlu0 %1340
  %1342 = vrot.lane.b32.xlu0 %v1303, 64
  %v1343 = vpop.permute.xlu0 %1342
  %1344 = vrot.lane.b32.xlu0 %v1304, 64
  %v1345 = vpop.permute.xlu0 %1344
  %1346 = vrot.lane.b32.xlu0 %v1305, 64
  %v1347 = vpop.permute.xlu0 %1346
  %1348 = vrot.lane.b32.xlu0 %v1306, 64
  %v1349 = vpop.permute.xlu0 %1348
  %1350 = vrot.lane.b32.xlu0 %v1307, 64
  %v1351 = vpop.permute.xlu0 %1350
  %1352 = vrot.lane.b32.xlu0 %v1308, 64
  %v1353 = vpop.permute.xlu0 %1352
  %1354 = vrot.lane.b32.xlu0 %v1309, 64
  %v1355 = vpop.permute.xlu0 %1354
  %1356 = vrot.lane.b32.xlu0 %v1310, 64
  %v1357 = vpop.permute.xlu0 %1356
  %1358 = vrot.lane.b32.xlu0 %v1311, 64
  %v1359 = vpop.permute.xlu0 %1358
  %v1376 = vadd.f32 %v1276, %v1329
  %v1377 = vadd.f32 %v1277, %v1331
  %v1378 = vadd.f32 %v1278, %v1333
  %v1379 = vadd.f32 %v1279, %v1335
  %v1380 = vadd.f32 %v1280, %v1337
  %v1381 = vadd.f32 %v1281, %v1339
  %v1382 = vadd.f32 %v1282, %v1341
  %v1383 = vadd.f32 %v1283, %v1343
  %v1384 = vadd.f32 %v1284, %v1345
  %v1385 = vadd.f32 %v1285, %v1347
  %v1386 = vadd.f32 %v1286, %v1349
  %v1387 = vadd.f32 %v1287, %v1351
  %v1388 = vadd.f32 %v1288, %v1353
  %v1389 = vadd.f32 %v1289, %v1355
  %v1390 = vadd.f32 %v1290, %v1357
  %v1391 = vadd.f32 %v1291, %v1359
  %1392 = vset.pattern.permute.xlu0 5
  %1393 = vperm.xlu0 %1392, %v85
  %v1394 = vpop.permute.xlu0 %1393
  %v1396 = vmul.f32 %v1394, %v924
  %v1397 = vmul.f32 %v1394, %v927
  %v1398 = vmul.f32 %v1394, %v930
  %v1399 = vmul.f32 %v1394, %v933
  %v1400 = vmul.f32 %v1394, %v936
  %v1401 = vmul.f32 %v1394, %v939
  %v1402 = vmul.f32 %v1394, %v942
  %v1403 = vmul.f32 %v1394, %v945
  %v1404 = vmul.f32 %v1394, %v948
  %v1405 = vmul.f32 %v1394, %v951
  %v1406 = vmul.f32 %v1394, %v954
  %v1407 = vmul.f32 %v1394, %v957
  %v1408 = vmul.f32 %v1394, %v960
  %v1409 = vmul.f32 %v1394, %v963
  %v1410 = vmul.f32 %v1394, %v966
  %v1411 = vmul.f32 %v1394, %v969
  %1428 = vrot.lane.b32.xlu0 %v1396, 48
  %v1429 = vpop.permute.xlu0 %1428
  %1430 = vrot.lane.b32.xlu0 %v1397, 48
  %v1431 = vpop.permute.xlu0 %1430
  %1432 = vrot.lane.b32.xlu0 %v1398, 48
  %v1433 = vpop.permute.xlu0 %1432
  %1434 = vrot.lane.b32.xlu0 %v1399, 48
  %v1435 = vpop.permute.xlu0 %1434
  %1436 = vrot.lane.b32.xlu0 %v1400, 48
  %v1437 = vpop.permute.xlu0 %1436
  %1438 = vrot.lane.b32.xlu0 %v1401, 48
  %v1439 = vpop.permute.xlu0 %1438
  %1440 = vrot.lane.b32.xlu0 %v1402, 48
  %v1441 = vpop.permute.xlu0 %1440
  %1442 = vrot.lane.b32.xlu0 %v1403, 48
  %v1443 = vpop.permute.xlu0 %1442
  %1444 = vrot.lane.b32.xlu0 %v1404, 48
  %v1445 = vpop.permute.xlu0 %1444
  %1446 = vrot.lane.b32.xlu0 %v1405, 48
  %v1447 = vpop.permute.xlu0 %1446
  %1448 = vrot.lane.b32.xlu0 %v1406, 48
  %v1449 = vpop.permute.xlu0 %1448
  %1450 = vrot.lane.b32.xlu0 %v1407, 48
  %v1451 = vpop.permute.xlu0 %1450
  %1452 = vrot.lane.b32.xlu0 %v1408, 48
  %v1453 = vpop.permute.xlu0 %1452
  %1454 = vrot.lane.b32.xlu0 %v1409, 48
  %v1455 = vpop.permute.xlu0 %1454
  %1456 = vrot.lane.b32.xlu0 %v1410, 48
  %v1457 = vpop.permute.xlu0 %1456
  %1458 = vrot.lane.b32.xlu0 %v1411, 48
  %v1459 = vpop.permute.xlu0 %1458
  %v1476 = vadd.f32 %v1376, %v1429
  %v1477 = vadd.f32 %v1377, %v1431
  %v1478 = vadd.f32 %v1378, %v1433
  %v1479 = vadd.f32 %v1379, %v1435
  %v1480 = vadd.f32 %v1380, %v1437
  %v1481 = vadd.f32 %v1381, %v1439
  %v1482 = vadd.f32 %v1382, %v1441
  %v1483 = vadd.f32 %v1383, %v1443
  %v1484 = vadd.f32 %v1384, %v1445
  %v1485 = vadd.f32 %v1385, %v1447
  %v1486 = vadd.f32 %v1386, %v1449
  %v1487 = vadd.f32 %v1387, %v1451
  %v1488 = vadd.f32 %v1388, %v1453
  %v1489 = vadd.f32 %v1389, %v1455
  %v1490 = vadd.f32 %v1390, %v1457
  %v1491 = vadd.f32 %v1391, %v1459
  %1492 = vset.pattern.permute.xlu0 6
  %1493 = vperm.xlu0 %1492, %v85
  %v1494 = vpop.permute.xlu0 %1493
  %v1496 = vmul.f32 %v1494, %v924
  %v1497 = vmul.f32 %v1494, %v927
  %v1498 = vmul.f32 %v1494, %v930
  %v1499 = vmul.f32 %v1494, %v933
  %v1500 = vmul.f32 %v1494, %v936
  %v1501 = vmul.f32 %v1494, %v939
  %v1502 = vmul.f32 %v1494, %v942
  %v1503 = vmul.f32 %v1494, %v945
  %v1504 = vmul.f32 %v1494, %v948
  %v1505 = vmul.f32 %v1494, %v951
  %v1506 = vmul.f32 %v1494, %v954
  %v1507 = vmul.f32 %v1494, %v957
  %v1508 = vmul.f32 %v1494, %v960
  %v1509 = vmul.f32 %v1494, %v963
  %v1510 = vmul.f32 %v1494, %v966
  %v1511 = vmul.f32 %v1494, %v969
  %1528 = vrot.lane.b32.xlu0 %v1496, 32
  %v1529 = vpop.permute.xlu0 %1528
  %1530 = vrot.lane.b32.xlu0 %v1497, 32
  %v1531 = vpop.permute.xlu0 %1530
  %1532 = vrot.lane.b32.xlu0 %v1498, 32
  %v1533 = vpop.permute.xlu0 %1532
  %1534 = vrot.lane.b32.xlu0 %v1499, 32
  %v1535 = vpop.permute.xlu0 %1534
  %1536 = vrot.lane.b32.xlu0 %v1500, 32
  %v1537 = vpop.permute.xlu0 %1536
  %1538 = vrot.lane.b32.xlu0 %v1501, 32
  %v1539 = vpop.permute.xlu0 %1538
  %1540 = vrot.lane.b32.xlu0 %v1502, 32
  %v1541 = vpop.permute.xlu0 %1540
  %1542 = vrot.lane.b32.xlu0 %v1503, 32
  %v1543 = vpop.permute.xlu0 %1542
  %1544 = vrot.lane.b32.xlu0 %v1504, 32
  %v1545 = vpop.permute.xlu0 %1544
  %1546 = vrot.lane.b32.xlu0 %v1505, 32
  %v1547 = vpop.permute.xlu0 %1546
  %1548 = vrot.lane.b32.xlu0 %v1506, 32
  %v1549 = vpop.permute.xlu0 %1548
  %1550 = vrot.lane.b32.xlu0 %v1507, 32
  %v1551 = vpop.permute.xlu0 %1550
  %1552 = vrot.lane.b32.xlu0 %v1508, 32
  %v1553 = vpop.permute.xlu0 %1552
  %1554 = vrot.lane.b32.xlu0 %v1509, 32
  %v1555 = vpop.permute.xlu0 %1554
  %1556 = vrot.lane.b32.xlu0 %v1510, 32
  %v1557 = vpop.permute.xlu0 %1556
  %1558 = vrot.lane.b32.xlu0 %v1511, 32
  %v1559 = vpop.permute.xlu0 %1558
  %v1576 = vadd.f32 %v1476, %v1529
  %v1577 = vadd.f32 %v1477, %v1531
  %v1578 = vadd.f32 %v1478, %v1533
  %v1579 = vadd.f32 %v1479, %v1535
  %v1580 = vadd.f32 %v1480, %v1537
  %v1581 = vadd.f32 %v1481, %v1539
  %v1582 = vadd.f32 %v1482, %v1541
  %v1583 = vadd.f32 %v1483, %v1543
  %v1584 = vadd.f32 %v1484, %v1545
  %v1585 = vadd.f32 %v1485, %v1547
  %v1586 = vadd.f32 %v1486, %v1549
  %v1587 = vadd.f32 %v1487, %v1551
  %v1588 = vadd.f32 %v1488, %v1553
  %v1589 = vadd.f32 %v1489, %v1555
  %v1590 = vadd.f32 %v1490, %v1557
  %v1591 = vadd.f32 %v1491, %v1559
  %1592 = vset.pattern.permute.xlu0 7
  %1593 = vperm.xlu0 %1592, %v85
  %v1594 = vpop.permute.xlu0 %1593
  %v1596 = vmul.f32 %v1594, %v924
  %v1597 = vmul.f32 %v1594, %v927
  %v1598 = vmul.f32 %v1594, %v930
  %v1599 = vmul.f32 %v1594, %v933
  %v1600 = vmul.f32 %v1594, %v936
  %v1601 = vmul.f32 %v1594, %v939
  %v1602 = vmul.f32 %v1594, %v942
  %v1603 = vmul.f32 %v1594, %v945
  %v1604 = vmul.f32 %v1594, %v948
  %v1605 = vmul.f32 %v1594, %v951
  %v1606 = vmul.f32 %v1594, %v954
  %v1607 = vmul.f32 %v1594, %v957
  %v1608 = vmul.f32 %v1594, %v960
  %v1609 = vmul.f32 %v1594, %v963
  %v1610 = vmul.f32 %v1594, %v966
  %v1611 = vmul.f32 %v1594, %v969
  %1628 = vrot.lane.b32.xlu0 %v1596, 16
  %v1629 = vpop.permute.xlu0 %1628
  %1630 = vrot.lane.b32.xlu0 %v1597, 16
  %v1631 = vpop.permute.xlu0 %1630
  %1632 = vrot.lane.b32.xlu0 %v1598, 16
  %v1633 = vpop.permute.xlu0 %1632
  %1634 = vrot.lane.b32.xlu0 %v1599, 16
  %v1635 = vpop.permute.xlu0 %1634
  %1636 = vrot.lane.b32.xlu0 %v1600, 16
  %v1637 = vpop.permute.xlu0 %1636
  %1638 = vrot.lane.b32.xlu0 %v1601, 16
  %v1639 = vpop.permute.xlu0 %1638
  %1640 = vrot.lane.b32.xlu0 %v1602, 16
  %v1641 = vpop.permute.xlu0 %1640
  %1642 = vrot.lane.b32.xlu0 %v1603, 16
  %v1643 = vpop.permute.xlu0 %1642
  %1644 = vrot.lane.b32.xlu0 %v1604, 16
  %v1645 = vpop.permute.xlu0 %1644
  %1646 = vrot.lane.b32.xlu0 %v1605, 16
  %v1647 = vpop.permute.xlu0 %1646
  %1648 = vrot.lane.b32.xlu0 %v1606, 16
  %v1649 = vpop.permute.xlu0 %1648
  %1650 = vrot.lane.b32.xlu0 %v1607, 16
  %v1651 = vpop.permute.xlu0 %1650
  %1652 = vrot.lane.b32.xlu0 %v1608, 16
  %v1653 = vpop.permute.xlu0 %1652
  %1654 = vrot.lane.b32.xlu0 %v1609, 16
  %v1655 = vpop.permute.xlu0 %1654
  %1656 = vrot.lane.b32.xlu0 %v1610, 16
  %v1657 = vpop.permute.xlu0 %1656
  %1658 = vrot.lane.b32.xlu0 %v1611, 16
  %v1659 = vpop.permute.xlu0 %1658
  %v1676 = vadd.f32 %v1576, %v1629
  %v1677 = vadd.f32 %v1577, %v1631
  %v1678 = vadd.f32 %v1578, %v1633
  %v1679 = vadd.f32 %v1579, %v1635
  %v1680 = vadd.f32 %v1580, %v1637
  %v1681 = vadd.f32 %v1581, %v1639
  %v1682 = vadd.f32 %v1582, %v1641
  %v1683 = vadd.f32 %v1583, %v1643
  %v1684 = vadd.f32 %v1584, %v1645
  %v1685 = vadd.f32 %v1585, %v1647
  %v1686 = vadd.f32 %v1586, %v1649
  %v1687 = vadd.f32 %v1587, %v1651
  %v1688 = vadd.f32 %v1588, %v1653
  %v1689 = vadd.f32 %v1589, %v1655
  %v1690 = vadd.f32 %v1590, %v1657
  %v1691 = vadd.f32 %v1591, %v1659
  %v1692 = vld [vmem:[%s4] sm:$0xff]
  %v1693 = vadd.f32 %v1676, %v1692
  %v1694 = vadd.f32 %v1677, %v1692
  %v1695 = vadd.f32 %v1678, %v1692
  %v1696 = vadd.f32 %v1679, %v1692
  %v1697 = vadd.f32 %v1680, %v1692
  %v1698 = vadd.f32 %v1681, %v1692
  %v1699 = vadd.f32 %v1682, %v1692
  %v1700 = vadd.f32 %v1683, %v1692
  %v1701 = vadd.f32 %v1684, %v1692
  %v1702 = vadd.f32 %v1685, %v1692
  %v1703 = vadd.f32 %v1686, %v1692
  %v1704 = vadd.f32 %v1687, %v1692
  %v1705 = vadd.f32 %v1688, %v1692
  %v1706 = vadd.f32 %v1689, %v1692
  %v1707 = vadd.f32 %v1690, %v1692
  %v1708 = vadd.f32 %v1691, %v1692
  %v1709 = vld [vmem:[%s5] sm:$0xff]
  %v1710 = vld [vmem:[%s5 + $0x8] sm:$0xff]
  %v1711 = vld [vmem:[%s6] sm:$0xff]
  %v1712 = vld [vmem:[%s6 + $0x8] sm:$0xff]
  %v1714 = vsel %vm857, %v1693, 0
  %v1717 = vsel %vm857, %v1694, 0
  %v1720 = vsel %vm857, %v1695, 0
  %v1723 = vsel %vm857, %v1696, 0
  %v1726 = vsel %vm857, %v1697, 0
  %v1729 = vsel %vm857, %v1698, 0
  %v1732 = vsel %vm857, %v1699, 0
  %v1735 = vsel %vm857, %v1700, 0
  %v1738 = vsel %vm857, %v1701, 0
  %v1741 = vsel %vm857, %v1702, 0
  %v1744 = vsel %vm857, %v1703, 0
  %v1747 = vsel %vm857, %v1704, 0
  %v1750 = vsel %vm857, %v1705, 0
  %v1753 = vsel %vm857, %v1706, 0
  %v1756 = vsel %vm857, %v1707, 0
  %v1759 = vsel %vm857, %v1708, 0
  %1761 = vmatpush.msra.mxu0 0.0
  %1762 = vmatpush.msra.mxu0 0.0
  %1763 = vmatpush.msra.mxu0 0.0
  %1764 = vmatpush.msra.mxu0 0.0
  %1765 = vmatpush.msra.mxu0 0.0
  %1766 = vmatpush.msra.mxu0 0.0
  %1767 = vmatpush.msra.mxu0 0.0
  %1768 = vmatpush.msra.mxu0 0.0
  %1769 = vmatpush.msra.mxu0 0.0
  %1770 = vmatpush.msra.mxu0 0.0
  %1771 = vmatpush.msra.mxu0 0.0
  %1772 = vmatpush.msra.mxu0 0.0
  %1773 = vmatpush.msra.mxu0 0.0
  %1774 = vmatpush.msra.mxu0 0.0
  %1775 = vmatpush.msra.mxu0 %v1712
  %1776 = vmatpush.msra.mxu0 %v1711
  %1777 = vmatmul.f32.gmra.mxu0 %v1714
  %v1778 = vpop.f32.mrf.mxu0
  %v1779 = vadd.f32 0.0, %v1778
  %1780 = vmatmul.f32.gmra.mxu0 %v1717
  %v1781 = vpop.f32.mrf.mxu0
  %v1782 = vadd.f32 0.0, %v1781
  %1783 = vmatmul.f32.gmra.mxu0 %v1720
  %v1784 = vpop.f32.mrf.mxu0
  %v1785 = vadd.f32 0.0, %v1784
  %1786 = vmatmul.f32.gmra.mxu0 %v1723
  %v1787 = vpop.f32.mrf.mxu0
  %v1788 = vadd.f32 0.0, %v1787
  %1789 = vmatmul.f32.gmra.mxu0 %v1726
  %v1790 = vpop.f32.mrf.mxu0
  %v1791 = vadd.f32 0.0, %v1790
  %1792 = vmatmul.f32.gmra.mxu0 %v1729
  %v1793 = vpop.f32.mrf.mxu0
  %v1794 = vadd.f32 0.0, %v1793
  %1795 = vmatmul.f32.gmra.mxu0 %v1732
  %v1796 = vpop.f32.mrf.mxu0
  %v1797 = vadd.f32 0.0, %v1796
  %1798 = vmatmul.f32.gmra.mxu0 %v1735
  %v1799 = vpop.f32.mrf.mxu0
  %v1800 = vadd.f32 0.0, %v1799
  %1801 = vmatmul.f32.gmra.mxu0 %v1738
  %v1802 = vpop.f32.mrf.mxu0
  %v1803 = vadd.f32 0.0, %v1802
  %1804 = vmatmul.f32.gmra.mxu0 %v1741
  %v1805 = vpop.f32.mrf.mxu0
  %v1806 = vadd.f32 0.0, %v1805
  %1807 = vmatmul.f32.gmra.mxu0 %v1744
  %v1808 = vpop.f32.mrf.mxu0
  %v1809 = vadd.f32 0.0, %v1808
  %1810 = vmatmul.f32.gmra.mxu0 %v1747
  %v1811 = vpop.f32.mrf.mxu0
  %v1812 = vadd.f32 0.0, %v1811
  %1813 = vmatmul.f32.gmra.mxu0 %v1750
  %v1814 = vpop.f32.mrf.mxu0
  %v1815 = vadd.f32 0.0, %v1814
  %1816 = vmatmul.f32.gmra.mxu0 %v1753
  %v1817 = vpop.f32.mrf.mxu0
  %v1818 = vadd.f32 0.0, %v1817
  %1819 = vmatmul.f32.gmra.mxu0 %v1756
  %v1820 = vpop.f32.mrf.mxu0
  %v1821 = vadd.f32 0.0, %v1820
  %1822 = vmatmul.f32.gmra.mxu0 %v1759
  %v1823 = vpop.f32.mrf.mxu0
  %v1824 = vadd.f32 0.0, %v1823
  %1825 = vdwg.mxu0
  %v1827 = vsel %vm857, %v53, 0
  %v1830 = vsel %vm857, %v54, 0
  %v1833 = vsel %vm857, %v55, 0
  %v1836 = vsel %vm857, %v56, 0
  %v1839 = vsel %vm857, %v57, 0
  %v1842 = vsel %vm857, %v58, 0
  %v1845 = vsel %vm857, %v59, 0
  %v1848 = vsel %vm857, %v60, 0
  %v1851 = vsel %vm857, %v61, 0
  %v1854 = vsel %vm857, %v62, 0
  %v1857 = vsel %vm857, %v63, 0
  %v1860 = vsel %vm857, %v64, 0
  %v1863 = vsel %vm857, %v65, 0
  %v1866 = vsel %vm857, %v66, 0
  %v1869 = vsel %vm857, %v67, 0
  %v1872 = vsel %vm857, %v68, 0
  %1874 = vmatpush.msra.mxu0 0.0
  %1875 = vmatpush.msra.mxu0 0.0
  %1876 = vmatpush.msra.mxu0 0.0
  %1877 = vmatpush.msra.mxu0 0.0
  %1878 = vmatpush.msra.mxu0 0.0
  %1879 = vmatpush.msra.mxu0 0.0
  %1880 = vmatpush.msra.mxu0 0.0
  %1881 = vmatpush.msra.mxu0 0.0
  %1882 = vmatpush.msra.mxu0 0.0
  %1883 = vmatpush.msra.mxu0 0.0
  %1884 = vmatpush.msra.mxu0 0.0
  %1885 = vmatpush.msra.mxu0 0.0
  %1886 = vmatpush.msra.mxu0 0.0
  %1887 = vmatpush.msra.mxu0 0.0
  %1888 = vmatpush.msra.mxu0 %v1710
  %1889 = vmatpush.msra.mxu0 %v1709
  %1890 = vmatmul.f32.gmra.mxu0 %v1827
  %v1891 = vpop.f32.mrf.mxu0
  %v1892 = vadd.f32 %v1779, %v1891
  %1893 = vmatmul.f32.gmra.mxu0 %v1830
  %v1894 = vpop.f32.mrf.mxu0
  %v1895 = vadd.f32 %v1782, %v1894
  %1896 = vmatmul.f32.gmra.mxu0 %v1833
  %v1897 = vpop.f32.mrf.mxu0
  %v1898 = vadd.f32 %v1785, %v1897
  %1899 = vmatmul.f32.gmra.mxu0 %v1836
  %v1900 = vpop.f32.mrf.mxu0
  %v1901 = vadd.f32 %v1788, %v1900
  %1902 = vmatmul.f32.gmra.mxu0 %v1839
  %v1903 = vpop.f32.mrf.mxu0
  %v1904 = vadd.f32 %v1791, %v1903
  %1905 = vmatmul.f32.gmra.mxu0 %v1842
  %v1906 = vpop.f32.mrf.mxu0
  %v1907 = vadd.f32 %v1794, %v1906
  %1908 = vmatmul.f32.gmra.mxu0 %v1845
  %v1909 = vpop.f32.mrf.mxu0
  %v1910 = vadd.f32 %v1797, %v1909
  %1911 = vmatmul.f32.gmra.mxu0 %v1848
  %v1912 = vpop.f32.mrf.mxu0
  %v1913 = vadd.f32 %v1800, %v1912
  %1914 = vmatmul.f32.gmra.mxu0 %v1851
  %v1915 = vpop.f32.mrf.mxu0
  %v1916 = vadd.f32 %v1803, %v1915
  %1917 = vmatmul.f32.gmra.mxu0 %v1854
  %v1918 = vpop.f32.mrf.mxu0
  %v1919 = vadd.f32 %v1806, %v1918
  %1920 = vmatmul.f32.gmra.mxu0 %v1857
  %v1921 = vpop.f32.mrf.mxu0
  %v1922 = vadd.f32 %v1809, %v1921
  %1923 = vmatmul.f32.gmra.mxu0 %v1860
  %v1924 = vpop.f32.mrf.mxu0
  %v1925 = vadd.f32 %v1812, %v1924
  %1926 = vmatmul.f32.gmra.mxu0 %v1863
  %v1927 = vpop.f32.mrf.mxu0
  %v1928 = vadd.f32 %v1815, %v1927
  %1929 = vmatmul.f32.gmra.mxu0 %v1866
  %v1930 = vpop.f32.mrf.mxu0
  %v1931 = vadd.f32 %v1818, %v1930
  %1932 = vmatmul.f32.gmra.mxu0 %v1869
  %v1933 = vpop.f32.mrf.mxu0
  %v1934 = vadd.f32 %v1821, %v1933
  %1935 = vmatmul.f32.gmra.mxu0 %v1872
  %v1936 = vpop.f32.mrf.mxu0
  %v1937 = vadd.f32 %v1824, %v1936
  %1938 = vdwg.mxu0
  %v1939 = vld [vmem:[%s7] sm:$0x1]
  %v1941 = vperm.slane %v1939, 0
  %v1943 = vadd.f32 %v1892, %v1941
  %v1944 = vadd.f32 %v1895, %v1941
  %v1945 = vadd.f32 %v1898, %v1941
  %v1946 = vadd.f32 %v1901, %v1941
  %v1947 = vadd.f32 %v1904, %v1941
  %v1948 = vadd.f32 %v1907, %v1941
  %v1949 = vadd.f32 %v1910, %v1941
  %v1950 = vadd.f32 %v1913, %v1941
  %v1951 = vadd.f32 %v1916, %v1941
  %v1952 = vadd.f32 %v1919, %v1941
  %v1953 = vadd.f32 %v1922, %v1941
  %v1954 = vadd.f32 %v1925, %v1941
  %v1955 = vadd.f32 %v1928, %v1941
  %v1956 = vadd.f32 %v1931, %v1941
  %v1957 = vadd.f32 %v1934, %v1941
  %v1958 = vadd.f32 %v1937, %v1941
  %v1959 = vld [vmem:[%s8] sm:$0xff]
  %v1960 = vld [vmem:[%s8 + $0x8] sm:$0xff]
  %v1961 = vld [vmem:[%s12] sm:$0x1]
  %v1963 = vperm.slane %v1961, 0
  %v1966 = vsel %vm857, %v1943, 0
  %v1969 = vsel %vm857, %v1944, 0
  %v1972 = vsel %vm857, %v1945, 0
  %v1975 = vsel %vm857, %v1946, 0
  %v1978 = vsel %vm857, %v1947, 0
  %v1981 = vsel %vm857, %v1948, 0
  %v1984 = vsel %vm857, %v1949, 0
  %v1987 = vsel %vm857, %v1950, 0
  %v1990 = vsel %vm857, %v1951, 0
  %v1993 = vsel %vm857, %v1952, 0
  %v1996 = vsel %vm857, %v1953, 0
  %v1999 = vsel %vm857, %v1954, 0
  %v2002 = vsel %vm857, %v1955, 0
  %v2005 = vsel %vm857, %v1956, 0
  %v2008 = vsel %vm857, %v1957, 0
  %v2011 = vsel %vm857, %v1958, 0
  %2013 = vmatpush.msra.mxu0 0.0
  %2014 = vmatpush.msra.mxu0 0.0
  %2015 = vmatpush.msra.mxu0 0.0
  %2016 = vmatpush.msra.mxu0 0.0
  %2017 = vmatpush.msra.mxu0 0.0
  %2018 = vmatpush.msra.mxu0 0.0
  %2019 = vmatpush.msra.mxu0 0.0
  %2020 = vmatpush.msra.mxu0 0.0
  %2021 = vmatpush.msra.mxu0 0.0
  %2022 = vmatpush.msra.mxu0 0.0
  %2023 = vmatpush.msra.mxu0 0.0
  %2024 = vmatpush.msra.mxu0 0.0
  %2025 = vmatpush.msra.mxu0 0.0
  %2026 = vmatpush.msra.mxu0 0.0
  %2027 = vmatpush.msra.mxu0 %v1960
  %2028 = vmatpush.msra.mxu0 %v1959
  %2029 = vmatmul.f32.gmra.mxu0 %v1966
  %v2030 = vpop.f32.mrf.mxu0
  %v2031 = vadd.f32 %v1963, %v2030
  %2032 = vmatmul.f32.gmra.mxu0 %v1969
  %v2033 = vpop.f32.mrf.mxu0
  %v2034 = vadd.f32 %v1963, %v2033
  %2035 = vmatmul.f32.gmra.mxu0 %v1972
  %v2036 = vpop.f32.mrf.mxu0
  %v2037 = vadd.f32 %v1963, %v2036
  %2038 = vmatmul.f32.gmra.mxu0 %v1975
  %v2039 = vpop.f32.mrf.mxu0
  %v2040 = vadd.f32 %v1963, %v2039
  %2041 = vmatmul.f32.gmra.mxu0 %v1978
  %v2042 = vpop.f32.mrf.mxu0
  %v2043 = vadd.f32 %v1963, %v2042
  %2044 = vmatmul.f32.gmra.mxu0 %v1981
  %v2045 = vpop.f32.mrf.mxu0
  %v2046 = vadd.f32 %v1963, %v2045
  %2047 = vmatmul.f32.gmra.mxu0 %v1984
  %v2048 = vpop.f32.mrf.mxu0
  %v2049 = vadd.f32 %v1963, %v2048
  %2050 = vmatmul.f32.gmra.mxu0 %v1987
  %v2051 = vpop.f32.mrf.mxu0
  %v2052 = vadd.f32 %v1963, %v2051
  %2053 = vmatmul.f32.gmra.mxu0 %v1990
  %v2054 = vpop.f32.mrf.mxu0
  %v2055 = vadd.f32 %v1963, %v2054
  %2056 = vmatmul.f32.gmra.mxu0 %v1993
  %v2057 = vpop.f32.mrf.mxu0
  %v2058 = vadd.f32 %v1963, %v2057
  %2059 = vmatmul.f32.gmra.mxu0 %v1996
  %v2060 = vpop.f32.mrf.mxu0
  %v2061 = vadd.f32 %v1963, %v2060
  %2062 = vmatmul.f32.gmra.mxu0 %v1999
  %v2063 = vpop.f32.mrf.mxu0
  %v2064 = vadd.f32 %v1963, %v2063
  %2065 = vmatmul.f32.gmra.mxu0 %v2002
  %v2066 = vpop.f32.mrf.mxu0
  %v2067 = vadd.f32 %v1963, %v2066
  %2068 = vmatmul.f32.gmra.mxu0 %v2005
  %v2069 = vpop.f32.mrf.mxu0
  %v2070 = vadd.f32 %v1963, %v2069
  %2071 = vmatmul.f32.gmra.mxu0 %v2008
  %v2072 = vpop.f32.mrf.mxu0
  %v2073 = vadd.f32 %v1963, %v2072
  %2074 = vmatmul.f32.gmra.mxu0 %v2011
  %v2075 = vpop.f32.mrf.mxu0
  %v2076 = vadd.f32 %v1963, %v2075
  %2077 = vdwg.mxu0
  %2078 = vst.msk [vmem:[#allocation2] sm:$0xff] %vm857, %v2031
  %2079 = vst.msk [vmem:[#allocation2 + $0x8] sm:$0xff] %vm857, %v2034
  %2080 = vst.msk [vmem:[#allocation2 + $0x10] sm:$0xff] %vm857, %v2037
  %2081 = vst.msk [vmem:[#allocation2 + $0x18] sm:$0xff] %vm857, %v2040
  %2082 = vst.msk [vmem:[#allocation2 + $0x20] sm:$0xff] %vm857, %v2043
  %2083 = vst.msk [vmem:[#allocation2 + $0x28] sm:$0xff] %vm857, %v2046
  %2084 = vst.msk [vmem:[#allocation2 + $0x30] sm:$0xff] %vm857, %v2049
  %2085 = vst.msk [vmem:[#allocation2 + $0x38] sm:$0xff] %vm857, %v2052
  %2086 = vst.msk [vmem:[#allocation2 + $0x40] sm:$0xff] %vm857, %v2055
  %2087 = vst.msk [vmem:[#allocation2 + $0x48] sm:$0xff] %vm857, %v2058
  %2088 = vst.msk [vmem:[#allocation2 + $0x50] sm:$0xff] %vm857, %v2061
  %2089 = vst.msk [vmem:[#allocation2 + $0x58] sm:$0xff] %vm857, %v2064
  %2090 = vst.msk [vmem:[#allocation2 + $0x60] sm:$0xff] %vm857, %v2067
  %2091 = vst.msk [vmem:[#allocation2 + $0x68] sm:$0xff] %vm857, %v2070
  %2092 = vst.msk [vmem:[#allocation2 + $0x70] sm:$0xff] %vm857, %v2073
  %2093 = vst.msk [vmem:[#allocation2 + $0x78] sm:$0xff] %vm857, %v2076
  %2110 = vrot.lane.b32.xlu0 %v2031, 112
  %v2111 = vpop.permute.xlu0 %2110
  %2112 = vrot.lane.b32.xlu0 %v2034, 112
  %v2113 = vpop.permute.xlu0 %2112
  %2114 = vrot.lane.b32.xlu0 %v2037, 112
  %v2115 = vpop.permute.xlu0 %2114
  %2116 = vrot.lane.b32.xlu0 %v2040, 112
  %v2117 = vpop.permute.xlu0 %2116
  %2118 = vrot.lane.b32.xlu0 %v2043, 112
  %v2119 = vpop.permute.xlu0 %2118
  %2120 = vrot.lane.b32.xlu0 %v2046, 112
  %v2121 = vpop.permute.xlu0 %2120
  %2122 = vrot.lane.b32.xlu0 %v2049, 112
  %v2123 = vpop.permute.xlu0 %2122
  %2124 = vrot.lane.b32.xlu0 %v2052, 112
  %v2125 = vpop.permute.xlu0 %2124
  %2126 = vrot.lane.b32.xlu0 %v2055, 112
  %v2127 = vpop.permute.xlu0 %2126
  %2128 = vrot.lane.b32.xlu0 %v2058, 112
  %v2129 = vpop.permute.xlu0 %2128
  %2130 = vrot.lane.b32.xlu0 %v2061, 112
  %v2131 = vpop.permute.xlu0 %2130
  %2132 = vrot.lane.b32.xlu0 %v2064, 112
  %v2133 = vpop.permute.xlu0 %2132
  %2134 = vrot.lane.b32.xlu0 %v2067, 112
  %v2135 = vpop.permute.xlu0 %2134
  %2136 = vrot.lane.b32.xlu0 %v2070, 112
  %v2137 = vpop.permute.xlu0 %2136
  %2138 = vrot.lane.b32.xlu0 %v2073, 112
  %v2139 = vpop.permute.xlu0 %2138
  %2140 = vrot.lane.b32.xlu0 %v2076, 112
  %v2141 = vpop.permute.xlu0 %2140
  %2158 = vst.msk [vmem:[#allocation3] sm:$0xff] %vm857, %v2111
  %2159 = vst.msk [vmem:[#allocation3 + $0x8] sm:$0xff] %vm857, %v2113
  %2160 = vst.msk [vmem:[#allocation3 + $0x10] sm:$0xff] %vm857, %v2115
  %2161 = vst.msk [vmem:[#allocation3 + $0x18] sm:$0xff] %vm857, %v2117
  %2162 = vst.msk [vmem:[#allocation3 + $0x20] sm:$0xff] %vm857, %v2119
  %2163 = vst.msk [vmem:[#allocation3 + $0x28] sm:$0xff] %vm857, %v2121
  %2164 = vst.msk [vmem:[#allocation3 + $0x30] sm:$0xff] %vm857, %v2123
  %2165 = vst.msk [vmem:[#allocation3 + $0x38] sm:$0xff] %vm857, %v2125
  %2166 = vst.msk [vmem:[#allocation3 + $0x40] sm:$0xff] %vm857, %v2127
  %2167 = vst.msk [vmem:[#allocation3 + $0x48] sm:$0xff] %vm857, %v2129
  %2168 = vst.msk [vmem:[#allocation3 + $0x50] sm:$0xff] %vm857, %v2131
  %2169 = vst.msk [vmem:[#allocation3 + $0x58] sm:$0xff] %vm857, %v2133
  %2170 = vst.msk [vmem:[#allocation3 + $0x60] sm:$0xff] %vm857, %v2135
  %2171 = vst.msk [vmem:[#allocation3 + $0x68] sm:$0xff] %vm857, %v2137
  %2172 = vst.msk [vmem:[#allocation3 + $0x70] sm:$0xff] %vm857, %v2139
  %2173 = vst.msk [vmem:[#allocation3 + $0x78] sm:$0xff] %vm857, %v2141
  %2174 = vrot.lane.b32.xlu0 %v2031, 96
  %v2175 = vpop.permute.xlu0 %2174
  %2176 = vrot.lane.b32.xlu0 %v2034, 96
  %v2177 = vpop.permute.xlu0 %2176
  %2178 = vrot.lane.b32.xlu0 %v2037, 96
  %v2179 = vpop.permute.xlu0 %2178
  %2180 = vrot.lane.b32.xlu0 %v2040, 96
  %v2181 = vpop.permute.xlu0 %2180
  %2182 = vrot.lane.b32.xlu0 %v2043, 96
  %v2183 = vpop.permute.xlu0 %2182
  %2184 = vrot.lane.b32.xlu0 %v2046, 96
  %v2185 = vpop.permute.xlu0 %2184
  %2186 = vrot.lane.b32.xlu0 %v2049, 96
  %v2187 = vpop.permute.xlu0 %2186
  %2188 = vrot.lane.b32.xlu0 %v2052, 96
  %v2189 = vpop.permute.xlu0 %2188
  %2190 = vrot.lane.b32.xlu0 %v2055, 96
  %v2191 = vpop.permute.xlu0 %2190
  %2192 = vrot.lane.b32.xlu0 %v2058, 96
  %v2193 = vpop.permute.xlu0 %2192
  %2194 = vrot.lane.b32.xlu0 %v2061, 96
  %v2195 = vpop.permute.xlu0 %2194
  %2196 = vrot.lane.b32.xlu0 %v2064, 96
  %v2197 = vpop.permute.xlu0 %2196
  %2198 = vrot.lane.b32.xlu0 %v2067, 96
  %v2199 = vpop.permute.xlu0 %2198
  %2200 = vrot.lane.b32.xlu0 %v2070, 96
  %v2201 = vpop.permute.xlu0 %2200
  %2202 = vrot.lane.b32.xlu0 %v2073, 96
  %v2203 = vpop.permute.xlu0 %2202
  %2204 = vrot.lane.b32.xlu0 %v2076, 96
  %v2205 = vpop.permute.xlu0 %2204
  %2222 = vst.msk [vmem:[#allocation4] sm:$0xff] %vm857, %v2175
  %2223 = vst.msk [vmem:[#allocation4 + $0x8] sm:$0xff] %vm857, %v2177
  %2224 = vst.msk [vmem:[#allocation4 + $0x10] sm:$0xff] %vm857, %v2179
  %2225 = vst.msk [vmem:[#allocation4 + $0x18] sm:$0xff] %vm857, %v2181
  %2226 = vst.msk [vmem:[#allocation4 + $0x20] sm:$0xff] %vm857, %v2183
  %2227 = vst.msk [vmem:[#allocation4 + $0x28] sm:$0xff] %vm857, %v2185
  %2228 = vst.msk [vmem:[#allocation4 + $0x30] sm:$0xff] %vm857, %v2187
  %2229 = vst.msk [vmem:[#allocation4 + $0x38] sm:$0xff] %vm857, %v2189
  %2230 = vst.msk [vmem:[#allocation4 + $0x40] sm:$0xff] %vm857, %v2191
  %2231 = vst.msk [vmem:[#allocation4 + $0x48] sm:$0xff] %vm857, %v2193
  %2232 = vst.msk [vmem:[#allocation4 + $0x50] sm:$0xff] %vm857, %v2195
  %2233 = vst.msk [vmem:[#allocation4 + $0x58] sm:$0xff] %vm857, %v2197
  %2234 = vst.msk [vmem:[#allocation4 + $0x60] sm:$0xff] %vm857, %v2199
  %2235 = vst.msk [vmem:[#allocation4 + $0x68] sm:$0xff] %vm857, %v2201
  %2236 = vst.msk [vmem:[#allocation4 + $0x70] sm:$0xff] %vm857, %v2203
  %2237 = vst.msk [vmem:[#allocation4 + $0x78] sm:$0xff] %vm857, %v2205
  %v2238 = vld [vmem:[%s9] sm:$0xff]
  %v2239 = vld [vmem:[%s9 + $0x8] sm:$0xff]
  %v2240 = vld [vmem:[%s10] sm:$0xff]
  %v2241 = vld [vmem:[%s10 + $0x8] sm:$0xff]
  %v2242 = vld [vmem:[%s11] sm:$0xff]
  %v2243 = vld [vmem:[%s11 + $0x8] sm:$0xff]
  %v2244 = vld [vmem:[%s13] sm:$0x1]
  %v2245 = vld [vmem:[%s14] sm:$0x1]
  %v2246 = vld [vmem:[%s15] sm:$0x1]
  %v2248 = vperm.slane %v2244, 0
  %v2251 = vsel %vm857, 0.0, 0
  %2253 = vmatpush.msra.mxu0 0.0
  %2254 = vmatpush.msra.mxu0 0.0
  %2255 = vmatpush.msra.mxu0 0.0
  %2256 = vmatpush.msra.mxu0 0.0
  %2257 = vmatpush.msra.mxu0 0.0
  %2258 = vmatpush.msra.mxu0 0.0
  %2259 = vmatpush.msra.mxu0 0.0
  %2260 = vmatpush.msra.mxu0 0.0
  %2261 = vmatpush.msra.mxu0 0.0
  %2262 = vmatpush.msra.mxu0 0.0
  %2263 = vmatpush.msra.mxu0 0.0
  %2264 = vmatpush.msra.mxu0 0.0
  %2265 = vmatpush.msra.mxu0 0.0
  %2266 = vmatpush.msra.mxu0 0.0
  %2267 = vmatpush.msra.mxu0 %v2239
  %2268 = vmatpush.msra.mxu0 %v2238
  %2269 = vmatmul.f32.gmra.mxu0 %v2251
  %v2270 = vpop.f32.mrf.mxu0
  %v2271 = vadd.f32 %v2248, %v2270
  %2272 = vmatmul.f32.gmra.mxu0 %v2251
  %v2273 = vpop.f32.mrf.mxu0
  %v2274 = vadd.f32 %v2248, %v2273
  %2275 = vdwg.mxu0
  %v2277 = vperm.slane %v2245, 0
  %2279 = vmatpush.msra.mxu0 0.0
  %2280 = vmatpush.msra.mxu0 0.0
  %2281 = vmatpush.msra.mxu0 0.0
  %2282 = vmatpush.msra.mxu0 0.0
  %2283 = vmatpush.msra.mxu0 0.0
  %2284 = vmatpush.msra.mxu0 0.0
  %2285 = vmatpush.msra.mxu0 0.0
  %2286 = vmatpush.msra.mxu0 0.0
  %2287 = vmatpush.msra.mxu0 0.0
  %2288 = vmatpush.msra.mxu0 0.0
  %2289 = vmatpush.msra.mxu0 0.0
  %2290 = vmatpush.msra.mxu0 0.0
  %2291 = vmatpush.msra.mxu0 0.0
  %2292 = vmatpush.msra.mxu0 0.0
  %2293 = vmatpush.msra.mxu0 %v2241
  %2294 = vmatpush.msra.mxu0 %v2240
  %2295 = vmatmul.f32.gmra.mxu0 %v2251
  %v2296 = vpop.f32.mrf.mxu0
  %v2297 = vadd.f32 %v2277, %v2296
  %2298 = vmatmul.f32.gmra.mxu0 %v2251
  %v2299 = vpop.f32.mrf.mxu0
  %v2300 = vadd.f32 %v2277, %v2299
  %2301 = vdwg.mxu0
  %v2303 = vperm.slane %v2246, 0
  %2305 = vmatpush.msra.mxu0 0.0
  %2306 = vmatpush.msra.mxu0 0.0
  %2307 = vmatpush.msra.mxu0 0.0
  %2308 = vmatpush.msra.mxu0 0.0
  %2309 = vmatpush.msra.mxu0 0.0
  %2310 = vmatpush.msra.mxu0 0.0
  %2311 = vmatpush.msra.mxu0 0.0
  %2312 = vmatpush.msra.mxu0 0.0
  %2313 = vmatpush.msra.mxu0 0.0
  %2314 = vmatpush.msra.mxu0 0.0
  %2315 = vmatpush.msra.mxu0 0.0
  %2316 = vmatpush.msra.mxu0 0.0
  %2317 = vmatpush.msra.mxu0 0.0
  %2318 = vmatpush.msra.mxu0 0.0
  %2319 = vmatpush.msra.mxu0 %v2243
  %2320 = vmatpush.msra.mxu0 %v2242
  %2321 = vmatmul.f32.gmra.mxu0 %v2251
  %v2322 = vpop.f32.mrf.mxu0
  %v2323 = vadd.f32 %v2303, %v2322
  %2324 = vmatmul.f32.gmra.mxu0 %v2251
  %v2325 = vpop.f32.mrf.mxu0
  %v2326 = vadd.f32 %v2303, %v2325
  %2327 = vdwg.mxu0
  %v2328 = vld [vmem:[#allocation2] sm:$0xff]
  %v2329 = vld [vmem:[#allocation2 + $0x8] sm:$0xff]
  %v2330 = vadd.f32 %v2328, %v2271
  %v2331 = vadd.f32 %v2329, %v2274
  %v2332 = vxor.u32 %v2330, 2147483648
  %v2333 = vxor.u32 %v2331, 2147483648
  %v2334 = vmul.f32 %v2332, 1.442695
  %v2335 = vpow.pop %v2334
  %v2336 = vmul.f32 %v2333, 1.442695
  %v2337 = vpow.pop %v2336
  %v2338 = vadd.f32 %v2335, 1.0
  %v2339 = vadd.f32 %v2337, 1.0
  %v2340 = vrcp.pop %v2338
  %v2341 = vmul.f32 %v2338, %v2340
  %v2342 = vsub.f32 1.0, %v2341
  %v2343 = vmul.f32 %v2340, %v2342
  %v2344 = vadd.f32 %v2340, %v2343
  %vm2345 = vweird.f32 %v2338
  %vm2346 = vweird.f32 %v2340
  %vm2347 = vmor %vm2345, %vm2346
  %v2348 = vsel %vm2347, %v2340, %v2344
  %v2349 = vand.u32 2147483647, %v2338
  %vm2350 = vcmp.eq.f32.partialorder %v2349, 8.507059e+37
  %v2351 = vand.u32 %v2338, 2147483648
  %v2352 = vor.u32 1.1754944e-38, %v2351
  %v2353 = vsel %vm2350, %v2352, %v2348
  %v2354 = vmul.f32 1.0, %v2353
  %v2355 = vrcp.pop %v2339
  %v2356 = vmul.f32 %v2339, %v2355
  %v2357 = vsub.f32 1.0, %v2356
  %v2358 = vmul.f32 %v2355, %v2357
  %v2359 = vadd.f32 %v2355, %v2358
  %vm2360 = vweird.f32 %v2339
  %vm2361 = vweird.f32 %v2355
  %vm2362 = vmor %vm2360, %vm2361
  %v2363 = vsel %vm2362, %v2355, %v2359
  %v2364 = vand.u32 2147483647, %v2339
  %vm2365 = vcmp.eq.f32.partialorder %v2364, 8.507059e+37
  %v2366 = vand.u32 %v2339, 2147483648
  %v2367 = vor.u32 1.1754944e-38, %v2366
  %v2368 = vsel %vm2365, %v2367, %v2363
  %v2369 = vmul.f32 1.0, %v2368
  %v2370 = vld [vmem:[#allocation3] sm:$0xff]
  %v2371 = vld [vmem:[#allocation3 + $0x8] sm:$0xff]
  %v2372 = vadd.f32 %v2370, %v2297
  %v2373 = vadd.f32 %v2371, %v2300
  %v2374 = vxor.u32 %v2372, 2147483648
  %v2375 = vxor.u32 %v2373, 2147483648
  %v2376 = vmul.f32 %v2374, 1.442695
  %v2377 = vpow.pop %v2376
  %v2378 = vmul.f32 %v2375, 1.442695
  %v2379 = vpow.pop %v2378
  %v2380 = vadd.f32 %v2377, 1.0
  %v2381 = vadd.f32 %v2379, 1.0
  %v2382 = vrcp.pop %v2380
  %v2383 = vmul.f32 %v2380, %v2382
  %v2384 = vsub.f32 1.0, %v2383
  %v2385 = vmul.f32 %v2382, %v2384
  %v2386 = vadd.f32 %v2382, %v2385
  %vm2387 = vweird.f32 %v2380
  %vm2388 = vweird.f32 %v2382
  %vm2389 = vmor %vm2387, %vm2388
  %v2390 = vsel %vm2389, %v2382, %v2386
  %v2391 = vand.u32 2147483647, %v2380
  %vm2392 = vcmp.eq.f32.partialorder %v2391, 8.507059e+37
  %v2393 = vand.u32 %v2380, 2147483648
  %v2394 = vor.u32 1.1754944e-38, %v2393
  %v2395 = vsel %vm2392, %v2394, %v2390
  %v2396 = vmul.f32 1.0, %v2395
  %v2397 = vrcp.pop %v2381
  %v2398 = vmul.f32 %v2381, %v2397
  %v2399 = vsub.f32 1.0, %v2398
  %v2400 = vmul.f32 %v2397, %v2399
  %v2401 = vadd.f32 %v2397, %v2400
  %vm2402 = vweird.f32 %v2381
  %vm2403 = vweird.f32 %v2397
  %vm2404 = vmor %vm2402, %vm2403
  %v2405 = vsel %vm2404, %v2397, %v2401
  %v2406 = vand.u32 2147483647, %v2381
  %vm2407 = vcmp.eq.f32.partialorder %v2406, 8.507059e+37
  %v2408 = vand.u32 %v2381, 2147483648
  %v2409 = vor.u32 1.1754944e-38, %v2408
  %v2410 = vsel %vm2407, %v2409, %v2405
  %v2411 = vmul.f32 1.0, %v2410
  %v2412 = vld [vmem:[#allocation4] sm:$0xff]
  %v2413 = vld [vmem:[#allocation4 + $0x8] sm:$0xff]
  %v2414 = vmul.f32 %v2354, %v2323
  %v2415 = vmul.f32 %v2369, %v2326
  %v2416 = vadd.f32 %v2412, %v2414
  %v2417 = vadd.f32 %v2413, %v2415
  %v2418 = vtanh.pop %v2416
  %v2419 = vtanh.pop %v2417
  %v2420 = vsub.f32 1.0, %v2396
  %v2421 = vsub.f32 1.0, %v2411
  %v2422 = vmul.f32 %v2420, %v2418
  %v2423 = vmul.f32 %v2421, %v2419
  %v2424 = vmul.f32 %v2396, 0.0
  %v2425 = vmul.f32 %v2411, 0.0
  %v2426 = vadd.f32 %v2422, %v2424
  %v2427 = vadd.f32 %v2423, %v2425
  %v2429 = vsel %vm857, %v2426, 0
  %v2432 = vsel %vm857, %v2427, 0
  %2434 = vmatpush.msra.mxu0 0.0
  %2435 = vmatpush.msra.mxu0 0.0
  %2436 = vmatpush.msra.mxu0 0.0
  %2437 = vmatpush.msra.mxu0 0.0
  %2438 = vmatpush.msra.mxu0 0.0
  %2439 = vmatpush.msra.mxu0 0.0
  %2440 = vmatpush.msra.mxu0 0.0
  %2441 = vmatpush.msra.mxu0 0.0
  %2442 = vmatpush.msra.mxu0 0.0
  %2443 = vmatpush.msra.mxu0 0.0
  %2444 = vmatpush.msra.mxu0 0.0
  %2445 = vmatpush.msra.mxu0 0.0
  %2446 = vmatpush.msra.mxu0 0.0
  %2447 = vmatpush.msra.mxu0 0.0
  %2448 = vmatpush.msra.mxu0 %v2239
  %2449 = vmatpush.msra.mxu0 %v2238
  %2450 = vmatmul.f32.gmra.mxu0 %v2429
  %v2451 = vpop.f32.mrf.mxu0
  %v2452 = vadd.f32 %v2248, %v2451
  %2453 = vmatmul.f32.gmra.mxu0 %v2432
  %v2454 = vpop.f32.mrf.mxu0
  %v2455 = vadd.f32 %v2248, %v2454
  %2456 = vdwg.mxu0
  %2457 = vmatpush.msra.mxu0 0.0
  %2458 = vmatpush.msra.mxu0 0.0
  %2459 = vmatpush.msra.mxu0 0.0
  %2460 = vmatpush.msra.mxu0 0.0
  %2461 = vmatpush.msra.mxu0 0.0
  %2462 = vmatpush.msra.mxu0 0.0
  %2463 = vmatpush.msra.mxu0 0.0
  %2464 = vmatpush.msra.mxu0 0.0
  %2465 = vmatpush.msra.mxu0 0.0
  %2466 = vmatpush.msra.mxu0 0.0
  %2467 = vmatpush.msra.mxu0 0.0
  %2468 = vmatpush.msra.mxu0 0.0
  %2469 = vmatpush.msra.mxu0 0.0
  %2470 = vmatpush.msra.mxu0 0.0
  %2471 = vmatpush.msra.mxu0 %v2241
  %2472 = vmatpush.msra.mxu0 %v2240
  %2473 = vmatmul.f32.gmra.mxu0 %v2429
  %v2474 = vpop.f32.mrf.mxu0
  %v2475 = vadd.f32 %v2277, %v2474
  %2476 = vmatmul.f32.gmra.mxu0 %v2432
  %v2477 = vpop.f32.mrf.mxu0
  %v2478 = vadd.f32 %v2277, %v2477
  %2479 = vdwg.mxu0
  %2480 = vmatpush.msra.mxu0 0.0
  %2481 = vmatpush.msra.mxu0 0.0
  %2482 = vmatpush.msra.mxu0 0.0
  %2483 = vmatpush.msra.mxu0 0.0
  %2484 = vmatpush.msra.mxu0 0.0
  %2485 = vmatpush.msra.mxu0 0.0
  %2486 = vmatpush.msra.mxu0 0.0
  %2487 = vmatpush.msra.mxu0 0.0
  %2488 = vmatpush.msra.mxu0 0.0
  %2489 = vmatpush.msra.mxu0 0.0
  %2490 = vmatpush.msra.mxu0 0.0
  %2491 = vmatpush.msra.mxu0 0.0
  %2492 = vmatpush.msra.mxu0 0.0
  %2493 = vmatpush.msra.mxu0 0.0
  %2494 = vmatpush.msra.mxu0 %v2243
  %2495 = vmatpush.msra.mxu0 %v2242
  %2496 = vmatmul.f32.gmra.mxu0 %v2429
  %v2497 = vpop.f32.mrf.mxu0
  %v2498 = vadd.f32 %v2303, %v2497
  %2499 = vmatmul.f32.gmra.mxu0 %v2432
  %v2500 = vpop.f32.mrf.mxu0
  %v2501 = vadd.f32 %v2303, %v2500
  %2502 = vdwg.mxu0
  %s2503 = scalar_lea.vmem [#allocation2], 16
  %v2504 = vld [vmem:[%s2503] sm:$0xff]
  %v2505 = vld [vmem:[%s2503 + $0x8] sm:$0xff]
  %v2506 = vadd.f32 %v2504, %v2452
  %v2507 = vadd.f32 %v2505, %v2455
  %v2508 = vxor.u32 %v2506, 2147483648
  %v2509 = vxor.u32 %v2507, 2147483648
  %v2510 = vmul.f32 %v2508, 1.442695
  %v2511 = vpow.pop %v2510
  %v2512 = vmul.f32 %v2509, 1.442695
  %v2513 = vpow.pop %v2512
  %v2514 = vadd.f32 %v2511, 1.0
  %v2515 = vadd.f32 %v2513, 1.0
  %v2516 = vrcp.pop %v2514
  %v2517 = vmul.f32 %v2514, %v2516
  %v2518 = vsub.f32 1.0, %v2517
  %v2519 = vmul.f32 %v2516, %v2518
  %v2520 = vadd.f32 %v2516, %v2519
  %vm2521 = vweird.f32 %v2514
  %vm2522 = vweird.f32 %v2516
  %vm2523 = vmor %vm2521, %vm2522
  %v2524 = vsel %vm2523, %v2516, %v2520
  %v2525 = vand.u32 2147483647, %v2514
  %vm2526 = vcmp.eq.f32.partialorder %v2525, 8.507059e+37
  %v2527 = vand.u32 %v2514, 2147483648
  %v2528 = vor.u32 1.1754944e-38, %v2527
  %v2529 = vsel %vm2526, %v2528, %v2524
  %v2530 = vmul.f32 1.0, %v2529
  %v2531 = vrcp.pop %v2515
  %v2532 = vmul.f32 %v2515, %v2531
  %v2533 = vsub.f32 1.0, %v2532
  %v2534 = vmul.f32 %v2531, %v2533
  %v2535 = vadd.f32 %v2531, %v2534
  %vm2536 = vweird.f32 %v2515
  %vm2537 = vweird.f32 %v2531
  %vm2538 = vmor %vm2536, %vm2537
  %v2539 = vsel %vm2538, %v2531, %v2535
  %v2540 = vand.u32 2147483647, %v2515
  %vm2541 = vcmp.eq.f32.partialorder %v2540, 8.507059e+37
  %v2542 = vand.u32 %v2515, 2147483648
  %v2543 = vor.u32 1.1754944e-38, %v2542
  %v2544 = vsel %vm2541, %v2543, %v2539
  %v2545 = vmul.f32 1.0, %v2544
  %s2546 = scalar_lea.vmem [#allocation3], 16
  %v2547 = vld [vmem:[%s2546] sm:$0xff]
  %v2548 = vld [vmem:[%s2546 + $0x8] sm:$0xff]
  %v2549 = vadd.f32 %v2547, %v2475
  %v2550 = vadd.f32 %v2548, %v2478
  %v2551 = vxor.u32 %v2549, 2147483648
  %v2552 = vxor.u32 %v2550, 2147483648
  %v2553 = vmul.f32 %v2551, 1.442695
  %v2554 = vpow.pop %v2553
  %v2555 = vmul.f32 %v2552, 1.442695
  %v2556 = vpow.pop %v2555
  %v2557 = vadd.f32 %v2554, 1.0
  %v2558 = vadd.f32 %v2556, 1.0
  %v2559 = vrcp.pop %v2557
  %v2560 = vmul.f32 %v2557, %v2559
  %v2561 = vsub.f32 1.0, %v2560
  %v2562 = vmul.f32 %v2559, %v2561
  %v2563 = vadd.f32 %v2559, %v2562
  %vm2564 = vweird.f32 %v2557
  %vm2565 = vweird.f32 %v2559
  %vm2566 = vmor %vm2564, %vm2565
  %v2567 = vsel %vm2566, %v2559, %v2563
  %v2568 = vand.u32 2147483647, %v2557
  %vm2569 = vcmp.eq.f32.partialorder %v2568, 8.507059e+37
  %v2570 = vand.u32 %v2557, 2147483648
  %v2571 = vor.u32 1.1754944e-38, %v2570
  %v2572 = vsel %vm2569, %v2571, %v2567
  %v2573 = vmul.f32 1.0, %v2572
  %v2574 = vrcp.pop %v2558
  %v2575 = vmul.f32 %v2558, %v2574
  %v2576 = vsub.f32 1.0, %v2575
  %v2577 = vmul.f32 %v2574, %v2576
  %v2578 = vadd.f32 %v2574, %v2577
  %vm2579 = vweird.f32 %v2558
  %vm2580 = vweird.f32 %v2574
  %vm2581 = vmor %vm2579, %vm2580
  %v2582 = vsel %vm2581, %v2574, %v2578
  %v2583 = vand.u32 2147483647, %v2558
  %vm2584 = vcmp.eq.f32.partialorder %v2583, 8.507059e+37
  %v2585 = vand.u32 %v2558, 2147483648
  %v2586 = vor.u32 1.1754944e-38, %v2585
  %v2587 = vsel %vm2584, %v2586, %v2582
  %v2588 = vmul.f32 1.0, %v2587
  %s2589 = scalar_lea.vmem [#allocation4], 16
  %v2590 = vld [vmem:[%s2589] sm:$0xff]
  %v2591 = vld [vmem:[%s2589 + $0x8] sm:$0xff]
  %v2592 = vmul.f32 %v2530, %v2498
  %v2593 = vmul.f32 %v2545, %v2501
  %v2594 = vadd.f32 %v2590, %v2592
  %v2595 = vadd.f32 %v2591, %v2593
  %v2596 = vtanh.pop %v2594
  %v2597 = vtanh.pop %v2595
  %v2598 = vsub.f32 1.0, %v2573
  %v2599 = vsub.f32 1.0, %v2588
  %v2600 = vmul.f32 %v2598, %v2596
  %v2601 = vmul.f32 %v2599, %v2597
  %v2602 = vmul.f32 %v2573, %v2426
  %v2603 = vmul.f32 %v2588, %v2427
  %v2604 = vadd.f32 %v2600, %v2602
  %v2605 = vadd.f32 %v2601, %v2603
  %v2607 = vsel %vm857, %v2604, 0
  %v2610 = vsel %vm857, %v2605, 0
  %2612 = vmatpush.msra.mxu0 0.0
  %2613 = vmatpush.msra.mxu0 0.0
  %2614 = vmatpush.msra.mxu0 0.0
  %2615 = vmatpush.msra.mxu0 0.0
  %2616 = vmatpush.msra.mxu0 0.0
  %2617 = vmatpush.msra.mxu0 0.0
  %2618 = vmatpush.msra.mxu0 0.0
  %2619 = vmatpush.msra.mxu0 0.0
  %2620 = vmatpush.msra.mxu0 0.0
  %2621 = vmatpush.msra.mxu0 0.0
  %2622 = vmatpush.msra.mxu0 0.0
  %2623 = vmatpush.msra.mxu0 0.0
  %2624 = vmatpush.msra.mxu0 0.0
  %2625 = vmatpush.msra.mxu0 0.0
  %2626 = vmatpush.msra.mxu0 %v2239
  %2627 = vmatpush.msra.mxu0 %v2238
  %2628 = vmatmul.f32.gmra.mxu0 %v2607
  %v2629 = vpop.f32.mrf.mxu0
  %v2630 = vadd.f32 %v2248, %v2629
  %2631 = vmatmul.f32.gmra.mxu0 %v2610
  %v2632 = vpop.f32.mrf.mxu0
  %v2633 = vadd.f32 %v2248, %v2632
  %2634 = vdwg.mxu0
  %2635 = vmatpush.msra.mxu0 0.0
  %2636 = vmatpush.msra.mxu0 0.0
  %2637 = vmatpush.msra.mxu0 0.0
  %2638 = vmatpush.msra.mxu0 0.0
  %2639 = vmatpush.msra.mxu0 0.0
  %2640 = vmatpush.msra.mxu0 0.0
  %2641 = vmatpush.msra.mxu0 0.0
  %2642 = vmatpush.msra.mxu0 0.0
  %2643 = vmatpush.msra.mxu0 0.0
  %2644 = vmatpush.msra.mxu0 0.0
  %2645 = vmatpush.msra.mxu0 0.0
  %2646 = vmatpush.msra.mxu0 0.0
  %2647 = vmatpush.msra.mxu0 0.0
  %2648 = vmatpush.msra.mxu0 0.0
  %2649 = vmatpush.msra.mxu0 %v2241
  %2650 = vmatpush.msra.mxu0 %v2240
  %2651 = vmatmul.f32.gmra.mxu0 %v2607
  %v2652 = vpop.f32.mrf.mxu0
  %v2653 = vadd.f32 %v2277, %v2652
  %2654 = vmatmul.f32.gmra.mxu0 %v2610
  %v2655 = vpop.f32.mrf.mxu0
  %v2656 = vadd.f32 %v2277, %v2655
  %2657 = vdwg.mxu0
  %2658 = vmatpush.msra.mxu0 0.0
  %2659 = vmatpush.msra.mxu0 0.0
  %2660 = vmatpush.msra.mxu0 0.0
  %2661 = vmatpush.msra.mxu0 0.0
  %2662 = vmatpush.msra.mxu0 0.0
  %2663 = vmatpush.msra.mxu0 0.0
  %2664 = vmatpush.msra.mxu0 0.0
  %2665 = vmatpush.msra.mxu0 0.0
  %2666 = vmatpush.msra.mxu0 0.0
  %2667 = vmatpush.msra.mxu0 0.0
  %2668 = vmatpush.msra.mxu0 0.0
  %2669 = vmatpush.msra.mxu0 0.0
  %2670 = vmatpush.msra.mxu0 0.0
  %2671 = vmatpush.msra.mxu0 0.0
  %2672 = vmatpush.msra.mxu0 %v2243
  %2673 = vmatpush.msra.mxu0 %v2242
  %2674 = vmatmul.f32.gmra.mxu0 %v2607
  %v2675 = vpop.f32.mrf.mxu0
  %v2676 = vadd.f32 %v2303, %v2675
  %2677 = vmatmul.f32.gmra.mxu0 %v2610
  %v2678 = vpop.f32.mrf.mxu0
  %v2679 = vadd.f32 %v2303, %v2678
  %2680 = vdwg.mxu0
  %s2681 = scalar_lea.vmem [#allocation2], 32
  %v2682 = vld [vmem:[%s2681] sm:$0xff]
  %v2683 = vld [vmem:[%s2681 + $0x8] sm:$0xff]
  %v2684 = vadd.f32 %v2682, %v2630
  %v2685 = vadd.f32 %v2683, %v2633
  %v2686 = vxor.u32 %v2684, 2147483648
  %v2687 = vxor.u32 %v2685, 2147483648
  %v2688 = vmul.f32 %v2686, 1.442695
  %v2689 = vpow.pop %v2688
  %v2690 = vmul.f32 %v2687, 1.442695
  %v2691 = vpow.pop %v2690
  %v2692 = vadd.f32 %v2689, 1.0
  %v2693 = vadd.f32 %v2691, 1.0
  %v2694 = vrcp.pop %v2692
  %v2695 = vmul.f32 %v2692, %v2694
  %v2696 = vsub.f32 1.0, %v2695
  %v2697 = vmul.f32 %v2694, %v2696
  %v2698 = vadd.f32 %v2694, %v2697
  %vm2699 = vweird.f32 %v2692
  %vm2700 = vweird.f32 %v2694
  %vm2701 = vmor %vm2699, %vm2700
  %v2702 = vsel %vm2701, %v2694, %v2698
  %v2703 = vand.u32 2147483647, %v2692
  %vm2704 = vcmp.eq.f32.partialorder %v2703, 8.507059e+37
  %v2705 = vand.u32 %v2692, 2147483648
  %v2706 = vor.u32 1.1754944e-38, %v2705
  %v2707 = vsel %vm2704, %v2706, %v2702
  %v2708 = vmul.f32 1.0, %v2707
  %v2709 = vrcp.pop %v2693
  %v2710 = vmul.f32 %v2693, %v2709
  %v2711 = vsub.f32 1.0, %v2710
  %v2712 = vmul.f32 %v2709, %v2711
  %v2713 = vadd.f32 %v2709, %v2712
  %vm2714 = vweird.f32 %v2693
  %vm2715 = vweird.f32 %v2709
  %vm2716 = vmor %vm2714, %vm2715
  %v2717 = vsel %vm2716, %v2709, %v2713
  %v2718 = vand.u32 2147483647, %v2693
  %vm2719 = vcmp.eq.f32.partialorder %v2718, 8.507059e+37
  %v2720 = vand.u32 %v2693, 2147483648
  %v2721 = vor.u32 1.1754944e-38, %v2720
  %v2722 = vsel %vm2719, %v2721, %v2717
  %v2723 = vmul.f32 1.0, %v2722
  %s2724 = scalar_lea.vmem [#allocation3], 32
  %v2725 = vld [vmem:[%s2724] sm:$0xff]
  %v2726 = vld [vmem:[%s2724 + $0x8] sm:$0xff]
  %v2727 = vadd.f32 %v2725, %v2653
  %v2728 = vadd.f32 %v2726, %v2656
  %v2729 = vxor.u32 %v2727, 2147483648
  %v2730 = vxor.u32 %v2728, 2147483648
  %v2731 = vmul.f32 %v2729, 1.442695
  %v2732 = vpow.pop %v2731
  %v2733 = vmul.f32 %v2730, 1.442695
  %v2734 = vpow.pop %v2733
  %v2735 = vadd.f32 %v2732, 1.0
  %v2736 = vadd.f32 %v2734, 1.0
  %v2737 = vrcp.pop %v2735
  %v2738 = vmul.f32 %v2735, %v2737
  %v2739 = vsub.f32 1.0, %v2738
  %v2740 = vmul.f32 %v2737, %v2739
  %v2741 = vadd.f32 %v2737, %v2740
  %vm2742 = vweird.f32 %v2735
  %vm2743 = vweird.f32 %v2737
  %vm2744 = vmor %vm2742, %vm2743
  %v2745 = vsel %vm2744, %v2737, %v2741
  %v2746 = vand.u32 2147483647, %v2735
  %vm2747 = vcmp.eq.f32.partialorder %v2746, 8.507059e+37
  %v2748 = vand.u32 %v2735, 2147483648
  %v2749 = vor.u32 1.1754944e-38, %v2748
  %v2750 = vsel %vm2747, %v2749, %v2745
  %v2751 = vmul.f32 1.0, %v2750
  %v2752 = vrcp.pop %v2736
  %v2753 = vmul.f32 %v2736, %v2752
  %v2754 = vsub.f32 1.0, %v2753
  %v2755 = vmul.f32 %v2752, %v2754
  %v2756 = vadd.f32 %v2752, %v2755
  %vm2757 = vweird.f32 %v2736
  %vm2758 = vweird.f32 %v2752
  %vm2759 = vmor %vm2757, %vm2758
  %v2760 = vsel %vm2759, %v2752, %v2756
  %v2761 = vand.u32 2147483647, %v2736
  %vm2762 = vcmp.eq.f32.partialorder %v2761, 8.507059e+37
  %v2763 = vand.u32 %v2736, 2147483648
  %v2764 = vor.u32 1.1754944e-38, %v2763
  %v2765 = vsel %vm2762, %v2764, %v2760
  %v2766 = vmul.f32 1.0, %v2765
  %s2767 = scalar_lea.vmem [#allocation4], 32
  %v2768 = vld [vmem:[%s2767] sm:$0xff]
  %v2769 = vld [vmem:[%s2767 + $0x8] sm:$0xff]
  %v2770 = vmul.f32 %v2708, %v2676
  %v2771 = vmul.f32 %v2723, %v2679
  %v2772 = vadd.f32 %v2768, %v2770
  %v2773 = vadd.f32 %v2769, %v2771
  %v2774 = vtanh.pop %v2772
  %v2775 = vtanh.pop %v2773
  %v2776 = vsub.f32 1.0, %v2751
  %v2777 = vsub.f32 1.0, %v2766
  %v2778 = vmul.f32 %v2776, %v2774
  %v2779 = vmul.f32 %v2777, %v2775
  %v2780 = vmul.f32 %v2751, %v2604
  %v2781 = vmul.f32 %v2766, %v2605
  %v2782 = vadd.f32 %v2778, %v2780
  %v2783 = vadd.f32 %v2779, %v2781
  %v2785 = vsel %vm857, %v2782, 0
  %v2788 = vsel %vm857, %v2783, 0
  %2790 = vmatpush.msra.mxu0 0.0
  %2791 = vmatpush.msra.mxu0 0.0
  %2792 = vmatpush.msra.mxu0 0.0
  %2793 = vmatpush.msra.mxu0 0.0
  %2794 = vmatpush.msra.mxu0 0.0
  %2795 = vmatpush.msra.mxu0 0.0
  %2796 = vmatpush.msra.mxu0 0.0
  %2797 = vmatpush.msra.mxu0 0.0
  %2798 = vmatpush.msra.mxu0 0.0
  %2799 = vmatpush.msra.mxu0 0.0
  %2800 = vmatpush.msra.mxu0 0.0
  %2801 = vmatpush.msra.mxu0 0.0
  %2802 = vmatpush.msra.mxu0 0.0
  %2803 = vmatpush.msra.mxu0 0.0
  %2804 = vmatpush.msra.mxu0 %v2239
  %2805 = vmatpush.msra.mxu0 %v2238
  %2806 = vmatmul.f32.gmra.mxu0 %v2785
  %v2807 = vpop.f32.mrf.mxu0
  %v2808 = vadd.f32 %v2248, %v2807
  %2809 = vmatmul.f32.gmra.mxu0 %v2788
  %v2810 = vpop.f32.mrf.mxu0
  %v2811 = vadd.f32 %v2248, %v2810
  %2812 = vdwg.mxu0
  %2813 = vmatpush.msra.mxu0 0.0
  %2814 = vmatpush.msra.mxu0 0.0
  %2815 = vmatpush.msra.mxu0 0.0
  %2816 = vmatpush.msra.mxu0 0.0
  %2817 = vmatpush.msra.mxu0 0.0
  %2818 = vmatpush.msra.mxu0 0.0
  %2819 = vmatpush.msra.mxu0 0.0
  %2820 = vmatpush.msra.mxu0 0.0
  %2821 = vmatpush.msra.mxu0 0.0
  %2822 = vmatpush.msra.mxu0 0.0
  %2823 = vmatpush.msra.mxu0 0.0
  %2824 = vmatpush.msra.mxu0 0.0
  %2825 = vmatpush.msra.mxu0 0.0
  %2826 = vmatpush.msra.mxu0 0.0
  %2827 = vmatpush.msra.mxu0 %v2241
  %2828 = vmatpush.msra.mxu0 %v2240
  %2829 = vmatmul.f32.gmra.mxu0 %v2785
  %v2830 = vpop.f32.mrf.mxu0
  %v2831 = vadd.f32 %v2277, %v2830
  %2832 = vmatmul.f32.gmra.mxu0 %v2788
  %v2833 = vpop.f32.mrf.mxu0
  %v2834 = vadd.f32 %v2277, %v2833
  %2835 = vdwg.mxu0
  %2836 = vmatpush.msra.mxu0 0.0
  %2837 = vmatpush.msra.mxu0 0.0
  %2838 = vmatpush.msra.mxu0 0.0
  %2839 = vmatpush.msra.mxu0 0.0
  %2840 = vmatpush.msra.mxu0 0.0
  %2841 = vmatpush.msra.mxu0 0.0
  %2842 = vmatpush.msra.mxu0 0.0
  %2843 = vmatpush.msra.mxu0 0.0
  %2844 = vmatpush.msra.mxu0 0.0
  %2845 = vmatpush.msra.mxu0 0.0
  %2846 = vmatpush.msra.mxu0 0.0
  %2847 = vmatpush.msra.mxu0 0.0
  %2848 = vmatpush.msra.mxu0 0.0
  %2849 = vmatpush.msra.mxu0 0.0
  %2850 = vmatpush.msra.mxu0 %v2243
  %2851 = vmatpush.msra.mxu0 %v2242
  %2852 = vmatmul.f32.gmra.mxu0 %v2785
  %v2853 = vpop.f32.mrf.mxu0
  %v2854 = vadd.f32 %v2303, %v2853
  %2855 = vmatmul.f32.gmra.mxu0 %v2788
  %v2856 = vpop.f32.mrf.mxu0
  %v2857 = vadd.f32 %v2303, %v2856
  %2858 = vdwg.mxu0
  %s2859 = scalar_lea.vmem [#allocation2], 48
  %v2860 = vld [vmem:[%s2859] sm:$0xff]
  %v2861 = vld [vmem:[%s2859 + $0x8] sm:$0xff]
  %v2862 = vadd.f32 %v2860, %v2808
  %v2863 = vadd.f32 %v2861, %v2811
  %v2864 = vxor.u32 %v2862, 2147483648
  %v2865 = vxor.u32 %v2863, 2147483648
  %v2866 = vmul.f32 %v2864, 1.442695
  %v2867 = vpow.pop %v2866
  %v2868 = vmul.f32 %v2865, 1.442695
  %v2869 = vpow.pop %v2868
  %v2870 = vadd.f32 %v2867, 1.0
  %v2871 = vadd.f32 %v2869, 1.0
  %v2872 = vrcp.pop %v2870
  %v2873 = vmul.f32 %v2870, %v2872
  %v2874 = vsub.f32 1.0, %v2873
  %v2875 = vmul.f32 %v2872, %v2874
  %v2876 = vadd.f32 %v2872, %v2875
  %vm2877 = vweird.f32 %v2870
  %vm2878 = vweird.f32 %v2872
  %vm2879 = vmor %vm2877, %vm2878
  %v2880 = vsel %vm2879, %v2872, %v2876
  %v2881 = vand.u32 2147483647, %v2870
  %vm2882 = vcmp.eq.f32.partialorder %v2881, 8.507059e+37
  %v2883 = vand.u32 %v2870, 2147483648
  %v2884 = vor.u32 1.1754944e-38, %v2883
  %v2885 = vsel %vm2882, %v2884, %v2880
  %v2886 = vmul.f32 1.0, %v2885
  %v2887 = vrcp.pop %v2871
  %v2888 = vmul.f32 %v2871, %v2887
  %v2889 = vsub.f32 1.0, %v2888
  %v2890 = vmul.f32 %v2887, %v2889
  %v2891 = vadd.f32 %v2887, %v2890
  %vm2892 = vweird.f32 %v2871
  %vm2893 = vweird.f32 %v2887
  %vm2894 = vmor %vm2892, %vm2893
  %v2895 = vsel %vm2894, %v2887, %v2891
  %v2896 = vand.u32 2147483647, %v2871
  %vm2897 = vcmp.eq.f32.partialorder %v2896, 8.507059e+37
  %v2898 = vand.u32 %v2871, 2147483648
  %v2899 = vor.u32 1.1754944e-38, %v2898
  %v2900 = vsel %vm2897, %v2899, %v2895
  %v2901 = vmul.f32 1.0, %v2900
  %s2902 = scalar_lea.vmem [#allocation3], 48
  %v2903 = vld [vmem:[%s2902] sm:$0xff]
  %v2904 = vld [vmem:[%s2902 + $0x8] sm:$0xff]
  %v2905 = vadd.f32 %v2903, %v2831
  %v2906 = vadd.f32 %v2904, %v2834
  %v2907 = vxor.u32 %v2905, 2147483648
  %v2908 = vxor.u32 %v2906, 2147483648
  %v2909 = vmul.f32 %v2907, 1.442695
  %v2910 = vpow.pop %v2909
  %v2911 = vmul.f32 %v2908, 1.442695
  %v2912 = vpow.pop %v2911
  %v2913 = vadd.f32 %v2910, 1.0
  %v2914 = vadd.f32 %v2912, 1.0
  %v2915 = vrcp.pop %v2913
  %v2916 = vmul.f32 %v2913, %v2915
  %v2917 = vsub.f32 1.0, %v2916
  %v2918 = vmul.f32 %v2915, %v2917
  %v2919 = vadd.f32 %v2915, %v2918
  %vm2920 = vweird.f32 %v2913
  %vm2921 = vweird.f32 %v2915
  %vm2922 = vmor %vm2920, %vm2921
  %v2923 = vsel %vm2922, %v2915, %v2919
  %v2924 = vand.u32 2147483647, %v2913
  %vm2925 = vcmp.eq.f32.partialorder %v2924, 8.507059e+37
  %v2926 = vand.u32 %v2913, 2147483648
  %v2927 = vor.u32 1.1754944e-38, %v2926
  %v2928 = vsel %vm2925, %v2927, %v2923
  %v2929 = vmul.f32 1.0, %v2928
  %v2930 = vrcp.pop %v2914
  %v2931 = vmul.f32 %v2914, %v2930
  %v2932 = vsub.f32 1.0, %v2931
  %v2933 = vmul.f32 %v2930, %v2932
  %v2934 = vadd.f32 %v2930, %v2933
  %vm2935 = vweird.f32 %v2914
  %vm2936 = vweird.f32 %v2930
  %vm2937 = vmor %vm2935, %vm2936
  %v2938 = vsel %vm2937, %v2930, %v2934
  %v2939 = vand.u32 2147483647, %v2914
  %vm2940 = vcmp.eq.f32.partialorder %v2939, 8.507059e+37
  %v2941 = vand.u32 %v2914, 2147483648
  %v2942 = vor.u32 1.1754944e-38, %v2941
  %v2943 = vsel %vm2940, %v2942, %v2938
  %v2944 = vmul.f32 1.0, %v2943
  %s2945 = scalar_lea.vmem [#allocation4], 48
  %v2946 = vld [vmem:[%s2945] sm:$0xff]
  %v2947 = vld [vmem:[%s2945 + $0x8] sm:$0xff]
  %v2948 = vmul.f32 %v2886, %v2854
  %v2949 = vmul.f32 %v2901, %v2857
  %v2950 = vadd.f32 %v2946, %v2948
  %v2951 = vadd.f32 %v2947, %v2949
  %v2952 = vtanh.pop %v2950
  %v2953 = vtanh.pop %v2951
  %v2954 = vsub.f32 1.0, %v2929
  %v2955 = vsub.f32 1.0, %v2944
  %v2956 = vmul.f32 %v2954, %v2952
  %v2957 = vmul.f32 %v2955, %v2953
  %v2958 = vmul.f32 %v2929, %v2782
  %v2959 = vmul.f32 %v2944, %v2783
  %v2960 = vadd.f32 %v2956, %v2958
  %v2961 = vadd.f32 %v2957, %v2959
  %v2963 = vsel %vm857, %v2960, 0
  %v2966 = vsel %vm857, %v2961, 0
  %2968 = vmatpush.msra.mxu0 0.0
  %2969 = vmatpush.msra.mxu0 0.0
  %2970 = vmatpush.msra.mxu0 0.0
  %2971 = vmatpush.msra.mxu0 0.0
  %2972 = vmatpush.msra.mxu0 0.0
  %2973 = vmatpush.msra.mxu0 0.0
  %2974 = vmatpush.msra.mxu0 0.0
  %2975 = vmatpush.msra.mxu0 0.0
  %2976 = vmatpush.msra.mxu0 0.0
  %2977 = vmatpush.msra.mxu0 0.0
  %2978 = vmatpush.msra.mxu0 0.0
  %2979 = vmatpush.msra.mxu0 0.0
  %2980 = vmatpush.msra.mxu0 0.0
  %2981 = vmatpush.msra.mxu0 0.0
  %2982 = vmatpush.msra.mxu0 %v2239
  %2983 = vmatpush.msra.mxu0 %v2238
  %2984 = vmatmul.f32.gmra.mxu0 %v2963
  %v2985 = vpop.f32.mrf.mxu0
  %v2986 = vadd.f32 %v2248, %v2985
  %2987 = vmatmul.f32.gmra.mxu0 %v2966
  %v2988 = vpop.f32.mrf.mxu0
  %v2989 = vadd.f32 %v2248, %v2988
  %2990 = vdwg.mxu0
  %2991 = vmatpush.msra.mxu0 0.0
  %2992 = vmatpush.msra.mxu0 0.0
  %2993 = vmatpush.msra.mxu0 0.0
  %2994 = vmatpush.msra.mxu0 0.0
  %2995 = vmatpush.msra.mxu0 0.0
  %2996 = vmatpush.msra.mxu0 0.0
  %2997 = vmatpush.msra.mxu0 0.0
  %2998 = vmatpush.msra.mxu0 0.0
  %2999 = vmatpush.msra.mxu0 0.0
  %3000 = vmatpush.msra.mxu0 0.0
  %3001 = vmatpush.msra.mxu0 0.0
  %3002 = vmatpush.msra.mxu0 0.0
  %3003 = vmatpush.msra.mxu0 0.0
  %3004 = vmatpush.msra.mxu0 0.0
  %3005 = vmatpush.msra.mxu0 %v2241
  %3006 = vmatpush.msra.mxu0 %v2240
  %3007 = vmatmul.f32.gmra.mxu0 %v2963
  %v3008 = vpop.f32.mrf.mxu0
  %v3009 = vadd.f32 %v2277, %v3008
  %3010 = vmatmul.f32.gmra.mxu0 %v2966
  %v3011 = vpop.f32.mrf.mxu0
  %v3012 = vadd.f32 %v2277, %v3011
  %3013 = vdwg.mxu0
  %3014 = vmatpush.msra.mxu0 0.0
  %3015 = vmatpush.msra.mxu0 0.0
  %3016 = vmatpush.msra.mxu0 0.0
  %3017 = vmatpush.msra.mxu0 0.0
  %3018 = vmatpush.msra.mxu0 0.0
  %3019 = vmatpush.msra.mxu0 0.0
  %3020 = vmatpush.msra.mxu0 0.0
  %3021 = vmatpush.msra.mxu0 0.0
  %3022 = vmatpush.msra.mxu0 0.0
  %3023 = vmatpush.msra.mxu0 0.0
  %3024 = vmatpush.msra.mxu0 0.0
  %3025 = vmatpush.msra.mxu0 0.0
  %3026 = vmatpush.msra.mxu0 0.0
  %3027 = vmatpush.msra.mxu0 0.0
  %3028 = vmatpush.msra.mxu0 %v2243
  %3029 = vmatpush.msra.mxu0 %v2242
  %3030 = vmatmul.f32.gmra.mxu0 %v2963
  %v3031 = vpop.f32.mrf.mxu0
  %v3032 = vadd.f32 %v2303, %v3031
  %3033 = vmatmul.f32.gmra.mxu0 %v2966
  %v3034 = vpop.f32.mrf.mxu0
  %v3035 = vadd.f32 %v2303, %v3034
  %3036 = vdwg.mxu0
  %s3037 = scalar_lea.vmem [#allocation2], 64
  %v3038 = vld [vmem:[%s3037] sm:$0xff]
  %v3039 = vld [vmem:[%s3037 + $0x8] sm:$0xff]
  %v3040 = vadd.f32 %v3038, %v2986
  %v3041 = vadd.f32 %v3039, %v2989
  %v3042 = vxor.u32 %v3040, 2147483648
  %v3043 = vxor.u32 %v3041, 2147483648
  %v3044 = vmul.f32 %v3042, 1.442695
  %v3045 = vpow.pop %v3044
  %v3046 = vmul.f32 %v3043, 1.442695
  %v3047 = vpow.pop %v3046
  %v3048 = vadd.f32 %v3045, 1.0
  %v3049 = vadd.f32 %v3047, 1.0
  %v3050 = vrcp.pop %v3048
  %v3051 = vmul.f32 %v3048, %v3050
  %v3052 = vsub.f32 1.0, %v3051
  %v3053 = vmul.f32 %v3050, %v3052
  %v3054 = vadd.f32 %v3050, %v3053
  %vm3055 = vweird.f32 %v3048
  %vm3056 = vweird.f32 %v3050
  %vm3057 = vmor %vm3055, %vm3056
  %v3058 = vsel %vm3057, %v3050, %v3054
  %v3059 = vand.u32 2147483647, %v3048
  %vm3060 = vcmp.eq.f32.partialorder %v3059, 8.507059e+37
  %v3061 = vand.u32 %v3048, 2147483648
  %v3062 = vor.u32 1.1754944e-38, %v3061
  %v3063 = vsel %vm3060, %v3062, %v3058
  %v3064 = vmul.f32 1.0, %v3063
  %v3065 = vrcp.pop %v3049
  %v3066 = vmul.f32 %v3049, %v3065
  %v3067 = vsub.f32 1.0, %v3066
  %v3068 = vmul.f32 %v3065, %v3067
  %v3069 = vadd.f32 %v3065, %v3068
  %vm3070 = vweird.f32 %v3049
  %vm3071 = vweird.f32 %v3065
  %vm3072 = vmor %vm3070, %vm3071
  %v3073 = vsel %vm3072, %v3065, %v3069
  %v3074 = vand.u32 2147483647, %v3049
  %vm3075 = vcmp.eq.f32.partialorder %v3074, 8.507059e+37
  %v3076 = vand.u32 %v3049, 2147483648
  %v3077 = vor.u32 1.1754944e-38, %v3076
  %v3078 = vsel %vm3075, %v3077, %v3073
  %v3079 = vmul.f32 1.0, %v3078
  %s3080 = scalar_lea.vmem [#allocation3], 64
  %v3081 = vld [vmem:[%s3080] sm:$0xff]
  %v3082 = vld [vmem:[%s3080 + $0x8] sm:$0xff]
  %v3083 = vadd.f32 %v3081, %v3009
  %v3084 = vadd.f32 %v3082, %v3012
  %v3085 = vxor.u32 %v3083, 2147483648
  %v3086 = vxor.u32 %v3084, 2147483648
  %v3087 = vmul.f32 %v3085, 1.442695
  %v3088 = vpow.pop %v3087
  %v3089 = vmul.f32 %v3086, 1.442695
  %v3090 = vpow.pop %v3089
  %v3091 = vadd.f32 %v3088, 1.0
  %v3092 = vadd.f32 %v3090, 1.0
  %v3093 = vrcp.pop %v3091
  %v3094 = vmul.f32 %v3091, %v3093
  %v3095 = vsub.f32 1.0, %v3094
  %v3096 = vmul.f32 %v3093, %v3095
  %v3097 = vadd.f32 %v3093, %v3096
  %vm3098 = vweird.f32 %v3091
  %vm3099 = vweird.f32 %v3093
  %vm3100 = vmor %vm3098, %vm3099
  %v3101 = vsel %vm3100, %v3093, %v3097
  %v3102 = vand.u32 2147483647, %v3091
  %vm3103 = vcmp.eq.f32.partialorder %v3102, 8.507059e+37
  %v3104 = vand.u32 %v3091, 2147483648
  %v3105 = vor.u32 1.1754944e-38, %v3104
  %v3106 = vsel %vm3103, %v3105, %v3101
  %v3107 = vmul.f32 1.0, %v3106
  %v3108 = vrcp.pop %v3092
  %v3109 = vmul.f32 %v3092, %v3108
  %v3110 = vsub.f32 1.0, %v3109
  %v3111 = vmul.f32 %v3108, %v3110
  %v3112 = vadd.f32 %v3108, %v3111
  %vm3113 = vweird.f32 %v3092
  %vm3114 = vweird.f32 %v3108
  %vm3115 = vmor %vm3113, %vm3114
  %v3116 = vsel %vm3115, %v3108, %v3112
  %v3117 = vand.u32 2147483647, %v3092
  %vm3118 = vcmp.eq.f32.partialorder %v3117, 8.507059e+37
  %v3119 = vand.u32 %v3092, 2147483648
  %v3120 = vor.u32 1.1754944e-38, %v3119
  %v3121 = vsel %vm3118, %v3120, %v3116
  %v3122 = vmul.f32 1.0, %v3121
  %s3123 = scalar_lea.vmem [#allocation4], 64
  %v3124 = vld [vmem:[%s3123] sm:$0xff]
  %v3125 = vld [vmem:[%s3123 + $0x8] sm:$0xff]
  %v3126 = vmul.f32 %v3064, %v3032
  %v3127 = vmul.f32 %v3079, %v3035
  %v3128 = vadd.f32 %v3124, %v3126
  %v3129 = vadd.f32 %v3125, %v3127
  %v3130 = vtanh.pop %v3128
  %v3131 = vtanh.pop %v3129
  %v3132 = vsub.f32 1.0, %v3107
  %v3133 = vsub.f32 1.0, %v3122
  %v3134 = vmul.f32 %v3132, %v3130
  %v3135 = vmul.f32 %v3133, %v3131
  %v3136 = vmul.f32 %v3107, %v2960
  %v3137 = vmul.f32 %v3122, %v2961
  %v3138 = vadd.f32 %v3134, %v3136
  %v3139 = vadd.f32 %v3135, %v3137
  %v3141 = vsel %vm857, %v3138, 0
  %v3144 = vsel %vm857, %v3139, 0
  %3146 = vmatpush.msra.mxu0 0.0
  %3147 = vmatpush.msra.mxu0 0.0
  %3148 = vmatpush.msra.mxu0 0.0
  %3149 = vmatpush.msra.mxu0 0.0
  %3150 = vmatpush.msra.mxu0 0.0
  %3151 = vmatpush.msra.mxu0 0.0
  %3152 = vmatpush.msra.mxu0 0.0
  %3153 = vmatpush.msra.mxu0 0.0
  %3154 = vmatpush.msra.mxu0 0.0
  %3155 = vmatpush.msra.mxu0 0.0
  %3156 = vmatpush.msra.mxu0 0.0
  %3157 = vmatpush.msra.mxu0 0.0
  %3158 = vmatpush.msra.mxu0 0.0
  %3159 = vmatpush.msra.mxu0 0.0
  %3160 = vmatpush.msra.mxu0 %v2239
  %3161 = vmatpush.msra.mxu0 %v2238
  %3162 = vmatmul.f32.gmra.mxu0 %v3141
  %v3163 = vpop.f32.mrf.mxu0
  %v3164 = vadd.f32 %v2248, %v3163
  %3165 = vmatmul.f32.gmra.mxu0 %v3144
  %v3166 = vpop.f32.mrf.mxu0
  %v3167 = vadd.f32 %v2248, %v3166
  %3168 = vdwg.mxu0
  %3169 = vmatpush.msra.mxu0 0.0
  %3170 = vmatpush.msra.mxu0 0.0
  %3171 = vmatpush.msra.mxu0 0.0
  %3172 = vmatpush.msra.mxu0 0.0
  %3173 = vmatpush.msra.mxu0 0.0
  %3174 = vmatpush.msra.mxu0 0.0
  %3175 = vmatpush.msra.mxu0 0.0
  %3176 = vmatpush.msra.mxu0 0.0
  %3177 = vmatpush.msra.mxu0 0.0
  %3178 = vmatpush.msra.mxu0 0.0
  %3179 = vmatpush.msra.mxu0 0.0
  %3180 = vmatpush.msra.mxu0 0.0
  %3181 = vmatpush.msra.mxu0 0.0
  %3182 = vmatpush.msra.mxu0 0.0
  %3183 = vmatpush.msra.mxu0 %v2241
  %3184 = vmatpush.msra.mxu0 %v2240
  %3185 = vmatmul.f32.gmra.mxu0 %v3141
  %v3186 = vpop.f32.mrf.mxu0
  %v3187 = vadd.f32 %v2277, %v3186
  %3188 = vmatmul.f32.gmra.mxu0 %v3144
  %v3189 = vpop.f32.mrf.mxu0
  %v3190 = vadd.f32 %v2277, %v3189
  %3191 = vdwg.mxu0
  %3192 = vmatpush.msra.mxu0 0.0
  %3193 = vmatpush.msra.mxu0 0.0
  %3194 = vmatpush.msra.mxu0 0.0
  %3195 = vmatpush.msra.mxu0 0.0
  %3196 = vmatpush.msra.mxu0 0.0
  %3197 = vmatpush.msra.mxu0 0.0
  %3198 = vmatpush.msra.mxu0 0.0
  %3199 = vmatpush.msra.mxu0 0.0
  %3200 = vmatpush.msra.mxu0 0.0
  %3201 = vmatpush.msra.mxu0 0.0
  %3202 = vmatpush.msra.mxu0 0.0
  %3203 = vmatpush.msra.mxu0 0.0
  %3204 = vmatpush.msra.mxu0 0.0
  %3205 = vmatpush.msra.mxu0 0.0
  %3206 = vmatpush.msra.mxu0 %v2243
  %3207 = vmatpush.msra.mxu0 %v2242
  %3208 = vmatmul.f32.gmra.mxu0 %v3141
  %v3209 = vpop.f32.mrf.mxu0
  %v3210 = vadd.f32 %v2303, %v3209
  %3211 = vmatmul.f32.gmra.mxu0 %v3144
  %v3212 = vpop.f32.mrf.mxu0
  %v3213 = vadd.f32 %v2303, %v3212
  %3214 = vdwg.mxu0
  %s3215 = scalar_lea.vmem [#allocation2], 80
  %v3216 = vld [vmem:[%s3215] sm:$0xff]
  %v3217 = vld [vmem:[%s3215 + $0x8] sm:$0xff]
  %v3218 = vadd.f32 %v3216, %v3164
  %v3219 = vadd.f32 %v3217, %v3167
  %v3220 = vxor.u32 %v3218, 2147483648
  %v3221 = vxor.u32 %v3219, 2147483648
  %v3222 = vmul.f32 %v3220, 1.442695
  %v3223 = vpow.pop %v3222
  %v3224 = vmul.f32 %v3221, 1.442695
  %v3225 = vpow.pop %v3224
  %v3226 = vadd.f32 %v3223, 1.0
  %v3227 = vadd.f32 %v3225, 1.0
  %v3228 = vrcp.pop %v3226
  %v3229 = vmul.f32 %v3226, %v3228
  %v3230 = vsub.f32 1.0, %v3229
  %v3231 = vmul.f32 %v3228, %v3230
  %v3232 = vadd.f32 %v3228, %v3231
  %vm3233 = vweird.f32 %v3226
  %vm3234 = vweird.f32 %v3228
  %vm3235 = vmor %vm3233, %vm3234
  %v3236 = vsel %vm3235, %v3228, %v3232
  %v3237 = vand.u32 2147483647, %v3226
  %vm3238 = vcmp.eq.f32.partialorder %v3237, 8.507059e+37
  %v3239 = vand.u32 %v3226, 2147483648
  %v3240 = vor.u32 1.1754944e-38, %v3239
  %v3241 = vsel %vm3238, %v3240, %v3236
  %v3242 = vmul.f32 1.0, %v3241
  %v3243 = vrcp.pop %v3227
  %v3244 = vmul.f32 %v3227, %v3243
  %v3245 = vsub.f32 1.0, %v3244
  %v3246 = vmul.f32 %v3243, %v3245
  %v3247 = vadd.f32 %v3243, %v3246
  %vm3248 = vweird.f32 %v3227
  %vm3249 = vweird.f32 %v3243
  %vm3250 = vmor %vm3248, %vm3249
  %v3251 = vsel %vm3250, %v3243, %v3247
  %v3252 = vand.u32 2147483647, %v3227
  %vm3253 = vcmp.eq.f32.partialorder %v3252, 8.507059e+37
  %v3254 = vand.u32 %v3227, 2147483648
  %v3255 = vor.u32 1.1754944e-38, %v3254
  %v3256 = vsel %vm3253, %v3255, %v3251
  %v3257 = vmul.f32 1.0, %v3256
  %s3258 = scalar_lea.vmem [#allocation3], 80
  %v3259 = vld [vmem:[%s3258] sm:$0xff]
  %v3260 = vld [vmem:[%s3258 + $0x8] sm:$0xff]
  %v3261 = vadd.f32 %v3259, %v3187
  %v3262 = vadd.f32 %v3260, %v3190
  %v3263 = vxor.u32 %v3261, 2147483648
  %v3264 = vxor.u32 %v3262, 2147483648
  %v3265 = vmul.f32 %v3263, 1.442695
  %v3266 = vpow.pop %v3265
  %v3267 = vmul.f32 %v3264, 1.442695
  %v3268 = vpow.pop %v3267
  %v3269 = vadd.f32 %v3266, 1.0
  %v3270 = vadd.f32 %v3268, 1.0
  %v3271 = vrcp.pop %v3269
  %v3272 = vmul.f32 %v3269, %v3271
  %v3273 = vsub.f32 1.0, %v3272
  %v3274 = vmul.f32 %v3271, %v3273
  %v3275 = vadd.f32 %v3271, %v3274
  %vm3276 = vweird.f32 %v3269
  %vm3277 = vweird.f32 %v3271
  %vm3278 = vmor %vm3276, %vm3277
  %v3279 = vsel %vm3278, %v3271, %v3275
  %v3280 = vand.u32 2147483647, %v3269
  %vm3281 = vcmp.eq.f32.partialorder %v3280, 8.507059e+37
  %v3282 = vand.u32 %v3269, 2147483648
  %v3283 = vor.u32 1.1754944e-38, %v3282
  %v3284 = vsel %vm3281, %v3283, %v3279
  %v3285 = vmul.f32 1.0, %v3284
  %v3286 = vrcp.pop %v3270
  %v3287 = vmul.f32 %v3270, %v3286
  %v3288 = vsub.f32 1.0, %v3287
  %v3289 = vmul.f32 %v3286, %v3288
  %v3290 = vadd.f32 %v3286, %v3289
  %vm3291 = vweird.f32 %v3270
  %vm3292 = vweird.f32 %v3286
  %vm3293 = vmor %vm3291, %vm3292
  %v3294 = vsel %vm3293, %v3286, %v3290
  %v3295 = vand.u32 2147483647, %v3270
  %vm3296 = vcmp.eq.f32.partialorder %v3295, 8.507059e+37
  %v3297 = vand.u32 %v3270, 2147483648
  %v3298 = vor.u32 1.1754944e-38, %v3297
  %v3299 = vsel %vm3296, %v3298, %v3294
  %v3300 = vmul.f32 1.0, %v3299
  %s3301 = scalar_lea.vmem [#allocation4], 80
  %v3302 = vld [vmem:[%s3301] sm:$0xff]
  %v3303 = vld [vmem:[%s3301 + $0x8] sm:$0xff]
  %v3304 = vmul.f32 %v3242, %v3210
  %v3305 = vmul.f32 %v3257, %v3213
  %v3306 = vadd.f32 %v3302, %v3304
  %v3307 = vadd.f32 %v3303, %v3305
  %v3308 = vtanh.pop %v3306
  %v3309 = vtanh.pop %v3307
  %v3310 = vsub.f32 1.0, %v3285
  %v3311 = vsub.f32 1.0, %v3300
  %v3312 = vmul.f32 %v3310, %v3308
  %v3313 = vmul.f32 %v3311, %v3309
  %v3314 = vmul.f32 %v3285, %v3138
  %v3315 = vmul.f32 %v3300, %v3139
  %v3316 = vadd.f32 %v3312, %v3314
  %v3317 = vadd.f32 %v3313, %v3315
  %v3319 = vsel %vm857, %v3316, 0
  %v3322 = vsel %vm857, %v3317, 0
  %3324 = vmatpush.msra.mxu0 0.0
  %3325 = vmatpush.msra.mxu0 0.0
  %3326 = vmatpush.msra.mxu0 0.0
  %3327 = vmatpush.msra.mxu0 0.0
  %3328 = vmatpush.msra.mxu0 0.0
  %3329 = vmatpush.msra.mxu0 0.0
  %3330 = vmatpush.msra.mxu0 0.0
  %3331 = vmatpush.msra.mxu0 0.0
  %3332 = vmatpush.msra.mxu0 0.0
  %3333 = vmatpush.msra.mxu0 0.0
  %3334 = vmatpush.msra.mxu0 0.0
  %3335 = vmatpush.msra.mxu0 0.0
  %3336 = vmatpush.msra.mxu0 0.0
  %3337 = vmatpush.msra.mxu0 0.0
  %3338 = vmatpush.msra.mxu0 %v2239
  %3339 = vmatpush.msra.mxu0 %v2238
  %3340 = vmatmul.f32.gmra.mxu0 %v3319
  %v3341 = vpop.f32.mrf.mxu0
  %v3342 = vadd.f32 %v2248, %v3341
  %3343 = vmatmul.f32.gmra.mxu0 %v3322
  %v3344 = vpop.f32.mrf.mxu0
  %v3345 = vadd.f32 %v2248, %v3344
  %3346 = vdwg.mxu0
  %3347 = vmatpush.msra.mxu0 0.0
  %3348 = vmatpush.msra.mxu0 0.0
  %3349 = vmatpush.msra.mxu0 0.0
  %3350 = vmatpush.msra.mxu0 0.0
  %3351 = vmatpush.msra.mxu0 0.0
  %3352 = vmatpush.msra.mxu0 0.0
  %3353 = vmatpush.msra.mxu0 0.0
  %3354 = vmatpush.msra.mxu0 0.0
  %3355 = vmatpush.msra.mxu0 0.0
  %3356 = vmatpush.msra.mxu0 0.0
  %3357 = vmatpush.msra.mxu0 0.0
  %3358 = vmatpush.msra.mxu0 0.0
  %3359 = vmatpush.msra.mxu0 0.0
  %3360 = vmatpush.msra.mxu0 0.0
  %3361 = vmatpush.msra.mxu0 %v2241
  %3362 = vmatpush.msra.mxu0 %v2240
  %3363 = vmatmul.f32.gmra.mxu0 %v3319
  %v3364 = vpop.f32.mrf.mxu0
  %v3365 = vadd.f32 %v2277, %v3364
  %3366 = vmatmul.f32.gmra.mxu0 %v3322
  %v3367 = vpop.f32.mrf.mxu0
  %v3368 = vadd.f32 %v2277, %v3367
  %3369 = vdwg.mxu0
  %3370 = vmatpush.msra.mxu0 0.0
  %3371 = vmatpush.msra.mxu0 0.0
  %3372 = vmatpush.msra.mxu0 0.0
  %3373 = vmatpush.msra.mxu0 0.0
  %3374 = vmatpush.msra.mxu0 0.0
  %3375 = vmatpush.msra.mxu0 0.0
  %3376 = vmatpush.msra.mxu0 0.0
  %3377 = vmatpush.msra.mxu0 0.0
  %3378 = vmatpush.msra.mxu0 0.0
  %3379 = vmatpush.msra.mxu0 0.0
  %3380 = vmatpush.msra.mxu0 0.0
  %3381 = vmatpush.msra.mxu0 0.0
  %3382 = vmatpush.msra.mxu0 0.0
  %3383 = vmatpush.msra.mxu0 0.0
  %3384 = vmatpush.msra.mxu0 %v2243
  %3385 = vmatpush.msra.mxu0 %v2242
  %3386 = vmatmul.f32.gmra.mxu0 %v3319
  %v3387 = vpop.f32.mrf.mxu0
  %v3388 = vadd.f32 %v2303, %v3387
  %3389 = vmatmul.f32.gmra.mxu0 %v3322
  %v3390 = vpop.f32.mrf.mxu0
  %v3391 = vadd.f32 %v2303, %v3390
  %3392 = vdwg.mxu0
  %s3393 = scalar_lea.vmem [#allocation2], 96
  %v3394 = vld [vmem:[%s3393] sm:$0xff]
  %v3395 = vld [vmem:[%s3393 + $0x8] sm:$0xff]
  %v3396 = vadd.f32 %v3394, %v3342
  %v3397 = vadd.f32 %v3395, %v3345
  %v3398 = vxor.u32 %v3396, 2147483648
  %v3399 = vxor.u32 %v3397, 2147483648
  %v3400 = vmul.f32 %v3398, 1.442695
  %v3401 = vpow.pop %v3400
  %v3402 = vmul.f32 %v3399, 1.442695
  %v3403 = vpow.pop %v3402
  %v3404 = vadd.f32 %v3401, 1.0
  %v3405 = vadd.f32 %v3403, 1.0
  %v3406 = vrcp.pop %v3404
  %v3407 = vmul.f32 %v3404, %v3406
  %v3408 = vsub.f32 1.0, %v3407
  %v3409 = vmul.f32 %v3406, %v3408
  %v3410 = vadd.f32 %v3406, %v3409
  %vm3411 = vweird.f32 %v3404
  %vm3412 = vweird.f32 %v3406
  %vm3413 = vmor %vm3411, %vm3412
  %v3414 = vsel %vm3413, %v3406, %v3410
  %v3415 = vand.u32 2147483647, %v3404
  %vm3416 = vcmp.eq.f32.partialorder %v3415, 8.507059e+37
  %v3417 = vand.u32 %v3404, 2147483648
  %v3418 = vor.u32 1.1754944e-38, %v3417
  %v3419 = vsel %vm3416, %v3418, %v3414
  %v3420 = vmul.f32 1.0, %v3419
  %v3421 = vrcp.pop %v3405
  %v3422 = vmul.f32 %v3405, %v3421
  %v3423 = vsub.f32 1.0, %v3422
  %v3424 = vmul.f32 %v3421, %v3423
  %v3425 = vadd.f32 %v3421, %v3424
  %vm3426 = vweird.f32 %v3405
  %vm3427 = vweird.f32 %v3421
  %vm3428 = vmor %vm3426, %vm3427
  %v3429 = vsel %vm3428, %v3421, %v3425
  %v3430 = vand.u32 2147483647, %v3405
  %vm3431 = vcmp.eq.f32.partialorder %v3430, 8.507059e+37
  %v3432 = vand.u32 %v3405, 2147483648
  %v3433 = vor.u32 1.1754944e-38, %v3432
  %v3434 = vsel %vm3431, %v3433, %v3429
  %v3435 = vmul.f32 1.0, %v3434
  %s3436 = scalar_lea.vmem [#allocation3], 96
  %v3437 = vld [vmem:[%s3436] sm:$0xff]
  %v3438 = vld [vmem:[%s3436 + $0x8] sm:$0xff]
  %v3439 = vadd.f32 %v3437, %v3365
  %v3440 = vadd.f32 %v3438, %v3368
  %v3441 = vxor.u32 %v3439, 2147483648
  %v3442 = vxor.u32 %v3440, 2147483648
  %v3443 = vmul.f32 %v3441, 1.442695
  %v3444 = vpow.pop %v3443
  %v3445 = vmul.f32 %v3442, 1.442695
  %v3446 = vpow.pop %v3445
  %v3447 = vadd.f32 %v3444, 1.0
  %v3448 = vadd.f32 %v3446, 1.0
  %v3449 = vrcp.pop %v3447
  %v3450 = vmul.f32 %v3447, %v3449
  %v3451 = vsub.f32 1.0, %v3450
  %v3452 = vmul.f32 %v3449, %v3451
  %v3453 = vadd.f32 %v3449, %v3452
  %vm3454 = vweird.f32 %v3447
  %vm3455 = vweird.f32 %v3449
  %vm3456 = vmor %vm3454, %vm3455
  %v3457 = vsel %vm3456, %v3449, %v3453
  %v3458 = vand.u32 2147483647, %v3447
  %vm3459 = vcmp.eq.f32.partialorder %v3458, 8.507059e+37
  %v3460 = vand.u32 %v3447, 2147483648
  %v3461 = vor.u32 1.1754944e-38, %v3460
  %v3462 = vsel %vm3459, %v3461, %v3457
  %v3463 = vmul.f32 1.0, %v3462
  %v3464 = vrcp.pop %v3448
  %v3465 = vmul.f32 %v3448, %v3464
  %v3466 = vsub.f32 1.0, %v3465
  %v3467 = vmul.f32 %v3464, %v3466
  %v3468 = vadd.f32 %v3464, %v3467
  %vm3469 = vweird.f32 %v3448
  %vm3470 = vweird.f32 %v3464
  %vm3471 = vmor %vm3469, %vm3470
  %v3472 = vsel %vm3471, %v3464, %v3468
  %v3473 = vand.u32 2147483647, %v3448
  %vm3474 = vcmp.eq.f32.partialorder %v3473, 8.507059e+37
  %v3475 = vand.u32 %v3448, 2147483648
  %v3476 = vor.u32 1.1754944e-38, %v3475
  %v3477 = vsel %vm3474, %v3476, %v3472
  %v3478 = vmul.f32 1.0, %v3477
  %s3479 = scalar_lea.vmem [#allocation4], 96
  %v3480 = vld [vmem:[%s3479] sm:$0xff]
  %v3481 = vld [vmem:[%s3479 + $0x8] sm:$0xff]
  %v3482 = vmul.f32 %v3420, %v3388
  %v3483 = vmul.f32 %v3435, %v3391
  %v3484 = vadd.f32 %v3480, %v3482
  %v3485 = vadd.f32 %v3481, %v3483
  %v3486 = vtanh.pop %v3484
  %v3487 = vtanh.pop %v3485
  %v3488 = vsub.f32 1.0, %v3463
  %v3489 = vsub.f32 1.0, %v3478
  %v3490 = vmul.f32 %v3488, %v3486
  %v3491 = vmul.f32 %v3489, %v3487
  %v3492 = vmul.f32 %v3463, %v3316
  %v3493 = vmul.f32 %v3478, %v3317
  %v3494 = vadd.f32 %v3490, %v3492
  %v3495 = vadd.f32 %v3491, %v3493
  %v3497 = vsel %vm857, %v3494, 0
  %v3500 = vsel %vm857, %v3495, 0
  %3502 = vmatpush.msra.mxu0 0.0
  %3503 = vmatpush.msra.mxu0 0.0
  %3504 = vmatpush.msra.mxu0 0.0
  %3505 = vmatpush.msra.mxu0 0.0
  %3506 = vmatpush.msra.mxu0 0.0
  %3507 = vmatpush.msra.mxu0 0.0
  %3508 = vmatpush.msra.mxu0 0.0
  %3509 = vmatpush.msra.mxu0 0.0
  %3510 = vmatpush.msra.mxu0 0.0
  %3511 = vmatpush.msra.mxu0 0.0
  %3512 = vmatpush.msra.mxu0 0.0
  %3513 = vmatpush.msra.mxu0 0.0
  %3514 = vmatpush.msra.mxu0 0.0
  %3515 = vmatpush.msra.mxu0 0.0
  %3516 = vmatpush.msra.mxu0 %v2239
  %3517 = vmatpush.msra.mxu0 %v2238
  %3518 = vmatmul.f32.gmra.mxu0 %v3497
  %v3519 = vpop.f32.mrf.mxu0
  %v3520 = vadd.f32 %v2248, %v3519
  %3521 = vmatmul.f32.gmra.mxu0 %v3500
  %v3522 = vpop.f32.mrf.mxu0
  %v3523 = vadd.f32 %v2248, %v3522
  %3524 = vdwg.mxu0
  %3525 = vmatpush.msra.mxu0 0.0
  %3526 = vmatpush.msra.mxu0 0.0
  %3527 = vmatpush.msra.mxu0 0.0
  %3528 = vmatpush.msra.mxu0 0.0
  %3529 = vmatpush.msra.mxu0 0.0
  %3530 = vmatpush.msra.mxu0 0.0
  %3531 = vmatpush.msra.mxu0 0.0
  %3532 = vmatpush.msra.mxu0 0.0
  %3533 = vmatpush.msra.mxu0 0.0
  %3534 = vmatpush.msra.mxu0 0.0
  %3535 = vmatpush.msra.mxu0 0.0
  %3536 = vmatpush.msra.mxu0 0.0
  %3537 = vmatpush.msra.mxu0 0.0
  %3538 = vmatpush.msra.mxu0 0.0
  %3539 = vmatpush.msra.mxu0 %v2241
  %3540 = vmatpush.msra.mxu0 %v2240
  %3541 = vmatmul.f32.gmra.mxu0 %v3497
  %v3542 = vpop.f32.mrf.mxu0
  %v3543 = vadd.f32 %v2277, %v3542
  %3544 = vmatmul.f32.gmra.mxu0 %v3500
  %v3545 = vpop.f32.mrf.mxu0
  %v3546 = vadd.f32 %v2277, %v3545
  %3547 = vdwg.mxu0
  %3548 = vmatpush.msra.mxu0 0.0
  %3549 = vmatpush.msra.mxu0 0.0
  %3550 = vmatpush.msra.mxu0 0.0
  %3551 = vmatpush.msra.mxu0 0.0
  %3552 = vmatpush.msra.mxu0 0.0
  %3553 = vmatpush.msra.mxu0 0.0
  %3554 = vmatpush.msra.mxu0 0.0
  %3555 = vmatpush.msra.mxu0 0.0
  %3556 = vmatpush.msra.mxu0 0.0
  %3557 = vmatpush.msra.mxu0 0.0
  %3558 = vmatpush.msra.mxu0 0.0
  %3559 = vmatpush.msra.mxu0 0.0
  %3560 = vmatpush.msra.mxu0 0.0
  %3561 = vmatpush.msra.mxu0 0.0
  %3562 = vmatpush.msra.mxu0 %v2243
  %3563 = vmatpush.msra.mxu0 %v2242
  %3564 = vmatmul.f32.gmra.mxu0 %v3497
  %v3565 = vpop.f32.mrf.mxu0
  %v3566 = vadd.f32 %v2303, %v3565
  %3567 = vmatmul.f32.gmra.mxu0 %v3500
  %v3568 = vpop.f32.mrf.mxu0
  %v3569 = vadd.f32 %v2303, %v3568
  %3570 = vdwg.mxu0
  %s3571 = scalar_lea.vmem [#allocation2], 112
  %v3572 = vld [vmem:[%s3571] sm:$0xff]
  %v3573 = vld [vmem:[%s3571 + $0x8] sm:$0xff]
  %v3574 = vadd.f32 %v3572, %v3520
  %v3575 = vadd.f32 %v3573, %v3523
  %v3576 = vxor.u32 %v3574, 2147483648
  %v3577 = vxor.u32 %v3575, 2147483648
  %v3578 = vmul.f32 %v3576, 1.442695
  %v3579 = vpow.pop %v3578
  %v3580 = vmul.f32 %v3577, 1.442695
  %v3581 = vpow.pop %v3580
  %v3582 = vadd.f32 %v3579, 1.0
  %v3583 = vadd.f32 %v3581, 1.0
  %v3584 = vrcp.pop %v3582
  %v3585 = vmul.f32 %v3582, %v3584
  %v3586 = vsub.f32 1.0, %v3585
  %v3587 = vmul.f32 %v3584, %v3586
  %v3588 = vadd.f32 %v3584, %v3587
  %vm3589 = vweird.f32 %v3582
  %vm3590 = vweird.f32 %v3584
  %vm3591 = vmor %vm3589, %vm3590
  %v3592 = vsel %vm3591, %v3584, %v3588
  %v3593 = vand.u32 2147483647, %v3582
  %vm3594 = vcmp.eq.f32.partialorder %v3593, 8.507059e+37
  %v3595 = vand.u32 %v3582, 2147483648
  %v3596 = vor.u32 1.1754944e-38, %v3595
  %v3597 = vsel %vm3594, %v3596, %v3592
  %v3598 = vmul.f32 1.0, %v3597
  %v3599 = vrcp.pop %v3583
  %v3600 = vmul.f32 %v3583, %v3599
  %v3601 = vsub.f32 1.0, %v3600
  %v3602 = vmul.f32 %v3599, %v3601
  %v3603 = vadd.f32 %v3599, %v3602
  %vm3604 = vweird.f32 %v3583
  %vm3605 = vweird.f32 %v3599
  %vm3606 = vmor %vm3604, %vm3605
  %v3607 = vsel %vm3606, %v3599, %v3603
  %v3608 = vand.u32 2147483647, %v3583
  %vm3609 = vcmp.eq.f32.partialorder %v3608, 8.507059e+37
  %v3610 = vand.u32 %v3583, 2147483648
  %v3611 = vor.u32 1.1754944e-38, %v3610
  %v3612 = vsel %vm3609, %v3611, %v3607
  %v3613 = vmul.f32 1.0, %v3612
  %s3614 = scalar_lea.vmem [#allocation3], 112
  %v3615 = vld [vmem:[%s3614] sm:$0xff]
  %v3616 = vld [vmem:[%s3614 + $0x8] sm:$0xff]
  %v3617 = vadd.f32 %v3615, %v3543
  %v3618 = vadd.f32 %v3616, %v3546
  %v3619 = vxor.u32 %v3617, 2147483648
  %v3620 = vxor.u32 %v3618, 2147483648
  %v3621 = vmul.f32 %v3619, 1.442695
  %v3622 = vpow.pop %v3621
  %v3623 = vmul.f32 %v3620, 1.442695
  %v3624 = vpow.pop %v3623
  %v3625 = vadd.f32 %v3622, 1.0
  %v3626 = vadd.f32 %v3624, 1.0
  %v3627 = vrcp.pop %v3625
  %v3628 = vmul.f32 %v3625, %v3627
  %v3629 = vsub.f32 1.0, %v3628
  %v3630 = vmul.f32 %v3627, %v3629
  %v3631 = vadd.f32 %v3627, %v3630
  %vm3632 = vweird.f32 %v3625
  %vm3633 = vweird.f32 %v3627
  %vm3634 = vmor %vm3632, %vm3633
  %v3635 = vsel %vm3634, %v3627, %v3631
  %v3636 = vand.u32 2147483647, %v3625
  %vm3637 = vcmp.eq.f32.partialorder %v3636, 8.507059e+37
  %v3638 = vand.u32 %v3625, 2147483648
  %v3639 = vor.u32 1.1754944e-38, %v3638
  %v3640 = vsel %vm3637, %v3639, %v3635
  %v3641 = vmul.f32 1.0, %v3640
  %v3642 = vrcp.pop %v3626
  %v3643 = vmul.f32 %v3626, %v3642
  %v3644 = vsub.f32 1.0, %v3643
  %v3645 = vmul.f32 %v3642, %v3644
  %v3646 = vadd.f32 %v3642, %v3645
  %vm3647 = vweird.f32 %v3626
  %vm3648 = vweird.f32 %v3642
  %vm3649 = vmor %vm3647, %vm3648
  %v3650 = vsel %vm3649, %v3642, %v3646
  %v3651 = vand.u32 2147483647, %v3626
  %vm3652 = vcmp.eq.f32.partialorder %v3651, 8.507059e+37
  %v3653 = vand.u32 %v3626, 2147483648
  %v3654 = vor.u32 1.1754944e-38, %v3653
  %v3655 = vsel %vm3652, %v3654, %v3650
  %v3656 = vmul.f32 1.0, %v3655
  %s3657 = scalar_lea.vmem [#allocation4], 112
  %v3658 = vld [vmem:[%s3657] sm:$0xff]
  %v3659 = vld [vmem:[%s3657 + $0x8] sm:$0xff]
  %v3660 = vmul.f32 %v3598, %v3566
  %v3661 = vmul.f32 %v3613, %v3569
  %v3662 = vadd.f32 %v3658, %v3660
  %v3663 = vadd.f32 %v3659, %v3661
  %v3664 = vtanh.pop %v3662
  %v3665 = vtanh.pop %v3663
  %v3666 = vsub.f32 1.0, %v3641
  %v3667 = vsub.f32 1.0, %v3656
  %v3668 = vmul.f32 %v3666, %v3664
  %v3669 = vmul.f32 %v3667, %v3665
  %v3670 = vmul.f32 %v3641, %v3494
  %v3671 = vmul.f32 %v3656, %v3495
  %v3672 = vadd.f32 %v3668, %v3670
  %v3673 = vadd.f32 %v3669, %v3671
  %3674 = vst.msk [vmem:[%s16] sm:$0xff] %vm857, %v3672
  %3675 = vst.msk [vmem:[%s16 + $0x8] sm:$0xff] %vm857, %v3673
  // Predicated region
  $region66: #{hsdgnn_forward.7} parent=0 // pred_check
    _
  $region67: #{hsdgnn_forward.7} parent=0 // pred_check_branch
    %3677 = sbr.rel (0) target = $region69
  $region68: #{hsdgnn_forward.7} parent=0 // pred_region
    _
  $region69: #{hsdgnn_forward.7} parent=0 // pred_fallthru
    _
  // Predicated region
  $region70: #{hsdgnn_forward.7} parent=0 // pred_check
    _
  $region71: #{hsdgnn_forward.7} parent=0 // pred_check_branch
    %3679 = sbr.rel (0) target = $region73
  $region72: #{hsdgnn_forward.7} parent=0 // pred_region
    _
  $region73: #{hsdgnn_forward.7} parent=0 // pred_fallthru
    _

</llo_original>
